<compile_context>
chip_gen: v7x
topology: tpu7x:2x2x1
jax: 0.10.0
libtpu: 0.0.40
codegen_flags: <defaults>
</compile_context>

<pallas_src>
import math
import jax
import jax.numpy as jnp
from jax import lax
from jax.experimental import pallas as pl
from jax.experimental.pallas import tpu as pltpu


def _round_up(x, m):
    return ((x + m - 1) // m) * m


# PyTorch packs gates as (i, f, g, o); we repack to (i, f, o, g) so the three
# sigmoid gates are contiguous (one wide EUP sigmoid) and tanh is last.
_GATE_PERM = (0, 1, 3, 2)

_STATIC_UNROLL_MAX_STEPS = 8   # fully unroll the wavefront below this length


# ----------------------------------------------------------------------------
# Fused kernel: all LSTM layers (wavefront schedule) + Linear + ReLU.
# ----------------------------------------------------------------------------
def _make_model_kernel(T, Bp, Hp, L, use_static, compute_dtype):
    S = T + L - 1          # number of wavefront steps
    cdt = compute_dtype    # MXU operand dtype (f32 or bf16); accum stays f32

    def kernel(*refs):
        if L > 1:
            (x_ref, wih0_ref, wihr_ref, whh_ref, b_ref, wfc_ref, bfc_ref,
             out_ref, gates_scr, hs_ref) = refs
        else:
            (x_ref, wih0_ref, whh_ref, b_ref, wfc_ref, bfc_ref,
             out_ref, gates_scr, hs_ref) = refs
            wihr_ref = None

        # --- Hoisted layer-0 input projection for ALL timesteps -----------
        # One big MXU matmul (M = T*Bp) with the bias folded in once; nothing
        # but the recurrent dot remains on layer 0's serial path.
        gates_scr[...] = (
            jnp.dot(x_ref[...].astype(cdt), wih0_ref[...],
                    preferred_element_type=jnp.float32) + b_ref[0])

        def row_of(t):
            r = t * Bp
            return r if isinstance(r, int) else pl.multiple_of(r, Bp)

        def cell(l, row, h_below, h_prev, c_prev):
            """One LSTM cell update for layer l at flat row offset `row`."""
            rec = jnp.dot(h_prev.astype(cdt), whh_ref[l],
                          preferred_element_type=jnp.float32)
            if l == 0:
                g = gates_scr[pl.ds(row, Bp), :] + rec
            else:
                g = (jnp.dot(h_below.astype(cdt), wihr_ref[l - 1],
                             preferred_element_type=jnp.float32)
                     + rec + b_ref[l])
            # Packed gate order (i, f, o, g): one wide sigmoid + one tanh.
            sig = jax.nn.sigmoid(g[:, 0:3 * Hp])
            i_g = sig[:, 0 * Hp:1 * Hp]
            f_g = sig[:, 1 * Hp:2 * Hp]
            o_g = sig[:, 2 * Hp:3 * Hp]
            g_g = jnp.tanh(g[:, 3 * Hp:4 * Hp])
            c_new = f_g * c_prev + i_g * g_g
            h_new = o_g * jnp.tanh(c_new)
            return h_new, c_new

        def wavefront_step(s, h_old, c_old, active):
            """Run every layer in `active` at wavefront step s.  All reads
            come from the OLD carry, so the per-layer chains stay independent
            within the step and can interleave in the same bundles."""
            h_new = list(h_old)
            c_new = list(c_old)
            for l in active:
                row = row_of(s - l)
                h_below = h_old[l - 1] if l > 0 else None
                hn, cn = cell(l, row, h_below, h_old[l], c_old[l])
                h_new[l] = hn
                c_new[l] = cn
                if l == L - 1:                 # stash last layer's h_t for FC
                    hs_ref[pl.ds(row, Bp), :] = hn
            return h_new, c_new

        zeros = jnp.zeros((Bp, Hp), jnp.float32)
        h_list = [zeros] * L
        c_list = [zeros] * L

        if use_static:
            # Short sequences: fully static wavefront (static activity sets).
            for s in range(S):
                active = [l for l in range(L) if 0 <= s - l <= T - 1]
                h_list, c_list = wavefront_step(s, h_list, c_list, active)
        else:
            # Phase A: ramp-up (< L static steps): layers 0..s active.
            for s in range(L - 1):
                h_list, c_list = wavefront_step(s, h_list, c_list,
                                                list(range(s + 1)))

            # Phase B: steady state — all L layers active every step.
            def body(s, carry):
                h_tup, c_tup = carry
                hn, cn = wavefront_step(s, list(h_tup), list(c_tup),
                                        list(range(L)))
                return tuple(hn), tuple(cn)

            n_steady = T - (L - 1)
            carry = lax.fori_loop(L - 1, T, body,
                                  (tuple(h_list), tuple(c_list)),
                                  unroll=min(8, max(n_steady, 1)))
            h_list, c_list = list(carry[0]), list(carry[1])

            # Phase C: ramp-down (< L static steps).
            for s in range(T, S):
                h_list, c_list = wavefront_step(s, h_list, c_list,
                                                list(range(s - T + 1, L)))

        # --- Fused Linear + ReLU epilogue over the whole hidden sequence ---
        y = jnp.dot(hs_ref[...].astype(cdt), wfc_ref[...],
                    preferred_element_type=jnp.float32) + bfc_ref[...]
        out_ref[...] = jnp.maximum(y, 0.0)

    return kernel


# ----------------------------------------------------------------------------
# Model wrapper: layout/padding plumbing around the fused kernel.
# ----------------------------------------------------------------------------
def lstm_model_forward(params, x_btd, weights_dtype=jnp.float32):
    """x_btd: [B, T, input_dim] -> [B, T, output_dim] (matches PyTorch)."""
    lstm_params = params["lstm"]
    w_fc, b_fc = params["fc"]
    L = len(lstm_params)
    B, T, D = x_btd.shape
    H = lstm_params[0][1].shape[1]            # w_hh: (4H, H)
    O = w_fc.shape[0]

    Bp = _round_up(B, 8)                      # fill vreg sublanes
    Hp = _round_up(H, 128)                    # lane-align each gate block
    Op = _round_up(O, 128)                    # lane-dense FC output
    N = T * Bp
    wdt = weights_dtype

    # Time-major, batch-padded, flattened to [T*Bp, D] (row = t*Bp + b).
    x_tbd = jnp.transpose(x_btd.astype(jnp.float32), (1, 0, 2))
    x_pad = jnp.pad(x_tbd, ((0, 0), (0, Bp - B), (0, 0)))
    x2d = x_pad.reshape(N, D)

    def gate_pack(w_t):     # (in, 4H) -> (in, 4*Hp): reorder (i,f,o,g) + pad
        in_d = w_t.shape[0]
        w4 = w_t.reshape(in_d, 4, H)[:, _GATE_PERM, :]
        w4 = jnp.pad(w4, ((0, 0), (0, 0), (0, Hp - H)))
        return w4.reshape(in_d, 4 * Hp)

    def pad_rows(w):        # (H, X) -> (Hp, X)
        return jnp.pad(w, ((0, Hp - H), (0, 0)))

    wih_list, whh_list, b_list = [], [], []
    for (w_ih, w_hh, b_ih, b_hh) in lstm_params:
        wih_list.append(gate_pack(jnp.transpose(w_ih)))             # (in, 4Hp)
        whh_list.append(pad_rows(gate_pack(jnp.transpose(w_hh))))   # (Hp, 4Hp)
        b_list.append(gate_pack((b_ih + b_hh)[None, :]))            # (1, 4Hp)

    wih0 = wih_list[0].astype(wdt)                                  # (D, 4Hp)
    whh = jnp.stack(whh_list).astype(wdt)                           # (L, Hp, 4Hp)
    bias = jnp.stack(b_list)                                        # (L, 1, 4Hp) f32
    wfc = jnp.pad(jnp.transpose(w_fc),
                  ((0, Hp - H), (0, Op - O))).astype(wdt)           # (Hp, Op)
    bfc = jnp.pad(b_fc, (0, Op - O))[None, :]                       # (1, Op)  f32

    in_specs = [
        pl.BlockSpec((N, D), lambda: (0, 0)),
        pl.BlockSpec((D, 4 * Hp), lambda: (0, 0)),
    ]
    args = [x2d, wih0]
    if L > 1:
        wihr = jnp.stack([pad_rows(w) for w in wih_list[1:]]).astype(wdt)
        in_specs.append(pl.BlockSpec((L - 1, Hp, 4 * Hp), lambda: (0, 0, 0)))
        args.append(wihr)                                           # (L-1, Hp, 4Hp)
    in_specs += [
        pl.BlockSpec((L, Hp, 4 * Hp), lambda: (0, 0, 0)),
        pl.BlockSpec((L, 1, 4 * Hp), lambda: (0, 0, 0)),
        pl.BlockSpec((Hp, Op), lambda: (0, 0)),
        pl.BlockSpec((1, Op), lambda: (0, 0)),
    ]
    args += [whh, bias, wfc, bfc]

    use_static = (T + L - 1 <= _STATIC_UNROLL_MAX_STEPS) or (T < L)

    # VMEM budget: operands + output + scratch, with generous headroom.
    arg_bytes = sum(int(a.size) * a.dtype.itemsize for a in args)
    scratch_bytes = (N * 4 * Hp + N * Hp) * 4
    out_bytes = N * Op * 4
    vmem_limit = int(min(max(2 * (arg_bytes + scratch_bytes + out_bytes)
                             + (4 << 20), 32 << 20), 128 << 20))

    out2d = pl.pallas_call(
        _make_model_kernel(T, Bp, Hp, L, use_static, wdt),
        out_shape=jax.ShapeDtypeStruct((N, Op), jnp.float32),
        in_specs=in_specs,
        out_specs=pl.BlockSpec((N, Op), lambda: (0, 0)),
        scratch_shapes=[
            pltpu.VMEM((N, 4 * Hp), jnp.float32),   # hoisted layer-0 gates_x
            pltpu.VMEM((N, Hp), jnp.float32),       # last-layer hidden sequence
        ],
        compiler_params=pltpu.CompilerParams(vmem_limit_bytes=vmem_limit),
    )(*args)

    out = out2d.reshape(T, Bp, Op)[:, :B, :O]        # drop batch/output padding
    return jnp.transpose(out, (1, 0, 2))             # [B, T, O]


# ----------------------------------------------------------------------------
# Parameter init (mimics PyTorch uniform(-1/sqrt(H), 1/sqrt(H)))
# ----------------------------------------------------------------------------
def init_params(key, input_dim, hidden_dim, layer_dim, output_dim):
    params = {"lstm": [], "fc": None}
    k = 1.0 / math.sqrt(hidden_dim)
    for layer in range(layer_dim):
        in_d = input_dim if layer == 0 else hidden_dim
        key, k1, k2, k3, k4 = jax.random.split(key, 5)
        w_ih = jax.random.uniform(k1, (4 * hidden_dim, in_d), jnp.float32, -k, k)
        w_hh = jax.random.uniform(k2, (4 * hidden_dim, hidden_dim), jnp.float32, -k, k)
        b_ih = jax.random.uniform(k3, (4 * hidden_dim,), jnp.float32, -k, k)
        b_hh = jax.random.uniform(k4, (4 * hidden_dim,), jnp.float32, -k, k)
        params["lstm"].append((w_ih, w_hh, b_ih, b_hh))
    key, k1, k2 = jax.random.split(key, 3)
    w_fc = jax.random.uniform(k1, (output_dim, hidden_dim), jnp.float32, -k, k)
    b_fc = jax.random.uniform(k2, (output_dim,), jnp.float32, -k, k)
    params["fc"] = (w_fc, b_fc)
    return params


# ----------------------------------------------------------------------------
# Pure-JAX reference for validation (PyTorch gate order i, f, g, o)
# ----------------------------------------------------------------------------
def reference_forward(params, x_btd):
    B, T, _ = x_btd.shape
    h_seq = x_btd.astype(jnp.float32)
    for (w_ih, w_hh, b_ih, b_hh) in params["lstm"]:
        H = w_hh.shape[1]
        h = jnp.zeros((B, H), jnp.float32)
        c = jnp.zeros((B, H), jnp.float32)
        outs = []
        for t in range(T):
            g = h_seq[:, t, :] @ w_ih.T + b_ih + h @ w_hh.T + b_hh
            i = jax.nn.sigmoid(g[:, 0 * H:1 * H])
            f = jax.nn.sigmoid(g[:, 1 * H:2 * H])
            gg = jnp.tanh(g[:, 2 * H:3 * H])
            o = jax.nn.sigmoid(g[:, 3 * H:4 * H])
            c = f * c + i * gg
            h = o * jnp.tanh(c)
            outs.append(h)
        h_seq = jnp.stack(outs, axis=1)
    w_fc, b_fc = params["fc"]
    out = h_seq @ w_fc.T + b_fc
    return jnp.maximum(out, 0.0)


if __name__ == "__main__":
    configs = [
        # (B,  T,  D,  H, L, O, weights_dtype, atol,  rtol)
        (2,  8, 16, 32, 2, 4, jnp.float32,  1e-4, 1e-4),  # phased wavefront, 2 layers
        (2,  8, 16, 32, 2, 4, jnp.bfloat16, 3e-2, 3e-2),  # bf16 weights (v6e/v7x path)
        (3, 12,  8, 20, 1, 5, jnp.float32,  1e-4, 1e-4),  # single layer, phased loop
        (3,  5,  8, 20, 3, 5, jnp.float32,  1e-4, 1e-4),  # deep stack, static wavefront
    ]

    key = jax.random.PRNGKey(0)
    for (B, T, D, H, L, O, wdt, atol, rtol) in configs:
        key, pk, xk = jax.random.split(key, 3)
        x = jax.random.normal(xk, (B, T, D), jnp.float32)
        params = init_params(pk, D, H, L, O)

        out = jax.block_until_ready(lstm_model_forward(params, x, wdt))
        ref = reference_forward(params, x)

        assert out.shape == (B, T, O), out.shape
        err = float(jnp.max(jnp.abs(out - ref)))
        assert jnp.allclose(out, ref, atol=atol, rtol=rtol), (
            f"config B={B} T={T} H={H} L={L} dtype={wdt}: max err {err}")

    print("KERNEL_OK")
</pallas_src>

<mosaic_0001>
module attributes {stable_mosaic.version = 11 : i64} {
  func.func @kernel(%arg0: memref<64x16xf32, #tpu.memory_space<vmem>>, %arg1: memref<16x512xf32, #tpu.memory_space<vmem>>, %arg2: memref<1x128x512xf32, #tpu.memory_space<vmem>>, %arg3: memref<2x128x512xf32, #tpu.memory_space<vmem>>, %arg4: memref<2x1x512xf32, #tpu.memory_space<vmem>>, %arg5: memref<128x128xf32, #tpu.memory_space<vmem>>, %arg6: memref<1x128xf32, #tpu.memory_space<vmem>>, %arg7: memref<64x128xf32, #tpu.memory_space<vmem>>, %arg8: memref<64x512xf32, #tpu.memory_space<vmem>>, %arg9: memref<64x128xf32, #tpu.memory_space<vmem>>) attributes {dimension_semantics = [], scalar_prefetch = 0 : i64, scratch_operands = 2 : i64, tpu.core_type = #tpu.core_type<tc>} {
    %c0 = arith.constant 0 : index
    %c0_0 = arith.constant 0 : index
    %0 = vector.load %arg0[%c0, %c0_0] : memref<64x16xf32, #tpu.memory_space<vmem>>, vector<64x16xf32>
    %c0_1 = arith.constant 0 : index
    %c0_2 = arith.constant 0 : index
    %1 = vector.load %arg1[%c0_1, %c0_2] : memref<16x512xf32, #tpu.memory_space<vmem>>, vector<16x512xf32>
    %cst = arith.constant dense<0.000000e+00> : vector<64x512xf32>
    %2 = tpu.matmul %0, %1, %cst {dimension_numbers = #tpu.dot_dimension_numbers<[1], [0], [0], [1], [0, 0, 1, 1], [], []>} : vector<64x16xf32>, vector<16x512xf32>, vector<64x512xf32> -> vector<64x512xf32>
    %c0_3 = arith.constant 0 : index
    %c0_4 = arith.constant 0 : index
    %c0_5 = arith.constant 0 : index
    %3 = vector.load %arg4[%c0_3, %c0_4, %c0_5] : memref<2x1x512xf32, #tpu.memory_space<vmem>>, vector<1x1x512xf32>
    %4 = vector.shape_cast %3 : vector<1x1x512xf32> to vector<1x512xf32>
    %5 = vector.broadcast %4 : vector<1x512xf32> to vector<64x512xf32>
    %6 = arith.addf %2, %5 : vector<64x512xf32>
    %c0_6 = arith.constant 0 : index
    %c0_7 = arith.constant 0 : index
    %7 = vector.load %arg8[%c0_6, %c0_7] : memref<64x512xf32, #tpu.memory_space<vmem>>, vector<64x512xf32>
    tpu.vector_store %arg8[%c0_6, %c0_7], %6 {strides = array<i32>} : memref<64x512xf32, #tpu.memory_space<vmem>>, vector<64x512xf32>,
    %cst_8 = arith.constant 0.000000e+00 : f32
    %8 = vector.broadcast %cst_8 : f32 to vector<8x128xf32>
    %c0_9 = arith.constant 0 : index
    %c0_10 = arith.constant 0 : index
    %c0_11 = arith.constant 0 : index
    %9 = vector.load %arg3[%c0_9, %c0_10, %c0_11] : memref<2x128x512xf32, #tpu.memory_space<vmem>>, vector<1x128x512xf32>
    %10 = vector.shape_cast %9 : vector<1x128x512xf32> to vector<128x512xf32>
    %cst_12 = arith.constant dense<0.000000e+00> : vector<8x512xf32>
    %11 = tpu.matmul %8, %10, %cst_12 {dimension_numbers = #tpu.dot_dimension_numbers<[1], [0], [0], [1], [0, 0, 1, 1], [], []>} : vector<8x128xf32>, vector<128x512xf32>, vector<8x512xf32> -> vector<8x512xf32>
    %c0_13 = arith.constant 0 : index
    %c0_14 = arith.constant 0 : index
    %12 = vector.load %arg8[%c0_13, %c0_14] : memref<64x512xf32, #tpu.memory_space<vmem>>, vector<8x512xf32>
    %13 = arith.addf %12, %11 : vector<8x512xf32>
    %14 = vector.extract_strided_slice %13 {offsets = [0, 0], sizes = [8, 384], strides = [1, 1]} : vector<8x512xf32> to vector<8x384xf32>
    %15 = arith.negf %14 : vector<8x384xf32>
    %16 = math.exp %15 : vector<8x384xf32>
    %cst_15 = arith.constant 1.000000e+00 : f32
    %17 = vector.broadcast %cst_15 : f32 to vector<8x384xf32>
    %18 = arith.addf %17, %16 : vector<8x384xf32>
    %19 = arith.divf %17, %18 : vector<8x384xf32>
    %20 = vector.extract_strided_slice %19 {offsets = [0, 0], sizes = [8, 128], strides = [1, 1]} : vector<8x384xf32> to vector<8x128xf32>
    %21 = vector.extract_strided_slice %19 {offsets = [0, 128], sizes = [8, 128], strides = [1, 1]} : vector<8x384xf32> to vector<8x128xf32>
    %22 = vector.extract_strided_slice %19 {offsets = [0, 256], sizes = [8, 128], strides = [1, 1]} : vector<8x384xf32> to vector<8x128xf32>
    %23 = vector.extract_strided_slice %13 {offsets = [0, 384], sizes = [8, 128], strides = [1, 1]} : vector<8x512xf32> to vector<8x128xf32>
    %24 = math.tanh %23 : vector<8x128xf32>
    %25 = arith.mulf %21, %8 : vector<8x128xf32>
    %26 = arith.mulf %20, %24 : vector<8x128xf32>
    %27 = arith.addf %25, %26 : vector<8x128xf32>
    %28 = math.tanh %27 : vector<8x128xf32>
    %29 = arith.mulf %22, %28 : vector<8x128xf32>
    %c1_i32 = arith.constant 1 : i32
    %c0_i32 = arith.constant 0 : i32
    %30 = arith.subi %c1_i32, %c0_i32 : i32
    %c8_i32 = arith.constant 8 : i32
    %31 = arith.muli %30, %c8_i32 : i32
    %32 = tpu.assume_multiple %31, 8 : i32
    %c0_16 = arith.constant 0 : index
    %c0_17 = arith.constant 0 : index
    %c0_18 = arith.constant 0 : index
    %33 = vector.load %arg3[%c0_16, %c0_17, %c0_18] : memref<2x128x512xf32, #tpu.memory_space<vmem>>, vector<1x128x512xf32>
    %34 = vector.shape_cast %33 : vector<1x128x512xf32> to vector<128x512xf32>
    %cst_19 = arith.constant dense<0.000000e+00> : vector<8x512xf32>
    %35 = tpu.matmul %29, %34, %cst_19 {dimension_numbers = #tpu.dot_dimension_numbers<[1], [0], [0], [1], [0, 0, 1, 1], [], []>} : vector<8x128xf32>, vector<128x512xf32>, vector<8x512xf32> -> vector<8x512xf32>
    %36 = arith.index_cast %32 : i32 to index
    %c0_20 = arith.constant 0 : index
    %37 = vector.load %arg8[%36, %c0_20] : memref<64x512xf32, #tpu.memory_space<vmem>>, vector<8x512xf32>
    %38 = arith.addf %37, %35 : vector<8x512xf32>
    %39 = vector.extract_strided_slice %38 {offsets = [0, 0], sizes = [8, 384], strides = [1, 1]} : vector<8x512xf32> to vector<8x384xf32>
    %40 = arith.negf %39 : vector<8x384xf32>
    %41 = math.exp %40 : vector<8x384xf32>
    %cst_21 = arith.constant 1.000000e+00 : f32
    %42 = vector.broadcast %cst_21 : f32 to vector<8x384xf32>
    %43 = arith.addf %42, %41 : vector<8x384xf32>
    %44 = arith.divf %42, %43 : vector<8x384xf32>
    %45 = vector.extract_strided_slice %44 {offsets = [0, 0], sizes = [8, 128], strides = [1, 1]} : vector<8x384xf32> to vector<8x128xf32>
    %46 = vector.extract_strided_slice %44 {offsets = [0, 128], sizes = [8, 128], strides = [1, 1]} : vector<8x384xf32> to vector<8x128xf32>
    %47 = vector.extract_strided_slice %44 {offsets = [0, 256], sizes = [8, 128], strides = [1, 1]} : vector<8x384xf32> to vector<8x128xf32>
    %48 = vector.extract_strided_slice %38 {offsets = [0, 384], sizes = [8, 128], strides = [1, 1]} : vector<8x512xf32> to vector<8x128xf32>
    %49 = math.tanh %48 : vector<8x128xf32>
    %50 = arith.mulf %46, %27 : vector<8x128xf32>
    %51 = arith.mulf %45, %49 : vector<8x128xf32>
    %52 = arith.addf %50, %51 : vector<8x128xf32>
    %53 = math.tanh %52 : vector<8x128xf32>
    %54 = arith.mulf %47, %53 : vector<8x128xf32>
    %c1_i32_22 = arith.constant 1 : i32
    %55 = arith.subi %c1_i32, %c1_i32_22 : i32
    %c8_i32_23 = arith.constant 8 : i32
    %56 = arith.muli %55, %c8_i32_23 : i32
    %57 = tpu.assume_multiple %56, 8 : i32
    %c1 = arith.constant 1 : index
    %c0_24 = arith.constant 0 : index
    %c0_25 = arith.constant 0 : index
    %58 = vector.load %arg3[%c1, %c0_24, %c0_25] : memref<2x128x512xf32, #tpu.memory_space<vmem>>, vector<1x128x512xf32>
    %59 = vector.shape_cast %58 : vector<1x128x512xf32> to vector<128x512xf32>
    %cst_26 = arith.constant dense<0.000000e+00> : vector<8x512xf32>
    %60 = tpu.matmul %8, %59, %cst_26 {dimension_numbers = #tpu.dot_dimension_numbers<[1], [0], [0], [1], [0, 0, 1, 1], [], []>} : vector<8x128xf32>, vector<128x512xf32>, vector<8x512xf32> -> vector<8x512xf32>
    %c0_27 = arith.constant 0 : index
    %c0_28 = arith.constant 0 : index
    %c0_29 = arith.constant 0 : index
    %61 = vector.load %arg2[%c0_27, %c0_28, %c0_29] : memref<1x128x512xf32, #tpu.memory_space<vmem>>, vector<1x128x512xf32>
    %62 = vector.shape_cast %61 : vector<1x128x512xf32> to vector<128x512xf32>
    %cst_30 = arith.constant dense<0.000000e+00> : vector<8x512xf32>
    %63 = tpu.matmul %29, %62, %cst_30 {dimension_numbers = #tpu.dot_dimension_numbers<[1], [0], [0], [1], [0, 0, 1, 1], [], []>} : vector<8x128xf32>, vector<128x512xf32>, vector<8x512xf32> -> vector<8x512xf32>
    %64 = arith.addf %63, %60 : vector<8x512xf32>
    %c1_31 = arith.constant 1 : index
    %c0_32 = arith.constant 0 : index
    %c0_33 = arith.constant 0 : index
    %65 = vector.load %arg4[%c1_31, %c0_32, %c0_33] : memref<2x1x512xf32, #tpu.memory_space<vmem>>, vector<1x1x512xf32>
    %66 = vector.shape_cast %65 : vector<1x1x512xf32> to vector<1x512xf32>
    %67 = vector.broadcast %66 : vector<1x512xf32> to vector<8x512xf32>
    %68 = arith.addf %64, %67 : vector<8x512xf32>
    %69 = vector.extract_strided_slice %68 {offsets = [0, 0], sizes = [8, 384], strides = [1, 1]} : vector<8x512xf32> to vector<8x384xf32>
    %70 = arith.negf %69 : vector<8x384xf32>
    %71 = math.exp %70 : vector<8x384xf32>
    %cst_34 = arith.constant 1.000000e+00 : f32
    %72 = vector.broadcast %cst_34 : f32 to vector<8x384xf32>
    %73 = arith.addf %72, %71 : vector<8x384xf32>
    %74 = arith.divf %72, %73 : vector<8x384xf32>
    %75 = vector.extract_strided_slice %74 {offsets = [0, 0], sizes = [8, 128], strides = [1, 1]} : vector<8x384xf32> to vector<8x128xf32>
    %76 = vector.extract_strided_slice %74 {offsets = [0, 128], sizes = [8, 128], strides = [1, 1]} : vector<8x384xf32> to vector<8x128xf32>
    %77 = vector.extract_strided_slice %74 {offsets = [0, 256], sizes = [8, 128], strides = [1, 1]} : vector<8x384xf32> to vector<8x128xf32>
    %78 = vector.extract_strided_slice %68 {offsets = [0, 384], sizes = [8, 128], strides = [1, 1]} : vector<8x512xf32> to vector<8x128xf32>
    %79 = math.tanh %78 : vector<8x128xf32>
    %80 = arith.mulf %76, %8 : vector<8x128xf32>
    %81 = arith.mulf %75, %79 : vector<8x128xf32>
    %82 = arith.addf %80, %81 : vector<8x128xf32>
    %83 = math.tanh %82 : vector<8x128xf32>
    %84 = arith.mulf %77, %83 : vector<8x128xf32>
    %85 = arith.index_cast %57 : i32 to index
    %c0_35 = arith.constant 0 : index
    %86 = vector.load %arg9[%85, %c0_35] : memref<64x128xf32, #tpu.memory_space<vmem>>, vector<8x128xf32>
    tpu.vector_store %arg9[%85, %c0_35], %84 {strides = array<i32>} : memref<64x128xf32, #tpu.memory_space<vmem>>, vector<8x128xf32>,
    %c2_i32 = arith.constant 2 : i32
    %c0_i32_36 = arith.constant 0 : i32
    %87 = arith.subi %c2_i32, %c0_i32_36 : i32
    %c8_i32_37 = arith.constant 8 : i32
    %88 = arith.muli %87, %c8_i32_37 : i32
    %89 = tpu.assume_multiple %88, 8 : i32
    %c0_38 = arith.constant 0 : index
    %c0_39 = arith.constant 0 : index
    %c0_40 = arith.constant 0 : index
    %90 = vector.load %arg3[%c0_38, %c0_39, %c0_40] : memref<2x128x512xf32, #tpu.memory_space<vmem>>, vector<1x128x512xf32>
    %91 = vector.shape_cast %90 : vector<1x128x512xf32> to vector<128x512xf32>
    %cst_41 = arith.constant dense<0.000000e+00> : vector<8x512xf32>
    %92 = tpu.matmul %54, %91, %cst_41 {dimension_numbers = #tpu.dot_dimension_numbers<[1], [0], [0], [1], [0, 0, 1, 1], [], []>} : vector<8x128xf32>, vector<128x512xf32>, vector<8x512xf32> -> vector<8x512xf32>
    %93 = arith.index_cast %89 : i32 to index
    %c0_42 = arith.constant 0 : index
    %94 = vector.load %arg8[%93, %c0_42] : memref<64x512xf32, #tpu.memory_space<vmem>>, vector<8x512xf32>
    %95 = arith.addf %94, %92 : vector<8x512xf32>
    %96 = vector.extract_strided_slice %95 {offsets = [0, 0], sizes = [8, 384], strides = [1, 1]} : vector<8x512xf32> to vector<8x384xf32>
    %97 = arith.negf %96 : vector<8x384xf32>
    %98 = math.exp %97 : vector<8x384xf32>
    %cst_43 = arith.constant 1.000000e+00 : f32
    %99 = vector.broadcast %cst_43 : f32 to vector<8x384xf32>
    %100 = arith.addf %99, %98 : vector<8x384xf32>
    %101 = arith.divf %99, %100 : vector<8x384xf32>
    %102 = vector.extract_strided_slice %101 {offsets = [0, 0], sizes = [8, 128], strides = [1, 1]} : vector<8x384xf32> to vector<8x128xf32>
    %103 = vector.extract_strided_slice %101 {offsets = [0, 128], sizes = [8, 128], strides = [1, 1]} : vector<8x384xf32> to vector<8x128xf32>
    %104 = vector.extract_strided_slice %101 {offsets = [0, 256], sizes = [8, 128], strides = [1, 1]} : vector<8x384xf32> to vector<8x128xf32>
    %105 = vector.extract_strided_slice %95 {offsets = [0, 384], sizes = [8, 128], strides = [1, 1]} : vector<8x512xf32> to vector<8x128xf32>
    %106 = math.tanh %105 : vector<8x128xf32>
    %107 = arith.mulf %103, %52 : vector<8x128xf32>
    %108 = arith.mulf %102, %106 : vector<8x128xf32>
    %109 = arith.addf %107, %108 : vector<8x128xf32>
    %110 = math.tanh %109 : vector<8x128xf32>
    %111 = arith.mulf %104, %110 : vector<8x128xf32>
    %c1_i32_44 = arith.constant 1 : i32
    %112 = arith.subi %c2_i32, %c1_i32_44 : i32
    %c8_i32_45 = arith.constant 8 : i32
    %113 = arith.muli %112, %c8_i32_45 : i32
    %114 = tpu.assume_multiple %113, 8 : i32
    %c1_46 = arith.constant 1 : index
    %c0_47 = arith.constant 0 : index
    %c0_48 = arith.constant 0 : index
    %115 = vector.load %arg3[%c1_46, %c0_47, %c0_48] : memref<2x128x512xf32, #tpu.memory_space<vmem>>, vector<1x128x512xf32>
    %116 = vector.shape_cast %115 : vector<1x128x512xf32> to vector<128x512xf32>
    %cst_49 = arith.constant dense<0.000000e+00> : vector<8x512xf32>
    %117 = tpu.matmul %84, %116, %cst_49 {dimension_numbers = #tpu.dot_dimension_numbers<[1], [0], [0], [1], [0, 0, 1, 1], [], []>} : vector<8x128xf32>, vector<128x512xf32>, vector<8x512xf32> -> vector<8x512xf32>
    %c0_50 = arith.constant 0 : index
    %c0_51 = arith.constant 0 : index
    %c0_52 = arith.constant 0 : index
    %118 = vector.load %arg2[%c0_50, %c0_51, %c0_52] : memref<1x128x512xf32, #tpu.memory_space<vmem>>, vector<1x128x512xf32>
    %119 = vector.shape_cast %118 : vector<1x128x512xf32> to vector<128x512xf32>
    %cst_53 = arith.constant dense<0.000000e+00> : vector<8x512xf32>
    %120 = tpu.matmul %54, %119, %cst_53 {dimension_numbers = #tpu.dot_dimension_numbers<[1], [0], [0], [1], [0, 0, 1, 1], [], []>} : vector<8x128xf32>, vector<128x512xf32>, vector<8x512xf32> -> vector<8x512xf32>
    %121 = arith.addf %120, %117 : vector<8x512xf32>
    %c1_54 = arith.constant 1 : index
    %c0_55 = arith.constant 0 : index
    %c0_56 = arith.constant 0 : index
    %122 = vector.load %arg4[%c1_54, %c0_55, %c0_56] : memref<2x1x512xf32, #tpu.memory_space<vmem>>, vector<1x1x512xf32>
    %123 = vector.shape_cast %122 : vector<1x1x512xf32> to vector<1x512xf32>
    %124 = vector.broadcast %123 : vector<1x512xf32> to vector<8x512xf32>
    %125 = arith.addf %121, %124 : vector<8x512xf32>
    %126 = vector.extract_strided_slice %125 {offsets = [0, 0], sizes = [8, 384], strides = [1, 1]} : vector<8x512xf32> to vector<8x384xf32>
    %127 = arith.negf %126 : vector<8x384xf32>
    %128 = math.exp %127 : vector<8x384xf32>
    %cst_57 = arith.constant 1.000000e+00 : f32
    %129 = vector.broadcast %cst_57 : f32 to vector<8x384xf32>
    %130 = arith.addf %129, %128 : vector<8x384xf32>
    %131 = arith.divf %129, %130 : vector<8x384xf32>
    %132 = vector.extract_strided_slice %131 {offsets = [0, 0], sizes = [8, 128], strides = [1, 1]} : vector<8x384xf32> to vector<8x128xf32>
    %133 = vector.extract_strided_slice %131 {offsets = [0, 128], sizes = [8, 128], strides = [1, 1]} : vector<8x384xf32> to vector<8x128xf32>
    %134 = vector.extract_strided_slice %131 {offsets = [0, 256], sizes = [8, 128], strides = [1, 1]} : vector<8x384xf32> to vector<8x128xf32>
    %135 = vector.extract_strided_slice %125 {offsets = [0, 384], sizes = [8, 128], strides = [1, 1]} : vector<8x512xf32> to vector<8x128xf32>
    %136 = math.tanh %135 : vector<8x128xf32>
    %137 = arith.mulf %133, %82 : vector<8x128xf32>
    %138 = arith.mulf %132, %136 : vector<8x128xf32>
    %139 = arith.addf %137, %138 : vector<8x128xf32>
    %140 = math.tanh %139 : vector<8x128xf32>
    %141 = arith.mulf %134, %140 : vector<8x128xf32>
    %142 = arith.index_cast %114 : i32 to index
    %c0_58 = arith.constant 0 : index
    %143 = vector.load %arg9[%142, %c0_58] : memref<64x128xf32, #tpu.memory_space<vmem>>, vector<8x128xf32>
    tpu.vector_store %arg9[%142, %c0_58], %141 {strides = array<i32>} : memref<64x128xf32, #tpu.memory_space<vmem>>, vector<8x128xf32>,
    %c3_i32 = arith.constant 3 : i32
    %c0_i32_59 = arith.constant 0 : i32
    %144 = arith.subi %c3_i32, %c0_i32_59 : i32
    %c8_i32_60 = arith.constant 8 : i32
    %145 = arith.muli %144, %c8_i32_60 : i32
    %146 = tpu.assume_multiple %145, 8 : i32
    %c0_61 = arith.constant 0 : index
    %c0_62 = arith.constant 0 : index
    %c0_63 = arith.constant 0 : index
    %147 = vector.load %arg3[%c0_61, %c0_62, %c0_63] : memref<2x128x512xf32, #tpu.memory_space<vmem>>, vector<1x128x512xf32>
    %148 = vector.shape_cast %147 : vector<1x128x512xf32> to vector<128x512xf32>
    %cst_64 = arith.constant dense<0.000000e+00> : vector<8x512xf32>
    %149 = tpu.matmul %111, %148, %cst_64 {dimension_numbers = #tpu.dot_dimension_numbers<[1], [0], [0], [1], [0, 0, 1, 1], [], []>} : vector<8x128xf32>, vector<128x512xf32>, vector<8x512xf32> -> vector<8x512xf32>
    %150 = arith.index_cast %146 : i32 to index
    %c0_65 = arith.constant 0 : index
    %151 = vector.load %arg8[%150, %c0_65] : memref<64x512xf32, #tpu.memory_space<vmem>>, vector<8x512xf32>
    %152 = arith.addf %151, %149 : vector<8x512xf32>
    %153 = vector.extract_strided_slice %152 {offsets = [0, 0], sizes = [8, 384], strides = [1, 1]} : vector<8x512xf32> to vector<8x384xf32>
    %154 = arith.negf %153 : vector<8x384xf32>
    %155 = math.exp %154 : vector<8x384xf32>
    %cst_66 = arith.constant 1.000000e+00 : f32
    %156 = vector.broadcast %cst_66 : f32 to vector<8x384xf32>
    %157 = arith.addf %156, %155 : vector<8x384xf32>
    %158 = arith.divf %156, %157 : vector<8x384xf32>
    %159 = vector.extract_strided_slice %158 {offsets = [0, 0], sizes = [8, 128], strides = [1, 1]} : vector<8x384xf32> to vector<8x128xf32>
    %160 = vector.extract_strided_slice %158 {offsets = [0, 128], sizes = [8, 128], strides = [1, 1]} : vector<8x384xf32> to vector<8x128xf32>
    %161 = vector.extract_strided_slice %158 {offsets = [0, 256], sizes = [8, 128], strides = [1, 1]} : vector<8x384xf32> to vector<8x128xf32>
    %162 = vector.extract_strided_slice %152 {offsets = [0, 384], sizes = [8, 128], strides = [1, 1]} : vector<8x512xf32> to vector<8x128xf32>
    %163 = math.tanh %162 : vector<8x128xf32>
    %164 = arith.mulf %160, %109 : vector<8x128xf32>
    %165 = arith.mulf %159, %163 : vector<8x128xf32>
    %166 = arith.addf %164, %165 : vector<8x128xf32>
    %167 = math.tanh %166 : vector<8x128xf32>
    %168 = arith.mulf %161, %167 : vector<8x128xf32>
    %c1_i32_67 = arith.constant 1 : i32
    %169 = arith.subi %c3_i32, %c1_i32_67 : i32
    %c8_i32_68 = arith.constant 8 : i32
    %170 = arith.muli %169, %c8_i32_68 : i32
    %171 = tpu.assume_multiple %170, 8 : i32
    %c1_69 = arith.constant 1 : index
    %c0_70 = arith.constant 0 : index
    %c0_71 = arith.constant 0 : index
    %172 = vector.load %arg3[%c1_69, %c0_70, %c0_71] : memref<2x128x512xf32, #tpu.memory_space<vmem>>, vector<1x128x512xf32>
    %173 = vector.shape_cast %172 : vector<1x128x512xf32> to vector<128x512xf32>
    %cst_72 = arith.constant dense<0.000000e+00> : vector<8x512xf32>
    %174 = tpu.matmul %141, %173, %cst_72 {dimension_numbers = #tpu.dot_dimension_numbers<[1], [0], [0], [1], [0, 0, 1, 1], [], []>} : vector<8x128xf32>, vector<128x512xf32>, vector<8x512xf32> -> vector<8x512xf32>
    %c0_73 = arith.constant 0 : index
    %c0_74 = arith.constant 0 : index
    %c0_75 = arith.constant 0 : index
    %175 = vector.load %arg2[%c0_73, %c0_74, %c0_75] : memref<1x128x512xf32, #tpu.memory_space<vmem>>, vector<1x128x512xf32>
    %176 = vector.shape_cast %175 : vector<1x128x512xf32> to vector<128x512xf32>
    %cst_76 = arith.constant dense<0.000000e+00> : vector<8x512xf32>
    %177 = tpu.matmul %111, %176, %cst_76 {dimension_numbers = #tpu.dot_dimension_numbers<[1], [0], [0], [1], [0, 0, 1, 1], [], []>} : vector<8x128xf32>, vector<128x512xf32>, vector<8x512xf32> -> vector<8x512xf32>
    %178 = arith.addf %177, %174 : vector<8x512xf32>
    %c1_77 = arith.constant 1 : index
    %c0_78 = arith.constant 0 : index
    %c0_79 = arith.constant 0 : index
    %179 = vector.load %arg4[%c1_77, %c0_78, %c0_79] : memref<2x1x512xf32, #tpu.memory_space<vmem>>, vector<1x1x512xf32>
    %180 = vector.shape_cast %179 : vector<1x1x512xf32> to vector<1x512xf32>
    %181 = vector.broadcast %180 : vector<1x512xf32> to vector<8x512xf32>
    %182 = arith.addf %178, %181 : vector<8x512xf32>
    %183 = vector.extract_strided_slice %182 {offsets = [0, 0], sizes = [8, 384], strides = [1, 1]} : vector<8x512xf32> to vector<8x384xf32>
    %184 = arith.negf %183 : vector<8x384xf32>
    %185 = math.exp %184 : vector<8x384xf32>
    %cst_80 = arith.constant 1.000000e+00 : f32
    %186 = vector.broadcast %cst_80 : f32 to vector<8x384xf32>
    %187 = arith.addf %186, %185 : vector<8x384xf32>
    %188 = arith.divf %186, %187 : vector<8x384xf32>
    %189 = vector.extract_strided_slice %188 {offsets = [0, 0], sizes = [8, 128], strides = [1, 1]} : vector<8x384xf32> to vector<8x128xf32>
    %190 = vector.extract_strided_slice %188 {offsets = [0, 128], sizes = [8, 128], strides = [1, 1]} : vector<8x384xf32> to vector<8x128xf32>
    %191 = vector.extract_strided_slice %188 {offsets = [0, 256], sizes = [8, 128], strides = [1, 1]} : vector<8x384xf32> to vector<8x128xf32>
    %192 = vector.extract_strided_slice %182 {offsets = [0, 384], sizes = [8, 128], strides = [1, 1]} : vector<8x512xf32> to vector<8x128xf32>
    %193 = math.tanh %192 : vector<8x128xf32>
    %194 = arith.mulf %190, %139 : vector<8x128xf32>
    %195 = arith.mulf %189, %193 : vector<8x128xf32>
    %196 = arith.addf %194, %195 : vector<8x128xf32>
    %197 = math.tanh %196 : vector<8x128xf32>
    %198 = arith.mulf %191, %197 : vector<8x128xf32>
    %199 = arith.index_cast %171 : i32 to index
    %c0_81 = arith.constant 0 : index
    %200 = vector.load %arg9[%199, %c0_81] : memref<64x128xf32, #tpu.memory_space<vmem>>, vector<8x128xf32>
    tpu.vector_store %arg9[%199, %c0_81], %198 {strides = array<i32>} : memref<64x128xf32, #tpu.memory_space<vmem>>, vector<8x128xf32>,
    %c4_i32 = arith.constant 4 : i32
    %c0_i32_82 = arith.constant 0 : i32
    %201 = arith.subi %c4_i32, %c0_i32_82 : i32
    %c8_i32_83 = arith.constant 8 : i32
    %202 = arith.muli %201, %c8_i32_83 : i32
    %203 = tpu.assume_multiple %202, 8 : i32
    %c0_84 = arith.constant 0 : index
    %c0_85 = arith.constant 0 : index
    %c0_86 = arith.constant 0 : index
    %204 = vector.load %arg3[%c0_84, %c0_85, %c0_86] : memref<2x128x512xf32, #tpu.memory_space<vmem>>, vector<1x128x512xf32>
    %205 = vector.shape_cast %204 : vector<1x128x512xf32> to vector<128x512xf32>
    %cst_87 = arith.constant dense<0.000000e+00> : vector<8x512xf32>
    %206 = tpu.matmul %168, %205, %cst_87 {dimension_numbers = #tpu.dot_dimension_numbers<[1], [0], [0], [1], [0, 0, 1, 1], [], []>} : vector<8x128xf32>, vector<128x512xf32>, vector<8x512xf32> -> vector<8x512xf32>
    %207 = arith.index_cast %203 : i32 to index
    %c0_88 = arith.constant 0 : index
    %208 = vector.load %arg8[%207, %c0_88] : memref<64x512xf32, #tpu.memory_space<vmem>>, vector<8x512xf32>
    %209 = arith.addf %208, %206 : vector<8x512xf32>
    %210 = vector.extract_strided_slice %209 {offsets = [0, 0], sizes = [8, 384], strides = [1, 1]} : vector<8x512xf32> to vector<8x384xf32>
    %211 = arith.negf %210 : vector<8x384xf32>
    %212 = math.exp %211 : vector<8x384xf32>
    %cst_89 = arith.constant 1.000000e+00 : f32
    %213 = vector.broadcast %cst_89 : f32 to vector<8x384xf32>
    %214 = arith.addf %213, %212 : vector<8x384xf32>
    %215 = arith.divf %213, %214 : vector<8x384xf32>
    %216 = vector.extract_strided_slice %215 {offsets = [0, 0], sizes = [8, 128], strides = [1, 1]} : vector<8x384xf32> to vector<8x128xf32>
    %217 = vector.extract_strided_slice %215 {offsets = [0, 128], sizes = [8, 128], strides = [1, 1]} : vector<8x384xf32> to vector<8x128xf32>
    %218 = vector.extract_strided_slice %215 {offsets = [0, 256], sizes = [8, 128], strides = [1, 1]} : vector<8x384xf32> to vector<8x128xf32>
    %219 = vector.extract_strided_slice %209 {offsets = [0, 384], sizes = [8, 128], strides = [1, 1]} : vector<8x512xf32> to vector<8x128xf32>
    %220 = math.tanh %219 : vector<8x128xf32>
    %221 = arith.mulf %217, %166 : vector<8x128xf32>
    %222 = arith.mulf %216, %220 : vector<8x128xf32>
    %223 = arith.addf %221, %222 : vector<8x128xf32>
    %224 = math.tanh %223 : vector<8x128xf32>
    %225 = arith.mulf %218, %224 : vector<8x128xf32>
    %c1_i32_90 = arith.constant 1 : i32
    %226 = arith.subi %c4_i32, %c1_i32_90 : i32
    %c8_i32_91 = arith.constant 8 : i32
    %227 = arith.muli %226, %c8_i32_91 : i32
    %228 = tpu.assume_multiple %227, 8 : i32
    %c1_92 = arith.constant 1 : index
    %c0_93 = arith.constant 0 : index
    %c0_94 = arith.constant 0 : index
    %229 = vector.load %arg3[%c1_92, %c0_93, %c0_94] : memref<2x128x512xf32, #tpu.memory_space<vmem>>, vector<1x128x512xf32>
    %230 = vector.shape_cast %229 : vector<1x128x512xf32> to vector<128x512xf32>
    %cst_95 = arith.constant dense<0.000000e+00> : vector<8x512xf32>
    %231 = tpu.matmul %198, %230, %cst_95 {dimension_numbers = #tpu.dot_dimension_numbers<[1], [0], [0], [1], [0, 0, 1, 1], [], []>} : vector<8x128xf32>, vector<128x512xf32>, vector<8x512xf32> -> vector<8x512xf32>
    %c0_96 = arith.constant 0 : index
    %c0_97 = arith.constant 0 : index
    %c0_98 = arith.constant 0 : index
    %232 = vector.load %arg2[%c0_96, %c0_97, %c0_98] : memref<1x128x512xf32, #tpu.memory_space<vmem>>, vector<1x128x512xf32>
    %233 = vector.shape_cast %232 : vector<1x128x512xf32> to vector<128x512xf32>
    %cst_99 = arith.constant dense<0.000000e+00> : vector<8x512xf32>
    %234 = tpu.matmul %168, %233, %cst_99 {dimension_numbers = #tpu.dot_dimension_numbers<[1], [0], [0], [1], [0, 0, 1, 1], [], []>} : vector<8x128xf32>, vector<128x512xf32>, vector<8x512xf32> -> vector<8x512xf32>
    %235 = arith.addf %234, %231 : vector<8x512xf32>
    %c1_100 = arith.constant 1 : index
    %c0_101 = arith.constant 0 : index
    %c0_102 = arith.constant 0 : index
    %236 = vector.load %arg4[%c1_100, %c0_101, %c0_102] : memref<2x1x512xf32, #tpu.memory_space<vmem>>, vector<1x1x512xf32>
    %237 = vector.shape_cast %236 : vector<1x1x512xf32> to vector<1x512xf32>
    %238 = vector.broadcast %237 : vector<1x512xf32> to vector<8x512xf32>
    %239 = arith.addf %235, %238 : vector<8x512xf32>
    %240 = vector.extract_strided_slice %239 {offsets = [0, 0], sizes = [8, 384], strides = [1, 1]} : vector<8x512xf32> to vector<8x384xf32>
    %241 = arith.negf %240 : vector<8x384xf32>
    %242 = math.exp %241 : vector<8x384xf32>
    %cst_103 = arith.constant 1.000000e+00 : f32
    %243 = vector.broadcast %cst_103 : f32 to vector<8x384xf32>
    %244 = arith.addf %243, %242 : vector<8x384xf32>
    %245 = arith.divf %243, %244 : vector<8x384xf32>
    %246 = vector.extract_strided_slice %245 {offsets = [0, 0], sizes = [8, 128], strides = [1, 1]} : vector<8x384xf32> to vector<8x128xf32>
    %247 = vector.extract_strided_slice %245 {offsets = [0, 128], sizes = [8, 128], strides = [1, 1]} : vector<8x384xf32> to vector<8x128xf32>
    %248 = vector.extract_strided_slice %245 {offsets = [0, 256], sizes = [8, 128], strides = [1, 1]} : vector<8x384xf32> to vector<8x128xf32>
    %249 = vector.extract_strided_slice %239 {offsets = [0, 384], sizes = [8, 128], strides = [1, 1]} : vector<8x512xf32> to vector<8x128xf32>
    %250 = math.tanh %249 : vector<8x128xf32>
    %251 = arith.mulf %247, %196 : vector<8x128xf32>
    %252 = arith.mulf %246, %250 : vector<8x128xf32>
    %253 = arith.addf %251, %252 : vector<8x128xf32>
    %254 = math.tanh %253 : vector<8x128xf32>
    %255 = arith.mulf %248, %254 : vector<8x128xf32>
    %256 = arith.index_cast %228 : i32 to index
    %c0_104 = arith.constant 0 : index
    %257 = vector.load %arg9[%256, %c0_104] : memref<64x128xf32, #tpu.memory_space<vmem>>, vector<8x128xf32>
    tpu.vector_store %arg9[%256, %c0_104], %255 {strides = array<i32>} : memref<64x128xf32, #tpu.memory_space<vmem>>, vector<8x128xf32>,
    %c5_i32 = arith.constant 5 : i32
    %c0_i32_105 = arith.constant 0 : i32
    %258 = arith.subi %c5_i32, %c0_i32_105 : i32
    %c8_i32_106 = arith.constant 8 : i32
    %259 = arith.muli %258, %c8_i32_106 : i32
    %260 = tpu.assume_multiple %259, 8 : i32
    %c0_107 = arith.constant 0 : index
    %c0_108 = arith.constant 0 : index
    %c0_109 = arith.constant 0 : index
    %261 = vector.load %arg3[%c0_107, %c0_108, %c0_109] : memref<2x128x512xf32, #tpu.memory_space<vmem>>, vector<1x128x512xf32>
    %262 = vector.shape_cast %261 : vector<1x128x512xf32> to vector<128x512xf32>
    %cst_110 = arith.constant dense<0.000000e+00> : vector<8x512xf32>
    %263 = tpu.matmul %225, %262, %cst_110 {dimension_numbers = #tpu.dot_dimension_numbers<[1], [0], [0], [1], [0, 0, 1, 1], [], []>} : vector<8x128xf32>, vector<128x512xf32>, vector<8x512xf32> -> vector<8x512xf32>
    %264 = arith.index_cast %260 : i32 to index
    %c0_111 = arith.constant 0 : index
    %265 = vector.load %arg8[%264, %c0_111] : memref<64x512xf32, #tpu.memory_space<vmem>>, vector<8x512xf32>
    %266 = arith.addf %265, %263 : vector<8x512xf32>
    %267 = vector.extract_strided_slice %266 {offsets = [0, 0], sizes = [8, 384], strides = [1, 1]} : vector<8x512xf32> to vector<8x384xf32>
    %268 = arith.negf %267 : vector<8x384xf32>
    %269 = math.exp %268 : vector<8x384xf32>
    %cst_112 = arith.constant 1.000000e+00 : f32
    %270 = vector.broadcast %cst_112 : f32 to vector<8x384xf32>
    %271 = arith.addf %270, %269 : vector<8x384xf32>
    %272 = arith.divf %270, %271 : vector<8x384xf32>
    %273 = vector.extract_strided_slice %272 {offsets = [0, 0], sizes = [8, 128], strides = [1, 1]} : vector<8x384xf32> to vector<8x128xf32>
    %274 = vector.extract_strided_slice %272 {offsets = [0, 128], sizes = [8, 128], strides = [1, 1]} : vector<8x384xf32> to vector<8x128xf32>
    %275 = vector.extract_strided_slice %272 {offsets = [0, 256], sizes = [8, 128], strides = [1, 1]} : vector<8x384xf32> to vector<8x128xf32>
    %276 = vector.extract_strided_slice %266 {offsets = [0, 384], sizes = [8, 128], strides = [1, 1]} : vector<8x512xf32> to vector<8x128xf32>
    %277 = math.tanh %276 : vector<8x128xf32>
    %278 = arith.mulf %274, %223 : vector<8x128xf32>
    %279 = arith.mulf %273, %277 : vector<8x128xf32>
    %280 = arith.addf %278, %279 : vector<8x128xf32>
    %281 = math.tanh %280 : vector<8x128xf32>
    %282 = arith.mulf %275, %281 : vector<8x128xf32>
    %c1_i32_113 = arith.constant 1 : i32
    %283 = arith.subi %c5_i32, %c1_i32_113 : i32
    %c8_i32_114 = arith.constant 8 : i32
    %284 = arith.muli %283, %c8_i32_114 : i32
    %285 = tpu.assume_multiple %284, 8 : i32
    %c1_115 = arith.constant 1 : index
    %c0_116 = arith.constant 0 : index
    %c0_117 = arith.constant 0 : index
    %286 = vector.load %arg3[%c1_115, %c0_116, %c0_117] : memref<2x128x512xf32, #tpu.memory_space<vmem>>, vector<1x128x512xf32>
    %287 = vector.shape_cast %286 : vector<1x128x512xf32> to vector<128x512xf32>
    %cst_118 = arith.constant dense<0.000000e+00> : vector<8x512xf32>
    %288 = tpu.matmul %255, %287, %cst_118 {dimension_numbers = #tpu.dot_dimension_numbers<[1], [0], [0], [1], [0, 0, 1, 1], [], []>} : vector<8x128xf32>, vector<128x512xf32>, vector<8x512xf32> -> vector<8x512xf32>
    %c0_119 = arith.constant 0 : index
    %c0_120 = arith.constant 0 : index
    %c0_121 = arith.constant 0 : index
    %289 = vector.load %arg2[%c0_119, %c0_120, %c0_121] : memref<1x128x512xf32, #tpu.memory_space<vmem>>, vector<1x128x512xf32>
    %290 = vector.shape_cast %289 : vector<1x128x512xf32> to vector<128x512xf32>
    %cst_122 = arith.constant dense<0.000000e+00> : vector<8x512xf32>
    %291 = tpu.matmul %225, %290, %cst_122 {dimension_numbers = #tpu.dot_dimension_numbers<[1], [0], [0], [1], [0, 0, 1, 1], [], []>} : vector<8x128xf32>, vector<128x512xf32>, vector<8x512xf32> -> vector<8x512xf32>
    %292 = arith.addf %291, %288 : vector<8x512xf32>
    %c1_123 = arith.constant 1 : index
    %c0_124 = arith.constant 0 : index
    %c0_125 = arith.constant 0 : index
    %293 = vector.load %arg4[%c1_123, %c0_124, %c0_125] : memref<2x1x512xf32, #tpu.memory_space<vmem>>, vector<1x1x512xf32>
    %294 = vector.shape_cast %293 : vector<1x1x512xf32> to vector<1x512xf32>
    %295 = vector.broadcast %294 : vector<1x512xf32> to vector<8x512xf32>
    %296 = arith.addf %292, %295 : vector<8x512xf32>
    %297 = vector.extract_strided_slice %296 {offsets = [0, 0], sizes = [8, 384], strides = [1, 1]} : vector<8x512xf32> to vector<8x384xf32>
    %298 = arith.negf %297 : vector<8x384xf32>
    %299 = math.exp %298 : vector<8x384xf32>
    %cst_126 = arith.constant 1.000000e+00 : f32
    %300 = vector.broadcast %cst_126 : f32 to vector<8x384xf32>
    %301 = arith.addf %300, %299 : vector<8x384xf32>
    %302 = arith.divf %300, %301 : vector<8x384xf32>
    %303 = vector.extract_strided_slice %302 {offsets = [0, 0], sizes = [8, 128], strides = [1, 1]} : vector<8x384xf32> to vector<8x128xf32>
    %304 = vector.extract_strided_slice %302 {offsets = [0, 128], sizes = [8, 128], strides = [1, 1]} : vector<8x384xf32> to vector<8x128xf32>
    %305 = vector.extract_strided_slice %302 {offsets = [0, 256], sizes = [8, 128], strides = [1, 1]} : vector<8x384xf32> to vector<8x128xf32>
    %306 = vector.extract_strided_slice %296 {offsets = [0, 384], sizes = [8, 128], strides = [1, 1]} : vector<8x512xf32> to vector<8x128xf32>
    %307 = math.tanh %306 : vector<8x128xf32>
    %308 = arith.mulf %304, %253 : vector<8x128xf32>
    %309 = arith.mulf %303, %307 : vector<8x128xf32>
    %310 = arith.addf %308, %309 : vector<8x128xf32>
    %311 = math.tanh %310 : vector<8x128xf32>
    %312 = arith.mulf %305, %311 : vector<8x128xf32>
    %313 = arith.index_cast %285 : i32 to index
    %c0_127 = arith.constant 0 : index
    %314 = vector.load %arg9[%313, %c0_127] : memref<64x128xf32, #tpu.memory_space<vmem>>, vector<8x128xf32>
    tpu.vector_store %arg9[%313, %c0_127], %312 {strides = array<i32>} : memref<64x128xf32, #tpu.memory_space<vmem>>, vector<8x128xf32>,
    %c6_i32 = arith.constant 6 : i32
    %c0_i32_128 = arith.constant 0 : i32
    %315 = arith.subi %c6_i32, %c0_i32_128 : i32
    %c8_i32_129 = arith.constant 8 : i32
    %316 = arith.muli %315, %c8_i32_129 : i32
    %317 = tpu.assume_multiple %316, 8 : i32
    %c0_130 = arith.constant 0 : index
    %c0_131 = arith.constant 0 : index
    %c0_132 = arith.constant 0 : index
    %318 = vector.load %arg3[%c0_130, %c0_131, %c0_132] : memref<2x128x512xf32, #tpu.memory_space<vmem>>, vector<1x128x512xf32>
    %319 = vector.shape_cast %318 : vector<1x128x512xf32> to vector<128x512xf32>
    %cst_133 = arith.constant dense<0.000000e+00> : vector<8x512xf32>
    %320 = tpu.matmul %282, %319, %cst_133 {dimension_numbers = #tpu.dot_dimension_numbers<[1], [0], [0], [1], [0, 0, 1, 1], [], []>} : vector<8x128xf32>, vector<128x512xf32>, vector<8x512xf32> -> vector<8x512xf32>
    %321 = arith.index_cast %317 : i32 to index
    %c0_134 = arith.constant 0 : index
    %322 = vector.load %arg8[%321, %c0_134] : memref<64x512xf32, #tpu.memory_space<vmem>>, vector<8x512xf32>
    %323 = arith.addf %322, %320 : vector<8x512xf32>
    %324 = vector.extract_strided_slice %323 {offsets = [0, 0], sizes = [8, 384], strides = [1, 1]} : vector<8x512xf32> to vector<8x384xf32>
    %325 = arith.negf %324 : vector<8x384xf32>
    %326 = math.exp %325 : vector<8x384xf32>
    %cst_135 = arith.constant 1.000000e+00 : f32
    %327 = vector.broadcast %cst_135 : f32 to vector<8x384xf32>
    %328 = arith.addf %327, %326 : vector<8x384xf32>
    %329 = arith.divf %327, %328 : vector<8x384xf32>
    %330 = vector.extract_strided_slice %329 {offsets = [0, 0], sizes = [8, 128], strides = [1, 1]} : vector<8x384xf32> to vector<8x128xf32>
    %331 = vector.extract_strided_slice %329 {offsets = [0, 128], sizes = [8, 128], strides = [1, 1]} : vector<8x384xf32> to vector<8x128xf32>
    %332 = vector.extract_strided_slice %329 {offsets = [0, 256], sizes = [8, 128], strides = [1, 1]} : vector<8x384xf32> to vector<8x128xf32>
    %333 = vector.extract_strided_slice %323 {offsets = [0, 384], sizes = [8, 128], strides = [1, 1]} : vector<8x512xf32> to vector<8x128xf32>
    %334 = math.tanh %333 : vector<8x128xf32>
    %335 = arith.mulf %331, %280 : vector<8x128xf32>
    %336 = arith.mulf %330, %334 : vector<8x128xf32>
    %337 = arith.addf %335, %336 : vector<8x128xf32>
    %338 = math.tanh %337 : vector<8x128xf32>
    %339 = arith.mulf %332, %338 : vector<8x128xf32>
    %c1_i32_136 = arith.constant 1 : i32
    %340 = arith.subi %c6_i32, %c1_i32_136 : i32
    %c8_i32_137 = arith.constant 8 : i32
    %341 = arith.muli %340, %c8_i32_137 : i32
    %342 = tpu.assume_multiple %341, 8 : i32
    %c1_138 = arith.constant 1 : index
    %c0_139 = arith.constant 0 : index
    %c0_140 = arith.constant 0 : index
    %343 = vector.load %arg3[%c1_138, %c0_139, %c0_140] : memref<2x128x512xf32, #tpu.memory_space<vmem>>, vector<1x128x512xf32>
    %344 = vector.shape_cast %343 : vector<1x128x512xf32> to vector<128x512xf32>
    %cst_141 = arith.constant dense<0.000000e+00> : vector<8x512xf32>
    %345 = tpu.matmul %312, %344, %cst_141 {dimension_numbers = #tpu.dot_dimension_numbers<[1], [0], [0], [1], [0, 0, 1, 1], [], []>} : vector<8x128xf32>, vector<128x512xf32>, vector<8x512xf32> -> vector<8x512xf32>
    %c0_142 = arith.constant 0 : index
    %c0_143 = arith.constant 0 : index
    %c0_144 = arith.constant 0 : index
    %346 = vector.load %arg2[%c0_142, %c0_143, %c0_144] : memref<1x128x512xf32, #tpu.memory_space<vmem>>, vector<1x128x512xf32>
    %347 = vector.shape_cast %346 : vector<1x128x512xf32> to vector<128x512xf32>
    %cst_145 = arith.constant dense<0.000000e+00> : vector<8x512xf32>
    %348 = tpu.matmul %282, %347, %cst_145 {dimension_numbers = #tpu.dot_dimension_numbers<[1], [0], [0], [1], [0, 0, 1, 1], [], []>} : vector<8x128xf32>, vector<128x512xf32>, vector<8x512xf32> -> vector<8x512xf32>
    %349 = arith.addf %348, %345 : vector<8x512xf32>
    %c1_146 = arith.constant 1 : index
    %c0_147 = arith.constant 0 : index
    %c0_148 = arith.constant 0 : index
    %350 = vector.load %arg4[%c1_146, %c0_147, %c0_148] : memref<2x1x512xf32, #tpu.memory_space<vmem>>, vector<1x1x512xf32>
    %351 = vector.shape_cast %350 : vector<1x1x512xf32> to vector<1x512xf32>
    %352 = vector.broadcast %351 : vector<1x512xf32> to vector<8x512xf32>
    %353 = arith.addf %349, %352 : vector<8x512xf32>
    %354 = vector.extract_strided_slice %353 {offsets = [0, 0], sizes = [8, 384], strides = [1, 1]} : vector<8x512xf32> to vector<8x384xf32>
    %355 = arith.negf %354 : vector<8x384xf32>
    %356 = math.exp %355 : vector<8x384xf32>
    %cst_149 = arith.constant 1.000000e+00 : f32
    %357 = vector.broadcast %cst_149 : f32 to vector<8x384xf32>
    %358 = arith.addf %357, %356 : vector<8x384xf32>
    %359 = arith.divf %357, %358 : vector<8x384xf32>
    %360 = vector.extract_strided_slice %359 {offsets = [0, 0], sizes = [8, 128], strides = [1, 1]} : vector<8x384xf32> to vector<8x128xf32>
    %361 = vector.extract_strided_slice %359 {offsets = [0, 128], sizes = [8, 128], strides = [1, 1]} : vector<8x384xf32> to vector<8x128xf32>
    %362 = vector.extract_strided_slice %359 {offsets = [0, 256], sizes = [8, 128], strides = [1, 1]} : vector<8x384xf32> to vector<8x128xf32>
    %363 = vector.extract_strided_slice %353 {offsets = [0, 384], sizes = [8, 128], strides = [1, 1]} : vector<8x512xf32> to vector<8x128xf32>
    %364 = math.tanh %363 : vector<8x128xf32>
    %365 = arith.mulf %361, %310 : vector<8x128xf32>
    %366 = arith.mulf %360, %364 : vector<8x128xf32>
    %367 = arith.addf %365, %366 : vector<8x128xf32>
    %368 = math.tanh %367 : vector<8x128xf32>
    %369 = arith.mulf %362, %368 : vector<8x128xf32>
    %370 = arith.index_cast %342 : i32 to index
    %c0_150 = arith.constant 0 : index
    %371 = vector.load %arg9[%370, %c0_150] : memref<64x128xf32, #tpu.memory_space<vmem>>, vector<8x128xf32>
    tpu.vector_store %arg9[%370, %c0_150], %369 {strides = array<i32>} : memref<64x128xf32, #tpu.memory_space<vmem>>, vector<8x128xf32>,
    %c7_i32 = arith.constant 7 : i32
    %c0_i32_151 = arith.constant 0 : i32
    %372 = arith.subi %c7_i32, %c0_i32_151 : i32
    %c8_i32_152 = arith.constant 8 : i32
    %373 = arith.muli %372, %c8_i32_152 : i32
    %374 = tpu.assume_multiple %373, 8 : i32
    %c0_153 = arith.constant 0 : index
    %c0_154 = arith.constant 0 : index
    %c0_155 = arith.constant 0 : index
    %375 = vector.load %arg3[%c0_153, %c0_154, %c0_155] : memref<2x128x512xf32, #tpu.memory_space<vmem>>, vector<1x128x512xf32>
    %376 = vector.shape_cast %375 : vector<1x128x512xf32> to vector<128x512xf32>
    %cst_156 = arith.constant dense<0.000000e+00> : vector<8x512xf32>
    %377 = tpu.matmul %339, %376, %cst_156 {dimension_numbers = #tpu.dot_dimension_numbers<[1], [0], [0], [1], [0, 0, 1, 1], [], []>} : vector<8x128xf32>, vector<128x512xf32>, vector<8x512xf32> -> vector<8x512xf32>
    %378 = arith.index_cast %374 : i32 to index
    %c0_157 = arith.constant 0 : index
    %379 = vector.load %arg8[%378, %c0_157] : memref<64x512xf32, #tpu.memory_space<vmem>>, vector<8x512xf32>
    %380 = arith.addf %379, %377 : vector<8x512xf32>
    %381 = vector.extract_strided_slice %380 {offsets = [0, 0], sizes = [8, 384], strides = [1, 1]} : vector<8x512xf32> to vector<8x384xf32>
    %382 = arith.negf %381 : vector<8x384xf32>
    %383 = math.exp %382 : vector<8x384xf32>
    %cst_158 = arith.constant 1.000000e+00 : f32
    %384 = vector.broadcast %cst_158 : f32 to vector<8x384xf32>
    %385 = arith.addf %384, %383 : vector<8x384xf32>
    %386 = arith.divf %384, %385 : vector<8x384xf32>
    %387 = vector.extract_strided_slice %386 {offsets = [0, 0], sizes = [8, 128], strides = [1, 1]} : vector<8x384xf32> to vector<8x128xf32>
    %388 = vector.extract_strided_slice %386 {offsets = [0, 128], sizes = [8, 128], strides = [1, 1]} : vector<8x384xf32> to vector<8x128xf32>
    %389 = vector.extract_strided_slice %386 {offsets = [0, 256], sizes = [8, 128], strides = [1, 1]} : vector<8x384xf32> to vector<8x128xf32>
    %390 = vector.extract_strided_slice %380 {offsets = [0, 384], sizes = [8, 128], strides = [1, 1]} : vector<8x512xf32> to vector<8x128xf32>
    %391 = math.tanh %390 : vector<8x128xf32>
    %392 = arith.mulf %388, %337 : vector<8x128xf32>
    %393 = arith.mulf %387, %391 : vector<8x128xf32>
    %394 = arith.addf %392, %393 : vector<8x128xf32>
    %395 = math.tanh %394 : vector<8x128xf32>
    %396 = arith.mulf %389, %395 : vector<8x128xf32>
    %c1_i32_159 = arith.constant 1 : i32
    %397 = arith.subi %c7_i32, %c1_i32_159 : i32
    %c8_i32_160 = arith.constant 8 : i32
    %398 = arith.muli %397, %c8_i32_160 : i32
    %399 = tpu.assume_multiple %398, 8 : i32
    %c1_161 = arith.constant 1 : index
    %c0_162 = arith.constant 0 : index
    %c0_163 = arith.constant 0 : index
    %400 = vector.load %arg3[%c1_161, %c0_162, %c0_163] : memref<2x128x512xf32, #tpu.memory_space<vmem>>, vector<1x128x512xf32>
    %401 = vector.shape_cast %400 : vector<1x128x512xf32> to vector<128x512xf32>
    %cst_164 = arith.constant dense<0.000000e+00> : vector<8x512xf32>
    %402 = tpu.matmul %369, %401, %cst_164 {dimension_numbers = #tpu.dot_dimension_numbers<[1], [0], [0], [1], [0, 0, 1, 1], [], []>} : vector<8x128xf32>, vector<128x512xf32>, vector<8x512xf32> -> vector<8x512xf32>
    %c0_165 = arith.constant 0 : index
    %c0_166 = arith.constant 0 : index
    %c0_167 = arith.constant 0 : index
    %403 = vector.load %arg2[%c0_165, %c0_166, %c0_167] : memref<1x128x512xf32, #tpu.memory_space<vmem>>, vector<1x128x512xf32>
    %404 = vector.shape_cast %403 : vector<1x128x512xf32> to vector<128x512xf32>
    %cst_168 = arith.constant dense<0.000000e+00> : vector<8x512xf32>
    %405 = tpu.matmul %339, %404, %cst_168 {dimension_numbers = #tpu.dot_dimension_numbers<[1], [0], [0], [1], [0, 0, 1, 1], [], []>} : vector<8x128xf32>, vector<128x512xf32>, vector<8x512xf32> -> vector<8x512xf32>
    %406 = arith.addf %405, %402 : vector<8x512xf32>
    %c1_169 = arith.constant 1 : index
    %c0_170 = arith.constant 0 : index
    %c0_171 = arith.constant 0 : index
    %407 = vector.load %arg4[%c1_169, %c0_170, %c0_171] : memref<2x1x512xf32, #tpu.memory_space<vmem>>, vector<1x1x512xf32>
    %408 = vector.shape_cast %407 : vector<1x1x512xf32> to vector<1x512xf32>
    %409 = vector.broadcast %408 : vector<1x512xf32> to vector<8x512xf32>
    %410 = arith.addf %406, %409 : vector<8x512xf32>
    %411 = vector.extract_strided_slice %410 {offsets = [0, 0], sizes = [8, 384], strides = [1, 1]} : vector<8x512xf32> to vector<8x384xf32>
    %412 = arith.negf %411 : vector<8x384xf32>
    %413 = math.exp %412 : vector<8x384xf32>
    %cst_172 = arith.constant 1.000000e+00 : f32
    %414 = vector.broadcast %cst_172 : f32 to vector<8x384xf32>
    %415 = arith.addf %414, %413 : vector<8x384xf32>
    %416 = arith.divf %414, %415 : vector<8x384xf32>
    %417 = vector.extract_strided_slice %416 {offsets = [0, 0], sizes = [8, 128], strides = [1, 1]} : vector<8x384xf32> to vector<8x128xf32>
    %418 = vector.extract_strided_slice %416 {offsets = [0, 128], sizes = [8, 128], strides = [1, 1]} : vector<8x384xf32> to vector<8x128xf32>
    %419 = vector.extract_strided_slice %416 {offsets = [0, 256], sizes = [8, 128], strides = [1, 1]} : vector<8x384xf32> to vector<8x128xf32>
    %420 = vector.extract_strided_slice %410 {offsets = [0, 384], sizes = [8, 128], strides = [1, 1]} : vector<8x512xf32> to vector<8x128xf32>
    %421 = math.tanh %420 : vector<8x128xf32>
    %422 = arith.mulf %418, %367 : vector<8x128xf32>
    %423 = arith.mulf %417, %421 : vector<8x128xf32>
    %424 = arith.addf %422, %423 : vector<8x128xf32>
    %425 = math.tanh %424 : vector<8x128xf32>
    %426 = arith.mulf %419, %425 : vector<8x128xf32>
    %427 = arith.index_cast %399 : i32 to index
    %c0_173 = arith.constant 0 : index
    %428 = vector.load %arg9[%427, %c0_173] : memref<64x128xf32, #tpu.memory_space<vmem>>, vector<8x128xf32>
    tpu.vector_store %arg9[%427, %c0_173], %426 {strides = array<i32>} : memref<64x128xf32, #tpu.memory_space<vmem>>, vector<8x128xf32>,
    %c7_i32_174 = arith.constant 7 : i32
    %c1_175 = arith.constant 1 : index
    %c0_176 = arith.constant 0 : index
    %c0_177 = arith.constant 0 : index
    %429 = vector.load %arg3[%c1_175, %c0_176, %c0_177] : memref<2x128x512xf32, #tpu.memory_space<vmem>>, vector<1x128x512xf32>
    %430 = vector.shape_cast %429 : vector<1x128x512xf32> to vector<128x512xf32>
    %cst_178 = arith.constant dense<0.000000e+00> : vector<8x512xf32>
    %431 = tpu.matmul %426, %430, %cst_178 {dimension_numbers = #tpu.dot_dimension_numbers<[1], [0], [0], [1], [0, 0, 1, 1], [], []>} : vector<8x128xf32>, vector<128x512xf32>, vector<8x512xf32> -> vector<8x512xf32>
    %c0_179 = arith.constant 0 : index
    %c0_180 = arith.constant 0 : index
    %c0_181 = arith.constant 0 : index
    %432 = vector.load %arg2[%c0_179, %c0_180, %c0_181] : memref<1x128x512xf32, #tpu.memory_space<vmem>>, vector<1x128x512xf32>
    %433 = vector.shape_cast %432 : vector<1x128x512xf32> to vector<128x512xf32>
    %cst_182 = arith.constant dense<0.000000e+00> : vector<8x512xf32>
    %434 = tpu.matmul %396, %433, %cst_182 {dimension_numbers = #tpu.dot_dimension_numbers<[1], [0], [0], [1], [0, 0, 1, 1], [], []>} : vector<8x128xf32>, vector<128x512xf32>, vector<8x512xf32> -> vector<8x512xf32>
    %435 = arith.addf %434, %431 : vector<8x512xf32>
    %c1_183 = arith.constant 1 : index
    %c0_184 = arith.constant 0 : index
    %c0_185 = arith.constant 0 : index
    %436 = vector.load %arg4[%c1_183, %c0_184, %c0_185] : memref<2x1x512xf32, #tpu.memory_space<vmem>>, vector<1x1x512xf32>
    %437 = vector.shape_cast %436 : vector<1x1x512xf32> to vector<1x512xf32>
    %438 = vector.broadcast %437 : vector<1x512xf32> to vector<8x512xf32>
    %439 = arith.addf %435, %438 : vector<8x512xf32>
    %440 = vector.extract_strided_slice %439 {offsets = [0, 0], sizes = [8, 384], strides = [1, 1]} : vector<8x512xf32> to vector<8x384xf32>
    %441 = arith.negf %440 : vector<8x384xf32>
    %442 = math.exp %441 : vector<8x384xf32>
    %cst_186 = arith.constant 1.000000e+00 : f32
    %443 = vector.broadcast %cst_186 : f32 to vector<8x384xf32>
    %444 = arith.addf %443, %442 : vector<8x384xf32>
    %445 = arith.divf %443, %444 : vector<8x384xf32>
    %446 = vector.extract_strided_slice %445 {offsets = [0, 0], sizes = [8, 128], strides = [1, 1]} : vector<8x384xf32> to vector<8x128xf32>
    %447 = vector.extract_strided_slice %445 {offsets = [0, 128], sizes = [8, 128], strides = [1, 1]} : vector<8x384xf32> to vector<8x128xf32>
    %448 = vector.extract_strided_slice %445 {offsets = [0, 256], sizes = [8, 128], strides = [1, 1]} : vector<8x384xf32> to vector<8x128xf32>
    %449 = vector.extract_strided_slice %439 {offsets = [0, 384], sizes = [8, 128], strides = [1, 1]} : vector<8x512xf32> to vector<8x128xf32>
    %450 = math.tanh %449 : vector<8x128xf32>
    %451 = arith.mulf %447, %424 : vector<8x128xf32>
    %452 = arith.mulf %446, %450 : vector<8x128xf32>
    %453 = arith.addf %451, %452 : vector<8x128xf32>
    %454 = math.tanh %453 : vector<8x128xf32>
    %455 = arith.mulf %448, %454 : vector<8x128xf32>
    %c56 = arith.constant 56 : index
    %c0_187 = arith.constant 0 : index
    %456 = vector.load %arg9[%c56, %c0_187] : memref<64x128xf32, #tpu.memory_space<vmem>>, vector<8x128xf32>
    tpu.vector_store %arg9[%c56, %c0_187], %455 {strides = array<i32>} : memref<64x128xf32, #tpu.memory_space<vmem>>, vector<8x128xf32>,
    %c0_188 = arith.constant 0 : index
    %c0_189 = arith.constant 0 : index
    %457 = vector.load %arg9[%c0_188, %c0_189] : memref<64x128xf32, #tpu.memory_space<vmem>>, vector<64x128xf32>
    %c0_190 = arith.constant 0 : index
    %c0_191 = arith.constant 0 : index
    %458 = vector.load %arg5[%c0_190, %c0_191] : memref<128x128xf32, #tpu.memory_space<vmem>>, vector<128x128xf32>
    %cst_192 = arith.constant dense<0.000000e+00> : vector<64x128xf32>
    %459 = tpu.matmul %457, %458, %cst_192 {dimension_numbers = #tpu.dot_dimension_numbers<[1], [0], [0], [1], [0, 0, 1, 1], [], []>} : vector<64x128xf32>, vector<128x128xf32>, vector<64x128xf32> -> vector<64x128xf32>
    %c0_193 = arith.constant 0 : index
    %c0_194 = arith.constant 0 : index
    %460 = vector.load %arg6[%c0_193, %c0_194] : memref<1x128xf32, #tpu.memory_space<vmem>>, vector<1x128xf32>
    %461 = vector.broadcast %460 : vector<1x128xf32> to vector<64x128xf32>
    %462 = arith.addf %459, %461 : vector<64x128xf32>
    %cst_195 = arith.constant 0.000000e+00 : f32
    %463 = vector.broadcast %cst_195 : f32 to vector<64x128xf32>
    %464 = arith.maximumf %462, %463 : vector<64x128xf32>
    %c0_196 = arith.constant 0 : index
    %c0_197 = arith.constant 0 : index
    %465 = vector.load %arg7[%c0_196, %c0_197] : memref<64x128xf32, #tpu.memory_space<vmem>>, vector<64x128xf32>
    tpu.vector_store %arg7[%c0_196, %c0_197], %464 {strides = array<i32>} : memref<64x128xf32, #tpu.memory_space<vmem>>, vector<64x128xf32>,
    return
  }
}

</mosaic_0001>

<llo_original>
// kernel: tpu_custom_call.1
$region0: #{tpu_custom_call.1}
  #allocation0 [shape = 'u32[]', space=smem, size = 0x4, offset = 0x4, fixed_abs, tag = 'smem constant byte address 0x4 - core index']
  #allocation1 [shape = 'u32[144,128]{1,0:T(1,128)}', space=vmem, size = 0x12000, scoped, tag = 'internal scratch']
  #allocation2 [shape = 'f32[64,512]{1,0:T(8,128)}', space=vmem, size = 0x20000, scoped, tag = 'scratch operand']
  #allocation3 [shape = 'f32[64,128]{1,0:T(8,128)}', space=vmem, size = 0x8000, scoped, tag = 'scratch operand']
  %s0 = inlined_call_operand.vmem [shape: f32[64,16], index: 0, kind: input, shape index: {}]
  %s1 = inlined_call_operand.vmem [shape: f32[16,512], index: 1, kind: input, shape index: {}]
  %s2 = inlined_call_operand.hbm [shape: f32[1,128,512], index: 2, kind: input, shape index: {}]
  %s3 = inlined_call_operand.hbm [shape: f32[2,128,512], index: 3, kind: input, shape index: {}]
  %s4 = inlined_call_operand.vmem [shape: f32[2,1,512], index: 4, kind: input, shape index: {}]
  %s5 = inlined_call_operand.hbm [shape: f32[128,128], index: 5, kind: input, shape index: {}]
  %s6 = inlined_call_operand.vmem [shape: f32[1,128], index: 6, kind: input, shape index: {}]
  %s7 = inlined_call_operand.hbm [shape: f32[64,128], index: 7, kind: output, shape index: {}]
  %s8 = sld [smem:[#allocation0]]
  $region50: #{tpu_custom_call.1} parent=0
    _
  %s10 = ssub.s32 1, %s8
  %s11 = scalar_select 0, %s10, %s8
  $region1: #{tpu_custom_call.1} parent=0
    #allocation4 [shape = 'u8[262144]{0}', space=vmem, size = 0x40000, scoped, tag = 'input window, operand 2, single buffered']
    #allocation5 [shape = 's32[1]{0}', space=sflag, size = 0x4, scoped, tag = 'scoped memory for tpu_custom_call.1']
    #allocation6 [shape = 's32[1]{0}', space=sflag, size = 0x4, scoped, tag = 'scoped memory for tpu_custom_call.1']
    #allocation7 [shape = 'u8[524288]{0}', space=vmem, size = 0x80000, scoped, tag = 'input window, operand 3, single buffered']
    #allocation8 [shape = 's32[1]{0}', space=sflag, size = 0x4, scoped, tag = 'scoped memory for tpu_custom_call.1']
    #allocation9 [shape = 'u8[65536]{0}', space=vmem, size = 0x10000, scoped, tag = 'input window, operand 5, single buffered']
    #allocation10 [shape = 'u8[32768]{0}', space=vmem, size = 0x8000, scoped, tag = 'output window, operand 0, single buffered']
    %12 = vsyncpa [#allocation5], 0
    %13 = vsyncpa [#allocation8], 0
    %14 = vsyncpa [#allocation6], 0
    // Predicated region
    $region2: #{tpu_custom_call.1} parent=1 // pred_check
      _
    $region3: #{tpu_custom_call.1} parent=1 // pred_check_branch
      %16 = sbr.rel (0) target = $region5
    $region4: #{tpu_custom_call.1} parent=1 // pred_region
      _
    $region5: #{tpu_custom_call.1} parent=1 // pred_fallthru
      _
    // Predicated region
    $region6: #{tpu_custom_call.1} parent=1 // pred_check
      _
    $region7: #{tpu_custom_call.1} parent=1 // pred_check_branch
      %18 = sbr.rel (0) target = $region9
    $region8: #{tpu_custom_call.1} parent=1 // pred_region
      _
    $region9: #{tpu_custom_call.1} parent=1 // pred_fallthru
      _
    // Predicated region
    $region10: #{tpu_custom_call.1} parent=1 // pred_check
      _
    $region11: #{tpu_custom_call.1} parent=1 // pred_check_branch
      %20 = sbr.rel (0) target = $region13
    $region12: #{tpu_custom_call.1} parent=1 // pred_region
      %s22 = ssub.s32 8192, 8192
      %23 = vsyncadd [#allocation5], %s22
      %s24 = sshll.u32 [#allocation4], 4
      %s25 = int_to_ptr.vmem [resolvable:$true] %s24
      %30 = dma.hbm_to_vmem [thread:$0]  %s2, 8192, %s25, [#allocation5], 512, 512, 32
    $region13: #{tpu_custom_call.1} parent=1 // pred_fallthru
      _
    // Predicated region
    $region14: #{tpu_custom_call.1} parent=1 // pred_check
      _
    $region15: #{tpu_custom_call.1} parent=1 // pred_check_branch
      %32 = sbr.rel (0) target = $region17
    $region16: #{tpu_custom_call.1} parent=1 // pred_region
      %s34 = ssub.s32 16384, 16384
      %35 = vsyncadd [#allocation8], %s34
      %s36 = sshll.u32 [#allocation7], 4
      %s37 = int_to_ptr.vmem [resolvable:$true] %s36
      %42 = dma.hbm_to_vmem [thread:$0]  %s3, 16384, %s37, [#allocation8], 512, 512, 32
    $region17: #{tpu_custom_call.1} parent=1 // pred_fallthru
      _
    // Predicated region
    $region18: #{tpu_custom_call.1} parent=1 // pred_check
      _
    $region19: #{tpu_custom_call.1} parent=1 // pred_check_branch
      %44 = sbr.rel (0) target = $region21
    $region20: #{tpu_custom_call.1} parent=1 // pred_region
      _
    $region21: #{tpu_custom_call.1} parent=1 // pred_fallthru
      _
    // Predicated region
    $region22: #{tpu_custom_call.1} parent=1 // pred_check
      _
    $region23: #{tpu_custom_call.1} parent=1 // pred_check_branch
      %46 = sbr.rel (0) target = $region25
    $region24: #{tpu_custom_call.1} parent=1 // pred_region
      %s48 = ssub.s32 2048, 2048
      %49 = vsyncadd [#allocation8], %s48
      %s50 = sshll.u32 [#allocation9], 4
      %s51 = int_to_ptr.vmem [resolvable:$true] %s50
      %56 = dma.hbm_to_vmem [thread:$0]  %s5, 2048, %s51, [#allocation8], 128, 128, 8
    $region25: #{tpu_custom_call.1} parent=1 // pred_fallthru
      _
    // Predicated region
    $region26: #{tpu_custom_call.1} parent=1 // pred_check
      _
    $region27: #{tpu_custom_call.1} parent=1 // pred_check_branch
      %58 = sbr.rel (0) target = $region29
    $region28: #{tpu_custom_call.1} parent=1 // pred_region
      _
    $region29: #{tpu_custom_call.1} parent=1 // pred_fallthru
      _
    // Predicated region
    $region30: #{tpu_custom_call.1} parent=1 // pred_check
      _
    $region31: #{tpu_custom_call.1} parent=1 // pred_check_branch
      %60 = sbr.rel (0) target = $region33
    $region32: #{tpu_custom_call.1} parent=1 // pred_region
      %61 = dma.done [#allocation5], 8192
    $region33: #{tpu_custom_call.1} parent=1 // pred_fallthru
      _
    // Predicated region
    $region34: #{tpu_custom_call.1} parent=1 // pred_check
      _
    $region35: #{tpu_custom_call.1} parent=1 // pred_check_branch
      %63 = sbr.rel (0) target = $region37
    $region36: #{tpu_custom_call.1} parent=1 // pred_region
      %64 = dma.done [#allocation8], 16384
    $region37: #{tpu_custom_call.1} parent=1 // pred_fallthru
      _
    // Predicated region
    $region38: #{tpu_custom_call.1} parent=1 // pred_check
      _
    $region39: #{tpu_custom_call.1} parent=1 // pred_check_branch
      %66 = sbr.rel (0) target = $region41
    $region40: #{tpu_custom_call.1} parent=1 // pred_region
      %67 = dma.done [#allocation8], 2048
    $region41: #{tpu_custom_call.1} parent=1 // pred_fallthru
      _
    %v68 = vld [vmem:[%s0] sm:$0xff]
    %v69 = vld [vmem:[%s0 + $0x8] sm:$0xff]
    %v70 = vld [vmem:[%s0 + $0x10] sm:$0xff]
    %v71 = vld [vmem:[%s0 + $0x18] sm:$0xff]
    %v72 = vld [vmem:[%s0 + $0x20] sm:$0xff]
    %v73 = vld [vmem:[%s0 + $0x28] sm:$0xff]
    %v74 = vld [vmem:[%s0 + $0x30] sm:$0xff]
    %v75 = vld [vmem:[%s0 + $0x38] sm:$0xff]
    %v76 = vld [vmem:[%s1] sm:$0xff]
    %v77 = vld [vmem:[%s1 + $0x8] sm:$0xff]
    %v78 = vld [vmem:[%s1 + $0x10] sm:$0xff]
    %v79 = vld [vmem:[%s1 + $0x18] sm:$0xff]
    %v80 = vld [vmem:[%s1 + $0x20] sm:$0xff]
    %v81 = vld [vmem:[%s1 + $0x28] sm:$0xff]
    %v82 = vld [vmem:[%s1 + $0x30] sm:$0xff]
    %v83 = vld [vmem:[%s1 + $0x38] sm:$0xff]
    %v84 = vld [vmem:[%s4] sm:$0xf]
    %v86 = vlaneseq
    %v87 = vshrl.u32 %v86, 7
    %v88 = vsub.s32 0, %v87
    %v89 = vrot.slane %v84, %v88
    %v90 = vlaneseq
    %v91 = vshrl.u32 %v90, 7
    %v92 = vsub.s32 1, %v91
    %v93 = vrot.slane %v84, %v92
    %v94 = vlaneseq
    %v95 = vshrl.u32 %v94, 7
    %v96 = vsub.s32 2, %v95
    %v97 = vrot.slane %v84, %v96
    %v98 = vlaneseq
    %v99 = vshrl.u32 %v98, 7
    %v100 = vsub.s32 3, %v99
    %v101 = vrot.slane %v84, %v100
    %vm106 = vcmask 130048
    %v108 = vsel %vm106, %v68, 0
    %v111 = vsel %vm106, %v69, 0
    %v114 = vsel %vm106, %v70, 0
    %v117 = vsel %vm106, %v71, 0
    %v120 = vsel %vm106, %v72, 0
    %v123 = vsel %vm106, %v73, 0
    %v126 = vsel %vm106, %v74, 0
    %v129 = vsel %vm106, %v75, 0
    %131 = vmatprep.subr.mxu0 %v77
    %132 = vmatpush1.msra.mxu0 %v76
    %133 = vmatprep.subr.mxu0 %v81
    %134 = vmatpush1.msra.mxu0 %v80
    %135 = vmatprep.subr.mxu0 0.0
    %136 = vmatpush1.msra.mxu0 0.0
    %137 = vmatprep.subr.mxu0 0.0
    %138 = vmatpush1.msra.mxu0 0.0
    %139 = vmatprep.subr.mxu0 0.0
    %140 = vmatpush1.msra.mxu0 0.0
    %141 = vmatprep.subr.mxu0 0.0
    %142 = vmatpush1.msra.mxu0 0.0
    %143 = vmatprep.subr.mxu0 0.0
    %144 = vmatpush1.msra.mxu0 0.0
    %145 = vmatprep.subr.mxu0 0.0
    %146 = vmatpush1.msra.mxu0 0.0
    %147 = vmatprep.subr.mxu0 0.0
    %148 = vmatpush1.msra.mxu0 0.0
    %149 = vmatprep.subr.mxu0 0.0
    %150 = vmatpush1.msra.mxu0 0.0
    %151 = vmatprep.subr.mxu0 0.0
    %152 = vmatpush1.msra.mxu0 0.0
    %153 = vmatprep.subr.mxu0 0.0
    %154 = vmatpush1.msra.mxu0 0.0
    %155 = vmatprep.subr.mxu0 0.0
    %156 = vmatpush1.msra.mxu0 0.0
    %157 = vmatprep.subr.mxu0 0.0
    %158 = vmatpush1.msra.mxu0 0.0
    %159 = vmatprep.subr.mxu0 0.0
    %160 = vmatpush1.msra.mxu0 0.0
    %161 = vmatprep.subr.mxu0 0.0
    %162 = vmatpush1.msra.mxu0 0.0
    %163 = vmatprep.subr.mxu0 0.0
    %164 = vmatpush1.msra.mxu0 0.0
    %165 = vmatprep.subr.mxu0 0.0
    %166 = vmatpush1.msra.mxu0 0.0
    %167 = vmatprep.subr.mxu0 0.0
    %168 = vmatpush1.msra.mxu0 0.0
    %169 = vmatprep.subr.mxu0 0.0
    %170 = vmatpush1.msra.mxu0 0.0
    %171 = vmatprep.subr.mxu0 0.0
    %172 = vmatpush1.msra.mxu0 0.0
    %173 = vmatprep.subr.mxu0 0.0
    %174 = vmatpush1.msra.mxu0 0.0
    %175 = vmatprep.subr.mxu0 0.0
    %176 = vmatpush1.msra.mxu0 0.0
    %177 = vmatprep.subr.mxu0 0.0
    %178 = vmatpush1.msra.mxu0 0.0
    %179 = vmatprep.subr.mxu0 0.0
    %180 = vmatpush1.msra.mxu0 0.0
    %181 = vmatprep.subr.mxu0 0.0
    %182 = vmatpush1.msra.mxu0 0.0
    %183 = vmatprep.subr.mxu0 0.0
    %184 = vmatpush1.msra.mxu0 0.0
    %185 = vmatprep.subr.mxu0 0.0
    %186 = vmatpush1.msra.mxu0 0.0
    %187 = vmatprep.subr.mxu0 0.0
    %188 = vmatpush1.msra.mxu0 0.0
    %189 = vmatprep.subr.mxu0 0.0
    %190 = vmatpush1.msra.mxu0 0.0
    %191 = vmatprep.subr.mxu0 0.0
    %192 = vmatpush1.msra.mxu0 0.0
    %193 = vmatprep.subr.mxu0 0.0
    %194 = vmatpush1.msra.mxu0 0.0
    %195 = vmatprep.mubr.f32.mxu0 0.0
    %196 = vmatmul.mubr.f32.gmra.mrb[0].mxu0 %v108
    %v197 = vpop.f32.mrb[0].mxu0
    %v198 = vadd.f32 %v89, %v197
    %v199 = vpop.f32.mrb[0].mxu0
    %v200 = vadd.f32 %v93, %v199
    %201 = vmatprep.mubr.f32.mxu0 0.0
    %202 = vmatmul.mubr.f32.gmra.mrb[0].mxu0 %v111
    %v203 = vpop.f32.mrb[0].mxu0
    %v204 = vadd.f32 %v89, %v203
    %v205 = vpop.f32.mrb[0].mxu0
    %v206 = vadd.f32 %v93, %v205
    %207 = vmatprep.mubr.f32.mxu0 0.0
    %208 = vmatmul.mubr.f32.gmra.mrb[0].mxu0 %v114
    %v209 = vpop.f32.mrb[0].mxu0
    %v210 = vadd.f32 %v89, %v209
    %v211 = vpop.f32.mrb[0].mxu0
    %v212 = vadd.f32 %v93, %v211
    %213 = vmatprep.mubr.f32.mxu0 0.0
    %214 = vmatmul.mubr.f32.gmra.mrb[0].mxu0 %v117
    %v215 = vpop.f32.mrb[0].mxu0
    %v216 = vadd.f32 %v89, %v215
    %v217 = vpop.f32.mrb[0].mxu0
    %v218 = vadd.f32 %v93, %v217
    %219 = vmatprep.mubr.f32.mxu0 0.0
    %220 = vmatmul.mubr.f32.gmra.mrb[0].mxu0 %v120
    %v221 = vpop.f32.mrb[0].mxu0
    %v222 = vadd.f32 %v89, %v221
    %v223 = vpop.f32.mrb[0].mxu0
    %v224 = vadd.f32 %v93, %v223
    %225 = vmatprep.mubr.f32.mxu0 0.0
    %226 = vmatmul.mubr.f32.gmra.mrb[0].mxu0 %v123
    %v227 = vpop.f32.mrb[0].mxu0
    %v228 = vadd.f32 %v89, %v227
    %v229 = vpop.f32.mrb[0].mxu0
    %v230 = vadd.f32 %v93, %v229
    %231 = vmatprep.mubr.f32.mxu0 0.0
    %232 = vmatmul.mubr.f32.gmra.mrb[0].mxu0 %v126
    %v233 = vpop.f32.mrb[0].mxu0
    %v234 = vadd.f32 %v89, %v233
    %v235 = vpop.f32.mrb[0].mxu0
    %v236 = vadd.f32 %v93, %v235
    %237 = vmatprep.mubr.f32.mxu0 0.0
    %238 = vmatmul.mubr.f32.gmra.mrb[0].mxu0 %v129
    %v239 = vpop.f32.mrb[0].mxu0
    %v240 = vadd.f32 %v89, %v239
    %v241 = vpop.f32.mrb[0].mxu0
    %v242 = vadd.f32 %v93, %v241
    %243 = vdwg.mxu0
    %244 = vmatprep.subr.mxu0 %v79
    %245 = vmatpush1.msra.mxu0 %v78
    %246 = vmatprep.subr.mxu0 %v83
    %247 = vmatpush1.msra.mxu0 %v82
    %248 = vmatprep.subr.mxu0 0.0
    %249 = vmatpush1.msra.mxu0 0.0
    %250 = vmatprep.subr.mxu0 0.0
    %251 = vmatpush1.msra.mxu0 0.0
    %252 = vmatprep.subr.mxu0 0.0
    %253 = vmatpush1.msra.mxu0 0.0
    %254 = vmatprep.subr.mxu0 0.0
    %255 = vmatpush1.msra.mxu0 0.0
    %256 = vmatprep.subr.mxu0 0.0
    %257 = vmatpush1.msra.mxu0 0.0
    %258 = vmatprep.subr.mxu0 0.0
    %259 = vmatpush1.msra.mxu0 0.0
    %260 = vmatprep.subr.mxu0 0.0
    %261 = vmatpush1.msra.mxu0 0.0
    %262 = vmatprep.subr.mxu0 0.0
    %263 = vmatpush1.msra.mxu0 0.0
    %264 = vmatprep.subr.mxu0 0.0
    %265 = vmatpush1.msra.mxu0 0.0
    %266 = vmatprep.subr.mxu0 0.0
    %267 = vmatpush1.msra.mxu0 0.0
    %268 = vmatprep.subr.mxu0 0.0
    %269 = vmatpush1.msra.mxu0 0.0
    %270 = vmatprep.subr.mxu0 0.0
    %271 = vmatpush1.msra.mxu0 0.0
    %272 = vmatprep.subr.mxu0 0.0
    %273 = vmatpush1.msra.mxu0 0.0
    %274 = vmatprep.subr.mxu0 0.0
    %275 = vmatpush1.msra.mxu0 0.0
    %276 = vmatprep.subr.mxu0 0.0
    %277 = vmatpush1.msra.mxu0 0.0
    %278 = vmatprep.subr.mxu0 0.0
    %279 = vmatpush1.msra.mxu0 0.0
    %280 = vmatprep.subr.mxu0 0.0
    %281 = vmatpush1.msra.mxu0 0.0
    %282 = vmatprep.subr.mxu0 0.0
    %283 = vmatpush1.msra.mxu0 0.0
    %284 = vmatprep.subr.mxu0 0.0
    %285 = vmatpush1.msra.mxu0 0.0
    %286 = vmatprep.subr.mxu0 0.0
    %287 = vmatpush1.msra.mxu0 0.0
    %288 = vmatprep.subr.mxu0 0.0
    %289 = vmatpush1.msra.mxu0 0.0
    %290 = vmatprep.subr.mxu0 0.0
    %291 = vmatpush1.msra.mxu0 0.0
    %292 = vmatprep.subr.mxu0 0.0
    %293 = vmatpush1.msra.mxu0 0.0
    %294 = vmatprep.subr.mxu0 0.0
    %295 = vmatpush1.msra.mxu0 0.0
    %296 = vmatprep.subr.mxu0 0.0
    %297 = vmatpush1.msra.mxu0 0.0
    %298 = vmatprep.subr.mxu0 0.0
    %299 = vmatpush1.msra.mxu0 0.0
    %300 = vmatprep.subr.mxu0 0.0
    %301 = vmatpush1.msra.mxu0 0.0
    %302 = vmatprep.subr.mxu0 0.0
    %303 = vmatpush1.msra.mxu0 0.0
    %304 = vmatprep.subr.mxu0 0.0
    %305 = vmatpush1.msra.mxu0 0.0
    %306 = vmatprep.subr.mxu0 0.0
    %307 = vmatpush1.msra.mxu0 0.0
    %308 = vmatprep.mubr.f32.mxu0 0.0
    %309 = vmatmul.mubr.f32.gmra.mrb[0].mxu0 %v108
    %v310 = vpop.f32.mrb[0].mxu0
    %v311 = vadd.f32 %v97, %v310
    %v312 = vpop.f32.mrb[0].mxu0
    %v313 = vadd.f32 %v101, %v312
    %314 = vmatprep.mubr.f32.mxu0 0.0
    %315 = vmatmul.mubr.f32.gmra.mrb[0].mxu0 %v111
    %v316 = vpop.f32.mrb[0].mxu0
    %v317 = vadd.f32 %v97, %v316
    %v318 = vpop.f32.mrb[0].mxu0
    %v319 = vadd.f32 %v101, %v318
    %320 = vmatprep.mubr.f32.mxu0 0.0
    %321 = vmatmul.mubr.f32.gmra.mrb[0].mxu0 %v114
    %v322 = vpop.f32.mrb[0].mxu0
    %v323 = vadd.f32 %v97, %v322
    %v324 = vpop.f32.mrb[0].mxu0
    %v325 = vadd.f32 %v101, %v324
    %326 = vmatprep.mubr.f32.mxu0 0.0
    %327 = vmatmul.mubr.f32.gmra.mrb[0].mxu0 %v117
    %v328 = vpop.f32.mrb[0].mxu0
    %v329 = vadd.f32 %v97, %v328
    %v330 = vpop.f32.mrb[0].mxu0
    %v331 = vadd.f32 %v101, %v330
    %332 = vmatprep.mubr.f32.mxu0 0.0
    %333 = vmatmul.mubr.f32.gmra.mrb[0].mxu0 %v120
    %v334 = vpop.f32.mrb[0].mxu0
    %v335 = vadd.f32 %v97, %v334
    %v336 = vpop.f32.mrb[0].mxu0
    %v337 = vadd.f32 %v101, %v336
    %338 = vmatprep.mubr.f32.mxu0 0.0
    %339 = vmatmul.mubr.f32.gmra.mrb[0].mxu0 %v123
    %v340 = vpop.f32.mrb[0].mxu0
    %v341 = vadd.f32 %v97, %v340
    %v342 = vpop.f32.mrb[0].mxu0
    %v343 = vadd.f32 %v101, %v342
    %344 = vmatprep.mubr.f32.mxu0 0.0
    %345 = vmatmul.mubr.f32.gmra.mrb[0].mxu0 %v126
    %v346 = vpop.f32.mrb[0].mxu0
    %v347 = vadd.f32 %v97, %v346
    %v348 = vpop.f32.mrb[0].mxu0
    %v349 = vadd.f32 %v101, %v348
    %350 = vmatprep.mubr.f32.mxu0 0.0
    %351 = vmatmul.mubr.f32.gmra.mrb[0].mxu0 %v129
    %v352 = vpop.f32.mrb[0].mxu0
    %v353 = vadd.f32 %v97, %v352
    %v354 = vpop.f32.mrb[0].mxu0
    %v355 = vadd.f32 %v101, %v354
    %356 = vdwg.mxu0
    %357 = vst [vmem:[#allocation2] sm:$0xff] %v198
    %358 = vst [vmem:[#allocation2 + $0x8] sm:$0xff] %v200
    %359 = vst [vmem:[#allocation2 + $0x10] sm:$0xff] %v311
    %360 = vst [vmem:[#allocation2 + $0x18] sm:$0xff] %v313
    %361 = vst [vmem:[#allocation2 + $0x20] sm:$0xff] %v204
    %362 = vst [vmem:[#allocation2 + $0x28] sm:$0xff] %v206
    %363 = vst [vmem:[#allocation2 + $0x30] sm:$0xff] %v317
    %364 = vst [vmem:[#allocation2 + $0x38] sm:$0xff] %v319
    %365 = vst [vmem:[#allocation2 + $0x40] sm:$0xff] %v210
    %366 = vst [vmem:[#allocation2 + $0x48] sm:$0xff] %v212
    %367 = vst [vmem:[#allocation2 + $0x50] sm:$0xff] %v323
    %368 = vst [vmem:[#allocation2 + $0x58] sm:$0xff] %v325
    %369 = vst [vmem:[#allocation2 + $0x60] sm:$0xff] %v216
    %370 = vst [vmem:[#allocation2 + $0x68] sm:$0xff] %v218
    %371 = vst [vmem:[#allocation2 + $0x70] sm:$0xff] %v329
    %372 = vst [vmem:[#allocation2 + $0x78] sm:$0xff] %v331
    %373 = vst [vmem:[#allocation2 + $0x80] sm:$0xff] %v222
    %374 = vst [vmem:[#allocation2 + $0x88] sm:$0xff] %v224
    %375 = vst [vmem:[#allocation2 + $0x90] sm:$0xff] %v335
    %376 = vst [vmem:[#allocation2 + $0x98] sm:$0xff] %v337
    %377 = vst [vmem:[#allocation2 + $0xa0] sm:$0xff] %v228
    %378 = vst [vmem:[#allocation2 + $0xa8] sm:$0xff] %v230
    %379 = vst [vmem:[#allocation2 + $0xb0] sm:$0xff] %v341
    %380 = vst [vmem:[#allocation2 + $0xb8] sm:$0xff] %v343
    %381 = vst [vmem:[#allocation2 + $0xc0] sm:$0xff] %v234
    %382 = vst [vmem:[#allocation2 + $0xc8] sm:$0xff] %v236
    %383 = vst [vmem:[#allocation2 + $0xd0] sm:$0xff] %v347
    %384 = vst [vmem:[#allocation2 + $0xd8] sm:$0xff] %v349
    %385 = vst [vmem:[#allocation2 + $0xe0] sm:$0xff] %v240
    %386 = vst [vmem:[#allocation2 + $0xe8] sm:$0xff] %v242
    %387 = vst [vmem:[#allocation2 + $0xf0] sm:$0xff] %v353
    %388 = vst [vmem:[#allocation2 + $0xf8] sm:$0xff] %v355
    %v389 = vld [vmem:[#allocation7] sm:$0xff]
    %v390 = vld [vmem:[#allocation7 + $0x8] sm:$0xff]
    %v391 = vld [vmem:[#allocation7 + $0x10] sm:$0xff]
    %v392 = vld [vmem:[#allocation7 + $0x18] sm:$0xff]
    %v393 = vld [vmem:[#allocation7 + $0x20] sm:$0xff]
    %v394 = vld [vmem:[#allocation7 + $0x28] sm:$0xff]
    %v395 = vld [vmem:[#allocation7 + $0x30] sm:$0xff]
    %v396 = vld [vmem:[#allocation7 + $0x38] sm:$0xff]
    %v397 = vld [vmem:[#allocation7 + $0x40] sm:$0xff]
    %v398 = vld [vmem:[#allocation7 + $0x48] sm:$0xff]
    %v399 = vld [vmem:[#allocation7 + $0x50] sm:$0xff]
    %v400 = vld [vmem:[#allocation7 + $0x58] sm:$0xff]
    %v401 = vld [vmem:[#allocation7 + $0x60] sm:$0xff]
    %v402 = vld [vmem:[#allocation7 + $0x68] sm:$0xff]
    %v403 = vld [vmem:[#allocation7 + $0x70] sm:$0xff]
    %v404 = vld [vmem:[#allocation7 + $0x78] sm:$0xff]
    %v405 = vld [vmem:[#allocation7 + $0x80] sm:$0xff]
    %v406 = vld [vmem:[#allocation7 + $0x88] sm:$0xff]
    %v407 = vld [vmem:[#allocation7 + $0x90] sm:$0xff]
    %v408 = vld [vmem:[#allocation7 + $0x98] sm:$0xff]
    %v409 = vld [vmem:[#allocation7 + $0xa0] sm:$0xff]
    %v410 = vld [vmem:[#allocation7 + $0xa8] sm:$0xff]
    %v411 = vld [vmem:[#allocation7 + $0xb0] sm:$0xff]
    %v412 = vld [vmem:[#allocation7 + $0xb8] sm:$0xff]
    %v413 = vld [vmem:[#allocation7 + $0xc0] sm:$0xff]
    %v414 = vld [vmem:[#allocation7 + $0xc8] sm:$0xff]
    %v415 = vld [vmem:[#allocation7 + $0xd0] sm:$0xff]
    %v416 = vld [vmem:[#allocation7 + $0xd8] sm:$0xff]
    %v417 = vld [vmem:[#allocation7 + $0xe0] sm:$0xff]
    %v418 = vld [vmem:[#allocation7 + $0xe8] sm:$0xff]
    %v419 = vld [vmem:[#allocation7 + $0xf0] sm:$0xff]
    %v420 = vld [vmem:[#allocation7 + $0xf8] sm:$0xff]
    %v421 = vld [vmem:[#allocation7 + $0x100] sm:$0xff]
    %v422 = vld [vmem:[#allocation7 + $0x108] sm:$0xff]
    %v423 = vld [vmem:[#allocation7 + $0x110] sm:$0xff]
    %v424 = vld [vmem:[#allocation7 + $0x118] sm:$0xff]
    %v425 = vld [vmem:[#allocation7 + $0x120] sm:$0xff]
    %v426 = vld [vmem:[#allocation7 + $0x128] sm:$0xff]
    %v427 = vld [vmem:[#allocation7 + $0x130] sm:$0xff]
    %v428 = vld [vmem:[#allocation7 + $0x138] sm:$0xff]
    %v429 = vld [vmem:[#allocation7 + $0x140] sm:$0xff]
    %v430 = vld [vmem:[#allocation7 + $0x148] sm:$0xff]
    %v431 = vld [vmem:[#allocation7 + $0x150] sm:$0xff]
    %v432 = vld [vmem:[#allocation7 + $0x158] sm:$0xff]
    %v433 = vld [vmem:[#allocation7 + $0x160] sm:$0xff]
    %v434 = vld [vmem:[#allocation7 + $0x168] sm:$0xff]
    %v435 = vld [vmem:[#allocation7 + $0x170] sm:$0xff]
    %v436 = vld [vmem:[#allocation7 + $0x178] sm:$0xff]
    %v437 = vld [vmem:[#allocation7 + $0x180] sm:$0xff]
    %v438 = vld [vmem:[#allocation7 + $0x188] sm:$0xff]
    %v439 = vld [vmem:[#allocation7 + $0x190] sm:$0xff]
    %v440 = vld [vmem:[#allocation7 + $0x198] sm:$0xff]
    %v441 = vld [vmem:[#allocation7 + $0x1a0] sm:$0xff]
    %v442 = vld [vmem:[#allocation7 + $0x1a8] sm:$0xff]
    %v443 = vld [vmem:[#allocation7 + $0x1b0] sm:$0xff]
    %v444 = vld [vmem:[#allocation7 + $0x1b8] sm:$0xff]
    %v445 = vld [vmem:[#allocation7 + $0x1c0] sm:$0xff]
    %v446 = vld [vmem:[#allocation7 + $0x1c8] sm:$0xff]
    %v447 = vld [vmem:[#allocation7 + $0x1d0] sm:$0xff]
    %v448 = vld [vmem:[#allocation7 + $0x1d8] sm:$0xff]
    %v449 = vld [vmem:[#allocation7 + $0x1e0] sm:$0xff]
    %v450 = vld [vmem:[#allocation7 + $0x1e8] sm:$0xff]
    %v451 = vld [vmem:[#allocation7 + $0x1f0] sm:$0xff]
    %v452 = vld [vmem:[#allocation7 + $0x1f8] sm:$0xff]
    %453 = vmatprep.subr.mxu0 %v390
    %454 = vmatpush1.msra.mxu0 %v389
    %455 = vmatprep.subr.mxu0 %v394
    %456 = vmatpush1.msra.mxu0 %v393
    %457 = vmatprep.subr.mxu0 %v398
    %458 = vmatpush1.msra.mxu0 %v397
    %459 = vmatprep.subr.mxu0 %v402
    %460 = vmatpush1.msra.mxu0 %v401
    %461 = vmatprep.subr.mxu0 %v406
    %462 = vmatpush1.msra.mxu0 %v405
    %463 = vmatprep.subr.mxu0 %v410
    %464 = vmatpush1.msra.mxu0 %v409
    %465 = vmatprep.subr.mxu0 %v414
    %466 = vmatpush1.msra.mxu0 %v413
    %467 = vmatprep.subr.mxu0 %v418
    %468 = vmatpush1.msra.mxu0 %v417
    %469 = vmatprep.subr.mxu0 %v422
    %470 = vmatpush1.msra.mxu0 %v421
    %471 = vmatprep.subr.mxu0 %v426
    %472 = vmatpush1.msra.mxu0 %v425
    %473 = vmatprep.subr.mxu0 %v430
    %474 = vmatpush1.msra.mxu0 %v429
    %475 = vmatprep.subr.mxu0 %v434
    %476 = vmatpush1.msra.mxu0 %v433
    %477 = vmatprep.subr.mxu0 %v438
    %478 = vmatpush1.msra.mxu0 %v437
    %479 = vmatprep.subr.mxu0 %v442
    %480 = vmatpush1.msra.mxu0 %v441
    %481 = vmatprep.subr.mxu0 %v446
    %482 = vmatpush1.msra.mxu0 %v445
    %483 = vmatprep.subr.mxu0 %v450
    %484 = vmatpush1.msra.mxu0 %v449
    %485 = vmatprep.subr.mxu0 0.0
    %486 = vmatpush1.msra.mxu0 0.0
    %487 = vmatprep.subr.mxu0 0.0
    %488 = vmatpush1.msra.mxu0 0.0
    %489 = vmatprep.subr.mxu0 0.0
    %490 = vmatpush1.msra.mxu0 0.0
    %491 = vmatprep.subr.mxu0 0.0
    %492 = vmatpush1.msra.mxu0 0.0
    %493 = vmatprep.subr.mxu0 0.0
    %494 = vmatpush1.msra.mxu0 0.0
    %495 = vmatprep.subr.mxu0 0.0
    %496 = vmatpush1.msra.mxu0 0.0
    %497 = vmatprep.subr.mxu0 0.0
    %498 = vmatpush1.msra.mxu0 0.0
    %499 = vmatprep.subr.mxu0 0.0
    %500 = vmatpush1.msra.mxu0 0.0
    %501 = vmatprep.subr.mxu0 0.0
    %502 = vmatpush1.msra.mxu0 0.0
    %503 = vmatprep.subr.mxu0 0.0
    %504 = vmatpush1.msra.mxu0 0.0
    %505 = vmatprep.subr.mxu0 0.0
    %506 = vmatpush1.msra.mxu0 0.0
    %507 = vmatprep.subr.mxu0 0.0
    %508 = vmatpush1.msra.mxu0 0.0
    %509 = vmatprep.subr.mxu0 0.0
    %510 = vmatpush1.msra.mxu0 0.0
    %511 = vmatprep.subr.mxu0 0.0
    %512 = vmatpush1.msra.mxu0 0.0
    %513 = vmatprep.subr.mxu0 0.0
    %514 = vmatpush1.msra.mxu0 0.0
    %515 = vmatprep.subr.mxu0 0.0
    %516 = vmatpush1.msra.mxu0 0.0
    %517 = vmatprep.mubr.f32.mxu0 0.0
    %518 = vmatmul.mubr.f32.gmra.mrb[0].mxu0 0.0
    %v519 = vpop.f32.mrb[0].mxu0
    %v520 = vadd.f32 0.0, %v519
    %v521 = vpop.f32.mrb[0].mxu0
    %v522 = vadd.f32 0.0, %v521
    %523 = vdwg.mxu0
    %524 = vmatprep.subr.mxu0 %v392
    %525 = vmatpush1.msra.mxu0 %v391
    %526 = vmatprep.subr.mxu0 %v396
    %527 = vmatpush1.msra.mxu0 %v395
    %528 = vmatprep.subr.mxu0 %v400
    %529 = vmatpush1.msra.mxu0 %v399
    %530 = vmatprep.subr.mxu0 %v404
    %531 = vmatpush1.msra.mxu0 %v403
    %532 = vmatprep.subr.mxu0 %v408
    %533 = vmatpush1.msra.mxu0 %v407
    %534 = vmatprep.subr.mxu0 %v412
    %535 = vmatpush1.msra.mxu0 %v411
    %536 = vmatprep.subr.mxu0 %v416
    %537 = vmatpush1.msra.mxu0 %v415
    %538 = vmatprep.subr.mxu0 %v420
    %539 = vmatpush1.msra.mxu0 %v419
    %540 = vmatprep.subr.mxu0 %v424
    %541 = vmatpush1.msra.mxu0 %v423
    %542 = vmatprep.subr.mxu0 %v428
    %543 = vmatpush1.msra.mxu0 %v427
    %544 = vmatprep.subr.mxu0 %v432
    %545 = vmatpush1.msra.mxu0 %v431
    %546 = vmatprep.subr.mxu0 %v436
    %547 = vmatpush1.msra.mxu0 %v435
    %548 = vmatprep.subr.mxu0 %v440
    %549 = vmatpush1.msra.mxu0 %v439
    %550 = vmatprep.subr.mxu0 %v444
    %551 = vmatpush1.msra.mxu0 %v443
    %552 = vmatprep.subr.mxu0 %v448
    %553 = vmatpush1.msra.mxu0 %v447
    %554 = vmatprep.subr.mxu0 %v452
    %555 = vmatpush1.msra.mxu0 %v451
    %556 = vmatprep.subr.mxu0 0.0
    %557 = vmatpush1.msra.mxu0 0.0
    %558 = vmatprep.subr.mxu0 0.0
    %559 = vmatpush1.msra.mxu0 0.0
    %560 = vmatprep.subr.mxu0 0.0
    %561 = vmatpush1.msra.mxu0 0.0
    %562 = vmatprep.subr.mxu0 0.0
    %563 = vmatpush1.msra.mxu0 0.0
    %564 = vmatprep.subr.mxu0 0.0
    %565 = vmatpush1.msra.mxu0 0.0
    %566 = vmatprep.subr.mxu0 0.0
    %567 = vmatpush1.msra.mxu0 0.0
    %568 = vmatprep.subr.mxu0 0.0
    %569 = vmatpush1.msra.mxu0 0.0
    %570 = vmatprep.subr.mxu0 0.0
    %571 = vmatpush1.msra.mxu0 0.0
    %572 = vmatprep.subr.mxu0 0.0
    %573 = vmatpush1.msra.mxu0 0.0
    %574 = vmatprep.subr.mxu0 0.0
    %575 = vmatpush1.msra.mxu0 0.0
    %576 = vmatprep.subr.mxu0 0.0
    %577 = vmatpush1.msra.mxu0 0.0
    %578 = vmatprep.subr.mxu0 0.0
    %579 = vmatpush1.msra.mxu0 0.0
    %580 = vmatprep.subr.mxu0 0.0
    %581 = vmatpush1.msra.mxu0 0.0
    %582 = vmatprep.subr.mxu0 0.0
    %583 = vmatpush1.msra.mxu0 0.0
    %584 = vmatprep.subr.mxu0 0.0
    %585 = vmatpush1.msra.mxu0 0.0
    %586 = vmatprep.subr.mxu0 0.0
    %587 = vmatpush1.msra.mxu0 0.0
    %588 = vmatprep.mubr.f32.mxu0 0.0
    %589 = vmatmul.mubr.f32.gmra.mrb[0].mxu0 0.0
    %v590 = vpop.f32.mrb[0].mxu0
    %v591 = vadd.f32 0.0, %v590
    %v592 = vpop.f32.mrb[0].mxu0
    %v593 = vadd.f32 0.0, %v592
    %594 = vdwg.mxu0
    %v595 = vld [vmem:[#allocation2] sm:$0xff]
    %v596 = vld [vmem:[#allocation2 + $0x8] sm:$0xff]
    %v597 = vld [vmem:[#allocation2 + $0x10] sm:$0xff]
    %v598 = vld [vmem:[#allocation2 + $0x18] sm:$0xff]
    %v599 = vadd.f32 %v595, %v520
    %v600 = vadd.f32 %v596, %v522
    %v601 = vadd.f32 %v597, %v591
    %v602 = vadd.f32 %v598, %v593
    %v603 = vxor.u32 %v599, 2147483648
    %v604 = vxor.u32 %v600, 2147483648
    %v605 = vxor.u32 %v601, 2147483648
    %v606 = vmul.f32 %v603, 1.442695
    %v607 = vpow.pop %v606
    %v608 = vmul.f32 %v604, 1.442695
    %v609 = vpow.pop %v608
    %v610 = vmul.f32 %v605, 1.442695
    %v611 = vpow.pop %v610
    %v612 = vadd.f32 %v607, 1.0
    %v613 = vadd.f32 %v609, 1.0
    %v614 = vadd.f32 %v611, 1.0
    %v615 = vrcp.pop %v612
    %v616 = vmul.f32 1.0, %v615
    %v617 = vrcp.pop %v613
    %v618 = vmul.f32 1.0, %v617
    %v619 = vrcp.pop %v614
    %v620 = vmul.f32 1.0, %v619
    %v621 = vtanh.pop %v602
    %v622 = vmul.f32 %v618, 0.0
    %v623 = vmul.f32 %v616, %v621
    %v624 = vadd.f32 %v622, %v623
    %v625 = vtanh.pop %v624
    %v626 = vmul.f32 %v620, %v625
    %627 = vmatprep.subr.mxu0 %v390
    %628 = vmatpush1.msra.mxu0 %v389
    %629 = vmatprep.subr.mxu0 %v394
    %630 = vmatpush1.msra.mxu0 %v393
    %631 = vmatprep.subr.mxu0 %v398
    %632 = vmatpush1.msra.mxu0 %v397
    %633 = vmatprep.subr.mxu0 %v402
    %634 = vmatpush1.msra.mxu0 %v401
    %635 = vmatprep.subr.mxu0 %v406
    %636 = vmatpush1.msra.mxu0 %v405
    %637 = vmatprep.subr.mxu0 %v410
    %638 = vmatpush1.msra.mxu0 %v409
    %639 = vmatprep.subr.mxu0 %v414
    %640 = vmatpush1.msra.mxu0 %v413
    %641 = vmatprep.subr.mxu0 %v418
    %642 = vmatpush1.msra.mxu0 %v417
    %643 = vmatprep.subr.mxu0 %v422
    %644 = vmatpush1.msra.mxu0 %v421
    %645 = vmatprep.subr.mxu0 %v426
    %646 = vmatpush1.msra.mxu0 %v425
    %647 = vmatprep.subr.mxu0 %v430
    %648 = vmatpush1.msra.mxu0 %v429
    %649 = vmatprep.subr.mxu0 %v434
    %650 = vmatpush1.msra.mxu0 %v433
    %651 = vmatprep.subr.mxu0 %v438
    %652 = vmatpush1.msra.mxu0 %v437
    %653 = vmatprep.subr.mxu0 %v442
    %654 = vmatpush1.msra.mxu0 %v441
    %655 = vmatprep.subr.mxu0 %v446
    %656 = vmatpush1.msra.mxu0 %v445
    %657 = vmatprep.subr.mxu0 %v450
    %658 = vmatpush1.msra.mxu0 %v449
    %659 = vmatprep.subr.mxu0 0.0
    %660 = vmatpush1.msra.mxu0 0.0
    %661 = vmatprep.subr.mxu0 0.0
    %662 = vmatpush1.msra.mxu0 0.0
    %663 = vmatprep.subr.mxu0 0.0
    %664 = vmatpush1.msra.mxu0 0.0
    %665 = vmatprep.subr.mxu0 0.0
    %666 = vmatpush1.msra.mxu0 0.0
    %667 = vmatprep.subr.mxu0 0.0
    %668 = vmatpush1.msra.mxu0 0.0
    %669 = vmatprep.subr.mxu0 0.0
    %670 = vmatpush1.msra.mxu0 0.0
    %671 = vmatprep.subr.mxu0 0.0
    %672 = vmatpush1.msra.mxu0 0.0
    %673 = vmatprep.subr.mxu0 0.0
    %674 = vmatpush1.msra.mxu0 0.0
    %675 = vmatprep.subr.mxu0 0.0
    %676 = vmatpush1.msra.mxu0 0.0
    %677 = vmatprep.subr.mxu0 0.0
    %678 = vmatpush1.msra.mxu0 0.0
    %679 = vmatprep.subr.mxu0 0.0
    %680 = vmatpush1.msra.mxu0 0.0
    %681 = vmatprep.subr.mxu0 0.0
    %682 = vmatpush1.msra.mxu0 0.0
    %683 = vmatprep.subr.mxu0 0.0
    %684 = vmatpush1.msra.mxu0 0.0
    %685 = vmatprep.subr.mxu0 0.0
    %686 = vmatpush1.msra.mxu0 0.0
    %687 = vmatprep.subr.mxu0 0.0
    %688 = vmatpush1.msra.mxu0 0.0
    %689 = vmatprep.subr.mxu0 0.0
    %690 = vmatpush1.msra.mxu0 0.0
    %691 = vmatprep.mubr.f32.mxu0 0.0
    %692 = vmatmul.mubr.f32.gmra.mrb[0].mxu0 %v626
    %v693 = vpop.f32.mrb[0].mxu0
    %v694 = vadd.f32 0.0, %v693
    %v695 = vpop.f32.mrb[0].mxu0
    %v696 = vadd.f32 0.0, %v695
    %697 = vdwg.mxu0
    %698 = vmatprep.subr.mxu0 %v392
    %699 = vmatpush1.msra.mxu0 %v391
    %700 = vmatprep.subr.mxu0 %v396
    %701 = vmatpush1.msra.mxu0 %v395
    %702 = vmatprep.subr.mxu0 %v400
    %703 = vmatpush1.msra.mxu0 %v399
    %704 = vmatprep.subr.mxu0 %v404
    %705 = vmatpush1.msra.mxu0 %v403
    %706 = vmatprep.subr.mxu0 %v408
    %707 = vmatpush1.msra.mxu0 %v407
    %708 = vmatprep.subr.mxu0 %v412
    %709 = vmatpush1.msra.mxu0 %v411
    %710 = vmatprep.subr.mxu0 %v416
    %711 = vmatpush1.msra.mxu0 %v415
    %712 = vmatprep.subr.mxu0 %v420
    %713 = vmatpush1.msra.mxu0 %v419
    %714 = vmatprep.subr.mxu0 %v424
    %715 = vmatpush1.msra.mxu0 %v423
    %716 = vmatprep.subr.mxu0 %v428
    %717 = vmatpush1.msra.mxu0 %v427
    %718 = vmatprep.subr.mxu0 %v432
    %719 = vmatpush1.msra.mxu0 %v431
    %720 = vmatprep.subr.mxu0 %v436
    %721 = vmatpush1.msra.mxu0 %v435
    %722 = vmatprep.subr.mxu0 %v440
    %723 = vmatpush1.msra.mxu0 %v439
    %724 = vmatprep.subr.mxu0 %v444
    %725 = vmatpush1.msra.mxu0 %v443
    %726 = vmatprep.subr.mxu0 %v448
    %727 = vmatpush1.msra.mxu0 %v447
    %728 = vmatprep.subr.mxu0 %v452
    %729 = vmatpush1.msra.mxu0 %v451
    %730 = vmatprep.subr.mxu0 0.0
    %731 = vmatpush1.msra.mxu0 0.0
    %732 = vmatprep.subr.mxu0 0.0
    %733 = vmatpush1.msra.mxu0 0.0
    %734 = vmatprep.subr.mxu0 0.0
    %735 = vmatpush1.msra.mxu0 0.0
    %736 = vmatprep.subr.mxu0 0.0
    %737 = vmatpush1.msra.mxu0 0.0
    %738 = vmatprep.subr.mxu0 0.0
    %739 = vmatpush1.msra.mxu0 0.0
    %740 = vmatprep.subr.mxu0 0.0
    %741 = vmatpush1.msra.mxu0 0.0
    %742 = vmatprep.subr.mxu0 0.0
    %743 = vmatpush1.msra.mxu0 0.0
    %744 = vmatprep.subr.mxu0 0.0
    %745 = vmatpush1.msra.mxu0 0.0
    %746 = vmatprep.subr.mxu0 0.0
    %747 = vmatpush1.msra.mxu0 0.0
    %748 = vmatprep.subr.mxu0 0.0
    %749 = vmatpush1.msra.mxu0 0.0
    %750 = vmatprep.subr.mxu0 0.0
    %751 = vmatpush1.msra.mxu0 0.0
    %752 = vmatprep.subr.mxu0 0.0
    %753 = vmatpush1.msra.mxu0 0.0
    %754 = vmatprep.subr.mxu0 0.0
    %755 = vmatpush1.msra.mxu0 0.0
    %756 = vmatprep.subr.mxu0 0.0
    %757 = vmatpush1.msra.mxu0 0.0
    %758 = vmatprep.subr.mxu0 0.0
    %759 = vmatpush1.msra.mxu0 0.0
    %760 = vmatprep.subr.mxu0 0.0
    %761 = vmatpush1.msra.mxu0 0.0
    %762 = vmatprep.mubr.f32.mxu0 0.0
    %763 = vmatmul.mubr.f32.gmra.mrb[0].mxu0 %v626
    %v764 = vpop.f32.mrb[0].mxu0
    %v765 = vadd.f32 0.0, %v764
    %v766 = vpop.f32.mrb[0].mxu0
    %v767 = vadd.f32 0.0, %v766
    %768 = vdwg.mxu0
    %s769 = smul.u32 1, 4
    %s770 = smul.addr %s769, 8
    %s771 = scalar_lea.vmem [#allocation2], %s770
    %v772 = vld [vmem:[%s771] sm:$0xff]
    %v773 = vld [vmem:[%s771 + $0x8] sm:$0xff]
    %v774 = vld [vmem:[%s771 + $0x10] sm:$0xff]
    %v775 = vld [vmem:[%s771 + $0x18] sm:$0xff]
    %v776 = vadd.f32 %v772, %v694
    %v777 = vadd.f32 %v773, %v696
    %v778 = vadd.f32 %v774, %v765
    %v779 = vadd.f32 %v775, %v767
    %v780 = vxor.u32 %v776, 2147483648
    %v781 = vxor.u32 %v777, 2147483648
    %v782 = vxor.u32 %v778, 2147483648
    %v783 = vmul.f32 %v780, 1.442695
    %v784 = vpow.pop %v783
    %v785 = vmul.f32 %v781, 1.442695
    %v786 = vpow.pop %v785
    %v787 = vmul.f32 %v782, 1.442695
    %v788 = vpow.pop %v787
    %v789 = vadd.f32 %v784, 1.0
    %v790 = vadd.f32 %v786, 1.0
    %v791 = vadd.f32 %v788, 1.0
    %v792 = vrcp.pop %v789
    %v793 = vmul.f32 1.0, %v792
    %v794 = vrcp.pop %v790
    %v795 = vmul.f32 1.0, %v794
    %v796 = vrcp.pop %v791
    %v797 = vmul.f32 1.0, %v796
    %v798 = vtanh.pop %v779
    %v799 = vmul.f32 %v795, %v624
    %v800 = vmul.f32 %v793, %v798
    %v801 = vadd.f32 %v799, %v800
    %v802 = vtanh.pop %v801
    %v803 = vmul.f32 %v797, %v802
    %s804 = scalar_lea.vmem [#allocation7], 512
    %v805 = vld [vmem:[%s804] sm:$0xff]
    %v806 = vld [vmem:[%s804 + $0x8] sm:$0xff]
    %v807 = vld [vmem:[%s804 + $0x10] sm:$0xff]
    %v808 = vld [vmem:[%s804 + $0x18] sm:$0xff]
    %v809 = vld [vmem:[%s804 + $0x20] sm:$0xff]
    %v810 = vld [vmem:[%s804 + $0x28] sm:$0xff]
    %v811 = vld [vmem:[%s804 + $0x30] sm:$0xff]
    %v812 = vld [vmem:[%s804 + $0x38] sm:$0xff]
    %v813 = vld [vmem:[%s804 + $0x40] sm:$0xff]
    %v814 = vld [vmem:[%s804 + $0x48] sm:$0xff]
    %v815 = vld [vmem:[%s804 + $0x50] sm:$0xff]
    %v816 = vld [vmem:[%s804 + $0x58] sm:$0xff]
    %v817 = vld [vmem:[%s804 + $0x60] sm:$0xff]
    %v818 = vld [vmem:[%s804 + $0x68] sm:$0xff]
    %v819 = vld [vmem:[%s804 + $0x70] sm:$0xff]
    %v820 = vld [vmem:[%s804 + $0x78] sm:$0xff]
    %v821 = vld [vmem:[%s804 + $0x80] sm:$0xff]
    %v822 = vld [vmem:[%s804 + $0x88] sm:$0xff]
    %v823 = vld [vmem:[%s804 + $0x90] sm:$0xff]
    %v824 = vld [vmem:[%s804 + $0x98] sm:$0xff]
    %v825 = vld [vmem:[%s804 + $0xa0] sm:$0xff]
    %v826 = vld [vmem:[%s804 + $0xa8] sm:$0xff]
    %v827 = vld [vmem:[%s804 + $0xb0] sm:$0xff]
    %v828 = vld [vmem:[%s804 + $0xb8] sm:$0xff]
    %v829 = vld [vmem:[%s804 + $0xc0] sm:$0xff]
    %v830 = vld [vmem:[%s804 + $0xc8] sm:$0xff]
    %v831 = vld [vmem:[%s804 + $0xd0] sm:$0xff]
    %v832 = vld [vmem:[%s804 + $0xd8] sm:$0xff]
    %v833 = vld [vmem:[%s804 + $0xe0] sm:$0xff]
    %v834 = vld [vmem:[%s804 + $0xe8] sm:$0xff]
    %v835 = vld [vmem:[%s804 + $0xf0] sm:$0xff]
    %v836 = vld [vmem:[%s804 + $0xf8] sm:$0xff]
    %v837 = vld [vmem:[%s804 + $0x100] sm:$0xff]
    %v838 = vld [vmem:[%s804 + $0x108] sm:$0xff]
    %v839 = vld [vmem:[%s804 + $0x110] sm:$0xff]
    %v840 = vld [vmem:[%s804 + $0x118] sm:$0xff]
    %v841 = vld [vmem:[%s804 + $0x120] sm:$0xff]
    %v842 = vld [vmem:[%s804 + $0x128] sm:$0xff]
    %v843 = vld [vmem:[%s804 + $0x130] sm:$0xff]
    %v844 = vld [vmem:[%s804 + $0x138] sm:$0xff]
    %v845 = vld [vmem:[%s804 + $0x140] sm:$0xff]
    %v846 = vld [vmem:[%s804 + $0x148] sm:$0xff]
    %v847 = vld [vmem:[%s804 + $0x150] sm:$0xff]
    %v848 = vld [vmem:[%s804 + $0x158] sm:$0xff]
    %v849 = vld [vmem:[%s804 + $0x160] sm:$0xff]
    %v850 = vld [vmem:[%s804 + $0x168] sm:$0xff]
    %v851 = vld [vmem:[%s804 + $0x170] sm:$0xff]
    %v852 = vld [vmem:[%s804 + $0x178] sm:$0xff]
    %v853 = vld [vmem:[%s804 + $0x180] sm:$0xff]
    %v854 = vld [vmem:[%s804 + $0x188] sm:$0xff]
    %v855 = vld [vmem:[%s804 + $0x190] sm:$0xff]
    %v856 = vld [vmem:[%s804 + $0x198] sm:$0xff]
    %v857 = vld [vmem:[%s804 + $0x1a0] sm:$0xff]
    %v858 = vld [vmem:[%s804 + $0x1a8] sm:$0xff]
    %v859 = vld [vmem:[%s804 + $0x1b0] sm:$0xff]
    %v860 = vld [vmem:[%s804 + $0x1b8] sm:$0xff]
    %v861 = vld [vmem:[%s804 + $0x1c0] sm:$0xff]
    %v862 = vld [vmem:[%s804 + $0x1c8] sm:$0xff]
    %v863 = vld [vmem:[%s804 + $0x1d0] sm:$0xff]
    %v864 = vld [vmem:[%s804 + $0x1d8] sm:$0xff]
    %v865 = vld [vmem:[%s804 + $0x1e0] sm:$0xff]
    %v866 = vld [vmem:[%s804 + $0x1e8] sm:$0xff]
    %v867 = vld [vmem:[%s804 + $0x1f0] sm:$0xff]
    %v868 = vld [vmem:[%s804 + $0x1f8] sm:$0xff]
    %869 = vmatprep.subr.mxu0 %v806
    %870 = vmatpush1.msra.mxu0 %v805
    %871 = vmatprep.subr.mxu0 %v810
    %872 = vmatpush1.msra.mxu0 %v809
    %873 = vmatprep.subr.mxu0 %v814
    %874 = vmatpush1.msra.mxu0 %v813
    %875 = vmatprep.subr.mxu0 %v818
    %876 = vmatpush1.msra.mxu0 %v817
    %877 = vmatprep.subr.mxu0 %v822
    %878 = vmatpush1.msra.mxu0 %v821
    %879 = vmatprep.subr.mxu0 %v826
    %880 = vmatpush1.msra.mxu0 %v825
    %881 = vmatprep.subr.mxu0 %v830
    %882 = vmatpush1.msra.mxu0 %v829
    %883 = vmatprep.subr.mxu0 %v834
    %884 = vmatpush1.msra.mxu0 %v833
    %885 = vmatprep.subr.mxu0 %v838
    %886 = vmatpush1.msra.mxu0 %v837
    %887 = vmatprep.subr.mxu0 %v842
    %888 = vmatpush1.msra.mxu0 %v841
    %889 = vmatprep.subr.mxu0 %v846
    %890 = vmatpush1.msra.mxu0 %v845
    %891 = vmatprep.subr.mxu0 %v850
    %892 = vmatpush1.msra.mxu0 %v849
    %893 = vmatprep.subr.mxu0 %v854
    %894 = vmatpush1.msra.mxu0 %v853
    %895 = vmatprep.subr.mxu0 %v858
    %896 = vmatpush1.msra.mxu0 %v857
    %897 = vmatprep.subr.mxu0 %v862
    %898 = vmatpush1.msra.mxu0 %v861
    %899 = vmatprep.subr.mxu0 %v866
    %900 = vmatpush1.msra.mxu0 %v865
    %901 = vmatprep.subr.mxu0 0.0
    %902 = vmatpush1.msra.mxu0 0.0
    %903 = vmatprep.subr.mxu0 0.0
    %904 = vmatpush1.msra.mxu0 0.0
    %905 = vmatprep.subr.mxu0 0.0
    %906 = vmatpush1.msra.mxu0 0.0
    %907 = vmatprep.subr.mxu0 0.0
    %908 = vmatpush1.msra.mxu0 0.0
    %909 = vmatprep.subr.mxu0 0.0
    %910 = vmatpush1.msra.mxu0 0.0
    %911 = vmatprep.subr.mxu0 0.0
    %912 = vmatpush1.msra.mxu0 0.0
    %913 = vmatprep.subr.mxu0 0.0
    %914 = vmatpush1.msra.mxu0 0.0
    %915 = vmatprep.subr.mxu0 0.0
    %916 = vmatpush1.msra.mxu0 0.0
    %917 = vmatprep.subr.mxu0 0.0
    %918 = vmatpush1.msra.mxu0 0.0
    %919 = vmatprep.subr.mxu0 0.0
    %920 = vmatpush1.msra.mxu0 0.0
    %921 = vmatprep.subr.mxu0 0.0
    %922 = vmatpush1.msra.mxu0 0.0
    %923 = vmatprep.subr.mxu0 0.0
    %924 = vmatpush1.msra.mxu0 0.0
    %925 = vmatprep.subr.mxu0 0.0
    %926 = vmatpush1.msra.mxu0 0.0
    %927 = vmatprep.subr.mxu0 0.0
    %928 = vmatpush1.msra.mxu0 0.0
    %929 = vmatprep.subr.mxu0 0.0
    %930 = vmatpush1.msra.mxu0 0.0
    %931 = vmatprep.subr.mxu0 0.0
    %932 = vmatpush1.msra.mxu0 0.0
    %933 = vmatprep.mubr.f32.mxu0 0.0
    %934 = vmatmul.mubr.f32.gmra.mrb[0].mxu0 0.0
    %v935 = vpop.f32.mrb[0].mxu0
    %v936 = vadd.f32 0.0, %v935
    %v937 = vpop.f32.mrb[0].mxu0
    %v938 = vadd.f32 0.0, %v937
    %939 = vdwg.mxu0
    %940 = vmatprep.subr.mxu0 %v808
    %941 = vmatpush1.msra.mxu0 %v807
    %942 = vmatprep.subr.mxu0 %v812
    %943 = vmatpush1.msra.mxu0 %v811
    %944 = vmatprep.subr.mxu0 %v816
    %945 = vmatpush1.msra.mxu0 %v815
    %946 = vmatprep.subr.mxu0 %v820
    %947 = vmatpush1.msra.mxu0 %v819
    %948 = vmatprep.subr.mxu0 %v824
    %949 = vmatpush1.msra.mxu0 %v823
    %950 = vmatprep.subr.mxu0 %v828
    %951 = vmatpush1.msra.mxu0 %v827
    %952 = vmatprep.subr.mxu0 %v832
    %953 = vmatpush1.msra.mxu0 %v831
    %954 = vmatprep.subr.mxu0 %v836
    %955 = vmatpush1.msra.mxu0 %v835
    %956 = vmatprep.subr.mxu0 %v840
    %957 = vmatpush1.msra.mxu0 %v839
    %958 = vmatprep.subr.mxu0 %v844
    %959 = vmatpush1.msra.mxu0 %v843
    %960 = vmatprep.subr.mxu0 %v848
    %961 = vmatpush1.msra.mxu0 %v847
    %962 = vmatprep.subr.mxu0 %v852
    %963 = vmatpush1.msra.mxu0 %v851
    %964 = vmatprep.subr.mxu0 %v856
    %965 = vmatpush1.msra.mxu0 %v855
    %966 = vmatprep.subr.mxu0 %v860
    %967 = vmatpush1.msra.mxu0 %v859
    %968 = vmatprep.subr.mxu0 %v864
    %969 = vmatpush1.msra.mxu0 %v863
    %970 = vmatprep.subr.mxu0 %v868
    %971 = vmatpush1.msra.mxu0 %v867
    %972 = vmatprep.subr.mxu0 0.0
    %973 = vmatpush1.msra.mxu0 0.0
    %974 = vmatprep.subr.mxu0 0.0
    %975 = vmatpush1.msra.mxu0 0.0
    %976 = vmatprep.subr.mxu0 0.0
    %977 = vmatpush1.msra.mxu0 0.0
    %978 = vmatprep.subr.mxu0 0.0
    %979 = vmatpush1.msra.mxu0 0.0
    %980 = vmatprep.subr.mxu0 0.0
    %981 = vmatpush1.msra.mxu0 0.0
    %982 = vmatprep.subr.mxu0 0.0
    %983 = vmatpush1.msra.mxu0 0.0
    %984 = vmatprep.subr.mxu0 0.0
    %985 = vmatpush1.msra.mxu0 0.0
    %986 = vmatprep.subr.mxu0 0.0
    %987 = vmatpush1.msra.mxu0 0.0
    %988 = vmatprep.subr.mxu0 0.0
    %989 = vmatpush1.msra.mxu0 0.0
    %990 = vmatprep.subr.mxu0 0.0
    %991 = vmatpush1.msra.mxu0 0.0
    %992 = vmatprep.subr.mxu0 0.0
    %993 = vmatpush1.msra.mxu0 0.0
    %994 = vmatprep.subr.mxu0 0.0
    %995 = vmatpush1.msra.mxu0 0.0
    %996 = vmatprep.subr.mxu0 0.0
    %997 = vmatpush1.msra.mxu0 0.0
    %998 = vmatprep.subr.mxu0 0.0
    %999 = vmatpush1.msra.mxu0 0.0
    %1000 = vmatprep.subr.mxu0 0.0
    %1001 = vmatpush1.msra.mxu0 0.0
    %1002 = vmatprep.subr.mxu0 0.0
    %1003 = vmatpush1.msra.mxu0 0.0
    %1004 = vmatprep.mubr.f32.mxu0 0.0
    %1005 = vmatmul.mubr.f32.gmra.mrb[0].mxu0 0.0
    %v1006 = vpop.f32.mrb[0].mxu0
    %v1007 = vadd.f32 0.0, %v1006
    %v1008 = vpop.f32.mrb[0].mxu0
    %v1009 = vadd.f32 0.0, %v1008
    %1010 = vdwg.mxu0
    %v1011 = vld [vmem:[#allocation4] sm:$0xff]
    %v1012 = vld [vmem:[#allocation4 + $0x8] sm:$0xff]
    %v1013 = vld [vmem:[#allocation4 + $0x10] sm:$0xff]
    %v1014 = vld [vmem:[#allocation4 + $0x18] sm:$0xff]
    %v1015 = vld [vmem:[#allocation4 + $0x20] sm:$0xff]
    %v1016 = vld [vmem:[#allocation4 + $0x28] sm:$0xff]
    %v1017 = vld [vmem:[#allocation4 + $0x30] sm:$0xff]
    %v1018 = vld [vmem:[#allocation4 + $0x38] sm:$0xff]
    %v1019 = vld [vmem:[#allocation4 + $0x40] sm:$0xff]
    %v1020 = vld [vmem:[#allocation4 + $0x48] sm:$0xff]
    %v1021 = vld [vmem:[#allocation4 + $0x50] sm:$0xff]
    %v1022 = vld [vmem:[#allocation4 + $0x58] sm:$0xff]
    %v1023 = vld [vmem:[#allocation4 + $0x60] sm:$0xff]
    %v1024 = vld [vmem:[#allocation4 + $0x68] sm:$0xff]
    %v1025 = vld [vmem:[#allocation4 + $0x70] sm:$0xff]
    %v1026 = vld [vmem:[#allocation4 + $0x78] sm:$0xff]
    %v1027 = vld [vmem:[#allocation4 + $0x80] sm:$0xff]
    %v1028 = vld [vmem:[#allocation4 + $0x88] sm:$0xff]
    %v1029 = vld [vmem:[#allocation4 + $0x90] sm:$0xff]
    %v1030 = vld [vmem:[#allocation4 + $0x98] sm:$0xff]
    %v1031 = vld [vmem:[#allocation4 + $0xa0] sm:$0xff]
    %v1032 = vld [vmem:[#allocation4 + $0xa8] sm:$0xff]
    %v1033 = vld [vmem:[#allocation4 + $0xb0] sm:$0xff]
    %v1034 = vld [vmem:[#allocation4 + $0xb8] sm:$0xff]
    %v1035 = vld [vmem:[#allocation4 + $0xc0] sm:$0xff]
    %v1036 = vld [vmem:[#allocation4 + $0xc8] sm:$0xff]
    %v1037 = vld [vmem:[#allocation4 + $0xd0] sm:$0xff]
    %v1038 = vld [vmem:[#allocation4 + $0xd8] sm:$0xff]
    %v1039 = vld [vmem:[#allocation4 + $0xe0] sm:$0xff]
    %v1040 = vld [vmem:[#allocation4 + $0xe8] sm:$0xff]
    %v1041 = vld [vmem:[#allocation4 + $0xf0] sm:$0xff]
    %v1042 = vld [vmem:[#allocation4 + $0xf8] sm:$0xff]
    %v1043 = vld [vmem:[#allocation4 + $0x100] sm:$0xff]
    %v1044 = vld [vmem:[#allocation4 + $0x108] sm:$0xff]
    %v1045 = vld [vmem:[#allocation4 + $0x110] sm:$0xff]
    %v1046 = vld [vmem:[#allocation4 + $0x118] sm:$0xff]
    %v1047 = vld [vmem:[#allocation4 + $0x120] sm:$0xff]
    %v1048 = vld [vmem:[#allocation4 + $0x128] sm:$0xff]
    %v1049 = vld [vmem:[#allocation4 + $0x130] sm:$0xff]
    %v1050 = vld [vmem:[#allocation4 + $0x138] sm:$0xff]
    %v1051 = vld [vmem:[#allocation4 + $0x140] sm:$0xff]
    %v1052 = vld [vmem:[#allocation4 + $0x148] sm:$0xff]
    %v1053 = vld [vmem:[#allocation4 + $0x150] sm:$0xff]
    %v1054 = vld [vmem:[#allocation4 + $0x158] sm:$0xff]
    %v1055 = vld [vmem:[#allocation4 + $0x160] sm:$0xff]
    %v1056 = vld [vmem:[#allocation4 + $0x168] sm:$0xff]
    %v1057 = vld [vmem:[#allocation4 + $0x170] sm:$0xff]
    %v1058 = vld [vmem:[#allocation4 + $0x178] sm:$0xff]
    %v1059 = vld [vmem:[#allocation4 + $0x180] sm:$0xff]
    %v1060 = vld [vmem:[#allocation4 + $0x188] sm:$0xff]
    %v1061 = vld [vmem:[#allocation4 + $0x190] sm:$0xff]
    %v1062 = vld [vmem:[#allocation4 + $0x198] sm:$0xff]
    %v1063 = vld [vmem:[#allocation4 + $0x1a0] sm:$0xff]
    %v1064 = vld [vmem:[#allocation4 + $0x1a8] sm:$0xff]
    %v1065 = vld [vmem:[#allocation4 + $0x1b0] sm:$0xff]
    %v1066 = vld [vmem:[#allocation4 + $0x1b8] sm:$0xff]
    %v1067 = vld [vmem:[#allocation4 + $0x1c0] sm:$0xff]
    %v1068 = vld [vmem:[#allocation4 + $0x1c8] sm:$0xff]
    %v1069 = vld [vmem:[#allocation4 + $0x1d0] sm:$0xff]
    %v1070 = vld [vmem:[#allocation4 + $0x1d8] sm:$0xff]
    %v1071 = vld [vmem:[#allocation4 + $0x1e0] sm:$0xff]
    %v1072 = vld [vmem:[#allocation4 + $0x1e8] sm:$0xff]
    %v1073 = vld [vmem:[#allocation4 + $0x1f0] sm:$0xff]
    %v1074 = vld [vmem:[#allocation4 + $0x1f8] sm:$0xff]
    %1075 = vmatprep.subr.mxu0 %v1012
    %1076 = vmatpush1.msra.mxu0 %v1011
    %1077 = vmatprep.subr.mxu0 %v1016
    %1078 = vmatpush1.msra.mxu0 %v1015
    %1079 = vmatprep.subr.mxu0 %v1020
    %1080 = vmatpush1.msra.mxu0 %v1019
    %1081 = vmatprep.subr.mxu0 %v1024
    %1082 = vmatpush1.msra.mxu0 %v1023
    %1083 = vmatprep.subr.mxu0 %v1028
    %1084 = vmatpush1.msra.mxu0 %v1027
    %1085 = vmatprep.subr.mxu0 %v1032
    %1086 = vmatpush1.msra.mxu0 %v1031
    %1087 = vmatprep.subr.mxu0 %v1036
    %1088 = vmatpush1.msra.mxu0 %v1035
    %1089 = vmatprep.subr.mxu0 %v1040
    %1090 = vmatpush1.msra.mxu0 %v1039
    %1091 = vmatprep.subr.mxu0 %v1044
    %1092 = vmatpush1.msra.mxu0 %v1043
    %1093 = vmatprep.subr.mxu0 %v1048
    %1094 = vmatpush1.msra.mxu0 %v1047
    %1095 = vmatprep.subr.mxu0 %v1052
    %1096 = vmatpush1.msra.mxu0 %v1051
    %1097 = vmatprep.subr.mxu0 %v1056
    %1098 = vmatpush1.msra.mxu0 %v1055
    %1099 = vmatprep.subr.mxu0 %v1060
    %1100 = vmatpush1.msra.mxu0 %v1059
    %1101 = vmatprep.subr.mxu0 %v1064
    %1102 = vmatpush1.msra.mxu0 %v1063
    %1103 = vmatprep.subr.mxu0 %v1068
    %1104 = vmatpush1.msra.mxu0 %v1067
    %1105 = vmatprep.subr.mxu0 %v1072
    %1106 = vmatpush1.msra.mxu0 %v1071
    %1107 = vmatprep.subr.mxu0 0.0
    %1108 = vmatpush1.msra.mxu0 0.0
    %1109 = vmatprep.subr.mxu0 0.0
    %1110 = vmatpush1.msra.mxu0 0.0
    %1111 = vmatprep.subr.mxu0 0.0
    %1112 = vmatpush1.msra.mxu0 0.0
    %1113 = vmatprep.subr.mxu0 0.0
    %1114 = vmatpush1.msra.mxu0 0.0
    %1115 = vmatprep.subr.mxu0 0.0
    %1116 = vmatpush1.msra.mxu0 0.0
    %1117 = vmatprep.subr.mxu0 0.0
    %1118 = vmatpush1.msra.mxu0 0.0
    %1119 = vmatprep.subr.mxu0 0.0
    %1120 = vmatpush1.msra.mxu0 0.0
    %1121 = vmatprep.subr.mxu0 0.0
    %1122 = vmatpush1.msra.mxu0 0.0
    %1123 = vmatprep.subr.mxu0 0.0
    %1124 = vmatpush1.msra.mxu0 0.0
    %1125 = vmatprep.subr.mxu0 0.0
    %1126 = vmatpush1.msra.mxu0 0.0
    %1127 = vmatprep.subr.mxu0 0.0
    %1128 = vmatpush1.msra.mxu0 0.0
    %1129 = vmatprep.subr.mxu0 0.0
    %1130 = vmatpush1.msra.mxu0 0.0
    %1131 = vmatprep.subr.mxu0 0.0
    %1132 = vmatpush1.msra.mxu0 0.0
    %1133 = vmatprep.subr.mxu0 0.0
    %1134 = vmatpush1.msra.mxu0 0.0
    %1135 = vmatprep.subr.mxu0 0.0
    %1136 = vmatpush1.msra.mxu0 0.0
    %1137 = vmatprep.subr.mxu0 0.0
    %1138 = vmatpush1.msra.mxu0 0.0
    %1139 = vmatprep.mubr.f32.mxu0 0.0
    %1140 = vmatmul.mubr.f32.gmra.mrb[0].mxu0 %v626
    %v1141 = vpop.f32.mrb[0].mxu0
    %v1142 = vadd.f32 %v936, %v1141
    %v1143 = vpop.f32.mrb[0].mxu0
    %v1144 = vadd.f32 %v938, %v1143
    %1145 = vdwg.mxu0
    %1146 = vmatprep.subr.mxu0 %v1014
    %1147 = vmatpush1.msra.mxu0 %v1013
    %1148 = vmatprep.subr.mxu0 %v1018
    %1149 = vmatpush1.msra.mxu0 %v1017
    %1150 = vmatprep.subr.mxu0 %v1022
    %1151 = vmatpush1.msra.mxu0 %v1021
    %1152 = vmatprep.subr.mxu0 %v1026
    %1153 = vmatpush1.msra.mxu0 %v1025
    %1154 = vmatprep.subr.mxu0 %v1030
    %1155 = vmatpush1.msra.mxu0 %v1029
    %1156 = vmatprep.subr.mxu0 %v1034
    %1157 = vmatpush1.msra.mxu0 %v1033
    %1158 = vmatprep.subr.mxu0 %v1038
    %1159 = vmatpush1.msra.mxu0 %v1037
    %1160 = vmatprep.subr.mxu0 %v1042
    %1161 = vmatpush1.msra.mxu0 %v1041
    %1162 = vmatprep.subr.mxu0 %v1046
    %1163 = vmatpush1.msra.mxu0 %v1045
    %1164 = vmatprep.subr.mxu0 %v1050
    %1165 = vmatpush1.msra.mxu0 %v1049
    %1166 = vmatprep.subr.mxu0 %v1054
    %1167 = vmatpush1.msra.mxu0 %v1053
    %1168 = vmatprep.subr.mxu0 %v1058
    %1169 = vmatpush1.msra.mxu0 %v1057
    %1170 = vmatprep.subr.mxu0 %v1062
    %1171 = vmatpush1.msra.mxu0 %v1061
    %1172 = vmatprep.subr.mxu0 %v1066
    %1173 = vmatpush1.msra.mxu0 %v1065
    %1174 = vmatprep.subr.mxu0 %v1070
    %1175 = vmatpush1.msra.mxu0 %v1069
    %1176 = vmatprep.subr.mxu0 %v1074
    %1177 = vmatpush1.msra.mxu0 %v1073
    %1178 = vmatprep.subr.mxu0 0.0
    %1179 = vmatpush1.msra.mxu0 0.0
    %1180 = vmatprep.subr.mxu0 0.0
    %1181 = vmatpush1.msra.mxu0 0.0
    %1182 = vmatprep.subr.mxu0 0.0
    %1183 = vmatpush1.msra.mxu0 0.0
    %1184 = vmatprep.subr.mxu0 0.0
    %1185 = vmatpush1.msra.mxu0 0.0
    %1186 = vmatprep.subr.mxu0 0.0
    %1187 = vmatpush1.msra.mxu0 0.0
    %1188 = vmatprep.subr.mxu0 0.0
    %1189 = vmatpush1.msra.mxu0 0.0
    %1190 = vmatprep.subr.mxu0 0.0
    %1191 = vmatpush1.msra.mxu0 0.0
    %1192 = vmatprep.subr.mxu0 0.0
    %1193 = vmatpush1.msra.mxu0 0.0
    %1194 = vmatprep.subr.mxu0 0.0
    %1195 = vmatpush1.msra.mxu0 0.0
    %1196 = vmatprep.subr.mxu0 0.0
    %1197 = vmatpush1.msra.mxu0 0.0
    %1198 = vmatprep.subr.mxu0 0.0
    %1199 = vmatpush1.msra.mxu0 0.0
    %1200 = vmatprep.subr.mxu0 0.0
    %1201 = vmatpush1.msra.mxu0 0.0
    %1202 = vmatprep.subr.mxu0 0.0
    %1203 = vmatpush1.msra.mxu0 0.0
    %1204 = vmatprep.subr.mxu0 0.0
    %1205 = vmatpush1.msra.mxu0 0.0
    %1206 = vmatprep.subr.mxu0 0.0
    %1207 = vmatpush1.msra.mxu0 0.0
    %1208 = vmatprep.subr.mxu0 0.0
    %1209 = vmatpush1.msra.mxu0 0.0
    %1210 = vmatprep.mubr.f32.mxu0 0.0
    %1211 = vmatmul.mubr.f32.gmra.mrb[0].mxu0 %v626
    %v1212 = vpop.f32.mrb[0].mxu0
    %v1213 = vadd.f32 %v1007, %v1212
    %v1214 = vpop.f32.mrb[0].mxu0
    %v1215 = vadd.f32 %v1009, %v1214
    %1216 = vdwg.mxu0
    %s1217 = scalar_lea.vmem %s4, 4
    %v1218 = vld [vmem:[%s1217] sm:$0xf]
    %v1220 = vlaneseq
    %v1221 = vshrl.u32 %v1220, 7
    %v1222 = vsub.s32 0, %v1221
    %v1223 = vrot.slane %v1218, %v1222
    %v1224 = vlaneseq
    %v1225 = vshrl.u32 %v1224, 7
    %v1226 = vsub.s32 1, %v1225
    %v1227 = vrot.slane %v1218, %v1226
    %v1228 = vlaneseq
    %v1229 = vshrl.u32 %v1228, 7
    %v1230 = vsub.s32 2, %v1229
    %v1231 = vrot.slane %v1218, %v1230
    %v1232 = vlaneseq
    %v1233 = vshrl.u32 %v1232, 7
    %v1234 = vsub.s32 3, %v1233
    %v1235 = vrot.slane %v1218, %v1234
    %v1240 = vadd.f32 %v1142, %v1223
    %v1241 = vadd.f32 %v1144, %v1227
    %v1242 = vadd.f32 %v1213, %v1231
    %v1243 = vadd.f32 %v1215, %v1235
    %v1244 = vxor.u32 %v1240, 2147483648
    %v1245 = vxor.u32 %v1241, 2147483648
    %v1246 = vxor.u32 %v1242, 2147483648
    %v1247 = vmul.f32 %v1244, 1.442695
    %v1248 = vpow.pop %v1247
    %v1249 = vmul.f32 %v1245, 1.442695
    %v1250 = vpow.pop %v1249
    %v1251 = vmul.f32 %v1246, 1.442695
    %v1252 = vpow.pop %v1251
    %v1253 = vadd.f32 %v1248, 1.0
    %v1254 = vadd.f32 %v1250, 1.0
    %v1255 = vadd.f32 %v1252, 1.0
    %v1256 = vrcp.pop %v1253
    %v1257 = vmul.f32 1.0, %v1256
    %v1258 = vrcp.pop %v1254
    %v1259 = vmul.f32 1.0, %v1258
    %v1260 = vrcp.pop %v1255
    %v1261 = vmul.f32 1.0, %v1260
    %v1262 = vtanh.pop %v1243
    %v1263 = vmul.f32 %v1259, 0.0
    %v1264 = vmul.f32 %v1257, %v1262
    %v1265 = vadd.f32 %v1263, %v1264
    %v1266 = vtanh.pop %v1265
    %v1267 = vmul.f32 %v1261, %v1266
    %1268 = vst [vmem:[#allocation3] sm:$0xff] %v1267
    %v1269 = vld [vmem:[#allocation7] sm:$0xff]
    %v1270 = vld [vmem:[#allocation7 + $0x8] sm:$0xff]
    %v1271 = vld [vmem:[#allocation7 + $0x10] sm:$0xff]
    %v1272 = vld [vmem:[#allocation7 + $0x18] sm:$0xff]
    %v1273 = vld [vmem:[#allocation7 + $0x20] sm:$0xff]
    %v1274 = vld [vmem:[#allocation7 + $0x28] sm:$0xff]
    %v1275 = vld [vmem:[#allocation7 + $0x30] sm:$0xff]
    %v1276 = vld [vmem:[#allocation7 + $0x38] sm:$0xff]
    %v1277 = vld [vmem:[#allocation7 + $0x40] sm:$0xff]
    %v1278 = vld [vmem:[#allocation7 + $0x48] sm:$0xff]
    %v1279 = vld [vmem:[#allocation7 + $0x50] sm:$0xff]
    %v1280 = vld [vmem:[#allocation7 + $0x58] sm:$0xff]
    %v1281 = vld [vmem:[#allocation7 + $0x60] sm:$0xff]
    %v1282 = vld [vmem:[#allocation7 + $0x68] sm:$0xff]
    %v1283 = vld [vmem:[#allocation7 + $0x70] sm:$0xff]
    %v1284 = vld [vmem:[#allocation7 + $0x78] sm:$0xff]
    %v1285 = vld [vmem:[#allocation7 + $0x80] sm:$0xff]
    %v1286 = vld [vmem:[#allocation7 + $0x88] sm:$0xff]
    %v1287 = vld [vmem:[#allocation7 + $0x90] sm:$0xff]
    %v1288 = vld [vmem:[#allocation7 + $0x98] sm:$0xff]
    %v1289 = vld [vmem:[#allocation7 + $0xa0] sm:$0xff]
    %v1290 = vld [vmem:[#allocation7 + $0xa8] sm:$0xff]
    %v1291 = vld [vmem:[#allocation7 + $0xb0] sm:$0xff]
    %v1292 = vld [vmem:[#allocation7 + $0xb8] sm:$0xff]
    %v1293 = vld [vmem:[#allocation7 + $0xc0] sm:$0xff]
    %v1294 = vld [vmem:[#allocation7 + $0xc8] sm:$0xff]
    %v1295 = vld [vmem:[#allocation7 + $0xd0] sm:$0xff]
    %v1296 = vld [vmem:[#allocation7 + $0xd8] sm:$0xff]
    %v1297 = vld [vmem:[#allocation7 + $0xe0] sm:$0xff]
    %v1298 = vld [vmem:[#allocation7 + $0xe8] sm:$0xff]
    %v1299 = vld [vmem:[#allocation7 + $0xf0] sm:$0xff]
    %v1300 = vld [vmem:[#allocation7 + $0xf8] sm:$0xff]
    %v1301 = vld [vmem:[#allocation7 + $0x100] sm:$0xff]
    %v1302 = vld [vmem:[#allocation7 + $0x108] sm:$0xff]
    %v1303 = vld [vmem:[#allocation7 + $0x110] sm:$0xff]
    %v1304 = vld [vmem:[#allocation7 + $0x118] sm:$0xff]
    %v1305 = vld [vmem:[#allocation7 + $0x120] sm:$0xff]
    %v1306 = vld [vmem:[#allocation7 + $0x128] sm:$0xff]
    %v1307 = vld [vmem:[#allocation7 + $0x130] sm:$0xff]
    %v1308 = vld [vmem:[#allocation7 + $0x138] sm:$0xff]
    %v1309 = vld [vmem:[#allocation7 + $0x140] sm:$0xff]
    %v1310 = vld [vmem:[#allocation7 + $0x148] sm:$0xff]
    %v1311 = vld [vmem:[#allocation7 + $0x150] sm:$0xff]
    %v1312 = vld [vmem:[#allocation7 + $0x158] sm:$0xff]
    %v1313 = vld [vmem:[#allocation7 + $0x160] sm:$0xff]
    %v1314 = vld [vmem:[#allocation7 + $0x168] sm:$0xff]
    %v1315 = vld [vmem:[#allocation7 + $0x170] sm:$0xff]
    %v1316 = vld [vmem:[#allocation7 + $0x178] sm:$0xff]
    %v1317 = vld [vmem:[#allocation7 + $0x180] sm:$0xff]
    %v1318 = vld [vmem:[#allocation7 + $0x188] sm:$0xff]
    %v1319 = vld [vmem:[#allocation7 + $0x190] sm:$0xff]
    %v1320 = vld [vmem:[#allocation7 + $0x198] sm:$0xff]
    %v1321 = vld [vmem:[#allocation7 + $0x1a0] sm:$0xff]
    %v1322 = vld [vmem:[#allocation7 + $0x1a8] sm:$0xff]
    %v1323 = vld [vmem:[#allocation7 + $0x1b0] sm:$0xff]
    %v1324 = vld [vmem:[#allocation7 + $0x1b8] sm:$0xff]
    %v1325 = vld [vmem:[#allocation7 + $0x1c0] sm:$0xff]
    %v1326 = vld [vmem:[#allocation7 + $0x1c8] sm:$0xff]
    %v1327 = vld [vmem:[#allocation7 + $0x1d0] sm:$0xff]
    %v1328 = vld [vmem:[#allocation7 + $0x1d8] sm:$0xff]
    %v1329 = vld [vmem:[#allocation7 + $0x1e0] sm:$0xff]
    %v1330 = vld [vmem:[#allocation7 + $0x1e8] sm:$0xff]
    %v1331 = vld [vmem:[#allocation7 + $0x1f0] sm:$0xff]
    %v1332 = vld [vmem:[#allocation7 + $0x1f8] sm:$0xff]
    %1333 = vmatprep.subr.mxu0 %v1270
    %1334 = vmatpush1.msra.mxu0 %v1269
    %1335 = vmatprep.subr.mxu0 %v1274
    %1336 = vmatpush1.msra.mxu0 %v1273
    %1337 = vmatprep.subr.mxu0 %v1278
    %1338 = vmatpush1.msra.mxu0 %v1277
    %1339 = vmatprep.subr.mxu0 %v1282
    %1340 = vmatpush1.msra.mxu0 %v1281
    %1341 = vmatprep.subr.mxu0 %v1286
    %1342 = vmatpush1.msra.mxu0 %v1285
    %1343 = vmatprep.subr.mxu0 %v1290
    %1344 = vmatpush1.msra.mxu0 %v1289
    %1345 = vmatprep.subr.mxu0 %v1294
    %1346 = vmatpush1.msra.mxu0 %v1293
    %1347 = vmatprep.subr.mxu0 %v1298
    %1348 = vmatpush1.msra.mxu0 %v1297
    %1349 = vmatprep.subr.mxu0 %v1302
    %1350 = vmatpush1.msra.mxu0 %v1301
    %1351 = vmatprep.subr.mxu0 %v1306
    %1352 = vmatpush1.msra.mxu0 %v1305
    %1353 = vmatprep.subr.mxu0 %v1310
    %1354 = vmatpush1.msra.mxu0 %v1309
    %1355 = vmatprep.subr.mxu0 %v1314
    %1356 = vmatpush1.msra.mxu0 %v1313
    %1357 = vmatprep.subr.mxu0 %v1318
    %1358 = vmatpush1.msra.mxu0 %v1317
    %1359 = vmatprep.subr.mxu0 %v1322
    %1360 = vmatpush1.msra.mxu0 %v1321
    %1361 = vmatprep.subr.mxu0 %v1326
    %1362 = vmatpush1.msra.mxu0 %v1325
    %1363 = vmatprep.subr.mxu0 %v1330
    %1364 = vmatpush1.msra.mxu0 %v1329
    %1365 = vmatprep.subr.mxu0 0.0
    %1366 = vmatpush1.msra.mxu0 0.0
    %1367 = vmatprep.subr.mxu0 0.0
    %1368 = vmatpush1.msra.mxu0 0.0
    %1369 = vmatprep.subr.mxu0 0.0
    %1370 = vmatpush1.msra.mxu0 0.0
    %1371 = vmatprep.subr.mxu0 0.0
    %1372 = vmatpush1.msra.mxu0 0.0
    %1373 = vmatprep.subr.mxu0 0.0
    %1374 = vmatpush1.msra.mxu0 0.0
    %1375 = vmatprep.subr.mxu0 0.0
    %1376 = vmatpush1.msra.mxu0 0.0
    %1377 = vmatprep.subr.mxu0 0.0
    %1378 = vmatpush1.msra.mxu0 0.0
    %1379 = vmatprep.subr.mxu0 0.0
    %1380 = vmatpush1.msra.mxu0 0.0
    %1381 = vmatprep.subr.mxu0 0.0
    %1382 = vmatpush1.msra.mxu0 0.0
    %1383 = vmatprep.subr.mxu0 0.0
    %1384 = vmatpush1.msra.mxu0 0.0
    %1385 = vmatprep.subr.mxu0 0.0
    %1386 = vmatpush1.msra.mxu0 0.0
    %1387 = vmatprep.subr.mxu0 0.0
    %1388 = vmatpush1.msra.mxu0 0.0
    %1389 = vmatprep.subr.mxu0 0.0
    %1390 = vmatpush1.msra.mxu0 0.0
    %1391 = vmatprep.subr.mxu0 0.0
    %1392 = vmatpush1.msra.mxu0 0.0
    %1393 = vmatprep.subr.mxu0 0.0
    %1394 = vmatpush1.msra.mxu0 0.0
    %1395 = vmatprep.subr.mxu0 0.0
    %1396 = vmatpush1.msra.mxu0 0.0
    %1397 = vmatprep.mubr.f32.mxu0 0.0
    %1398 = vmatmul.mubr.f32.gmra.mrb[0].mxu0 %v803
    %v1399 = vpop.f32.mrb[0].mxu0
    %v1400 = vadd.f32 0.0, %v1399
    %v1401 = vpop.f32.mrb[0].mxu0
    %v1402 = vadd.f32 0.0, %v1401
    %1403 = vdwg.mxu0
    %1404 = vmatprep.subr.mxu0 %v1272
    %1405 = vmatpush1.msra.mxu0 %v1271
    %1406 = vmatprep.subr.mxu0 %v1276
    %1407 = vmatpush1.msra.mxu0 %v1275
    %1408 = vmatprep.subr.mxu0 %v1280
    %1409 = vmatpush1.msra.mxu0 %v1279
    %1410 = vmatprep.subr.mxu0 %v1284
    %1411 = vmatpush1.msra.mxu0 %v1283
    %1412 = vmatprep.subr.mxu0 %v1288
    %1413 = vmatpush1.msra.mxu0 %v1287
    %1414 = vmatprep.subr.mxu0 %v1292
    %1415 = vmatpush1.msra.mxu0 %v1291
    %1416 = vmatprep.subr.mxu0 %v1296
    %1417 = vmatpush1.msra.mxu0 %v1295
    %1418 = vmatprep.subr.mxu0 %v1300
    %1419 = vmatpush1.msra.mxu0 %v1299
    %1420 = vmatprep.subr.mxu0 %v1304
    %1421 = vmatpush1.msra.mxu0 %v1303
    %1422 = vmatprep.subr.mxu0 %v1308
    %1423 = vmatpush1.msra.mxu0 %v1307
    %1424 = vmatprep.subr.mxu0 %v1312
    %1425 = vmatpush1.msra.mxu0 %v1311
    %1426 = vmatprep.subr.mxu0 %v1316
    %1427 = vmatpush1.msra.mxu0 %v1315
    %1428 = vmatprep.subr.mxu0 %v1320
    %1429 = vmatpush1.msra.mxu0 %v1319
    %1430 = vmatprep.subr.mxu0 %v1324
    %1431 = vmatpush1.msra.mxu0 %v1323
    %1432 = vmatprep.subr.mxu0 %v1328
    %1433 = vmatpush1.msra.mxu0 %v1327
    %1434 = vmatprep.subr.mxu0 %v1332
    %1435 = vmatpush1.msra.mxu0 %v1331
    %1436 = vmatprep.subr.mxu0 0.0
    %1437 = vmatpush1.msra.mxu0 0.0
    %1438 = vmatprep.subr.mxu0 0.0
    %1439 = vmatpush1.msra.mxu0 0.0
    %1440 = vmatprep.subr.mxu0 0.0
    %1441 = vmatpush1.msra.mxu0 0.0
    %1442 = vmatprep.subr.mxu0 0.0
    %1443 = vmatpush1.msra.mxu0 0.0
    %1444 = vmatprep.subr.mxu0 0.0
    %1445 = vmatpush1.msra.mxu0 0.0
    %1446 = vmatprep.subr.mxu0 0.0
    %1447 = vmatpush1.msra.mxu0 0.0
    %1448 = vmatprep.subr.mxu0 0.0
    %1449 = vmatpush1.msra.mxu0 0.0
    %1450 = vmatprep.subr.mxu0 0.0
    %1451 = vmatpush1.msra.mxu0 0.0
    %1452 = vmatprep.subr.mxu0 0.0
    %1453 = vmatpush1.msra.mxu0 0.0
    %1454 = vmatprep.subr.mxu0 0.0
    %1455 = vmatpush1.msra.mxu0 0.0
    %1456 = vmatprep.subr.mxu0 0.0
    %1457 = vmatpush1.msra.mxu0 0.0
    %1458 = vmatprep.subr.mxu0 0.0
    %1459 = vmatpush1.msra.mxu0 0.0
    %1460 = vmatprep.subr.mxu0 0.0
    %1461 = vmatpush1.msra.mxu0 0.0
    %1462 = vmatprep.subr.mxu0 0.0
    %1463 = vmatpush1.msra.mxu0 0.0
    %1464 = vmatprep.subr.mxu0 0.0
    %1465 = vmatpush1.msra.mxu0 0.0
    %1466 = vmatprep.subr.mxu0 0.0
    %1467 = vmatpush1.msra.mxu0 0.0
    %1468 = vmatprep.mubr.f32.mxu0 0.0
    %1469 = vmatmul.mubr.f32.gmra.mrb[0].mxu0 %v803
    %v1470 = vpop.f32.mrb[0].mxu0
    %v1471 = vadd.f32 0.0, %v1470
    %v1472 = vpop.f32.mrb[0].mxu0
    %v1473 = vadd.f32 0.0, %v1472
    %1474 = vdwg.mxu0
    %s1475 = smul.u32 2, 4
    %s1476 = smul.addr %s1475, 8
    %s1477 = scalar_lea.vmem [#allocation2], %s1476
    %v1478 = vld [vmem:[%s1477] sm:$0xff]
    %v1479 = vld [vmem:[%s1477 + $0x8] sm:$0xff]
    %v1480 = vld [vmem:[%s1477 + $0x10] sm:$0xff]
    %v1481 = vld [vmem:[%s1477 + $0x18] sm:$0xff]
    %v1482 = vadd.f32 %v1478, %v1400
    %v1483 = vadd.f32 %v1479, %v1402
    %v1484 = vadd.f32 %v1480, %v1471
    %v1485 = vadd.f32 %v1481, %v1473
    %v1486 = vxor.u32 %v1482, 2147483648
    %v1487 = vxor.u32 %v1483, 2147483648
    %v1488 = vxor.u32 %v1484, 2147483648
    %v1489 = vmul.f32 %v1486, 1.442695
    %v1490 = vpow.pop %v1489
    %v1491 = vmul.f32 %v1487, 1.442695
    %v1492 = vpow.pop %v1491
    %v1493 = vmul.f32 %v1488, 1.442695
    %v1494 = vpow.pop %v1493
    %v1495 = vadd.f32 %v1490, 1.0
    %v1496 = vadd.f32 %v1492, 1.0
    %v1497 = vadd.f32 %v1494, 1.0
    %v1498 = vrcp.pop %v1495
    %v1499 = vmul.f32 1.0, %v1498
    %v1500 = vrcp.pop %v1496
    %v1501 = vmul.f32 1.0, %v1500
    %v1502 = vrcp.pop %v1497
    %v1503 = vmul.f32 1.0, %v1502
    %v1504 = vtanh.pop %v1485
    %v1505 = vmul.f32 %v1501, %v801
    %v1506 = vmul.f32 %v1499, %v1504
    %v1507 = vadd.f32 %v1505, %v1506
    %v1508 = vtanh.pop %v1507
    %v1509 = vmul.f32 %v1503, %v1508
    %v1510 = vld [vmem:[%s804] sm:$0xff]
    %v1511 = vld [vmem:[%s804 + $0x8] sm:$0xff]
    %v1512 = vld [vmem:[%s804 + $0x10] sm:$0xff]
    %v1513 = vld [vmem:[%s804 + $0x18] sm:$0xff]
    %v1514 = vld [vmem:[%s804 + $0x20] sm:$0xff]
    %v1515 = vld [vmem:[%s804 + $0x28] sm:$0xff]
    %v1516 = vld [vmem:[%s804 + $0x30] sm:$0xff]
    %v1517 = vld [vmem:[%s804 + $0x38] sm:$0xff]
    %v1518 = vld [vmem:[%s804 + $0x40] sm:$0xff]
    %v1519 = vld [vmem:[%s804 + $0x48] sm:$0xff]
    %v1520 = vld [vmem:[%s804 + $0x50] sm:$0xff]
    %v1521 = vld [vmem:[%s804 + $0x58] sm:$0xff]
    %v1522 = vld [vmem:[%s804 + $0x60] sm:$0xff]
    %v1523 = vld [vmem:[%s804 + $0x68] sm:$0xff]
    %v1524 = vld [vmem:[%s804 + $0x70] sm:$0xff]
    %v1525 = vld [vmem:[%s804 + $0x78] sm:$0xff]
    %v1526 = vld [vmem:[%s804 + $0x80] sm:$0xff]
    %v1527 = vld [vmem:[%s804 + $0x88] sm:$0xff]
    %v1528 = vld [vmem:[%s804 + $0x90] sm:$0xff]
    %v1529 = vld [vmem:[%s804 + $0x98] sm:$0xff]
    %v1530 = vld [vmem:[%s804 + $0xa0] sm:$0xff]
    %v1531 = vld [vmem:[%s804 + $0xa8] sm:$0xff]
    %v1532 = vld [vmem:[%s804 + $0xb0] sm:$0xff]
    %v1533 = vld [vmem:[%s804 + $0xb8] sm:$0xff]
    %v1534 = vld [vmem:[%s804 + $0xc0] sm:$0xff]
    %v1535 = vld [vmem:[%s804 + $0xc8] sm:$0xff]
    %v1536 = vld [vmem:[%s804 + $0xd0] sm:$0xff]
    %v1537 = vld [vmem:[%s804 + $0xd8] sm:$0xff]
    %v1538 = vld [vmem:[%s804 + $0xe0] sm:$0xff]
    %v1539 = vld [vmem:[%s804 + $0xe8] sm:$0xff]
    %v1540 = vld [vmem:[%s804 + $0xf0] sm:$0xff]
    %v1541 = vld [vmem:[%s804 + $0xf8] sm:$0xff]
    %v1542 = vld [vmem:[%s804 + $0x100] sm:$0xff]
    %v1543 = vld [vmem:[%s804 + $0x108] sm:$0xff]
    %v1544 = vld [vmem:[%s804 + $0x110] sm:$0xff]
    %v1545 = vld [vmem:[%s804 + $0x118] sm:$0xff]
    %v1546 = vld [vmem:[%s804 + $0x120] sm:$0xff]
    %v1547 = vld [vmem:[%s804 + $0x128] sm:$0xff]
    %v1548 = vld [vmem:[%s804 + $0x130] sm:$0xff]
    %v1549 = vld [vmem:[%s804 + $0x138] sm:$0xff]
    %v1550 = vld [vmem:[%s804 + $0x140] sm:$0xff]
    %v1551 = vld [vmem:[%s804 + $0x148] sm:$0xff]
    %v1552 = vld [vmem:[%s804 + $0x150] sm:$0xff]
    %v1553 = vld [vmem:[%s804 + $0x158] sm:$0xff]
    %v1554 = vld [vmem:[%s804 + $0x160] sm:$0xff]
    %v1555 = vld [vmem:[%s804 + $0x168] sm:$0xff]
    %v1556 = vld [vmem:[%s804 + $0x170] sm:$0xff]
    %v1557 = vld [vmem:[%s804 + $0x178] sm:$0xff]
    %v1558 = vld [vmem:[%s804 + $0x180] sm:$0xff]
    %v1559 = vld [vmem:[%s804 + $0x188] sm:$0xff]
    %v1560 = vld [vmem:[%s804 + $0x190] sm:$0xff]
    %v1561 = vld [vmem:[%s804 + $0x198] sm:$0xff]
    %v1562 = vld [vmem:[%s804 + $0x1a0] sm:$0xff]
    %v1563 = vld [vmem:[%s804 + $0x1a8] sm:$0xff]
    %v1564 = vld [vmem:[%s804 + $0x1b0] sm:$0xff]
    %v1565 = vld [vmem:[%s804 + $0x1b8] sm:$0xff]
    %v1566 = vld [vmem:[%s804 + $0x1c0] sm:$0xff]
    %v1567 = vld [vmem:[%s804 + $0x1c8] sm:$0xff]
    %v1568 = vld [vmem:[%s804 + $0x1d0] sm:$0xff]
    %v1569 = vld [vmem:[%s804 + $0x1d8] sm:$0xff]
    %v1570 = vld [vmem:[%s804 + $0x1e0] sm:$0xff]
    %v1571 = vld [vmem:[%s804 + $0x1e8] sm:$0xff]
    %v1572 = vld [vmem:[%s804 + $0x1f0] sm:$0xff]
    %v1573 = vld [vmem:[%s804 + $0x1f8] sm:$0xff]
    %1574 = vmatprep.subr.mxu0 %v1511
    %1575 = vmatpush1.msra.mxu0 %v1510
    %1576 = vmatprep.subr.mxu0 %v1515
    %1577 = vmatpush1.msra.mxu0 %v1514
    %1578 = vmatprep.subr.mxu0 %v1519
    %1579 = vmatpush1.msra.mxu0 %v1518
    %1580 = vmatprep.subr.mxu0 %v1523
    %1581 = vmatpush1.msra.mxu0 %v1522
    %1582 = vmatprep.subr.mxu0 %v1527
    %1583 = vmatpush1.msra.mxu0 %v1526
    %1584 = vmatprep.subr.mxu0 %v1531
    %1585 = vmatpush1.msra.mxu0 %v1530
    %1586 = vmatprep.subr.mxu0 %v1535
    %1587 = vmatpush1.msra.mxu0 %v1534
    %1588 = vmatprep.subr.mxu0 %v1539
    %1589 = vmatpush1.msra.mxu0 %v1538
    %1590 = vmatprep.subr.mxu0 %v1543
    %1591 = vmatpush1.msra.mxu0 %v1542
    %1592 = vmatprep.subr.mxu0 %v1547
    %1593 = vmatpush1.msra.mxu0 %v1546
    %1594 = vmatprep.subr.mxu0 %v1551
    %1595 = vmatpush1.msra.mxu0 %v1550
    %1596 = vmatprep.subr.mxu0 %v1555
    %1597 = vmatpush1.msra.mxu0 %v1554
    %1598 = vmatprep.subr.mxu0 %v1559
    %1599 = vmatpush1.msra.mxu0 %v1558
    %1600 = vmatprep.subr.mxu0 %v1563
    %1601 = vmatpush1.msra.mxu0 %v1562
    %1602 = vmatprep.subr.mxu0 %v1567
    %1603 = vmatpush1.msra.mxu0 %v1566
    %1604 = vmatprep.subr.mxu0 %v1571
    %1605 = vmatpush1.msra.mxu0 %v1570
    %1606 = vmatprep.subr.mxu0 0.0
    %1607 = vmatpush1.msra.mxu0 0.0
    %1608 = vmatprep.subr.mxu0 0.0
    %1609 = vmatpush1.msra.mxu0 0.0
    %1610 = vmatprep.subr.mxu0 0.0
    %1611 = vmatpush1.msra.mxu0 0.0
    %1612 = vmatprep.subr.mxu0 0.0
    %1613 = vmatpush1.msra.mxu0 0.0
    %1614 = vmatprep.subr.mxu0 0.0
    %1615 = vmatpush1.msra.mxu0 0.0
    %1616 = vmatprep.subr.mxu0 0.0
    %1617 = vmatpush1.msra.mxu0 0.0
    %1618 = vmatprep.subr.mxu0 0.0
    %1619 = vmatpush1.msra.mxu0 0.0
    %1620 = vmatprep.subr.mxu0 0.0
    %1621 = vmatpush1.msra.mxu0 0.0
    %1622 = vmatprep.subr.mxu0 0.0
    %1623 = vmatpush1.msra.mxu0 0.0
    %1624 = vmatprep.subr.mxu0 0.0
    %1625 = vmatpush1.msra.mxu0 0.0
    %1626 = vmatprep.subr.mxu0 0.0
    %1627 = vmatpush1.msra.mxu0 0.0
    %1628 = vmatprep.subr.mxu0 0.0
    %1629 = vmatpush1.msra.mxu0 0.0
    %1630 = vmatprep.subr.mxu0 0.0
    %1631 = vmatpush1.msra.mxu0 0.0
    %1632 = vmatprep.subr.mxu0 0.0
    %1633 = vmatpush1.msra.mxu0 0.0
    %1634 = vmatprep.subr.mxu0 0.0
    %1635 = vmatpush1.msra.mxu0 0.0
    %1636 = vmatprep.subr.mxu0 0.0
    %1637 = vmatpush1.msra.mxu0 0.0
    %1638 = vmatprep.mubr.f32.mxu0 0.0
    %1639 = vmatmul.mubr.f32.gmra.mrb[0].mxu0 %v1267
    %v1640 = vpop.f32.mrb[0].mxu0
    %v1641 = vadd.f32 0.0, %v1640
    %v1642 = vpop.f32.mrb[0].mxu0
    %v1643 = vadd.f32 0.0, %v1642
    %1644 = vdwg.mxu0
    %1645 = vmatprep.subr.mxu0 %v1513
    %1646 = vmatpush1.msra.mxu0 %v1512
    %1647 = vmatprep.subr.mxu0 %v1517
    %1648 = vmatpush1.msra.mxu0 %v1516
    %1649 = vmatprep.subr.mxu0 %v1521
    %1650 = vmatpush1.msra.mxu0 %v1520
    %1651 = vmatprep.subr.mxu0 %v1525
    %1652 = vmatpush1.msra.mxu0 %v1524
    %1653 = vmatprep.subr.mxu0 %v1529
    %1654 = vmatpush1.msra.mxu0 %v1528
    %1655 = vmatprep.subr.mxu0 %v1533
    %1656 = vmatpush1.msra.mxu0 %v1532
    %1657 = vmatprep.subr.mxu0 %v1537
    %1658 = vmatpush1.msra.mxu0 %v1536
    %1659 = vmatprep.subr.mxu0 %v1541
    %1660 = vmatpush1.msra.mxu0 %v1540
    %1661 = vmatprep.subr.mxu0 %v1545
    %1662 = vmatpush1.msra.mxu0 %v1544
    %1663 = vmatprep.subr.mxu0 %v1549
    %1664 = vmatpush1.msra.mxu0 %v1548
    %1665 = vmatprep.subr.mxu0 %v1553
    %1666 = vmatpush1.msra.mxu0 %v1552
    %1667 = vmatprep.subr.mxu0 %v1557
    %1668 = vmatpush1.msra.mxu0 %v1556
    %1669 = vmatprep.subr.mxu0 %v1561
    %1670 = vmatpush1.msra.mxu0 %v1560
    %1671 = vmatprep.subr.mxu0 %v1565
    %1672 = vmatpush1.msra.mxu0 %v1564
    %1673 = vmatprep.subr.mxu0 %v1569
    %1674 = vmatpush1.msra.mxu0 %v1568
    %1675 = vmatprep.subr.mxu0 %v1573
    %1676 = vmatpush1.msra.mxu0 %v1572
    %1677 = vmatprep.subr.mxu0 0.0
    %1678 = vmatpush1.msra.mxu0 0.0
    %1679 = vmatprep.subr.mxu0 0.0
    %1680 = vmatpush1.msra.mxu0 0.0
    %1681 = vmatprep.subr.mxu0 0.0
    %1682 = vmatpush1.msra.mxu0 0.0
    %1683 = vmatprep.subr.mxu0 0.0
    %1684 = vmatpush1.msra.mxu0 0.0
    %1685 = vmatprep.subr.mxu0 0.0
    %1686 = vmatpush1.msra.mxu0 0.0
    %1687 = vmatprep.subr.mxu0 0.0
    %1688 = vmatpush1.msra.mxu0 0.0
    %1689 = vmatprep.subr.mxu0 0.0
    %1690 = vmatpush1.msra.mxu0 0.0
    %1691 = vmatprep.subr.mxu0 0.0
    %1692 = vmatpush1.msra.mxu0 0.0
    %1693 = vmatprep.subr.mxu0 0.0
    %1694 = vmatpush1.msra.mxu0 0.0
    %1695 = vmatprep.subr.mxu0 0.0
    %1696 = vmatpush1.msra.mxu0 0.0
    %1697 = vmatprep.subr.mxu0 0.0
    %1698 = vmatpush1.msra.mxu0 0.0
    %1699 = vmatprep.subr.mxu0 0.0
    %1700 = vmatpush1.msra.mxu0 0.0
    %1701 = vmatprep.subr.mxu0 0.0
    %1702 = vmatpush1.msra.mxu0 0.0
    %1703 = vmatprep.subr.mxu0 0.0
    %1704 = vmatpush1.msra.mxu0 0.0
    %1705 = vmatprep.subr.mxu0 0.0
    %1706 = vmatpush1.msra.mxu0 0.0
    %1707 = vmatprep.subr.mxu0 0.0
    %1708 = vmatpush1.msra.mxu0 0.0
    %1709 = vmatprep.mubr.f32.mxu0 0.0
    %1710 = vmatmul.mubr.f32.gmra.mrb[0].mxu0 %v1267
    %v1711 = vpop.f32.mrb[0].mxu0
    %v1712 = vadd.f32 0.0, %v1711
    %v1713 = vpop.f32.mrb[0].mxu0
    %v1714 = vadd.f32 0.0, %v1713
    %1715 = vdwg.mxu0
    %v1716 = vld [vmem:[#allocation4] sm:$0xff]
    %v1717 = vld [vmem:[#allocation4 + $0x8] sm:$0xff]
    %v1718 = vld [vmem:[#allocation4 + $0x10] sm:$0xff]
    %v1719 = vld [vmem:[#allocation4 + $0x18] sm:$0xff]
    %v1720 = vld [vmem:[#allocation4 + $0x20] sm:$0xff]
    %v1721 = vld [vmem:[#allocation4 + $0x28] sm:$0xff]
    %v1722 = vld [vmem:[#allocation4 + $0x30] sm:$0xff]
    %v1723 = vld [vmem:[#allocation4 + $0x38] sm:$0xff]
    %v1724 = vld [vmem:[#allocation4 + $0x40] sm:$0xff]
    %v1725 = vld [vmem:[#allocation4 + $0x48] sm:$0xff]
    %v1726 = vld [vmem:[#allocation4 + $0x50] sm:$0xff]
    %v1727 = vld [vmem:[#allocation4 + $0x58] sm:$0xff]
    %v1728 = vld [vmem:[#allocation4 + $0x60] sm:$0xff]
    %v1729 = vld [vmem:[#allocation4 + $0x68] sm:$0xff]
    %v1730 = vld [vmem:[#allocation4 + $0x70] sm:$0xff]
    %v1731 = vld [vmem:[#allocation4 + $0x78] sm:$0xff]
    %v1732 = vld [vmem:[#allocation4 + $0x80] sm:$0xff]
    %v1733 = vld [vmem:[#allocation4 + $0x88] sm:$0xff]
    %v1734 = vld [vmem:[#allocation4 + $0x90] sm:$0xff]
    %v1735 = vld [vmem:[#allocation4 + $0x98] sm:$0xff]
    %v1736 = vld [vmem:[#allocation4 + $0xa0] sm:$0xff]
    %v1737 = vld [vmem:[#allocation4 + $0xa8] sm:$0xff]
    %v1738 = vld [vmem:[#allocation4 + $0xb0] sm:$0xff]
    %v1739 = vld [vmem:[#allocation4 + $0xb8] sm:$0xff]
    %v1740 = vld [vmem:[#allocation4 + $0xc0] sm:$0xff]
    %v1741 = vld [vmem:[#allocation4 + $0xc8] sm:$0xff]
    %v1742 = vld [vmem:[#allocation4 + $0xd0] sm:$0xff]
    %v1743 = vld [vmem:[#allocation4 + $0xd8] sm:$0xff]
    %v1744 = vld [vmem:[#allocation4 + $0xe0] sm:$0xff]
    %v1745 = vld [vmem:[#allocation4 + $0xe8] sm:$0xff]
    %v1746 = vld [vmem:[#allocation4 + $0xf0] sm:$0xff]
    %v1747 = vld [vmem:[#allocation4 + $0xf8] sm:$0xff]
    %v1748 = vld [vmem:[#allocation4 + $0x100] sm:$0xff]
    %v1749 = vld [vmem:[#allocation4 + $0x108] sm:$0xff]
    %v1750 = vld [vmem:[#allocation4 + $0x110] sm:$0xff]
    %v1751 = vld [vmem:[#allocation4 + $0x118] sm:$0xff]
    %v1752 = vld [vmem:[#allocation4 + $0x120] sm:$0xff]
    %v1753 = vld [vmem:[#allocation4 + $0x128] sm:$0xff]
    %v1754 = vld [vmem:[#allocation4 + $0x130] sm:$0xff]
    %v1755 = vld [vmem:[#allocation4 + $0x138] sm:$0xff]
    %v1756 = vld [vmem:[#allocation4 + $0x140] sm:$0xff]
    %v1757 = vld [vmem:[#allocation4 + $0x148] sm:$0xff]
    %v1758 = vld [vmem:[#allocation4 + $0x150] sm:$0xff]
    %v1759 = vld [vmem:[#allocation4 + $0x158] sm:$0xff]
    %v1760 = vld [vmem:[#allocation4 + $0x160] sm:$0xff]
    %v1761 = vld [vmem:[#allocation4 + $0x168] sm:$0xff]
    %v1762 = vld [vmem:[#allocation4 + $0x170] sm:$0xff]
    %v1763 = vld [vmem:[#allocation4 + $0x178] sm:$0xff]
    %v1764 = vld [vmem:[#allocation4 + $0x180] sm:$0xff]
    %v1765 = vld [vmem:[#allocation4 + $0x188] sm:$0xff]
    %v1766 = vld [vmem:[#allocation4 + $0x190] sm:$0xff]
    %v1767 = vld [vmem:[#allocation4 + $0x198] sm:$0xff]
    %v1768 = vld [vmem:[#allocation4 + $0x1a0] sm:$0xff]
    %v1769 = vld [vmem:[#allocation4 + $0x1a8] sm:$0xff]
    %v1770 = vld [vmem:[#allocation4 + $0x1b0] sm:$0xff]
    %v1771 = vld [vmem:[#allocation4 + $0x1b8] sm:$0xff]
    %v1772 = vld [vmem:[#allocation4 + $0x1c0] sm:$0xff]
    %v1773 = vld [vmem:[#allocation4 + $0x1c8] sm:$0xff]
    %v1774 = vld [vmem:[#allocation4 + $0x1d0] sm:$0xff]
    %v1775 = vld [vmem:[#allocation4 + $0x1d8] sm:$0xff]
    %v1776 = vld [vmem:[#allocation4 + $0x1e0] sm:$0xff]
    %v1777 = vld [vmem:[#allocation4 + $0x1e8] sm:$0xff]
    %v1778 = vld [vmem:[#allocation4 + $0x1f0] sm:$0xff]
    %v1779 = vld [vmem:[#allocation4 + $0x1f8] sm:$0xff]
    %1780 = vmatprep.subr.mxu0 %v1717
    %1781 = vmatpush1.msra.mxu0 %v1716
    %1782 = vmatprep.subr.mxu0 %v1721
    %1783 = vmatpush1.msra.mxu0 %v1720
    %1784 = vmatprep.subr.mxu0 %v1725
    %1785 = vmatpush1.msra.mxu0 %v1724
    %1786 = vmatprep.subr.mxu0 %v1729
    %1787 = vmatpush1.msra.mxu0 %v1728
    %1788 = vmatprep.subr.mxu0 %v1733
    %1789 = vmatpush1.msra.mxu0 %v1732
    %1790 = vmatprep.subr.mxu0 %v1737
    %1791 = vmatpush1.msra.mxu0 %v1736
    %1792 = vmatprep.subr.mxu0 %v1741
    %1793 = vmatpush1.msra.mxu0 %v1740
    %1794 = vmatprep.subr.mxu0 %v1745
    %1795 = vmatpush1.msra.mxu0 %v1744
    %1796 = vmatprep.subr.mxu0 %v1749
    %1797 = vmatpush1.msra.mxu0 %v1748
    %1798 = vmatprep.subr.mxu0 %v1753
    %1799 = vmatpush1.msra.mxu0 %v1752
    %1800 = vmatprep.subr.mxu0 %v1757
    %1801 = vmatpush1.msra.mxu0 %v1756
    %1802 = vmatprep.subr.mxu0 %v1761
    %1803 = vmatpush1.msra.mxu0 %v1760
    %1804 = vmatprep.subr.mxu0 %v1765
    %1805 = vmatpush1.msra.mxu0 %v1764
    %1806 = vmatprep.subr.mxu0 %v1769
    %1807 = vmatpush1.msra.mxu0 %v1768
    %1808 = vmatprep.subr.mxu0 %v1773
    %1809 = vmatpush1.msra.mxu0 %v1772
    %1810 = vmatprep.subr.mxu0 %v1777
    %1811 = vmatpush1.msra.mxu0 %v1776
    %1812 = vmatprep.subr.mxu0 0.0
    %1813 = vmatpush1.msra.mxu0 0.0
    %1814 = vmatprep.subr.mxu0 0.0
    %1815 = vmatpush1.msra.mxu0 0.0
    %1816 = vmatprep.subr.mxu0 0.0
    %1817 = vmatpush1.msra.mxu0 0.0
    %1818 = vmatprep.subr.mxu0 0.0
    %1819 = vmatpush1.msra.mxu0 0.0
    %1820 = vmatprep.subr.mxu0 0.0
    %1821 = vmatpush1.msra.mxu0 0.0
    %1822 = vmatprep.subr.mxu0 0.0
    %1823 = vmatpush1.msra.mxu0 0.0
    %1824 = vmatprep.subr.mxu0 0.0
    %1825 = vmatpush1.msra.mxu0 0.0
    %1826 = vmatprep.subr.mxu0 0.0
    %1827 = vmatpush1.msra.mxu0 0.0
    %1828 = vmatprep.subr.mxu0 0.0
    %1829 = vmatpush1.msra.mxu0 0.0
    %1830 = vmatprep.subr.mxu0 0.0
    %1831 = vmatpush1.msra.mxu0 0.0
    %1832 = vmatprep.subr.mxu0 0.0
    %1833 = vmatpush1.msra.mxu0 0.0
    %1834 = vmatprep.subr.mxu0 0.0
    %1835 = vmatpush1.msra.mxu0 0.0
    %1836 = vmatprep.subr.mxu0 0.0
    %1837 = vmatpush1.msra.mxu0 0.0
    %1838 = vmatprep.subr.mxu0 0.0
    %1839 = vmatpush1.msra.mxu0 0.0
    %1840 = vmatprep.subr.mxu0 0.0
    %1841 = vmatpush1.msra.mxu0 0.0
    %1842 = vmatprep.subr.mxu0 0.0
    %1843 = vmatpush1.msra.mxu0 0.0
    %1844 = vmatprep.mubr.f32.mxu0 0.0
    %1845 = vmatmul.mubr.f32.gmra.mrb[0].mxu0 %v803
    %v1846 = vpop.f32.mrb[0].mxu0
    %v1847 = vadd.f32 %v1641, %v1846
    %v1848 = vpop.f32.mrb[0].mxu0
    %v1849 = vadd.f32 %v1643, %v1848
    %1850 = vdwg.mxu0
    %1851 = vmatprep.subr.mxu0 %v1719
    %1852 = vmatpush1.msra.mxu0 %v1718
    %1853 = vmatprep.subr.mxu0 %v1723
    %1854 = vmatpush1.msra.mxu0 %v1722
    %1855 = vmatprep.subr.mxu0 %v1727
    %1856 = vmatpush1.msra.mxu0 %v1726
    %1857 = vmatprep.subr.mxu0 %v1731
    %1858 = vmatpush1.msra.mxu0 %v1730
    %1859 = vmatprep.subr.mxu0 %v1735
    %1860 = vmatpush1.msra.mxu0 %v1734
    %1861 = vmatprep.subr.mxu0 %v1739
    %1862 = vmatpush1.msra.mxu0 %v1738
    %1863 = vmatprep.subr.mxu0 %v1743
    %1864 = vmatpush1.msra.mxu0 %v1742
    %1865 = vmatprep.subr.mxu0 %v1747
    %1866 = vmatpush1.msra.mxu0 %v1746
    %1867 = vmatprep.subr.mxu0 %v1751
    %1868 = vmatpush1.msra.mxu0 %v1750
    %1869 = vmatprep.subr.mxu0 %v1755
    %1870 = vmatpush1.msra.mxu0 %v1754
    %1871 = vmatprep.subr.mxu0 %v1759
    %1872 = vmatpush1.msra.mxu0 %v1758
    %1873 = vmatprep.subr.mxu0 %v1763
    %1874 = vmatpush1.msra.mxu0 %v1762
    %1875 = vmatprep.subr.mxu0 %v1767
    %1876 = vmatpush1.msra.mxu0 %v1766
    %1877 = vmatprep.subr.mxu0 %v1771
    %1878 = vmatpush1.msra.mxu0 %v1770
    %1879 = vmatprep.subr.mxu0 %v1775
    %1880 = vmatpush1.msra.mxu0 %v1774
    %1881 = vmatprep.subr.mxu0 %v1779
    %1882 = vmatpush1.msra.mxu0 %v1778
    %1883 = vmatprep.subr.mxu0 0.0
    %1884 = vmatpush1.msra.mxu0 0.0
    %1885 = vmatprep.subr.mxu0 0.0
    %1886 = vmatpush1.msra.mxu0 0.0
    %1887 = vmatprep.subr.mxu0 0.0
    %1888 = vmatpush1.msra.mxu0 0.0
    %1889 = vmatprep.subr.mxu0 0.0
    %1890 = vmatpush1.msra.mxu0 0.0
    %1891 = vmatprep.subr.mxu0 0.0
    %1892 = vmatpush1.msra.mxu0 0.0
    %1893 = vmatprep.subr.mxu0 0.0
    %1894 = vmatpush1.msra.mxu0 0.0
    %1895 = vmatprep.subr.mxu0 0.0
    %1896 = vmatpush1.msra.mxu0 0.0
    %1897 = vmatprep.subr.mxu0 0.0
    %1898 = vmatpush1.msra.mxu0 0.0
    %1899 = vmatprep.subr.mxu0 0.0
    %1900 = vmatpush1.msra.mxu0 0.0
    %1901 = vmatprep.subr.mxu0 0.0
    %1902 = vmatpush1.msra.mxu0 0.0
    %1903 = vmatprep.subr.mxu0 0.0
    %1904 = vmatpush1.msra.mxu0 0.0
    %1905 = vmatprep.subr.mxu0 0.0
    %1906 = vmatpush1.msra.mxu0 0.0
    %1907 = vmatprep.subr.mxu0 0.0
    %1908 = vmatpush1.msra.mxu0 0.0
    %1909 = vmatprep.subr.mxu0 0.0
    %1910 = vmatpush1.msra.mxu0 0.0
    %1911 = vmatprep.subr.mxu0 0.0
    %1912 = vmatpush1.msra.mxu0 0.0
    %1913 = vmatprep.subr.mxu0 0.0
    %1914 = vmatpush1.msra.mxu0 0.0
    %1915 = vmatprep.mubr.f32.mxu0 0.0
    %1916 = vmatmul.mubr.f32.gmra.mrb[0].mxu0 %v803
    %v1917 = vpop.f32.mrb[0].mxu0
    %v1918 = vadd.f32 %v1712, %v1917
    %v1919 = vpop.f32.mrb[0].mxu0
    %v1920 = vadd.f32 %v1714, %v1919
    %1921 = vdwg.mxu0
    %v1922 = vld [vmem:[%s1217] sm:$0xf]
    %v1924 = vlaneseq
    %v1925 = vshrl.u32 %v1924, 7
    %v1926 = vsub.s32 0, %v1925
    %v1927 = vrot.slane %v1922, %v1926
    %v1928 = vlaneseq
    %v1929 = vshrl.u32 %v1928, 7
    %v1930 = vsub.s32 1, %v1929
    %v1931 = vrot.slane %v1922, %v1930
    %v1932 = vlaneseq
    %v1933 = vshrl.u32 %v1932, 7
    %v1934 = vsub.s32 2, %v1933
    %v1935 = vrot.slane %v1922, %v1934
    %v1936 = vlaneseq
    %v1937 = vshrl.u32 %v1936, 7
    %v1938 = vsub.s32 3, %v1937
    %v1939 = vrot.slane %v1922, %v1938
    %v1944 = vadd.f32 %v1847, %v1927
    %v1945 = vadd.f32 %v1849, %v1931
    %v1946 = vadd.f32 %v1918, %v1935
    %v1947 = vadd.f32 %v1920, %v1939
    %v1948 = vxor.u32 %v1944, 2147483648
    %v1949 = vxor.u32 %v1945, 2147483648
    %v1950 = vxor.u32 %v1946, 2147483648
    %v1951 = vmul.f32 %v1948, 1.442695
    %v1952 = vpow.pop %v1951
    %v1953 = vmul.f32 %v1949, 1.442695
    %v1954 = vpow.pop %v1953
    %v1955 = vmul.f32 %v1950, 1.442695
    %v1956 = vpow.pop %v1955
    %v1957 = vadd.f32 %v1952, 1.0
    %v1958 = vadd.f32 %v1954, 1.0
    %v1959 = vadd.f32 %v1956, 1.0
    %v1960 = vrcp.pop %v1957
    %v1961 = vmul.f32 1.0, %v1960
    %v1962 = vrcp.pop %v1958
    %v1963 = vmul.f32 1.0, %v1962
    %v1964 = vrcp.pop %v1959
    %v1965 = vmul.f32 1.0, %v1964
    %v1966 = vtanh.pop %v1947
    %v1967 = vmul.f32 %v1963, %v1265
    %v1968 = vmul.f32 %v1961, %v1966
    %v1969 = vadd.f32 %v1967, %v1968
    %v1970 = vtanh.pop %v1969
    %v1971 = vmul.f32 %v1965, %v1970
    %s1972 = scalar_lea.vmem [#allocation3], 8
    %1973 = vst [vmem:[%s1972] sm:$0xff] %v1971
    %v1974 = vld [vmem:[#allocation7] sm:$0xff]
    %v1975 = vld [vmem:[#allocation7 + $0x8] sm:$0xff]
    %v1976 = vld [vmem:[#allocation7 + $0x10] sm:$0xff]
    %v1977 = vld [vmem:[#allocation7 + $0x18] sm:$0xff]
    %v1978 = vld [vmem:[#allocation7 + $0x20] sm:$0xff]
    %v1979 = vld [vmem:[#allocation7 + $0x28] sm:$0xff]
    %v1980 = vld [vmem:[#allocation7 + $0x30] sm:$0xff]
    %v1981 = vld [vmem:[#allocation7 + $0x38] sm:$0xff]
    %v1982 = vld [vmem:[#allocation7 + $0x40] sm:$0xff]
    %v1983 = vld [vmem:[#allocation7 + $0x48] sm:$0xff]
    %v1984 = vld [vmem:[#allocation7 + $0x50] sm:$0xff]
    %v1985 = vld [vmem:[#allocation7 + $0x58] sm:$0xff]
    %v1986 = vld [vmem:[#allocation7 + $0x60] sm:$0xff]
    %v1987 = vld [vmem:[#allocation7 + $0x68] sm:$0xff]
    %v1988 = vld [vmem:[#allocation7 + $0x70] sm:$0xff]
    %v1989 = vld [vmem:[#allocation7 + $0x78] sm:$0xff]
    %v1990 = vld [vmem:[#allocation7 + $0x80] sm:$0xff]
    %v1991 = vld [vmem:[#allocation7 + $0x88] sm:$0xff]
    %v1992 = vld [vmem:[#allocation7 + $0x90] sm:$0xff]
    %v1993 = vld [vmem:[#allocation7 + $0x98] sm:$0xff]
    %v1994 = vld [vmem:[#allocation7 + $0xa0] sm:$0xff]
    %v1995 = vld [vmem:[#allocation7 + $0xa8] sm:$0xff]
    %v1996 = vld [vmem:[#allocation7 + $0xb0] sm:$0xff]
    %v1997 = vld [vmem:[#allocation7 + $0xb8] sm:$0xff]
    %v1998 = vld [vmem:[#allocation7 + $0xc0] sm:$0xff]
    %v1999 = vld [vmem:[#allocation7 + $0xc8] sm:$0xff]
    %v2000 = vld [vmem:[#allocation7 + $0xd0] sm:$0xff]
    %v2001 = vld [vmem:[#allocation7 + $0xd8] sm:$0xff]
    %v2002 = vld [vmem:[#allocation7 + $0xe0] sm:$0xff]
    %v2003 = vld [vmem:[#allocation7 + $0xe8] sm:$0xff]
    %v2004 = vld [vmem:[#allocation7 + $0xf0] sm:$0xff]
    %v2005 = vld [vmem:[#allocation7 + $0xf8] sm:$0xff]
    %v2006 = vld [vmem:[#allocation7 + $0x100] sm:$0xff]
    %v2007 = vld [vmem:[#allocation7 + $0x108] sm:$0xff]
    %v2008 = vld [vmem:[#allocation7 + $0x110] sm:$0xff]
    %v2009 = vld [vmem:[#allocation7 + $0x118] sm:$0xff]
    %v2010 = vld [vmem:[#allocation7 + $0x120] sm:$0xff]
    %v2011 = vld [vmem:[#allocation7 + $0x128] sm:$0xff]
    %v2012 = vld [vmem:[#allocation7 + $0x130] sm:$0xff]
    %v2013 = vld [vmem:[#allocation7 + $0x138] sm:$0xff]
    %v2014 = vld [vmem:[#allocation7 + $0x140] sm:$0xff]
    %v2015 = vld [vmem:[#allocation7 + $0x148] sm:$0xff]
    %v2016 = vld [vmem:[#allocation7 + $0x150] sm:$0xff]
    %v2017 = vld [vmem:[#allocation7 + $0x158] sm:$0xff]
    %v2018 = vld [vmem:[#allocation7 + $0x160] sm:$0xff]
    %v2019 = vld [vmem:[#allocation7 + $0x168] sm:$0xff]
    %v2020 = vld [vmem:[#allocation7 + $0x170] sm:$0xff]
    %v2021 = vld [vmem:[#allocation7 + $0x178] sm:$0xff]
    %v2022 = vld [vmem:[#allocation7 + $0x180] sm:$0xff]
    %v2023 = vld [vmem:[#allocation7 + $0x188] sm:$0xff]
    %v2024 = vld [vmem:[#allocation7 + $0x190] sm:$0xff]
    %v2025 = vld [vmem:[#allocation7 + $0x198] sm:$0xff]
    %v2026 = vld [vmem:[#allocation7 + $0x1a0] sm:$0xff]
    %v2027 = vld [vmem:[#allocation7 + $0x1a8] sm:$0xff]
    %v2028 = vld [vmem:[#allocation7 + $0x1b0] sm:$0xff]
    %v2029 = vld [vmem:[#allocation7 + $0x1b8] sm:$0xff]
    %v2030 = vld [vmem:[#allocation7 + $0x1c0] sm:$0xff]
    %v2031 = vld [vmem:[#allocation7 + $0x1c8] sm:$0xff]
    %v2032 = vld [vmem:[#allocation7 + $0x1d0] sm:$0xff]
    %v2033 = vld [vmem:[#allocation7 + $0x1d8] sm:$0xff]
    %v2034 = vld [vmem:[#allocation7 + $0x1e0] sm:$0xff]
    %v2035 = vld [vmem:[#allocation7 + $0x1e8] sm:$0xff]
    %v2036 = vld [vmem:[#allocation7 + $0x1f0] sm:$0xff]
    %v2037 = vld [vmem:[#allocation7 + $0x1f8] sm:$0xff]
    %2038 = vmatprep.subr.mxu0 %v1975
    %2039 = vmatpush1.msra.mxu0 %v1974
    %2040 = vmatprep.subr.mxu0 %v1979
    %2041 = vmatpush1.msra.mxu0 %v1978
    %2042 = vmatprep.subr.mxu0 %v1983
    %2043 = vmatpush1.msra.mxu0 %v1982
    %2044 = vmatprep.subr.mxu0 %v1987
    %2045 = vmatpush1.msra.mxu0 %v1986
    %2046 = vmatprep.subr.mxu0 %v1991
    %2047 = vmatpush1.msra.mxu0 %v1990
    %2048 = vmatprep.subr.mxu0 %v1995
    %2049 = vmatpush1.msra.mxu0 %v1994
    %2050 = vmatprep.subr.mxu0 %v1999
    %2051 = vmatpush1.msra.mxu0 %v1998
    %2052 = vmatprep.subr.mxu0 %v2003
    %2053 = vmatpush1.msra.mxu0 %v2002
    %2054 = vmatprep.subr.mxu0 %v2007
    %2055 = vmatpush1.msra.mxu0 %v2006
    %2056 = vmatprep.subr.mxu0 %v2011
    %2057 = vmatpush1.msra.mxu0 %v2010
    %2058 = vmatprep.subr.mxu0 %v2015
    %2059 = vmatpush1.msra.mxu0 %v2014
    %2060 = vmatprep.subr.mxu0 %v2019
    %2061 = vmatpush1.msra.mxu0 %v2018
    %2062 = vmatprep.subr.mxu0 %v2023
    %2063 = vmatpush1.msra.mxu0 %v2022
    %2064 = vmatprep.subr.mxu0 %v2027
    %2065 = vmatpush1.msra.mxu0 %v2026
    %2066 = vmatprep.subr.mxu0 %v2031
    %2067 = vmatpush1.msra.mxu0 %v2030
    %2068 = vmatprep.subr.mxu0 %v2035
    %2069 = vmatpush1.msra.mxu0 %v2034
    %2070 = vmatprep.subr.mxu0 0.0
    %2071 = vmatpush1.msra.mxu0 0.0
    %2072 = vmatprep.subr.mxu0 0.0
    %2073 = vmatpush1.msra.mxu0 0.0
    %2074 = vmatprep.subr.mxu0 0.0
    %2075 = vmatpush1.msra.mxu0 0.0
    %2076 = vmatprep.subr.mxu0 0.0
    %2077 = vmatpush1.msra.mxu0 0.0
    %2078 = vmatprep.subr.mxu0 0.0
    %2079 = vmatpush1.msra.mxu0 0.0
    %2080 = vmatprep.subr.mxu0 0.0
    %2081 = vmatpush1.msra.mxu0 0.0
    %2082 = vmatprep.subr.mxu0 0.0
    %2083 = vmatpush1.msra.mxu0 0.0
    %2084 = vmatprep.subr.mxu0 0.0
    %2085 = vmatpush1.msra.mxu0 0.0
    %2086 = vmatprep.subr.mxu0 0.0
    %2087 = vmatpush1.msra.mxu0 0.0
    %2088 = vmatprep.subr.mxu0 0.0
    %2089 = vmatpush1.msra.mxu0 0.0
    %2090 = vmatprep.subr.mxu0 0.0
    %2091 = vmatpush1.msra.mxu0 0.0
    %2092 = vmatprep.subr.mxu0 0.0
    %2093 = vmatpush1.msra.mxu0 0.0
    %2094 = vmatprep.subr.mxu0 0.0
    %2095 = vmatpush1.msra.mxu0 0.0
    %2096 = vmatprep.subr.mxu0 0.0
    %2097 = vmatpush1.msra.mxu0 0.0
    %2098 = vmatprep.subr.mxu0 0.0
    %2099 = vmatpush1.msra.mxu0 0.0
    %2100 = vmatprep.subr.mxu0 0.0
    %2101 = vmatpush1.msra.mxu0 0.0
    %2102 = vmatprep.mubr.f32.mxu0 0.0
    %2103 = vmatmul.mubr.f32.gmra.mrb[0].mxu0 %v1509
    %v2104 = vpop.f32.mrb[0].mxu0
    %v2105 = vadd.f32 0.0, %v2104
    %v2106 = vpop.f32.mrb[0].mxu0
    %v2107 = vadd.f32 0.0, %v2106
    %2108 = vdwg.mxu0
    %2109 = vmatprep.subr.mxu0 %v1977
    %2110 = vmatpush1.msra.mxu0 %v1976
    %2111 = vmatprep.subr.mxu0 %v1981
    %2112 = vmatpush1.msra.mxu0 %v1980
    %2113 = vmatprep.subr.mxu0 %v1985
    %2114 = vmatpush1.msra.mxu0 %v1984
    %2115 = vmatprep.subr.mxu0 %v1989
    %2116 = vmatpush1.msra.mxu0 %v1988
    %2117 = vmatprep.subr.mxu0 %v1993
    %2118 = vmatpush1.msra.mxu0 %v1992
    %2119 = vmatprep.subr.mxu0 %v1997
    %2120 = vmatpush1.msra.mxu0 %v1996
    %2121 = vmatprep.subr.mxu0 %v2001
    %2122 = vmatpush1.msra.mxu0 %v2000
    %2123 = vmatprep.subr.mxu0 %v2005
    %2124 = vmatpush1.msra.mxu0 %v2004
    %2125 = vmatprep.subr.mxu0 %v2009
    %2126 = vmatpush1.msra.mxu0 %v2008
    %2127 = vmatprep.subr.mxu0 %v2013
    %2128 = vmatpush1.msra.mxu0 %v2012
    %2129 = vmatprep.subr.mxu0 %v2017
    %2130 = vmatpush1.msra.mxu0 %v2016
    %2131 = vmatprep.subr.mxu0 %v2021
    %2132 = vmatpush1.msra.mxu0 %v2020
    %2133 = vmatprep.subr.mxu0 %v2025
    %2134 = vmatpush1.msra.mxu0 %v2024
    %2135 = vmatprep.subr.mxu0 %v2029
    %2136 = vmatpush1.msra.mxu0 %v2028
    %2137 = vmatprep.subr.mxu0 %v2033
    %2138 = vmatpush1.msra.mxu0 %v2032
    %2139 = vmatprep.subr.mxu0 %v2037
    %2140 = vmatpush1.msra.mxu0 %v2036
    %2141 = vmatprep.subr.mxu0 0.0
    %2142 = vmatpush1.msra.mxu0 0.0
    %2143 = vmatprep.subr.mxu0 0.0
    %2144 = vmatpush1.msra.mxu0 0.0
    %2145 = vmatprep.subr.mxu0 0.0
    %2146 = vmatpush1.msra.mxu0 0.0
    %2147 = vmatprep.subr.mxu0 0.0
    %2148 = vmatpush1.msra.mxu0 0.0
    %2149 = vmatprep.subr.mxu0 0.0
    %2150 = vmatpush1.msra.mxu0 0.0
    %2151 = vmatprep.subr.mxu0 0.0
    %2152 = vmatpush1.msra.mxu0 0.0
    %2153 = vmatprep.subr.mxu0 0.0
    %2154 = vmatpush1.msra.mxu0 0.0
    %2155 = vmatprep.subr.mxu0 0.0
    %2156 = vmatpush1.msra.mxu0 0.0
    %2157 = vmatprep.subr.mxu0 0.0
    %2158 = vmatpush1.msra.mxu0 0.0
    %2159 = vmatprep.subr.mxu0 0.0
    %2160 = vmatpush1.msra.mxu0 0.0
    %2161 = vmatprep.subr.mxu0 0.0
    %2162 = vmatpush1.msra.mxu0 0.0
    %2163 = vmatprep.subr.mxu0 0.0
    %2164 = vmatpush1.msra.mxu0 0.0
    %2165 = vmatprep.subr.mxu0 0.0
    %2166 = vmatpush1.msra.mxu0 0.0
    %2167 = vmatprep.subr.mxu0 0.0
    %2168 = vmatpush1.msra.mxu0 0.0
    %2169 = vmatprep.subr.mxu0 0.0
    %2170 = vmatpush1.msra.mxu0 0.0
    %2171 = vmatprep.subr.mxu0 0.0
    %2172 = vmatpush1.msra.mxu0 0.0
    %2173 = vmatprep.mubr.f32.mxu0 0.0
    %2174 = vmatmul.mubr.f32.gmra.mrb[0].mxu0 %v1509
    %v2175 = vpop.f32.mrb[0].mxu0
    %v2176 = vadd.f32 0.0, %v2175
    %v2177 = vpop.f32.mrb[0].mxu0
    %v2178 = vadd.f32 0.0, %v2177
    %2179 = vdwg.mxu0
    %s2180 = smul.u32 3, 4
    %s2181 = smul.addr %s2180, 8
    %s2182 = scalar_lea.vmem [#allocation2], %s2181
    %v2183 = vld [vmem:[%s2182] sm:$0xff]
    %v2184 = vld [vmem:[%s2182 + $0x8] sm:$0xff]
    %v2185 = vld [vmem:[%s2182 + $0x10] sm:$0xff]
    %v2186 = vld [vmem:[%s2182 + $0x18] sm:$0xff]
    %v2187 = vadd.f32 %v2183, %v2105
    %v2188 = vadd.f32 %v2184, %v2107
    %v2189 = vadd.f32 %v2185, %v2176
    %v2190 = vadd.f32 %v2186, %v2178
    %v2191 = vxor.u32 %v2187, 2147483648
    %v2192 = vxor.u32 %v2188, 2147483648
    %v2193 = vxor.u32 %v2189, 2147483648
    %v2194 = vmul.f32 %v2191, 1.442695
    %v2195 = vpow.pop %v2194
    %v2196 = vmul.f32 %v2192, 1.442695
    %v2197 = vpow.pop %v2196
    %v2198 = vmul.f32 %v2193, 1.442695
    %v2199 = vpow.pop %v2198
    %v2200 = vadd.f32 %v2195, 1.0
    %v2201 = vadd.f32 %v2197, 1.0
    %v2202 = vadd.f32 %v2199, 1.0
    %v2203 = vrcp.pop %v2200
    %v2204 = vmul.f32 1.0, %v2203
    %v2205 = vrcp.pop %v2201
    %v2206 = vmul.f32 1.0, %v2205
    %v2207 = vrcp.pop %v2202
    %v2208 = vmul.f32 1.0, %v2207
    %v2209 = vtanh.pop %v2190
    %v2210 = vmul.f32 %v2206, %v1507
    %v2211 = vmul.f32 %v2204, %v2209
    %v2212 = vadd.f32 %v2210, %v2211
    %v2213 = vtanh.pop %v2212
    %v2214 = vmul.f32 %v2208, %v2213
    %v2215 = vld [vmem:[%s804] sm:$0xff]
    %v2216 = vld [vmem:[%s804 + $0x8] sm:$0xff]
    %v2217 = vld [vmem:[%s804 + $0x10] sm:$0xff]
    %v2218 = vld [vmem:[%s804 + $0x18] sm:$0xff]
    %v2219 = vld [vmem:[%s804 + $0x20] sm:$0xff]
    %v2220 = vld [vmem:[%s804 + $0x28] sm:$0xff]
    %v2221 = vld [vmem:[%s804 + $0x30] sm:$0xff]
    %v2222 = vld [vmem:[%s804 + $0x38] sm:$0xff]
    %v2223 = vld [vmem:[%s804 + $0x40] sm:$0xff]
    %v2224 = vld [vmem:[%s804 + $0x48] sm:$0xff]
    %v2225 = vld [vmem:[%s804 + $0x50] sm:$0xff]
    %v2226 = vld [vmem:[%s804 + $0x58] sm:$0xff]
    %v2227 = vld [vmem:[%s804 + $0x60] sm:$0xff]
    %v2228 = vld [vmem:[%s804 + $0x68] sm:$0xff]
    %v2229 = vld [vmem:[%s804 + $0x70] sm:$0xff]
    %v2230 = vld [vmem:[%s804 + $0x78] sm:$0xff]
    %v2231 = vld [vmem:[%s804 + $0x80] sm:$0xff]
    %v2232 = vld [vmem:[%s804 + $0x88] sm:$0xff]
    %v2233 = vld [vmem:[%s804 + $0x90] sm:$0xff]
    %v2234 = vld [vmem:[%s804 + $0x98] sm:$0xff]
    %v2235 = vld [vmem:[%s804 + $0xa0] sm:$0xff]
    %v2236 = vld [vmem:[%s804 + $0xa8] sm:$0xff]
    %v2237 = vld [vmem:[%s804 + $0xb0] sm:$0xff]
    %v2238 = vld [vmem:[%s804 + $0xb8] sm:$0xff]
    %v2239 = vld [vmem:[%s804 + $0xc0] sm:$0xff]
    %v2240 = vld [vmem:[%s804 + $0xc8] sm:$0xff]
    %v2241 = vld [vmem:[%s804 + $0xd0] sm:$0xff]
    %v2242 = vld [vmem:[%s804 + $0xd8] sm:$0xff]
    %v2243 = vld [vmem:[%s804 + $0xe0] sm:$0xff]
    %v2244 = vld [vmem:[%s804 + $0xe8] sm:$0xff]
    %v2245 = vld [vmem:[%s804 + $0xf0] sm:$0xff]
    %v2246 = vld [vmem:[%s804 + $0xf8] sm:$0xff]
    %v2247 = vld [vmem:[%s804 + $0x100] sm:$0xff]
    %v2248 = vld [vmem:[%s804 + $0x108] sm:$0xff]
    %v2249 = vld [vmem:[%s804 + $0x110] sm:$0xff]
    %v2250 = vld [vmem:[%s804 + $0x118] sm:$0xff]
    %v2251 = vld [vmem:[%s804 + $0x120] sm:$0xff]
    %v2252 = vld [vmem:[%s804 + $0x128] sm:$0xff]
    %v2253 = vld [vmem:[%s804 + $0x130] sm:$0xff]
    %v2254 = vld [vmem:[%s804 + $0x138] sm:$0xff]
    %v2255 = vld [vmem:[%s804 + $0x140] sm:$0xff]
    %v2256 = vld [vmem:[%s804 + $0x148] sm:$0xff]
    %v2257 = vld [vmem:[%s804 + $0x150] sm:$0xff]
    %v2258 = vld [vmem:[%s804 + $0x158] sm:$0xff]
    %v2259 = vld [vmem:[%s804 + $0x160] sm:$0xff]
    %v2260 = vld [vmem:[%s804 + $0x168] sm:$0xff]
    %v2261 = vld [vmem:[%s804 + $0x170] sm:$0xff]
    %v2262 = vld [vmem:[%s804 + $0x178] sm:$0xff]
    %v2263 = vld [vmem:[%s804 + $0x180] sm:$0xff]
    %v2264 = vld [vmem:[%s804 + $0x188] sm:$0xff]
    %v2265 = vld [vmem:[%s804 + $0x190] sm:$0xff]
    %v2266 = vld [vmem:[%s804 + $0x198] sm:$0xff]
    %v2267 = vld [vmem:[%s804 + $0x1a0] sm:$0xff]
    %v2268 = vld [vmem:[%s804 + $0x1a8] sm:$0xff]
    %v2269 = vld [vmem:[%s804 + $0x1b0] sm:$0xff]
    %v2270 = vld [vmem:[%s804 + $0x1b8] sm:$0xff]
    %v2271 = vld [vmem:[%s804 + $0x1c0] sm:$0xff]
    %v2272 = vld [vmem:[%s804 + $0x1c8] sm:$0xff]
    %v2273 = vld [vmem:[%s804 + $0x1d0] sm:$0xff]
    %v2274 = vld [vmem:[%s804 + $0x1d8] sm:$0xff]
    %v2275 = vld [vmem:[%s804 + $0x1e0] sm:$0xff]
    %v2276 = vld [vmem:[%s804 + $0x1e8] sm:$0xff]
    %v2277 = vld [vmem:[%s804 + $0x1f0] sm:$0xff]
    %v2278 = vld [vmem:[%s804 + $0x1f8] sm:$0xff]
    %2279 = vmatprep.subr.mxu0 %v2216
    %2280 = vmatpush1.msra.mxu0 %v2215
    %2281 = vmatprep.subr.mxu0 %v2220
    %2282 = vmatpush1.msra.mxu0 %v2219
    %2283 = vmatprep.subr.mxu0 %v2224
    %2284 = vmatpush1.msra.mxu0 %v2223
    %2285 = vmatprep.subr.mxu0 %v2228
    %2286 = vmatpush1.msra.mxu0 %v2227
    %2287 = vmatprep.subr.mxu0 %v2232
    %2288 = vmatpush1.msra.mxu0 %v2231
    %2289 = vmatprep.subr.mxu0 %v2236
    %2290 = vmatpush1.msra.mxu0 %v2235
    %2291 = vmatprep.subr.mxu0 %v2240
    %2292 = vmatpush1.msra.mxu0 %v2239
    %2293 = vmatprep.subr.mxu0 %v2244
    %2294 = vmatpush1.msra.mxu0 %v2243
    %2295 = vmatprep.subr.mxu0 %v2248
    %2296 = vmatpush1.msra.mxu0 %v2247
    %2297 = vmatprep.subr.mxu0 %v2252
    %2298 = vmatpush1.msra.mxu0 %v2251
    %2299 = vmatprep.subr.mxu0 %v2256
    %2300 = vmatpush1.msra.mxu0 %v2255
    %2301 = vmatprep.subr.mxu0 %v2260
    %2302 = vmatpush1.msra.mxu0 %v2259
    %2303 = vmatprep.subr.mxu0 %v2264
    %2304 = vmatpush1.msra.mxu0 %v2263
    %2305 = vmatprep.subr.mxu0 %v2268
    %2306 = vmatpush1.msra.mxu0 %v2267
    %2307 = vmatprep.subr.mxu0 %v2272
    %2308 = vmatpush1.msra.mxu0 %v2271
    %2309 = vmatprep.subr.mxu0 %v2276
    %2310 = vmatpush1.msra.mxu0 %v2275
    %2311 = vmatprep.subr.mxu0 0.0
    %2312 = vmatpush1.msra.mxu0 0.0
    %2313 = vmatprep.subr.mxu0 0.0
    %2314 = vmatpush1.msra.mxu0 0.0
    %2315 = vmatprep.subr.mxu0 0.0
    %2316 = vmatpush1.msra.mxu0 0.0
    %2317 = vmatprep.subr.mxu0 0.0
    %2318 = vmatpush1.msra.mxu0 0.0
    %2319 = vmatprep.subr.mxu0 0.0
    %2320 = vmatpush1.msra.mxu0 0.0
    %2321 = vmatprep.subr.mxu0 0.0
    %2322 = vmatpush1.msra.mxu0 0.0
    %2323 = vmatprep.subr.mxu0 0.0
    %2324 = vmatpush1.msra.mxu0 0.0
    %2325 = vmatprep.subr.mxu0 0.0
    %2326 = vmatpush1.msra.mxu0 0.0
    %2327 = vmatprep.subr.mxu0 0.0
    %2328 = vmatpush1.msra.mxu0 0.0
    %2329 = vmatprep.subr.mxu0 0.0
    %2330 = vmatpush1.msra.mxu0 0.0
    %2331 = vmatprep.subr.mxu0 0.0
    %2332 = vmatpush1.msra.mxu0 0.0
    %2333 = vmatprep.subr.mxu0 0.0
    %2334 = vmatpush1.msra.mxu0 0.0
    %2335 = vmatprep.subr.mxu0 0.0
    %2336 = vmatpush1.msra.mxu0 0.0
    %2337 = vmatprep.subr.mxu0 0.0
    %2338 = vmatpush1.msra.mxu0 0.0
    %2339 = vmatprep.subr.mxu0 0.0
    %2340 = vmatpush1.msra.mxu0 0.0
    %2341 = vmatprep.subr.mxu0 0.0
    %2342 = vmatpush1.msra.mxu0 0.0
    %2343 = vmatprep.mubr.f32.mxu0 0.0
    %2344 = vmatmul.mubr.f32.gmra.mrb[0].mxu0 %v1971
    %v2345 = vpop.f32.mrb[0].mxu0
    %v2346 = vadd.f32 0.0, %v2345
    %v2347 = vpop.f32.mrb[0].mxu0
    %v2348 = vadd.f32 0.0, %v2347
    %2349 = vdwg.mxu0
    %2350 = vmatprep.subr.mxu0 %v2218
    %2351 = vmatpush1.msra.mxu0 %v2217
    %2352 = vmatprep.subr.mxu0 %v2222
    %2353 = vmatpush1.msra.mxu0 %v2221
    %2354 = vmatprep.subr.mxu0 %v2226
    %2355 = vmatpush1.msra.mxu0 %v2225
    %2356 = vmatprep.subr.mxu0 %v2230
    %2357 = vmatpush1.msra.mxu0 %v2229
    %2358 = vmatprep.subr.mxu0 %v2234
    %2359 = vmatpush1.msra.mxu0 %v2233
    %2360 = vmatprep.subr.mxu0 %v2238
    %2361 = vmatpush1.msra.mxu0 %v2237
    %2362 = vmatprep.subr.mxu0 %v2242
    %2363 = vmatpush1.msra.mxu0 %v2241
    %2364 = vmatprep.subr.mxu0 %v2246
    %2365 = vmatpush1.msra.mxu0 %v2245
    %2366 = vmatprep.subr.mxu0 %v2250
    %2367 = vmatpush1.msra.mxu0 %v2249
    %2368 = vmatprep.subr.mxu0 %v2254
    %2369 = vmatpush1.msra.mxu0 %v2253
    %2370 = vmatprep.subr.mxu0 %v2258
    %2371 = vmatpush1.msra.mxu0 %v2257
    %2372 = vmatprep.subr.mxu0 %v2262
    %2373 = vmatpush1.msra.mxu0 %v2261
    %2374 = vmatprep.subr.mxu0 %v2266
    %2375 = vmatpush1.msra.mxu0 %v2265
    %2376 = vmatprep.subr.mxu0 %v2270
    %2377 = vmatpush1.msra.mxu0 %v2269
    %2378 = vmatprep.subr.mxu0 %v2274
    %2379 = vmatpush1.msra.mxu0 %v2273
    %2380 = vmatprep.subr.mxu0 %v2278
    %2381 = vmatpush1.msra.mxu0 %v2277
    %2382 = vmatprep.subr.mxu0 0.0
    %2383 = vmatpush1.msra.mxu0 0.0
    %2384 = vmatprep.subr.mxu0 0.0
    %2385 = vmatpush1.msra.mxu0 0.0
    %2386 = vmatprep.subr.mxu0 0.0
    %2387 = vmatpush1.msra.mxu0 0.0
    %2388 = vmatprep.subr.mxu0 0.0
    %2389 = vmatpush1.msra.mxu0 0.0
    %2390 = vmatprep.subr.mxu0 0.0
    %2391 = vmatpush1.msra.mxu0 0.0
    %2392 = vmatprep.subr.mxu0 0.0
    %2393 = vmatpush1.msra.mxu0 0.0
    %2394 = vmatprep.subr.mxu0 0.0
    %2395 = vmatpush1.msra.mxu0 0.0
    %2396 = vmatprep.subr.mxu0 0.0
    %2397 = vmatpush1.msra.mxu0 0.0
    %2398 = vmatprep.subr.mxu0 0.0
    %2399 = vmatpush1.msra.mxu0 0.0
    %2400 = vmatprep.subr.mxu0 0.0
    %2401 = vmatpush1.msra.mxu0 0.0
    %2402 = vmatprep.subr.mxu0 0.0
    %2403 = vmatpush1.msra.mxu0 0.0
    %2404 = vmatprep.subr.mxu0 0.0
    %2405 = vmatpush1.msra.mxu0 0.0
    %2406 = vmatprep.subr.mxu0 0.0
    %2407 = vmatpush1.msra.mxu0 0.0
    %2408 = vmatprep.subr.mxu0 0.0
    %2409 = vmatpush1.msra.mxu0 0.0
    %2410 = vmatprep.subr.mxu0 0.0
    %2411 = vmatpush1.msra.mxu0 0.0
    %2412 = vmatprep.subr.mxu0 0.0
    %2413 = vmatpush1.msra.mxu0 0.0
    %2414 = vmatprep.mubr.f32.mxu0 0.0
    %2415 = vmatmul.mubr.f32.gmra.mrb[0].mxu0 %v1971
    %v2416 = vpop.f32.mrb[0].mxu0
    %v2417 = vadd.f32 0.0, %v2416
    %v2418 = vpop.f32.mrb[0].mxu0
    %v2419 = vadd.f32 0.0, %v2418
    %2420 = vdwg.mxu0
    %v2421 = vld [vmem:[#allocation4] sm:$0xff]
    %v2422 = vld [vmem:[#allocation4 + $0x8] sm:$0xff]
    %v2423 = vld [vmem:[#allocation4 + $0x10] sm:$0xff]
    %v2424 = vld [vmem:[#allocation4 + $0x18] sm:$0xff]
    %v2425 = vld [vmem:[#allocation4 + $0x20] sm:$0xff]
    %v2426 = vld [vmem:[#allocation4 + $0x28] sm:$0xff]
    %v2427 = vld [vmem:[#allocation4 + $0x30] sm:$0xff]
    %v2428 = vld [vmem:[#allocation4 + $0x38] sm:$0xff]
    %v2429 = vld [vmem:[#allocation4 + $0x40] sm:$0xff]
    %v2430 = vld [vmem:[#allocation4 + $0x48] sm:$0xff]
    %v2431 = vld [vmem:[#allocation4 + $0x50] sm:$0xff]
    %v2432 = vld [vmem:[#allocation4 + $0x58] sm:$0xff]
    %v2433 = vld [vmem:[#allocation4 + $0x60] sm:$0xff]
    %v2434 = vld [vmem:[#allocation4 + $0x68] sm:$0xff]
    %v2435 = vld [vmem:[#allocation4 + $0x70] sm:$0xff]
    %v2436 = vld [vmem:[#allocation4 + $0x78] sm:$0xff]
    %v2437 = vld [vmem:[#allocation4 + $0x80] sm:$0xff]
    %v2438 = vld [vmem:[#allocation4 + $0x88] sm:$0xff]
    %v2439 = vld [vmem:[#allocation4 + $0x90] sm:$0xff]
    %v2440 = vld [vmem:[#allocation4 + $0x98] sm:$0xff]
    %v2441 = vld [vmem:[#allocation4 + $0xa0] sm:$0xff]
    %v2442 = vld [vmem:[#allocation4 + $0xa8] sm:$0xff]
    %v2443 = vld [vmem:[#allocation4 + $0xb0] sm:$0xff]
    %v2444 = vld [vmem:[#allocation4 + $0xb8] sm:$0xff]
    %v2445 = vld [vmem:[#allocation4 + $0xc0] sm:$0xff]
    %v2446 = vld [vmem:[#allocation4 + $0xc8] sm:$0xff]
    %v2447 = vld [vmem:[#allocation4 + $0xd0] sm:$0xff]
    %v2448 = vld [vmem:[#allocation4 + $0xd8] sm:$0xff]
    %v2449 = vld [vmem:[#allocation4 + $0xe0] sm:$0xff]
    %v2450 = vld [vmem:[#allocation4 + $0xe8] sm:$0xff]
    %v2451 = vld [vmem:[#allocation4 + $0xf0] sm:$0xff]
    %v2452 = vld [vmem:[#allocation4 + $0xf8] sm:$0xff]
    %v2453 = vld [vmem:[#allocation4 + $0x100] sm:$0xff]
    %v2454 = vld [vmem:[#allocation4 + $0x108] sm:$0xff]
    %v2455 = vld [vmem:[#allocation4 + $0x110] sm:$0xff]
    %v2456 = vld [vmem:[#allocation4 + $0x118] sm:$0xff]
    %v2457 = vld [vmem:[#allocation4 + $0x120] sm:$0xff]
    %v2458 = vld [vmem:[#allocation4 + $0x128] sm:$0xff]
    %v2459 = vld [vmem:[#allocation4 + $0x130] sm:$0xff]
    %v2460 = vld [vmem:[#allocation4 + $0x138] sm:$0xff]
    %v2461 = vld [vmem:[#allocation4 + $0x140] sm:$0xff]
    %v2462 = vld [vmem:[#allocation4 + $0x148] sm:$0xff]
    %v2463 = vld [vmem:[#allocation4 + $0x150] sm:$0xff]
    %v2464 = vld [vmem:[#allocation4 + $0x158] sm:$0xff]
    %v2465 = vld [vmem:[#allocation4 + $0x160] sm:$0xff]
    %v2466 = vld [vmem:[#allocation4 + $0x168] sm:$0xff]
    %v2467 = vld [vmem:[#allocation4 + $0x170] sm:$0xff]
    %v2468 = vld [vmem:[#allocation4 + $0x178] sm:$0xff]
    %v2469 = vld [vmem:[#allocation4 + $0x180] sm:$0xff]
    %v2470 = vld [vmem:[#allocation4 + $0x188] sm:$0xff]
    %v2471 = vld [vmem:[#allocation4 + $0x190] sm:$0xff]
    %v2472 = vld [vmem:[#allocation4 + $0x198] sm:$0xff]
    %v2473 = vld [vmem:[#allocation4 + $0x1a0] sm:$0xff]
    %v2474 = vld [vmem:[#allocation4 + $0x1a8] sm:$0xff]
    %v2475 = vld [vmem:[#allocation4 + $0x1b0] sm:$0xff]
    %v2476 = vld [vmem:[#allocation4 + $0x1b8] sm:$0xff]
    %v2477 = vld [vmem:[#allocation4 + $0x1c0] sm:$0xff]
    %v2478 = vld [vmem:[#allocation4 + $0x1c8] sm:$0xff]
    %v2479 = vld [vmem:[#allocation4 + $0x1d0] sm:$0xff]
    %v2480 = vld [vmem:[#allocation4 + $0x1d8] sm:$0xff]
    %v2481 = vld [vmem:[#allocation4 + $0x1e0] sm:$0xff]
    %v2482 = vld [vmem:[#allocation4 + $0x1e8] sm:$0xff]
    %v2483 = vld [vmem:[#allocation4 + $0x1f0] sm:$0xff]
    %v2484 = vld [vmem:[#allocation4 + $0x1f8] sm:$0xff]
    %2485 = vmatprep.subr.mxu0 %v2422
    %2486 = vmatpush1.msra.mxu0 %v2421
    %2487 = vmatprep.subr.mxu0 %v2426
    %2488 = vmatpush1.msra.mxu0 %v2425
    %2489 = vmatprep.subr.mxu0 %v2430
    %2490 = vmatpush1.msra.mxu0 %v2429
    %2491 = vmatprep.subr.mxu0 %v2434
    %2492 = vmatpush1.msra.mxu0 %v2433
    %2493 = vmatprep.subr.mxu0 %v2438
    %2494 = vmatpush1.msra.mxu0 %v2437
    %2495 = vmatprep.subr.mxu0 %v2442
    %2496 = vmatpush1.msra.mxu0 %v2441
    %2497 = vmatprep.subr.mxu0 %v2446
    %2498 = vmatpush1.msra.mxu0 %v2445
    %2499 = vmatprep.subr.mxu0 %v2450
    %2500 = vmatpush1.msra.mxu0 %v2449
    %2501 = vmatprep.subr.mxu0 %v2454
    %2502 = vmatpush1.msra.mxu0 %v2453
    %2503 = vmatprep.subr.mxu0 %v2458
    %2504 = vmatpush1.msra.mxu0 %v2457
    %2505 = vmatprep.subr.mxu0 %v2462
    %2506 = vmatpush1.msra.mxu0 %v2461
    %2507 = vmatprep.subr.mxu0 %v2466
    %2508 = vmatpush1.msra.mxu0 %v2465
    %2509 = vmatprep.subr.mxu0 %v2470
    %2510 = vmatpush1.msra.mxu0 %v2469
    %2511 = vmatprep.subr.mxu0 %v2474
    %2512 = vmatpush1.msra.mxu0 %v2473
    %2513 = vmatprep.subr.mxu0 %v2478
    %2514 = vmatpush1.msra.mxu0 %v2477
    %2515 = vmatprep.subr.mxu0 %v2482
    %2516 = vmatpush1.msra.mxu0 %v2481
    %2517 = vmatprep.subr.mxu0 0.0
    %2518 = vmatpush1.msra.mxu0 0.0
    %2519 = vmatprep.subr.mxu0 0.0
    %2520 = vmatpush1.msra.mxu0 0.0
    %2521 = vmatprep.subr.mxu0 0.0
    %2522 = vmatpush1.msra.mxu0 0.0
    %2523 = vmatprep.subr.mxu0 0.0
    %2524 = vmatpush1.msra.mxu0 0.0
    %2525 = vmatprep.subr.mxu0 0.0
    %2526 = vmatpush1.msra.mxu0 0.0
    %2527 = vmatprep.subr.mxu0 0.0
    %2528 = vmatpush1.msra.mxu0 0.0
    %2529 = vmatprep.subr.mxu0 0.0
    %2530 = vmatpush1.msra.mxu0 0.0
    %2531 = vmatprep.subr.mxu0 0.0
    %2532 = vmatpush1.msra.mxu0 0.0
    %2533 = vmatprep.subr.mxu0 0.0
    %2534 = vmatpush1.msra.mxu0 0.0
    %2535 = vmatprep.subr.mxu0 0.0
    %2536 = vmatpush1.msra.mxu0 0.0
    %2537 = vmatprep.subr.mxu0 0.0
    %2538 = vmatpush1.msra.mxu0 0.0
    %2539 = vmatprep.subr.mxu0 0.0
    %2540 = vmatpush1.msra.mxu0 0.0
    %2541 = vmatprep.subr.mxu0 0.0
    %2542 = vmatpush1.msra.mxu0 0.0
    %2543 = vmatprep.subr.mxu0 0.0
    %2544 = vmatpush1.msra.mxu0 0.0
    %2545 = vmatprep.subr.mxu0 0.0
    %2546 = vmatpush1.msra.mxu0 0.0
    %2547 = vmatprep.subr.mxu0 0.0
    %2548 = vmatpush1.msra.mxu0 0.0
    %2549 = vmatprep.mubr.f32.mxu0 0.0
    %2550 = vmatmul.mubr.f32.gmra.mrb[0].mxu0 %v1509
    %v2551 = vpop.f32.mrb[0].mxu0
    %v2552 = vadd.f32 %v2346, %v2551
    %v2553 = vpop.f32.mrb[0].mxu0
    %v2554 = vadd.f32 %v2348, %v2553
    %2555 = vdwg.mxu0
    %2556 = vmatprep.subr.mxu0 %v2424
    %2557 = vmatpush1.msra.mxu0 %v2423
    %2558 = vmatprep.subr.mxu0 %v2428
    %2559 = vmatpush1.msra.mxu0 %v2427
    %2560 = vmatprep.subr.mxu0 %v2432
    %2561 = vmatpush1.msra.mxu0 %v2431
    %2562 = vmatprep.subr.mxu0 %v2436
    %2563 = vmatpush1.msra.mxu0 %v2435
    %2564 = vmatprep.subr.mxu0 %v2440
    %2565 = vmatpush1.msra.mxu0 %v2439
    %2566 = vmatprep.subr.mxu0 %v2444
    %2567 = vmatpush1.msra.mxu0 %v2443
    %2568 = vmatprep.subr.mxu0 %v2448
    %2569 = vmatpush1.msra.mxu0 %v2447
    %2570 = vmatprep.subr.mxu0 %v2452
    %2571 = vmatpush1.msra.mxu0 %v2451
    %2572 = vmatprep.subr.mxu0 %v2456
    %2573 = vmatpush1.msra.mxu0 %v2455
    %2574 = vmatprep.subr.mxu0 %v2460
    %2575 = vmatpush1.msra.mxu0 %v2459
    %2576 = vmatprep.subr.mxu0 %v2464
    %2577 = vmatpush1.msra.mxu0 %v2463
    %2578 = vmatprep.subr.mxu0 %v2468
    %2579 = vmatpush1.msra.mxu0 %v2467
    %2580 = vmatprep.subr.mxu0 %v2472
    %2581 = vmatpush1.msra.mxu0 %v2471
    %2582 = vmatprep.subr.mxu0 %v2476
    %2583 = vmatpush1.msra.mxu0 %v2475
    %2584 = vmatprep.subr.mxu0 %v2480
    %2585 = vmatpush1.msra.mxu0 %v2479
    %2586 = vmatprep.subr.mxu0 %v2484
    %2587 = vmatpush1.msra.mxu0 %v2483
    %2588 = vmatprep.subr.mxu0 0.0
    %2589 = vmatpush1.msra.mxu0 0.0
    %2590 = vmatprep.subr.mxu0 0.0
    %2591 = vmatpush1.msra.mxu0 0.0
    %2592 = vmatprep.subr.mxu0 0.0
    %2593 = vmatpush1.msra.mxu0 0.0
    %2594 = vmatprep.subr.mxu0 0.0
    %2595 = vmatpush1.msra.mxu0 0.0
    %2596 = vmatprep.subr.mxu0 0.0
    %2597 = vmatpush1.msra.mxu0 0.0
    %2598 = vmatprep.subr.mxu0 0.0
    %2599 = vmatpush1.msra.mxu0 0.0
    %2600 = vmatprep.subr.mxu0 0.0
    %2601 = vmatpush1.msra.mxu0 0.0
    %2602 = vmatprep.subr.mxu0 0.0
    %2603 = vmatpush1.msra.mxu0 0.0
    %2604 = vmatprep.subr.mxu0 0.0
    %2605 = vmatpush1.msra.mxu0 0.0
    %2606 = vmatprep.subr.mxu0 0.0
    %2607 = vmatpush1.msra.mxu0 0.0
    %2608 = vmatprep.subr.mxu0 0.0
    %2609 = vmatpush1.msra.mxu0 0.0
    %2610 = vmatprep.subr.mxu0 0.0
    %2611 = vmatpush1.msra.mxu0 0.0
    %2612 = vmatprep.subr.mxu0 0.0
    %2613 = vmatpush1.msra.mxu0 0.0
    %2614 = vmatprep.subr.mxu0 0.0
    %2615 = vmatpush1.msra.mxu0 0.0
    %2616 = vmatprep.subr.mxu0 0.0
    %2617 = vmatpush1.msra.mxu0 0.0
    %2618 = vmatprep.subr.mxu0 0.0
    %2619 = vmatpush1.msra.mxu0 0.0
    %2620 = vmatprep.mubr.f32.mxu0 0.0
    %2621 = vmatmul.mubr.f32.gmra.mrb[0].mxu0 %v1509
    %v2622 = vpop.f32.mrb[0].mxu0
    %v2623 = vadd.f32 %v2417, %v2622
    %v2624 = vpop.f32.mrb[0].mxu0
    %v2625 = vadd.f32 %v2419, %v2624
    %2626 = vdwg.mxu0
    %v2627 = vld [vmem:[%s1217] sm:$0xf]
    %v2629 = vlaneseq
    %v2630 = vshrl.u32 %v2629, 7
    %v2631 = vsub.s32 0, %v2630
    %v2632 = vrot.slane %v2627, %v2631
    %v2633 = vlaneseq
    %v2634 = vshrl.u32 %v2633, 7
    %v2635 = vsub.s32 1, %v2634
    %v2636 = vrot.slane %v2627, %v2635
    %v2637 = vlaneseq
    %v2638 = vshrl.u32 %v2637, 7
    %v2639 = vsub.s32 2, %v2638
    %v2640 = vrot.slane %v2627, %v2639
    %v2641 = vlaneseq
    %v2642 = vshrl.u32 %v2641, 7
    %v2643 = vsub.s32 3, %v2642
    %v2644 = vrot.slane %v2627, %v2643
    %v2649 = vadd.f32 %v2552, %v2632
    %v2650 = vadd.f32 %v2554, %v2636
    %v2651 = vadd.f32 %v2623, %v2640
    %v2652 = vadd.f32 %v2625, %v2644
    %v2653 = vxor.u32 %v2649, 2147483648
    %v2654 = vxor.u32 %v2650, 2147483648
    %v2655 = vxor.u32 %v2651, 2147483648
    %v2656 = vmul.f32 %v2653, 1.442695
    %v2657 = vpow.pop %v2656
    %v2658 = vmul.f32 %v2654, 1.442695
    %v2659 = vpow.pop %v2658
    %v2660 = vmul.f32 %v2655, 1.442695
    %v2661 = vpow.pop %v2660
    %v2662 = vadd.f32 %v2657, 1.0
    %v2663 = vadd.f32 %v2659, 1.0
    %v2664 = vadd.f32 %v2661, 1.0
    %v2665 = vrcp.pop %v2662
    %v2666 = vmul.f32 1.0, %v2665
    %v2667 = vrcp.pop %v2663
    %v2668 = vmul.f32 1.0, %v2667
    %v2669 = vrcp.pop %v2664
    %v2670 = vmul.f32 1.0, %v2669
    %v2671 = vtanh.pop %v2652
    %v2672 = vmul.f32 %v2668, %v1969
    %v2673 = vmul.f32 %v2666, %v2671
    %v2674 = vadd.f32 %v2672, %v2673
    %v2675 = vtanh.pop %v2674
    %v2676 = vmul.f32 %v2670, %v2675
    %s2677 = scalar_lea.vmem [#allocation3], 16
    %2678 = vst [vmem:[%s2677] sm:$0xff] %v2676
    %v2679 = vld [vmem:[#allocation7] sm:$0xff]
    %v2680 = vld [vmem:[#allocation7 + $0x8] sm:$0xff]
    %v2681 = vld [vmem:[#allocation7 + $0x10] sm:$0xff]
    %v2682 = vld [vmem:[#allocation7 + $0x18] sm:$0xff]
    %v2683 = vld [vmem:[#allocation7 + $0x20] sm:$0xff]
    %v2684 = vld [vmem:[#allocation7 + $0x28] sm:$0xff]
    %v2685 = vld [vmem:[#allocation7 + $0x30] sm:$0xff]
    %v2686 = vld [vmem:[#allocation7 + $0x38] sm:$0xff]
    %v2687 = vld [vmem:[#allocation7 + $0x40] sm:$0xff]
    %v2688 = vld [vmem:[#allocation7 + $0x48] sm:$0xff]
    %v2689 = vld [vmem:[#allocation7 + $0x50] sm:$0xff]
    %v2690 = vld [vmem:[#allocation7 + $0x58] sm:$0xff]
    %v2691 = vld [vmem:[#allocation7 + $0x60] sm:$0xff]
    %v2692 = vld [vmem:[#allocation7 + $0x68] sm:$0xff]
    %v2693 = vld [vmem:[#allocation7 + $0x70] sm:$0xff]
    %v2694 = vld [vmem:[#allocation7 + $0x78] sm:$0xff]
    %v2695 = vld [vmem:[#allocation7 + $0x80] sm:$0xff]
    %v2696 = vld [vmem:[#allocation7 + $0x88] sm:$0xff]
    %v2697 = vld [vmem:[#allocation7 + $0x90] sm:$0xff]
    %v2698 = vld [vmem:[#allocation7 + $0x98] sm:$0xff]
    %v2699 = vld [vmem:[#allocation7 + $0xa0] sm:$0xff]
    %v2700 = vld [vmem:[#allocation7 + $0xa8] sm:$0xff]
    %v2701 = vld [vmem:[#allocation7 + $0xb0] sm:$0xff]
    %v2702 = vld [vmem:[#allocation7 + $0xb8] sm:$0xff]
    %v2703 = vld [vmem:[#allocation7 + $0xc0] sm:$0xff]
    %v2704 = vld [vmem:[#allocation7 + $0xc8] sm:$0xff]
    %v2705 = vld [vmem:[#allocation7 + $0xd0] sm:$0xff]
    %v2706 = vld [vmem:[#allocation7 + $0xd8] sm:$0xff]
    %v2707 = vld [vmem:[#allocation7 + $0xe0] sm:$0xff]
    %v2708 = vld [vmem:[#allocation7 + $0xe8] sm:$0xff]
    %v2709 = vld [vmem:[#allocation7 + $0xf0] sm:$0xff]
    %v2710 = vld [vmem:[#allocation7 + $0xf8] sm:$0xff]
    %v2711 = vld [vmem:[#allocation7 + $0x100] sm:$0xff]
    %v2712 = vld [vmem:[#allocation7 + $0x108] sm:$0xff]
    %v2713 = vld [vmem:[#allocation7 + $0x110] sm:$0xff]
    %v2714 = vld [vmem:[#allocation7 + $0x118] sm:$0xff]
    %v2715 = vld [vmem:[#allocation7 + $0x120] sm:$0xff]
    %v2716 = vld [vmem:[#allocation7 + $0x128] sm:$0xff]
    %v2717 = vld [vmem:[#allocation7 + $0x130] sm:$0xff]
    %v2718 = vld [vmem:[#allocation7 + $0x138] sm:$0xff]
    %v2719 = vld [vmem:[#allocation7 + $0x140] sm:$0xff]
    %v2720 = vld [vmem:[#allocation7 + $0x148] sm:$0xff]
    %v2721 = vld [vmem:[#allocation7 + $0x150] sm:$0xff]
    %v2722 = vld [vmem:[#allocation7 + $0x158] sm:$0xff]
    %v2723 = vld [vmem:[#allocation7 + $0x160] sm:$0xff]
    %v2724 = vld [vmem:[#allocation7 + $0x168] sm:$0xff]
    %v2725 = vld [vmem:[#allocation7 + $0x170] sm:$0xff]
    %v2726 = vld [vmem:[#allocation7 + $0x178] sm:$0xff]
    %v2727 = vld [vmem:[#allocation7 + $0x180] sm:$0xff]
    %v2728 = vld [vmem:[#allocation7 + $0x188] sm:$0xff]
    %v2729 = vld [vmem:[#allocation7 + $0x190] sm:$0xff]
    %v2730 = vld [vmem:[#allocation7 + $0x198] sm:$0xff]
    %v2731 = vld [vmem:[#allocation7 + $0x1a0] sm:$0xff]
    %v2732 = vld [vmem:[#allocation7 + $0x1a8] sm:$0xff]
    %v2733 = vld [vmem:[#allocation7 + $0x1b0] sm:$0xff]
    %v2734 = vld [vmem:[#allocation7 + $0x1b8] sm:$0xff]
    %v2735 = vld [vmem:[#allocation7 + $0x1c0] sm:$0xff]
    %v2736 = vld [vmem:[#allocation7 + $0x1c8] sm:$0xff]
    %v2737 = vld [vmem:[#allocation7 + $0x1d0] sm:$0xff]
    %v2738 = vld [vmem:[#allocation7 + $0x1d8] sm:$0xff]
    %v2739 = vld [vmem:[#allocation7 + $0x1e0] sm:$0xff]
    %v2740 = vld [vmem:[#allocation7 + $0x1e8] sm:$0xff]
    %v2741 = vld [vmem:[#allocation7 + $0x1f0] sm:$0xff]
    %v2742 = vld [vmem:[#allocation7 + $0x1f8] sm:$0xff]
    %2743 = vmatprep.subr.mxu0 %v2680
    %2744 = vmatpush1.msra.mxu0 %v2679
    %2745 = vmatprep.subr.mxu0 %v2684
    %2746 = vmatpush1.msra.mxu0 %v2683
    %2747 = vmatprep.subr.mxu0 %v2688
    %2748 = vmatpush1.msra.mxu0 %v2687
    %2749 = vmatprep.subr.mxu0 %v2692
    %2750 = vmatpush1.msra.mxu0 %v2691
    %2751 = vmatprep.subr.mxu0 %v2696
    %2752 = vmatpush1.msra.mxu0 %v2695
    %2753 = vmatprep.subr.mxu0 %v2700
    %2754 = vmatpush1.msra.mxu0 %v2699
    %2755 = vmatprep.subr.mxu0 %v2704
    %2756 = vmatpush1.msra.mxu0 %v2703
    %2757 = vmatprep.subr.mxu0 %v2708
    %2758 = vmatpush1.msra.mxu0 %v2707
    %2759 = vmatprep.subr.mxu0 %v2712
    %2760 = vmatpush1.msra.mxu0 %v2711
    %2761 = vmatprep.subr.mxu0 %v2716
    %2762 = vmatpush1.msra.mxu0 %v2715
    %2763 = vmatprep.subr.mxu0 %v2720
    %2764 = vmatpush1.msra.mxu0 %v2719
    %2765 = vmatprep.subr.mxu0 %v2724
    %2766 = vmatpush1.msra.mxu0 %v2723
    %2767 = vmatprep.subr.mxu0 %v2728
    %2768 = vmatpush1.msra.mxu0 %v2727
    %2769 = vmatprep.subr.mxu0 %v2732
    %2770 = vmatpush1.msra.mxu0 %v2731
    %2771 = vmatprep.subr.mxu0 %v2736
    %2772 = vmatpush1.msra.mxu0 %v2735
    %2773 = vmatprep.subr.mxu0 %v2740
    %2774 = vmatpush1.msra.mxu0 %v2739
    %2775 = vmatprep.subr.mxu0 0.0
    %2776 = vmatpush1.msra.mxu0 0.0
    %2777 = vmatprep.subr.mxu0 0.0
    %2778 = vmatpush1.msra.mxu0 0.0
    %2779 = vmatprep.subr.mxu0 0.0
    %2780 = vmatpush1.msra.mxu0 0.0
    %2781 = vmatprep.subr.mxu0 0.0
    %2782 = vmatpush1.msra.mxu0 0.0
    %2783 = vmatprep.subr.mxu0 0.0
    %2784 = vmatpush1.msra.mxu0 0.0
    %2785 = vmatprep.subr.mxu0 0.0
    %2786 = vmatpush1.msra.mxu0 0.0
    %2787 = vmatprep.subr.mxu0 0.0
    %2788 = vmatpush1.msra.mxu0 0.0
    %2789 = vmatprep.subr.mxu0 0.0
    %2790 = vmatpush1.msra.mxu0 0.0
    %2791 = vmatprep.subr.mxu0 0.0
    %2792 = vmatpush1.msra.mxu0 0.0
    %2793 = vmatprep.subr.mxu0 0.0
    %2794 = vmatpush1.msra.mxu0 0.0
    %2795 = vmatprep.subr.mxu0 0.0
    %2796 = vmatpush1.msra.mxu0 0.0
    %2797 = vmatprep.subr.mxu0 0.0
    %2798 = vmatpush1.msra.mxu0 0.0
    %2799 = vmatprep.subr.mxu0 0.0
    %2800 = vmatpush1.msra.mxu0 0.0
    %2801 = vmatprep.subr.mxu0 0.0
    %2802 = vmatpush1.msra.mxu0 0.0
    %2803 = vmatprep.subr.mxu0 0.0
    %2804 = vmatpush1.msra.mxu0 0.0
    %2805 = vmatprep.subr.mxu0 0.0
    %2806 = vmatpush1.msra.mxu0 0.0
    %2807 = vmatprep.mubr.f32.mxu0 0.0
    %2808 = vmatmul.mubr.f32.gmra.mrb[0].mxu0 %v2214
    %v2809 = vpop.f32.mrb[0].mxu0
    %v2810 = vadd.f32 0.0, %v2809
    %v2811 = vpop.f32.mrb[0].mxu0
    %v2812 = vadd.f32 0.0, %v2811
    %2813 = vdwg.mxu0
    %2814 = vmatprep.subr.mxu0 %v2682
    %2815 = vmatpush1.msra.mxu0 %v2681
    %2816 = vmatprep.subr.mxu0 %v2686
    %2817 = vmatpush1.msra.mxu0 %v2685
    %2818 = vmatprep.subr.mxu0 %v2690
    %2819 = vmatpush1.msra.mxu0 %v2689
    %2820 = vmatprep.subr.mxu0 %v2694
    %2821 = vmatpush1.msra.mxu0 %v2693
    %2822 = vmatprep.subr.mxu0 %v2698
    %2823 = vmatpush1.msra.mxu0 %v2697
    %2824 = vmatprep.subr.mxu0 %v2702
    %2825 = vmatpush1.msra.mxu0 %v2701
    %2826 = vmatprep.subr.mxu0 %v2706
    %2827 = vmatpush1.msra.mxu0 %v2705
    %2828 = vmatprep.subr.mxu0 %v2710
    %2829 = vmatpush1.msra.mxu0 %v2709
    %2830 = vmatprep.subr.mxu0 %v2714
    %2831 = vmatpush1.msra.mxu0 %v2713
    %2832 = vmatprep.subr.mxu0 %v2718
    %2833 = vmatpush1.msra.mxu0 %v2717
    %2834 = vmatprep.subr.mxu0 %v2722
    %2835 = vmatpush1.msra.mxu0 %v2721
    %2836 = vmatprep.subr.mxu0 %v2726
    %2837 = vmatpush1.msra.mxu0 %v2725
    %2838 = vmatprep.subr.mxu0 %v2730
    %2839 = vmatpush1.msra.mxu0 %v2729
    %2840 = vmatprep.subr.mxu0 %v2734
    %2841 = vmatpush1.msra.mxu0 %v2733
    %2842 = vmatprep.subr.mxu0 %v2738
    %2843 = vmatpush1.msra.mxu0 %v2737
    %2844 = vmatprep.subr.mxu0 %v2742
    %2845 = vmatpush1.msra.mxu0 %v2741
    %2846 = vmatprep.subr.mxu0 0.0
    %2847 = vmatpush1.msra.mxu0 0.0
    %2848 = vmatprep.subr.mxu0 0.0
    %2849 = vmatpush1.msra.mxu0 0.0
    %2850 = vmatprep.subr.mxu0 0.0
    %2851 = vmatpush1.msra.mxu0 0.0
    %2852 = vmatprep.subr.mxu0 0.0
    %2853 = vmatpush1.msra.mxu0 0.0
    %2854 = vmatprep.subr.mxu0 0.0
    %2855 = vmatpush1.msra.mxu0 0.0
    %2856 = vmatprep.subr.mxu0 0.0
    %2857 = vmatpush1.msra.mxu0 0.0
    %2858 = vmatprep.subr.mxu0 0.0
    %2859 = vmatpush1.msra.mxu0 0.0
    %2860 = vmatprep.subr.mxu0 0.0
    %2861 = vmatpush1.msra.mxu0 0.0
    %2862 = vmatprep.subr.mxu0 0.0
    %2863 = vmatpush1.msra.mxu0 0.0
    %2864 = vmatprep.subr.mxu0 0.0
    %2865 = vmatpush1.msra.mxu0 0.0
    %2866 = vmatprep.subr.mxu0 0.0
    %2867 = vmatpush1.msra.mxu0 0.0
    %2868 = vmatprep.subr.mxu0 0.0
    %2869 = vmatpush1.msra.mxu0 0.0
    %2870 = vmatprep.subr.mxu0 0.0
    %2871 = vmatpush1.msra.mxu0 0.0
    %2872 = vmatprep.subr.mxu0 0.0
    %2873 = vmatpush1.msra.mxu0 0.0
    %2874 = vmatprep.subr.mxu0 0.0
    %2875 = vmatpush1.msra.mxu0 0.0
    %2876 = vmatprep.subr.mxu0 0.0
    %2877 = vmatpush1.msra.mxu0 0.0
    %2878 = vmatprep.mubr.f32.mxu0 0.0
    %2879 = vmatmul.mubr.f32.gmra.mrb[0].mxu0 %v2214
    %v2880 = vpop.f32.mrb[0].mxu0
    %v2881 = vadd.f32 0.0, %v2880
    %v2882 = vpop.f32.mrb[0].mxu0
    %v2883 = vadd.f32 0.0, %v2882
    %2884 = vdwg.mxu0
    %s2885 = smul.u32 4, 4
    %s2886 = smul.addr %s2885, 8
    %s2887 = scalar_lea.vmem [#allocation2], %s2886
    %v2888 = vld [vmem:[%s2887] sm:$0xff]
    %v2889 = vld [vmem:[%s2887 + $0x8] sm:$0xff]
    %v2890 = vld [vmem:[%s2887 + $0x10] sm:$0xff]
    %v2891 = vld [vmem:[%s2887 + $0x18] sm:$0xff]
    %v2892 = vadd.f32 %v2888, %v2810
    %v2893 = vadd.f32 %v2889, %v2812
    %v2894 = vadd.f32 %v2890, %v2881
    %v2895 = vadd.f32 %v2891, %v2883
    %v2896 = vxor.u32 %v2892, 2147483648
    %v2897 = vxor.u32 %v2893, 2147483648
    %v2898 = vxor.u32 %v2894, 2147483648
    %v2899 = vmul.f32 %v2896, 1.442695
    %v2900 = vpow.pop %v2899
    %v2901 = vmul.f32 %v2897, 1.442695
    %v2902 = vpow.pop %v2901
    %v2903 = vmul.f32 %v2898, 1.442695
    %v2904 = vpow.pop %v2903
    %v2905 = vadd.f32 %v2900, 1.0
    %v2906 = vadd.f32 %v2902, 1.0
    %v2907 = vadd.f32 %v2904, 1.0
    %v2908 = vrcp.pop %v2905
    %v2909 = vmul.f32 1.0, %v2908
    %v2910 = vrcp.pop %v2906
    %v2911 = vmul.f32 1.0, %v2910
    %v2912 = vrcp.pop %v2907
    %v2913 = vmul.f32 1.0, %v2912
    %v2914 = vtanh.pop %v2895
    %v2915 = vmul.f32 %v2911, %v2212
    %v2916 = vmul.f32 %v2909, %v2914
    %v2917 = vadd.f32 %v2915, %v2916
    %v2918 = vtanh.pop %v2917
    %v2919 = vmul.f32 %v2913, %v2918
    %v2920 = vld [vmem:[%s804] sm:$0xff]
    %v2921 = vld [vmem:[%s804 + $0x8] sm:$0xff]
    %v2922 = vld [vmem:[%s804 + $0x10] sm:$0xff]
    %v2923 = vld [vmem:[%s804 + $0x18] sm:$0xff]
    %v2924 = vld [vmem:[%s804 + $0x20] sm:$0xff]
    %v2925 = vld [vmem:[%s804 + $0x28] sm:$0xff]
    %v2926 = vld [vmem:[%s804 + $0x30] sm:$0xff]
    %v2927 = vld [vmem:[%s804 + $0x38] sm:$0xff]
    %v2928 = vld [vmem:[%s804 + $0x40] sm:$0xff]
    %v2929 = vld [vmem:[%s804 + $0x48] sm:$0xff]
    %v2930 = vld [vmem:[%s804 + $0x50] sm:$0xff]
    %v2931 = vld [vmem:[%s804 + $0x58] sm:$0xff]
    %v2932 = vld [vmem:[%s804 + $0x60] sm:$0xff]
    %v2933 = vld [vmem:[%s804 + $0x68] sm:$0xff]
    %v2934 = vld [vmem:[%s804 + $0x70] sm:$0xff]
    %v2935 = vld [vmem:[%s804 + $0x78] sm:$0xff]
    %v2936 = vld [vmem:[%s804 + $0x80] sm:$0xff]
    %v2937 = vld [vmem:[%s804 + $0x88] sm:$0xff]
    %v2938 = vld [vmem:[%s804 + $0x90] sm:$0xff]
    %v2939 = vld [vmem:[%s804 + $0x98] sm:$0xff]
    %v2940 = vld [vmem:[%s804 + $0xa0] sm:$0xff]
    %v2941 = vld [vmem:[%s804 + $0xa8] sm:$0xff]
    %v2942 = vld [vmem:[%s804 + $0xb0] sm:$0xff]
    %v2943 = vld [vmem:[%s804 + $0xb8] sm:$0xff]
    %v2944 = vld [vmem:[%s804 + $0xc0] sm:$0xff]
    %v2945 = vld [vmem:[%s804 + $0xc8] sm:$0xff]
    %v2946 = vld [vmem:[%s804 + $0xd0] sm:$0xff]
    %v2947 = vld [vmem:[%s804 + $0xd8] sm:$0xff]
    %v2948 = vld [vmem:[%s804 + $0xe0] sm:$0xff]
    %v2949 = vld [vmem:[%s804 + $0xe8] sm:$0xff]
    %v2950 = vld [vmem:[%s804 + $0xf0] sm:$0xff]
    %v2951 = vld [vmem:[%s804 + $0xf8] sm:$0xff]
    %v2952 = vld [vmem:[%s804 + $0x100] sm:$0xff]
    %v2953 = vld [vmem:[%s804 + $0x108] sm:$0xff]
    %v2954 = vld [vmem:[%s804 + $0x110] sm:$0xff]
    %v2955 = vld [vmem:[%s804 + $0x118] sm:$0xff]
    %v2956 = vld [vmem:[%s804 + $0x120] sm:$0xff]
    %v2957 = vld [vmem:[%s804 + $0x128] sm:$0xff]
    %v2958 = vld [vmem:[%s804 + $0x130] sm:$0xff]
    %v2959 = vld [vmem:[%s804 + $0x138] sm:$0xff]
    %v2960 = vld [vmem:[%s804 + $0x140] sm:$0xff]
    %v2961 = vld [vmem:[%s804 + $0x148] sm:$0xff]
    %v2962 = vld [vmem:[%s804 + $0x150] sm:$0xff]
    %v2963 = vld [vmem:[%s804 + $0x158] sm:$0xff]
    %v2964 = vld [vmem:[%s804 + $0x160] sm:$0xff]
    %v2965 = vld [vmem:[%s804 + $0x168] sm:$0xff]
    %v2966 = vld [vmem:[%s804 + $0x170] sm:$0xff]
    %v2967 = vld [vmem:[%s804 + $0x178] sm:$0xff]
    %v2968 = vld [vmem:[%s804 + $0x180] sm:$0xff]
    %v2969 = vld [vmem:[%s804 + $0x188] sm:$0xff]
    %v2970 = vld [vmem:[%s804 + $0x190] sm:$0xff]
    %v2971 = vld [vmem:[%s804 + $0x198] sm:$0xff]
    %v2972 = vld [vmem:[%s804 + $0x1a0] sm:$0xff]
    %v2973 = vld [vmem:[%s804 + $0x1a8] sm:$0xff]
    %v2974 = vld [vmem:[%s804 + $0x1b0] sm:$0xff]
    %v2975 = vld [vmem:[%s804 + $0x1b8] sm:$0xff]
    %v2976 = vld [vmem:[%s804 + $0x1c0] sm:$0xff]
    %v2977 = vld [vmem:[%s804 + $0x1c8] sm:$0xff]
    %v2978 = vld [vmem:[%s804 + $0x1d0] sm:$0xff]
    %v2979 = vld [vmem:[%s804 + $0x1d8] sm:$0xff]
    %v2980 = vld [vmem:[%s804 + $0x1e0] sm:$0xff]
    %v2981 = vld [vmem:[%s804 + $0x1e8] sm:$0xff]
    %v2982 = vld [vmem:[%s804 + $0x1f0] sm:$0xff]
    %v2983 = vld [vmem:[%s804 + $0x1f8] sm:$0xff]
    %2984 = vmatprep.subr.mxu0 %v2921
    %2985 = vmatpush1.msra.mxu0 %v2920
    %2986 = vmatprep.subr.mxu0 %v2925
    %2987 = vmatpush1.msra.mxu0 %v2924
    %2988 = vmatprep.subr.mxu0 %v2929
    %2989 = vmatpush1.msra.mxu0 %v2928
    %2990 = vmatprep.subr.mxu0 %v2933
    %2991 = vmatpush1.msra.mxu0 %v2932
    %2992 = vmatprep.subr.mxu0 %v2937
    %2993 = vmatpush1.msra.mxu0 %v2936
    %2994 = vmatprep.subr.mxu0 %v2941
    %2995 = vmatpush1.msra.mxu0 %v2940
    %2996 = vmatprep.subr.mxu0 %v2945
    %2997 = vmatpush1.msra.mxu0 %v2944
    %2998 = vmatprep.subr.mxu0 %v2949
    %2999 = vmatpush1.msra.mxu0 %v2948
    %3000 = vmatprep.subr.mxu0 %v2953
    %3001 = vmatpush1.msra.mxu0 %v2952
    %3002 = vmatprep.subr.mxu0 %v2957
    %3003 = vmatpush1.msra.mxu0 %v2956
    %3004 = vmatprep.subr.mxu0 %v2961
    %3005 = vmatpush1.msra.mxu0 %v2960
    %3006 = vmatprep.subr.mxu0 %v2965
    %3007 = vmatpush1.msra.mxu0 %v2964
    %3008 = vmatprep.subr.mxu0 %v2969
    %3009 = vmatpush1.msra.mxu0 %v2968
    %3010 = vmatprep.subr.mxu0 %v2973
    %3011 = vmatpush1.msra.mxu0 %v2972
    %3012 = vmatprep.subr.mxu0 %v2977
    %3013 = vmatpush1.msra.mxu0 %v2976
    %3014 = vmatprep.subr.mxu0 %v2981
    %3015 = vmatpush1.msra.mxu0 %v2980
    %3016 = vmatprep.subr.mxu0 0.0
    %3017 = vmatpush1.msra.mxu0 0.0
    %3018 = vmatprep.subr.mxu0 0.0
    %3019 = vmatpush1.msra.mxu0 0.0
    %3020 = vmatprep.subr.mxu0 0.0
    %3021 = vmatpush1.msra.mxu0 0.0
    %3022 = vmatprep.subr.mxu0 0.0
    %3023 = vmatpush1.msra.mxu0 0.0
    %3024 = vmatprep.subr.mxu0 0.0
    %3025 = vmatpush1.msra.mxu0 0.0
    %3026 = vmatprep.subr.mxu0 0.0
    %3027 = vmatpush1.msra.mxu0 0.0
    %3028 = vmatprep.subr.mxu0 0.0
    %3029 = vmatpush1.msra.mxu0 0.0
    %3030 = vmatprep.subr.mxu0 0.0
    %3031 = vmatpush1.msra.mxu0 0.0
    %3032 = vmatprep.subr.mxu0 0.0
    %3033 = vmatpush1.msra.mxu0 0.0
    %3034 = vmatprep.subr.mxu0 0.0
    %3035 = vmatpush1.msra.mxu0 0.0
    %3036 = vmatprep.subr.mxu0 0.0
    %3037 = vmatpush1.msra.mxu0 0.0
    %3038 = vmatprep.subr.mxu0 0.0
    %3039 = vmatpush1.msra.mxu0 0.0
    %3040 = vmatprep.subr.mxu0 0.0
    %3041 = vmatpush1.msra.mxu0 0.0
    %3042 = vmatprep.subr.mxu0 0.0
    %3043 = vmatpush1.msra.mxu0 0.0
    %3044 = vmatprep.subr.mxu0 0.0
    %3045 = vmatpush1.msra.mxu0 0.0
    %3046 = vmatprep.subr.mxu0 0.0
    %3047 = vmatpush1.msra.mxu0 0.0
    %3048 = vmatprep.mubr.f32.mxu0 0.0
    %3049 = vmatmul.mubr.f32.gmra.mrb[0].mxu0 %v2676
    %v3050 = vpop.f32.mrb[0].mxu0
    %v3051 = vadd.f32 0.0, %v3050
    %v3052 = vpop.f32.mrb[0].mxu0
    %v3053 = vadd.f32 0.0, %v3052
    %3054 = vdwg.mxu0
    %3055 = vmatprep.subr.mxu0 %v2923
    %3056 = vmatpush1.msra.mxu0 %v2922
    %3057 = vmatprep.subr.mxu0 %v2927
    %3058 = vmatpush1.msra.mxu0 %v2926
    %3059 = vmatprep.subr.mxu0 %v2931
    %3060 = vmatpush1.msra.mxu0 %v2930
    %3061 = vmatprep.subr.mxu0 %v2935
    %3062 = vmatpush1.msra.mxu0 %v2934
    %3063 = vmatprep.subr.mxu0 %v2939
    %3064 = vmatpush1.msra.mxu0 %v2938
    %3065 = vmatprep.subr.mxu0 %v2943
    %3066 = vmatpush1.msra.mxu0 %v2942
    %3067 = vmatprep.subr.mxu0 %v2947
    %3068 = vmatpush1.msra.mxu0 %v2946
    %3069 = vmatprep.subr.mxu0 %v2951
    %3070 = vmatpush1.msra.mxu0 %v2950
    %3071 = vmatprep.subr.mxu0 %v2955
    %3072 = vmatpush1.msra.mxu0 %v2954
    %3073 = vmatprep.subr.mxu0 %v2959
    %3074 = vmatpush1.msra.mxu0 %v2958
    %3075 = vmatprep.subr.mxu0 %v2963
    %3076 = vmatpush1.msra.mxu0 %v2962
    %3077 = vmatprep.subr.mxu0 %v2967
    %3078 = vmatpush1.msra.mxu0 %v2966
    %3079 = vmatprep.subr.mxu0 %v2971
    %3080 = vmatpush1.msra.mxu0 %v2970
    %3081 = vmatprep.subr.mxu0 %v2975
    %3082 = vmatpush1.msra.mxu0 %v2974
    %3083 = vmatprep.subr.mxu0 %v2979
    %3084 = vmatpush1.msra.mxu0 %v2978
    %3085 = vmatprep.subr.mxu0 %v2983
    %3086 = vmatpush1.msra.mxu0 %v2982
    %3087 = vmatprep.subr.mxu0 0.0
    %3088 = vmatpush1.msra.mxu0 0.0
    %3089 = vmatprep.subr.mxu0 0.0
    %3090 = vmatpush1.msra.mxu0 0.0
    %3091 = vmatprep.subr.mxu0 0.0
    %3092 = vmatpush1.msra.mxu0 0.0
    %3093 = vmatprep.subr.mxu0 0.0
    %3094 = vmatpush1.msra.mxu0 0.0
    %3095 = vmatprep.subr.mxu0 0.0
    %3096 = vmatpush1.msra.mxu0 0.0
    %3097 = vmatprep.subr.mxu0 0.0
    %3098 = vmatpush1.msra.mxu0 0.0
    %3099 = vmatprep.subr.mxu0 0.0
    %3100 = vmatpush1.msra.mxu0 0.0
    %3101 = vmatprep.subr.mxu0 0.0
    %3102 = vmatpush1.msra.mxu0 0.0
    %3103 = vmatprep.subr.mxu0 0.0
    %3104 = vmatpush1.msra.mxu0 0.0
    %3105 = vmatprep.subr.mxu0 0.0
    %3106 = vmatpush1.msra.mxu0 0.0
    %3107 = vmatprep.subr.mxu0 0.0
    %3108 = vmatpush1.msra.mxu0 0.0
    %3109 = vmatprep.subr.mxu0 0.0
    %3110 = vmatpush1.msra.mxu0 0.0
    %3111 = vmatprep.subr.mxu0 0.0
    %3112 = vmatpush1.msra.mxu0 0.0
    %3113 = vmatprep.subr.mxu0 0.0
    %3114 = vmatpush1.msra.mxu0 0.0
    %3115 = vmatprep.subr.mxu0 0.0
    %3116 = vmatpush1.msra.mxu0 0.0
    %3117 = vmatprep.subr.mxu0 0.0
    %3118 = vmatpush1.msra.mxu0 0.0
    %3119 = vmatprep.mubr.f32.mxu0 0.0
    %3120 = vmatmul.mubr.f32.gmra.mrb[0].mxu0 %v2676
    %v3121 = vpop.f32.mrb[0].mxu0
    %v3122 = vadd.f32 0.0, %v3121
    %v3123 = vpop.f32.mrb[0].mxu0
    %v3124 = vadd.f32 0.0, %v3123
    %3125 = vdwg.mxu0
    %v3126 = vld [vmem:[#allocation4] sm:$0xff]
    %v3127 = vld [vmem:[#allocation4 + $0x8] sm:$0xff]
    %v3128 = vld [vmem:[#allocation4 + $0x10] sm:$0xff]
    %v3129 = vld [vmem:[#allocation4 + $0x18] sm:$0xff]
    %v3130 = vld [vmem:[#allocation4 + $0x20] sm:$0xff]
    %v3131 = vld [vmem:[#allocation4 + $0x28] sm:$0xff]
    %v3132 = vld [vmem:[#allocation4 + $0x30] sm:$0xff]
    %v3133 = vld [vmem:[#allocation4 + $0x38] sm:$0xff]
    %v3134 = vld [vmem:[#allocation4 + $0x40] sm:$0xff]
    %v3135 = vld [vmem:[#allocation4 + $0x48] sm:$0xff]
    %v3136 = vld [vmem:[#allocation4 + $0x50] sm:$0xff]
    %v3137 = vld [vmem:[#allocation4 + $0x58] sm:$0xff]
    %v3138 = vld [vmem:[#allocation4 + $0x60] sm:$0xff]
    %v3139 = vld [vmem:[#allocation4 + $0x68] sm:$0xff]
    %v3140 = vld [vmem:[#allocation4 + $0x70] sm:$0xff]
    %v3141 = vld [vmem:[#allocation4 + $0x78] sm:$0xff]
    %v3142 = vld [vmem:[#allocation4 + $0x80] sm:$0xff]
    %v3143 = vld [vmem:[#allocation4 + $0x88] sm:$0xff]
    %v3144 = vld [vmem:[#allocation4 + $0x90] sm:$0xff]
    %v3145 = vld [vmem:[#allocation4 + $0x98] sm:$0xff]
    %v3146 = vld [vmem:[#allocation4 + $0xa0] sm:$0xff]
    %v3147 = vld [vmem:[#allocation4 + $0xa8] sm:$0xff]
    %v3148 = vld [vmem:[#allocation4 + $0xb0] sm:$0xff]
    %v3149 = vld [vmem:[#allocation4 + $0xb8] sm:$0xff]
    %v3150 = vld [vmem:[#allocation4 + $0xc0] sm:$0xff]
    %v3151 = vld [vmem:[#allocation4 + $0xc8] sm:$0xff]
    %v3152 = vld [vmem:[#allocation4 + $0xd0] sm:$0xff]
    %v3153 = vld [vmem:[#allocation4 + $0xd8] sm:$0xff]
    %v3154 = vld [vmem:[#allocation4 + $0xe0] sm:$0xff]
    %v3155 = vld [vmem:[#allocation4 + $0xe8] sm:$0xff]
    %v3156 = vld [vmem:[#allocation4 + $0xf0] sm:$0xff]
    %v3157 = vld [vmem:[#allocation4 + $0xf8] sm:$0xff]
    %v3158 = vld [vmem:[#allocation4 + $0x100] sm:$0xff]
    %v3159 = vld [vmem:[#allocation4 + $0x108] sm:$0xff]
    %v3160 = vld [vmem:[#allocation4 + $0x110] sm:$0xff]
    %v3161 = vld [vmem:[#allocation4 + $0x118] sm:$0xff]
    %v3162 = vld [vmem:[#allocation4 + $0x120] sm:$0xff]
    %v3163 = vld [vmem:[#allocation4 + $0x128] sm:$0xff]
    %v3164 = vld [vmem:[#allocation4 + $0x130] sm:$0xff]
    %v3165 = vld [vmem:[#allocation4 + $0x138] sm:$0xff]
    %v3166 = vld [vmem:[#allocation4 + $0x140] sm:$0xff]
    %v3167 = vld [vmem:[#allocation4 + $0x148] sm:$0xff]
    %v3168 = vld [vmem:[#allocation4 + $0x150] sm:$0xff]
    %v3169 = vld [vmem:[#allocation4 + $0x158] sm:$0xff]
    %v3170 = vld [vmem:[#allocation4 + $0x160] sm:$0xff]
    %v3171 = vld [vmem:[#allocation4 + $0x168] sm:$0xff]
    %v3172 = vld [vmem:[#allocation4 + $0x170] sm:$0xff]
    %v3173 = vld [vmem:[#allocation4 + $0x178] sm:$0xff]
    %v3174 = vld [vmem:[#allocation4 + $0x180] sm:$0xff]
    %v3175 = vld [vmem:[#allocation4 + $0x188] sm:$0xff]
    %v3176 = vld [vmem:[#allocation4 + $0x190] sm:$0xff]
    %v3177 = vld [vmem:[#allocation4 + $0x198] sm:$0xff]
    %v3178 = vld [vmem:[#allocation4 + $0x1a0] sm:$0xff]
    %v3179 = vld [vmem:[#allocation4 + $0x1a8] sm:$0xff]
    %v3180 = vld [vmem:[#allocation4 + $0x1b0] sm:$0xff]
    %v3181 = vld [vmem:[#allocation4 + $0x1b8] sm:$0xff]
    %v3182 = vld [vmem:[#allocation4 + $0x1c0] sm:$0xff]
    %v3183 = vld [vmem:[#allocation4 + $0x1c8] sm:$0xff]
    %v3184 = vld [vmem:[#allocation4 + $0x1d0] sm:$0xff]
    %v3185 = vld [vmem:[#allocation4 + $0x1d8] sm:$0xff]
    %v3186 = vld [vmem:[#allocation4 + $0x1e0] sm:$0xff]
    %v3187 = vld [vmem:[#allocation4 + $0x1e8] sm:$0xff]
    %v3188 = vld [vmem:[#allocation4 + $0x1f0] sm:$0xff]
    %v3189 = vld [vmem:[#allocation4 + $0x1f8] sm:$0xff]
    %3190 = vmatprep.subr.mxu0 %v3127
    %3191 = vmatpush1.msra.mxu0 %v3126
    %3192 = vmatprep.subr.mxu0 %v3131
    %3193 = vmatpush1.msra.mxu0 %v3130
    %3194 = vmatprep.subr.mxu0 %v3135
    %3195 = vmatpush1.msra.mxu0 %v3134
    %3196 = vmatprep.subr.mxu0 %v3139
    %3197 = vmatpush1.msra.mxu0 %v3138
    %3198 = vmatprep.subr.mxu0 %v3143
    %3199 = vmatpush1.msra.mxu0 %v3142
    %3200 = vmatprep.subr.mxu0 %v3147
    %3201 = vmatpush1.msra.mxu0 %v3146
    %3202 = vmatprep.subr.mxu0 %v3151
    %3203 = vmatpush1.msra.mxu0 %v3150
    %3204 = vmatprep.subr.mxu0 %v3155
    %3205 = vmatpush1.msra.mxu0 %v3154
    %3206 = vmatprep.subr.mxu0 %v3159
    %3207 = vmatpush1.msra.mxu0 %v3158
    %3208 = vmatprep.subr.mxu0 %v3163
    %3209 = vmatpush1.msra.mxu0 %v3162
    %3210 = vmatprep.subr.mxu0 %v3167
    %3211 = vmatpush1.msra.mxu0 %v3166
    %3212 = vmatprep.subr.mxu0 %v3171
    %3213 = vmatpush1.msra.mxu0 %v3170
    %3214 = vmatprep.subr.mxu0 %v3175
    %3215 = vmatpush1.msra.mxu0 %v3174
    %3216 = vmatprep.subr.mxu0 %v3179
    %3217 = vmatpush1.msra.mxu0 %v3178
    %3218 = vmatprep.subr.mxu0 %v3183
    %3219 = vmatpush1.msra.mxu0 %v3182
    %3220 = vmatprep.subr.mxu0 %v3187
    %3221 = vmatpush1.msra.mxu0 %v3186
    %3222 = vmatprep.subr.mxu0 0.0
    %3223 = vmatpush1.msra.mxu0 0.0
    %3224 = vmatprep.subr.mxu0 0.0
    %3225 = vmatpush1.msra.mxu0 0.0
    %3226 = vmatprep.subr.mxu0 0.0
    %3227 = vmatpush1.msra.mxu0 0.0
    %3228 = vmatprep.subr.mxu0 0.0
    %3229 = vmatpush1.msra.mxu0 0.0
    %3230 = vmatprep.subr.mxu0 0.0
    %3231 = vmatpush1.msra.mxu0 0.0
    %3232 = vmatprep.subr.mxu0 0.0
    %3233 = vmatpush1.msra.mxu0 0.0
    %3234 = vmatprep.subr.mxu0 0.0
    %3235 = vmatpush1.msra.mxu0 0.0
    %3236 = vmatprep.subr.mxu0 0.0
    %3237 = vmatpush1.msra.mxu0 0.0
    %3238 = vmatprep.subr.mxu0 0.0
    %3239 = vmatpush1.msra.mxu0 0.0
    %3240 = vmatprep.subr.mxu0 0.0
    %3241 = vmatpush1.msra.mxu0 0.0
    %3242 = vmatprep.subr.mxu0 0.0
    %3243 = vmatpush1.msra.mxu0 0.0
    %3244 = vmatprep.subr.mxu0 0.0
    %3245 = vmatpush1.msra.mxu0 0.0
    %3246 = vmatprep.subr.mxu0 0.0
    %3247 = vmatpush1.msra.mxu0 0.0
    %3248 = vmatprep.subr.mxu0 0.0
    %3249 = vmatpush1.msra.mxu0 0.0
    %3250 = vmatprep.subr.mxu0 0.0
    %3251 = vmatpush1.msra.mxu0 0.0
    %3252 = vmatprep.subr.mxu0 0.0
    %3253 = vmatpush1.msra.mxu0 0.0
    %3254 = vmatprep.mubr.f32.mxu0 0.0
    %3255 = vmatmul.mubr.f32.gmra.mrb[0].mxu0 %v2214
    %v3256 = vpop.f32.mrb[0].mxu0
    %v3257 = vadd.f32 %v3051, %v3256
    %v3258 = vpop.f32.mrb[0].mxu0
    %v3259 = vadd.f32 %v3053, %v3258
    %3260 = vdwg.mxu0
    %3261 = vmatprep.subr.mxu0 %v3129
    %3262 = vmatpush1.msra.mxu0 %v3128
    %3263 = vmatprep.subr.mxu0 %v3133
    %3264 = vmatpush1.msra.mxu0 %v3132
    %3265 = vmatprep.subr.mxu0 %v3137
    %3266 = vmatpush1.msra.mxu0 %v3136
    %3267 = vmatprep.subr.mxu0 %v3141
    %3268 = vmatpush1.msra.mxu0 %v3140
    %3269 = vmatprep.subr.mxu0 %v3145
    %3270 = vmatpush1.msra.mxu0 %v3144
    %3271 = vmatprep.subr.mxu0 %v3149
    %3272 = vmatpush1.msra.mxu0 %v3148
    %3273 = vmatprep.subr.mxu0 %v3153
    %3274 = vmatpush1.msra.mxu0 %v3152
    %3275 = vmatprep.subr.mxu0 %v3157
    %3276 = vmatpush1.msra.mxu0 %v3156
    %3277 = vmatprep.subr.mxu0 %v3161
    %3278 = vmatpush1.msra.mxu0 %v3160
    %3279 = vmatprep.subr.mxu0 %v3165
    %3280 = vmatpush1.msra.mxu0 %v3164
    %3281 = vmatprep.subr.mxu0 %v3169
    %3282 = vmatpush1.msra.mxu0 %v3168
    %3283 = vmatprep.subr.mxu0 %v3173
    %3284 = vmatpush1.msra.mxu0 %v3172
    %3285 = vmatprep.subr.mxu0 %v3177
    %3286 = vmatpush1.msra.mxu0 %v3176
    %3287 = vmatprep.subr.mxu0 %v3181
    %3288 = vmatpush1.msra.mxu0 %v3180
    %3289 = vmatprep.subr.mxu0 %v3185
    %3290 = vmatpush1.msra.mxu0 %v3184
    %3291 = vmatprep.subr.mxu0 %v3189
    %3292 = vmatpush1.msra.mxu0 %v3188
    %3293 = vmatprep.subr.mxu0 0.0
    %3294 = vmatpush1.msra.mxu0 0.0
    %3295 = vmatprep.subr.mxu0 0.0
    %3296 = vmatpush1.msra.mxu0 0.0
    %3297 = vmatprep.subr.mxu0 0.0
    %3298 = vmatpush1.msra.mxu0 0.0
    %3299 = vmatprep.subr.mxu0 0.0
    %3300 = vmatpush1.msra.mxu0 0.0
    %3301 = vmatprep.subr.mxu0 0.0
    %3302 = vmatpush1.msra.mxu0 0.0
    %3303 = vmatprep.subr.mxu0 0.0
    %3304 = vmatpush1.msra.mxu0 0.0
    %3305 = vmatprep.subr.mxu0 0.0
    %3306 = vmatpush1.msra.mxu0 0.0
    %3307 = vmatprep.subr.mxu0 0.0
    %3308 = vmatpush1.msra.mxu0 0.0
    %3309 = vmatprep.subr.mxu0 0.0
    %3310 = vmatpush1.msra.mxu0 0.0
    %3311 = vmatprep.subr.mxu0 0.0
    %3312 = vmatpush1.msra.mxu0 0.0
    %3313 = vmatprep.subr.mxu0 0.0
    %3314 = vmatpush1.msra.mxu0 0.0
    %3315 = vmatprep.subr.mxu0 0.0
    %3316 = vmatpush1.msra.mxu0 0.0
    %3317 = vmatprep.subr.mxu0 0.0
    %3318 = vmatpush1.msra.mxu0 0.0
    %3319 = vmatprep.subr.mxu0 0.0
    %3320 = vmatpush1.msra.mxu0 0.0
    %3321 = vmatprep.subr.mxu0 0.0
    %3322 = vmatpush1.msra.mxu0 0.0
    %3323 = vmatprep.subr.mxu0 0.0
    %3324 = vmatpush1.msra.mxu0 0.0
    %3325 = vmatprep.mubr.f32.mxu0 0.0
    %3326 = vmatmul.mubr.f32.gmra.mrb[0].mxu0 %v2214
    %v3327 = vpop.f32.mrb[0].mxu0
    %v3328 = vadd.f32 %v3122, %v3327
    %v3329 = vpop.f32.mrb[0].mxu0
    %v3330 = vadd.f32 %v3124, %v3329
    %3331 = vdwg.mxu0
    %v3332 = vld [vmem:[%s1217] sm:$0xf]
    %v3334 = vlaneseq
    %v3335 = vshrl.u32 %v3334, 7
    %v3336 = vsub.s32 0, %v3335
    %v3337 = vrot.slane %v3332, %v3336
    %v3338 = vlaneseq
    %v3339 = vshrl.u32 %v3338, 7
    %v3340 = vsub.s32 1, %v3339
    %v3341 = vrot.slane %v3332, %v3340
    %v3342 = vlaneseq
    %v3343 = vshrl.u32 %v3342, 7
    %v3344 = vsub.s32 2, %v3343
    %v3345 = vrot.slane %v3332, %v3344
    %v3346 = vlaneseq
    %v3347 = vshrl.u32 %v3346, 7
    %v3348 = vsub.s32 3, %v3347
    %v3349 = vrot.slane %v3332, %v3348
    %v3354 = vadd.f32 %v3257, %v3337
    %v3355 = vadd.f32 %v3259, %v3341
    %v3356 = vadd.f32 %v3328, %v3345
    %v3357 = vadd.f32 %v3330, %v3349
    %v3358 = vxor.u32 %v3354, 2147483648
    %v3359 = vxor.u32 %v3355, 2147483648
    %v3360 = vxor.u32 %v3356, 2147483648
    %v3361 = vmul.f32 %v3358, 1.442695
    %v3362 = vpow.pop %v3361
    %v3363 = vmul.f32 %v3359, 1.442695
    %v3364 = vpow.pop %v3363
    %v3365 = vmul.f32 %v3360, 1.442695
    %v3366 = vpow.pop %v3365
    %v3367 = vadd.f32 %v3362, 1.0
    %v3368 = vadd.f32 %v3364, 1.0
    %v3369 = vadd.f32 %v3366, 1.0
    %v3370 = vrcp.pop %v3367
    %v3371 = vmul.f32 1.0, %v3370
    %v3372 = vrcp.pop %v3368
    %v3373 = vmul.f32 1.0, %v3372
    %v3374 = vrcp.pop %v3369
    %v3375 = vmul.f32 1.0, %v3374
    %v3376 = vtanh.pop %v3357
    %v3377 = vmul.f32 %v3373, %v2674
    %v3378 = vmul.f32 %v3371, %v3376
    %v3379 = vadd.f32 %v3377, %v3378
    %v3380 = vtanh.pop %v3379
    %v3381 = vmul.f32 %v3375, %v3380
    %s3382 = scalar_lea.vmem [#allocation3], 24
    %3383 = vst [vmem:[%s3382] sm:$0xff] %v3381
    %v3384 = vld [vmem:[#allocation7] sm:$0xff]
    %v3385 = vld [vmem:[#allocation7 + $0x8] sm:$0xff]
    %v3386 = vld [vmem:[#allocation7 + $0x10] sm:$0xff]
    %v3387 = vld [vmem:[#allocation7 + $0x18] sm:$0xff]
    %v3388 = vld [vmem:[#allocation7 + $0x20] sm:$0xff]
    %v3389 = vld [vmem:[#allocation7 + $0x28] sm:$0xff]
    %v3390 = vld [vmem:[#allocation7 + $0x30] sm:$0xff]
    %v3391 = vld [vmem:[#allocation7 + $0x38] sm:$0xff]
    %v3392 = vld [vmem:[#allocation7 + $0x40] sm:$0xff]
    %v3393 = vld [vmem:[#allocation7 + $0x48] sm:$0xff]
    %v3394 = vld [vmem:[#allocation7 + $0x50] sm:$0xff]
    %v3395 = vld [vmem:[#allocation7 + $0x58] sm:$0xff]
    %v3396 = vld [vmem:[#allocation7 + $0x60] sm:$0xff]
    %v3397 = vld [vmem:[#allocation7 + $0x68] sm:$0xff]
    %v3398 = vld [vmem:[#allocation7 + $0x70] sm:$0xff]
    %v3399 = vld [vmem:[#allocation7 + $0x78] sm:$0xff]
    %v3400 = vld [vmem:[#allocation7 + $0x80] sm:$0xff]
    %v3401 = vld [vmem:[#allocation7 + $0x88] sm:$0xff]
    %v3402 = vld [vmem:[#allocation7 + $0x90] sm:$0xff]
    %v3403 = vld [vmem:[#allocation7 + $0x98] sm:$0xff]
    %v3404 = vld [vmem:[#allocation7 + $0xa0] sm:$0xff]
    %v3405 = vld [vmem:[#allocation7 + $0xa8] sm:$0xff]
    %v3406 = vld [vmem:[#allocation7 + $0xb0] sm:$0xff]
    %v3407 = vld [vmem:[#allocation7 + $0xb8] sm:$0xff]
    %v3408 = vld [vmem:[#allocation7 + $0xc0] sm:$0xff]
    %v3409 = vld [vmem:[#allocation7 + $0xc8] sm:$0xff]
    %v3410 = vld [vmem:[#allocation7 + $0xd0] sm:$0xff]
    %v3411 = vld [vmem:[#allocation7 + $0xd8] sm:$0xff]
    %v3412 = vld [vmem:[#allocation7 + $0xe0] sm:$0xff]
    %v3413 = vld [vmem:[#allocation7 + $0xe8] sm:$0xff]
    %v3414 = vld [vmem:[#allocation7 + $0xf0] sm:$0xff]
    %v3415 = vld [vmem:[#allocation7 + $0xf8] sm:$0xff]
    %v3416 = vld [vmem:[#allocation7 + $0x100] sm:$0xff]
    %v3417 = vld [vmem:[#allocation7 + $0x108] sm:$0xff]
    %v3418 = vld [vmem:[#allocation7 + $0x110] sm:$0xff]
    %v3419 = vld [vmem:[#allocation7 + $0x118] sm:$0xff]
    %v3420 = vld [vmem:[#allocation7 + $0x120] sm:$0xff]
    %v3421 = vld [vmem:[#allocation7 + $0x128] sm:$0xff]
    %v3422 = vld [vmem:[#allocation7 + $0x130] sm:$0xff]
    %v3423 = vld [vmem:[#allocation7 + $0x138] sm:$0xff]
    %v3424 = vld [vmem:[#allocation7 + $0x140] sm:$0xff]
    %v3425 = vld [vmem:[#allocation7 + $0x148] sm:$0xff]
    %v3426 = vld [vmem:[#allocation7 + $0x150] sm:$0xff]
    %v3427 = vld [vmem:[#allocation7 + $0x158] sm:$0xff]
    %v3428 = vld [vmem:[#allocation7 + $0x160] sm:$0xff]
    %v3429 = vld [vmem:[#allocation7 + $0x168] sm:$0xff]
    %v3430 = vld [vmem:[#allocation7 + $0x170] sm:$0xff]
    %v3431 = vld [vmem:[#allocation7 + $0x178] sm:$0xff]
    %v3432 = vld [vmem:[#allocation7 + $0x180] sm:$0xff]
    %v3433 = vld [vmem:[#allocation7 + $0x188] sm:$0xff]
    %v3434 = vld [vmem:[#allocation7 + $0x190] sm:$0xff]
    %v3435 = vld [vmem:[#allocation7 + $0x198] sm:$0xff]
    %v3436 = vld [vmem:[#allocation7 + $0x1a0] sm:$0xff]
    %v3437 = vld [vmem:[#allocation7 + $0x1a8] sm:$0xff]
    %v3438 = vld [vmem:[#allocation7 + $0x1b0] sm:$0xff]
    %v3439 = vld [vmem:[#allocation7 + $0x1b8] sm:$0xff]
    %v3440 = vld [vmem:[#allocation7 + $0x1c0] sm:$0xff]
    %v3441 = vld [vmem:[#allocation7 + $0x1c8] sm:$0xff]
    %v3442 = vld [vmem:[#allocation7 + $0x1d0] sm:$0xff]
    %v3443 = vld [vmem:[#allocation7 + $0x1d8] sm:$0xff]
    %v3444 = vld [vmem:[#allocation7 + $0x1e0] sm:$0xff]
    %v3445 = vld [vmem:[#allocation7 + $0x1e8] sm:$0xff]
    %v3446 = vld [vmem:[#allocation7 + $0x1f0] sm:$0xff]
    %v3447 = vld [vmem:[#allocation7 + $0x1f8] sm:$0xff]
    %3448 = vmatprep.subr.mxu0 %v3385
    %3449 = vmatpush1.msra.mxu0 %v3384
    %3450 = vmatprep.subr.mxu0 %v3389
    %3451 = vmatpush1.msra.mxu0 %v3388
    %3452 = vmatprep.subr.mxu0 %v3393
    %3453 = vmatpush1.msra.mxu0 %v3392
    %3454 = vmatprep.subr.mxu0 %v3397
    %3455 = vmatpush1.msra.mxu0 %v3396
    %3456 = vmatprep.subr.mxu0 %v3401
    %3457 = vmatpush1.msra.mxu0 %v3400
    %3458 = vmatprep.subr.mxu0 %v3405
    %3459 = vmatpush1.msra.mxu0 %v3404
    %3460 = vmatprep.subr.mxu0 %v3409
    %3461 = vmatpush1.msra.mxu0 %v3408
    %3462 = vmatprep.subr.mxu0 %v3413
    %3463 = vmatpush1.msra.mxu0 %v3412
    %3464 = vmatprep.subr.mxu0 %v3417
    %3465 = vmatpush1.msra.mxu0 %v3416
    %3466 = vmatprep.subr.mxu0 %v3421
    %3467 = vmatpush1.msra.mxu0 %v3420
    %3468 = vmatprep.subr.mxu0 %v3425
    %3469 = vmatpush1.msra.mxu0 %v3424
    %3470 = vmatprep.subr.mxu0 %v3429
    %3471 = vmatpush1.msra.mxu0 %v3428
    %3472 = vmatprep.subr.mxu0 %v3433
    %3473 = vmatpush1.msra.mxu0 %v3432
    %3474 = vmatprep.subr.mxu0 %v3437
    %3475 = vmatpush1.msra.mxu0 %v3436
    %3476 = vmatprep.subr.mxu0 %v3441
    %3477 = vmatpush1.msra.mxu0 %v3440
    %3478 = vmatprep.subr.mxu0 %v3445
    %3479 = vmatpush1.msra.mxu0 %v3444
    %3480 = vmatprep.subr.mxu0 0.0
    %3481 = vmatpush1.msra.mxu0 0.0
    %3482 = vmatprep.subr.mxu0 0.0
    %3483 = vmatpush1.msra.mxu0 0.0
    %3484 = vmatprep.subr.mxu0 0.0
    %3485 = vmatpush1.msra.mxu0 0.0
    %3486 = vmatprep.subr.mxu0 0.0
    %3487 = vmatpush1.msra.mxu0 0.0
    %3488 = vmatprep.subr.mxu0 0.0
    %3489 = vmatpush1.msra.mxu0 0.0
    %3490 = vmatprep.subr.mxu0 0.0
    %3491 = vmatpush1.msra.mxu0 0.0
    %3492 = vmatprep.subr.mxu0 0.0
    %3493 = vmatpush1.msra.mxu0 0.0
    %3494 = vmatprep.subr.mxu0 0.0
    %3495 = vmatpush1.msra.mxu0 0.0
    %3496 = vmatprep.subr.mxu0 0.0
    %3497 = vmatpush1.msra.mxu0 0.0
    %3498 = vmatprep.subr.mxu0 0.0
    %3499 = vmatpush1.msra.mxu0 0.0
    %3500 = vmatprep.subr.mxu0 0.0
    %3501 = vmatpush1.msra.mxu0 0.0
    %3502 = vmatprep.subr.mxu0 0.0
    %3503 = vmatpush1.msra.mxu0 0.0
    %3504 = vmatprep.subr.mxu0 0.0
    %3505 = vmatpush1.msra.mxu0 0.0
    %3506 = vmatprep.subr.mxu0 0.0
    %3507 = vmatpush1.msra.mxu0 0.0
    %3508 = vmatprep.subr.mxu0 0.0
    %3509 = vmatpush1.msra.mxu0 0.0
    %3510 = vmatprep.subr.mxu0 0.0
    %3511 = vmatpush1.msra.mxu0 0.0
    %3512 = vmatprep.mubr.f32.mxu0 0.0
    %3513 = vmatmul.mubr.f32.gmra.mrb[0].mxu0 %v2919
    %v3514 = vpop.f32.mrb[0].mxu0
    %v3515 = vadd.f32 0.0, %v3514
    %v3516 = vpop.f32.mrb[0].mxu0
    %v3517 = vadd.f32 0.0, %v3516
    %3518 = vdwg.mxu0
    %3519 = vmatprep.subr.mxu0 %v3387
    %3520 = vmatpush1.msra.mxu0 %v3386
    %3521 = vmatprep.subr.mxu0 %v3391
    %3522 = vmatpush1.msra.mxu0 %v3390
    %3523 = vmatprep.subr.mxu0 %v3395
    %3524 = vmatpush1.msra.mxu0 %v3394
    %3525 = vmatprep.subr.mxu0 %v3399
    %3526 = vmatpush1.msra.mxu0 %v3398
    %3527 = vmatprep.subr.mxu0 %v3403
    %3528 = vmatpush1.msra.mxu0 %v3402
    %3529 = vmatprep.subr.mxu0 %v3407
    %3530 = vmatpush1.msra.mxu0 %v3406
    %3531 = vmatprep.subr.mxu0 %v3411
    %3532 = vmatpush1.msra.mxu0 %v3410
    %3533 = vmatprep.subr.mxu0 %v3415
    %3534 = vmatpush1.msra.mxu0 %v3414
    %3535 = vmatprep.subr.mxu0 %v3419
    %3536 = vmatpush1.msra.mxu0 %v3418
    %3537 = vmatprep.subr.mxu0 %v3423
    %3538 = vmatpush1.msra.mxu0 %v3422
    %3539 = vmatprep.subr.mxu0 %v3427
    %3540 = vmatpush1.msra.mxu0 %v3426
    %3541 = vmatprep.subr.mxu0 %v3431
    %3542 = vmatpush1.msra.mxu0 %v3430
    %3543 = vmatprep.subr.mxu0 %v3435
    %3544 = vmatpush1.msra.mxu0 %v3434
    %3545 = vmatprep.subr.mxu0 %v3439
    %3546 = vmatpush1.msra.mxu0 %v3438
    %3547 = vmatprep.subr.mxu0 %v3443
    %3548 = vmatpush1.msra.mxu0 %v3442
    %3549 = vmatprep.subr.mxu0 %v3447
    %3550 = vmatpush1.msra.mxu0 %v3446
    %3551 = vmatprep.subr.mxu0 0.0
    %3552 = vmatpush1.msra.mxu0 0.0
    %3553 = vmatprep.subr.mxu0 0.0
    %3554 = vmatpush1.msra.mxu0 0.0
    %3555 = vmatprep.subr.mxu0 0.0
    %3556 = vmatpush1.msra.mxu0 0.0
    %3557 = vmatprep.subr.mxu0 0.0
    %3558 = vmatpush1.msra.mxu0 0.0
    %3559 = vmatprep.subr.mxu0 0.0
    %3560 = vmatpush1.msra.mxu0 0.0
    %3561 = vmatprep.subr.mxu0 0.0
    %3562 = vmatpush1.msra.mxu0 0.0
    %3563 = vmatprep.subr.mxu0 0.0
    %3564 = vmatpush1.msra.mxu0 0.0
    %3565 = vmatprep.subr.mxu0 0.0
    %3566 = vmatpush1.msra.mxu0 0.0
    %3567 = vmatprep.subr.mxu0 0.0
    %3568 = vmatpush1.msra.mxu0 0.0
    %3569 = vmatprep.subr.mxu0 0.0
    %3570 = vmatpush1.msra.mxu0 0.0
    %3571 = vmatprep.subr.mxu0 0.0
    %3572 = vmatpush1.msra.mxu0 0.0
    %3573 = vmatprep.subr.mxu0 0.0
    %3574 = vmatpush1.msra.mxu0 0.0
    %3575 = vmatprep.subr.mxu0 0.0
    %3576 = vmatpush1.msra.mxu0 0.0
    %3577 = vmatprep.subr.mxu0 0.0
    %3578 = vmatpush1.msra.mxu0 0.0
    %3579 = vmatprep.subr.mxu0 0.0
    %3580 = vmatpush1.msra.mxu0 0.0
    %3581 = vmatprep.subr.mxu0 0.0
    %3582 = vmatpush1.msra.mxu0 0.0
    %3583 = vmatprep.mubr.f32.mxu0 0.0
    %3584 = vmatmul.mubr.f32.gmra.mrb[0].mxu0 %v2919
    %v3585 = vpop.f32.mrb[0].mxu0
    %v3586 = vadd.f32 0.0, %v3585
    %v3587 = vpop.f32.mrb[0].mxu0
    %v3588 = vadd.f32 0.0, %v3587
    %3589 = vdwg.mxu0
    %s3590 = smul.u32 5, 4
    %s3591 = smul.addr %s3590, 8
    %s3592 = scalar_lea.vmem [#allocation2], %s3591
    %v3593 = vld [vmem:[%s3592] sm:$0xff]
    %v3594 = vld [vmem:[%s3592 + $0x8] sm:$0xff]
    %v3595 = vld [vmem:[%s3592 + $0x10] sm:$0xff]
    %v3596 = vld [vmem:[%s3592 + $0x18] sm:$0xff]
    %v3597 = vadd.f32 %v3593, %v3515
    %v3598 = vadd.f32 %v3594, %v3517
    %v3599 = vadd.f32 %v3595, %v3586
    %v3600 = vadd.f32 %v3596, %v3588
    %v3601 = vxor.u32 %v3597, 2147483648
    %v3602 = vxor.u32 %v3598, 2147483648
    %v3603 = vxor.u32 %v3599, 2147483648
    %v3604 = vmul.f32 %v3601, 1.442695
    %v3605 = vpow.pop %v3604
    %v3606 = vmul.f32 %v3602, 1.442695
    %v3607 = vpow.pop %v3606
    %v3608 = vmul.f32 %v3603, 1.442695
    %v3609 = vpow.pop %v3608
    %v3610 = vadd.f32 %v3605, 1.0
    %v3611 = vadd.f32 %v3607, 1.0
    %v3612 = vadd.f32 %v3609, 1.0
    %v3613 = vrcp.pop %v3610
    %v3614 = vmul.f32 1.0, %v3613
    %v3615 = vrcp.pop %v3611
    %v3616 = vmul.f32 1.0, %v3615
    %v3617 = vrcp.pop %v3612
    %v3618 = vmul.f32 1.0, %v3617
    %v3619 = vtanh.pop %v3600
    %v3620 = vmul.f32 %v3616, %v2917
    %v3621 = vmul.f32 %v3614, %v3619
    %v3622 = vadd.f32 %v3620, %v3621
    %v3623 = vtanh.pop %v3622
    %v3624 = vmul.f32 %v3618, %v3623
    %v3625 = vld [vmem:[%s804] sm:$0xff]
    %v3626 = vld [vmem:[%s804 + $0x8] sm:$0xff]
    %v3627 = vld [vmem:[%s804 + $0x10] sm:$0xff]
    %v3628 = vld [vmem:[%s804 + $0x18] sm:$0xff]
    %v3629 = vld [vmem:[%s804 + $0x20] sm:$0xff]
    %v3630 = vld [vmem:[%s804 + $0x28] sm:$0xff]
    %v3631 = vld [vmem:[%s804 + $0x30] sm:$0xff]
    %v3632 = vld [vmem:[%s804 + $0x38] sm:$0xff]
    %v3633 = vld [vmem:[%s804 + $0x40] sm:$0xff]
    %v3634 = vld [vmem:[%s804 + $0x48] sm:$0xff]
    %v3635 = vld [vmem:[%s804 + $0x50] sm:$0xff]
    %v3636 = vld [vmem:[%s804 + $0x58] sm:$0xff]
    %v3637 = vld [vmem:[%s804 + $0x60] sm:$0xff]
    %v3638 = vld [vmem:[%s804 + $0x68] sm:$0xff]
    %v3639 = vld [vmem:[%s804 + $0x70] sm:$0xff]
    %v3640 = vld [vmem:[%s804 + $0x78] sm:$0xff]
    %v3641 = vld [vmem:[%s804 + $0x80] sm:$0xff]
    %v3642 = vld [vmem:[%s804 + $0x88] sm:$0xff]
    %v3643 = vld [vmem:[%s804 + $0x90] sm:$0xff]
    %v3644 = vld [vmem:[%s804 + $0x98] sm:$0xff]
    %v3645 = vld [vmem:[%s804 + $0xa0] sm:$0xff]
    %v3646 = vld [vmem:[%s804 + $0xa8] sm:$0xff]
    %v3647 = vld [vmem:[%s804 + $0xb0] sm:$0xff]
    %v3648 = vld [vmem:[%s804 + $0xb8] sm:$0xff]
    %v3649 = vld [vmem:[%s804 + $0xc0] sm:$0xff]
    %v3650 = vld [vmem:[%s804 + $0xc8] sm:$0xff]
    %v3651 = vld [vmem:[%s804 + $0xd0] sm:$0xff]
    %v3652 = vld [vmem:[%s804 + $0xd8] sm:$0xff]
    %v3653 = vld [vmem:[%s804 + $0xe0] sm:$0xff]
    %v3654 = vld [vmem:[%s804 + $0xe8] sm:$0xff]
    %v3655 = vld [vmem:[%s804 + $0xf0] sm:$0xff]
    %v3656 = vld [vmem:[%s804 + $0xf8] sm:$0xff]
    %v3657 = vld [vmem:[%s804 + $0x100] sm:$0xff]
    %v3658 = vld [vmem:[%s804 + $0x108] sm:$0xff]
    %v3659 = vld [vmem:[%s804 + $0x110] sm:$0xff]
    %v3660 = vld [vmem:[%s804 + $0x118] sm:$0xff]
    %v3661 = vld [vmem:[%s804 + $0x120] sm:$0xff]
    %v3662 = vld [vmem:[%s804 + $0x128] sm:$0xff]
    %v3663 = vld [vmem:[%s804 + $0x130] sm:$0xff]
    %v3664 = vld [vmem:[%s804 + $0x138] sm:$0xff]
    %v3665 = vld [vmem:[%s804 + $0x140] sm:$0xff]
    %v3666 = vld [vmem:[%s804 + $0x148] sm:$0xff]
    %v3667 = vld [vmem:[%s804 + $0x150] sm:$0xff]
    %v3668 = vld [vmem:[%s804 + $0x158] sm:$0xff]
    %v3669 = vld [vmem:[%s804 + $0x160] sm:$0xff]
    %v3670 = vld [vmem:[%s804 + $0x168] sm:$0xff]
    %v3671 = vld [vmem:[%s804 + $0x170] sm:$0xff]
    %v3672 = vld [vmem:[%s804 + $0x178] sm:$0xff]
    %v3673 = vld [vmem:[%s804 + $0x180] sm:$0xff]
    %v3674 = vld [vmem:[%s804 + $0x188] sm:$0xff]
    %v3675 = vld [vmem:[%s804 + $0x190] sm:$0xff]
    %v3676 = vld [vmem:[%s804 + $0x198] sm:$0xff]
    %v3677 = vld [vmem:[%s804 + $0x1a0] sm:$0xff]
    %v3678 = vld [vmem:[%s804 + $0x1a8] sm:$0xff]
    %v3679 = vld [vmem:[%s804 + $0x1b0] sm:$0xff]
    %v3680 = vld [vmem:[%s804 + $0x1b8] sm:$0xff]
    %v3681 = vld [vmem:[%s804 + $0x1c0] sm:$0xff]
    %v3682 = vld [vmem:[%s804 + $0x1c8] sm:$0xff]
    %v3683 = vld [vmem:[%s804 + $0x1d0] sm:$0xff]
    %v3684 = vld [vmem:[%s804 + $0x1d8] sm:$0xff]
    %v3685 = vld [vmem:[%s804 + $0x1e0] sm:$0xff]
    %v3686 = vld [vmem:[%s804 + $0x1e8] sm:$0xff]
    %v3687 = vld [vmem:[%s804 + $0x1f0] sm:$0xff]
    %v3688 = vld [vmem:[%s804 + $0x1f8] sm:$0xff]
    %3689 = vmatprep.subr.mxu0 %v3626
    %3690 = vmatpush1.msra.mxu0 %v3625
    %3691 = vmatprep.subr.mxu0 %v3630
    %3692 = vmatpush1.msra.mxu0 %v3629
    %3693 = vmatprep.subr.mxu0 %v3634
    %3694 = vmatpush1.msra.mxu0 %v3633
    %3695 = vmatprep.subr.mxu0 %v3638
    %3696 = vmatpush1.msra.mxu0 %v3637
    %3697 = vmatprep.subr.mxu0 %v3642
    %3698 = vmatpush1.msra.mxu0 %v3641
    %3699 = vmatprep.subr.mxu0 %v3646
    %3700 = vmatpush1.msra.mxu0 %v3645
    %3701 = vmatprep.subr.mxu0 %v3650
    %3702 = vmatpush1.msra.mxu0 %v3649
    %3703 = vmatprep.subr.mxu0 %v3654
    %3704 = vmatpush1.msra.mxu0 %v3653
    %3705 = vmatprep.subr.mxu0 %v3658
    %3706 = vmatpush1.msra.mxu0 %v3657
    %3707 = vmatprep.subr.mxu0 %v3662
    %3708 = vmatpush1.msra.mxu0 %v3661
    %3709 = vmatprep.subr.mxu0 %v3666
    %3710 = vmatpush1.msra.mxu0 %v3665
    %3711 = vmatprep.subr.mxu0 %v3670
    %3712 = vmatpush1.msra.mxu0 %v3669
    %3713 = vmatprep.subr.mxu0 %v3674
    %3714 = vmatpush1.msra.mxu0 %v3673
    %3715 = vmatprep.subr.mxu0 %v3678
    %3716 = vmatpush1.msra.mxu0 %v3677
    %3717 = vmatprep.subr.mxu0 %v3682
    %3718 = vmatpush1.msra.mxu0 %v3681
    %3719 = vmatprep.subr.mxu0 %v3686
    %3720 = vmatpush1.msra.mxu0 %v3685
    %3721 = vmatprep.subr.mxu0 0.0
    %3722 = vmatpush1.msra.mxu0 0.0
    %3723 = vmatprep.subr.mxu0 0.0
    %3724 = vmatpush1.msra.mxu0 0.0
    %3725 = vmatprep.subr.mxu0 0.0
    %3726 = vmatpush1.msra.mxu0 0.0
    %3727 = vmatprep.subr.mxu0 0.0
    %3728 = vmatpush1.msra.mxu0 0.0
    %3729 = vmatprep.subr.mxu0 0.0
    %3730 = vmatpush1.msra.mxu0 0.0
    %3731 = vmatprep.subr.mxu0 0.0
    %3732 = vmatpush1.msra.mxu0 0.0
    %3733 = vmatprep.subr.mxu0 0.0
    %3734 = vmatpush1.msra.mxu0 0.0
    %3735 = vmatprep.subr.mxu0 0.0
    %3736 = vmatpush1.msra.mxu0 0.0
    %3737 = vmatprep.subr.mxu0 0.0
    %3738 = vmatpush1.msra.mxu0 0.0
    %3739 = vmatprep.subr.mxu0 0.0
    %3740 = vmatpush1.msra.mxu0 0.0
    %3741 = vmatprep.subr.mxu0 0.0
    %3742 = vmatpush1.msra.mxu0 0.0
    %3743 = vmatprep.subr.mxu0 0.0
    %3744 = vmatpush1.msra.mxu0 0.0
    %3745 = vmatprep.subr.mxu0 0.0
    %3746 = vmatpush1.msra.mxu0 0.0
    %3747 = vmatprep.subr.mxu0 0.0
    %3748 = vmatpush1.msra.mxu0 0.0
    %3749 = vmatprep.subr.mxu0 0.0
    %3750 = vmatpush1.msra.mxu0 0.0
    %3751 = vmatprep.subr.mxu0 0.0
    %3752 = vmatpush1.msra.mxu0 0.0
    %3753 = vmatprep.mubr.f32.mxu0 0.0
    %3754 = vmatmul.mubr.f32.gmra.mrb[0].mxu0 %v3381
    %v3755 = vpop.f32.mrb[0].mxu0
    %v3756 = vadd.f32 0.0, %v3755
    %v3757 = vpop.f32.mrb[0].mxu0
    %v3758 = vadd.f32 0.0, %v3757
    %3759 = vdwg.mxu0
    %3760 = vmatprep.subr.mxu0 %v3628
    %3761 = vmatpush1.msra.mxu0 %v3627
    %3762 = vmatprep.subr.mxu0 %v3632
    %3763 = vmatpush1.msra.mxu0 %v3631
    %3764 = vmatprep.subr.mxu0 %v3636
    %3765 = vmatpush1.msra.mxu0 %v3635
    %3766 = vmatprep.subr.mxu0 %v3640
    %3767 = vmatpush1.msra.mxu0 %v3639
    %3768 = vmatprep.subr.mxu0 %v3644
    %3769 = vmatpush1.msra.mxu0 %v3643
    %3770 = vmatprep.subr.mxu0 %v3648
    %3771 = vmatpush1.msra.mxu0 %v3647
    %3772 = vmatprep.subr.mxu0 %v3652
    %3773 = vmatpush1.msra.mxu0 %v3651
    %3774 = vmatprep.subr.mxu0 %v3656
    %3775 = vmatpush1.msra.mxu0 %v3655
    %3776 = vmatprep.subr.mxu0 %v3660
    %3777 = vmatpush1.msra.mxu0 %v3659
    %3778 = vmatprep.subr.mxu0 %v3664
    %3779 = vmatpush1.msra.mxu0 %v3663
    %3780 = vmatprep.subr.mxu0 %v3668
    %3781 = vmatpush1.msra.mxu0 %v3667
    %3782 = vmatprep.subr.mxu0 %v3672
    %3783 = vmatpush1.msra.mxu0 %v3671
    %3784 = vmatprep.subr.mxu0 %v3676
    %3785 = vmatpush1.msra.mxu0 %v3675
    %3786 = vmatprep.subr.mxu0 %v3680
    %3787 = vmatpush1.msra.mxu0 %v3679
    %3788 = vmatprep.subr.mxu0 %v3684
    %3789 = vmatpush1.msra.mxu0 %v3683
    %3790 = vmatprep.subr.mxu0 %v3688
    %3791 = vmatpush1.msra.mxu0 %v3687
    %3792 = vmatprep.subr.mxu0 0.0
    %3793 = vmatpush1.msra.mxu0 0.0
    %3794 = vmatprep.subr.mxu0 0.0
    %3795 = vmatpush1.msra.mxu0 0.0
    %3796 = vmatprep.subr.mxu0 0.0
    %3797 = vmatpush1.msra.mxu0 0.0
    %3798 = vmatprep.subr.mxu0 0.0
    %3799 = vmatpush1.msra.mxu0 0.0
    %3800 = vmatprep.subr.mxu0 0.0
    %3801 = vmatpush1.msra.mxu0 0.0
    %3802 = vmatprep.subr.mxu0 0.0
    %3803 = vmatpush1.msra.mxu0 0.0
    %3804 = vmatprep.subr.mxu0 0.0
    %3805 = vmatpush1.msra.mxu0 0.0
    %3806 = vmatprep.subr.mxu0 0.0
    %3807 = vmatpush1.msra.mxu0 0.0
    %3808 = vmatprep.subr.mxu0 0.0
    %3809 = vmatpush1.msra.mxu0 0.0
    %3810 = vmatprep.subr.mxu0 0.0
    %3811 = vmatpush1.msra.mxu0 0.0
    %3812 = vmatprep.subr.mxu0 0.0
    %3813 = vmatpush1.msra.mxu0 0.0
    %3814 = vmatprep.subr.mxu0 0.0
    %3815 = vmatpush1.msra.mxu0 0.0
    %3816 = vmatprep.subr.mxu0 0.0
    %3817 = vmatpush1.msra.mxu0 0.0
    %3818 = vmatprep.subr.mxu0 0.0
    %3819 = vmatpush1.msra.mxu0 0.0
    %3820 = vmatprep.subr.mxu0 0.0
    %3821 = vmatpush1.msra.mxu0 0.0
    %3822 = vmatprep.subr.mxu0 0.0
    %3823 = vmatpush1.msra.mxu0 0.0
    %3824 = vmatprep.mubr.f32.mxu0 0.0
    %3825 = vmatmul.mubr.f32.gmra.mrb[0].mxu0 %v3381
    %v3826 = vpop.f32.mrb[0].mxu0
    %v3827 = vadd.f32 0.0, %v3826
    %v3828 = vpop.f32.mrb[0].mxu0
    %v3829 = vadd.f32 0.0, %v3828
    %3830 = vdwg.mxu0
    %v3831 = vld [vmem:[#allocation4] sm:$0xff]
    %v3832 = vld [vmem:[#allocation4 + $0x8] sm:$0xff]
    %v3833 = vld [vmem:[#allocation4 + $0x10] sm:$0xff]
    %v3834 = vld [vmem:[#allocation4 + $0x18] sm:$0xff]
    %v3835 = vld [vmem:[#allocation4 + $0x20] sm:$0xff]
    %v3836 = vld [vmem:[#allocation4 + $0x28] sm:$0xff]
    %v3837 = vld [vmem:[#allocation4 + $0x30] sm:$0xff]
    %v3838 = vld [vmem:[#allocation4 + $0x38] sm:$0xff]
    %v3839 = vld [vmem:[#allocation4 + $0x40] sm:$0xff]
    %v3840 = vld [vmem:[#allocation4 + $0x48] sm:$0xff]
    %v3841 = vld [vmem:[#allocation4 + $0x50] sm:$0xff]
    %v3842 = vld [vmem:[#allocation4 + $0x58] sm:$0xff]
    %v3843 = vld [vmem:[#allocation4 + $0x60] sm:$0xff]
    %v3844 = vld [vmem:[#allocation4 + $0x68] sm:$0xff]
    %v3845 = vld [vmem:[#allocation4 + $0x70] sm:$0xff]
    %v3846 = vld [vmem:[#allocation4 + $0x78] sm:$0xff]
    %v3847 = vld [vmem:[#allocation4 + $0x80] sm:$0xff]
    %v3848 = vld [vmem:[#allocation4 + $0x88] sm:$0xff]
    %v3849 = vld [vmem:[#allocation4 + $0x90] sm:$0xff]
    %v3850 = vld [vmem:[#allocation4 + $0x98] sm:$0xff]
    %v3851 = vld [vmem:[#allocation4 + $0xa0] sm:$0xff]
    %v3852 = vld [vmem:[#allocation4 + $0xa8] sm:$0xff]
    %v3853 = vld [vmem:[#allocation4 + $0xb0] sm:$0xff]
    %v3854 = vld [vmem:[#allocation4 + $0xb8] sm:$0xff]
    %v3855 = vld [vmem:[#allocation4 + $0xc0] sm:$0xff]
    %v3856 = vld [vmem:[#allocation4 + $0xc8] sm:$0xff]
    %v3857 = vld [vmem:[#allocation4 + $0xd0] sm:$0xff]
    %v3858 = vld [vmem:[#allocation4 + $0xd8] sm:$0xff]
    %v3859 = vld [vmem:[#allocation4 + $0xe0] sm:$0xff]
    %v3860 = vld [vmem:[#allocation4 + $0xe8] sm:$0xff]
    %v3861 = vld [vmem:[#allocation4 + $0xf0] sm:$0xff]
    %v3862 = vld [vmem:[#allocation4 + $0xf8] sm:$0xff]
    %v3863 = vld [vmem:[#allocation4 + $0x100] sm:$0xff]
    %v3864 = vld [vmem:[#allocation4 + $0x108] sm:$0xff]
    %v3865 = vld [vmem:[#allocation4 + $0x110] sm:$0xff]
    %v3866 = vld [vmem:[#allocation4 + $0x118] sm:$0xff]
    %v3867 = vld [vmem:[#allocation4 + $0x120] sm:$0xff]
    %v3868 = vld [vmem:[#allocation4 + $0x128] sm:$0xff]
    %v3869 = vld [vmem:[#allocation4 + $0x130] sm:$0xff]
    %v3870 = vld [vmem:[#allocation4 + $0x138] sm:$0xff]
    %v3871 = vld [vmem:[#allocation4 + $0x140] sm:$0xff]
    %v3872 = vld [vmem:[#allocation4 + $0x148] sm:$0xff]
    %v3873 = vld [vmem:[#allocation4 + $0x150] sm:$0xff]
    %v3874 = vld [vmem:[#allocation4 + $0x158] sm:$0xff]
    %v3875 = vld [vmem:[#allocation4 + $0x160] sm:$0xff]
    %v3876 = vld [vmem:[#allocation4 + $0x168] sm:$0xff]
    %v3877 = vld [vmem:[#allocation4 + $0x170] sm:$0xff]
    %v3878 = vld [vmem:[#allocation4 + $0x178] sm:$0xff]
    %v3879 = vld [vmem:[#allocation4 + $0x180] sm:$0xff]
    %v3880 = vld [vmem:[#allocation4 + $0x188] sm:$0xff]
    %v3881 = vld [vmem:[#allocation4 + $0x190] sm:$0xff]
    %v3882 = vld [vmem:[#allocation4 + $0x198] sm:$0xff]
    %v3883 = vld [vmem:[#allocation4 + $0x1a0] sm:$0xff]
    %v3884 = vld [vmem:[#allocation4 + $0x1a8] sm:$0xff]
    %v3885 = vld [vmem:[#allocation4 + $0x1b0] sm:$0xff]
    %v3886 = vld [vmem:[#allocation4 + $0x1b8] sm:$0xff]
    %v3887 = vld [vmem:[#allocation4 + $0x1c0] sm:$0xff]
    %v3888 = vld [vmem:[#allocation4 + $0x1c8] sm:$0xff]
    %v3889 = vld [vmem:[#allocation4 + $0x1d0] sm:$0xff]
    %v3890 = vld [vmem:[#allocation4 + $0x1d8] sm:$0xff]
    %v3891 = vld [vmem:[#allocation4 + $0x1e0] sm:$0xff]
    %v3892 = vld [vmem:[#allocation4 + $0x1e8] sm:$0xff]
    %v3893 = vld [vmem:[#allocation4 + $0x1f0] sm:$0xff]
    %v3894 = vld [vmem:[#allocation4 + $0x1f8] sm:$0xff]
    %3895 = vmatprep.subr.mxu0 %v3832
    %3896 = vmatpush1.msra.mxu0 %v3831
    %3897 = vmatprep.subr.mxu0 %v3836
    %3898 = vmatpush1.msra.mxu0 %v3835
    %3899 = vmatprep.subr.mxu0 %v3840
    %3900 = vmatpush1.msra.mxu0 %v3839
    %3901 = vmatprep.subr.mxu0 %v3844
    %3902 = vmatpush1.msra.mxu0 %v3843
    %3903 = vmatprep.subr.mxu0 %v3848
    %3904 = vmatpush1.msra.mxu0 %v3847
    %3905 = vmatprep.subr.mxu0 %v3852
    %3906 = vmatpush1.msra.mxu0 %v3851
    %3907 = vmatprep.subr.mxu0 %v3856
    %3908 = vmatpush1.msra.mxu0 %v3855
    %3909 = vmatprep.subr.mxu0 %v3860
    %3910 = vmatpush1.msra.mxu0 %v3859
    %3911 = vmatprep.subr.mxu0 %v3864
    %3912 = vmatpush1.msra.mxu0 %v3863
    %3913 = vmatprep.subr.mxu0 %v3868
    %3914 = vmatpush1.msra.mxu0 %v3867
    %3915 = vmatprep.subr.mxu0 %v3872
    %3916 = vmatpush1.msra.mxu0 %v3871
    %3917 = vmatprep.subr.mxu0 %v3876
    %3918 = vmatpush1.msra.mxu0 %v3875
    %3919 = vmatprep.subr.mxu0 %v3880
    %3920 = vmatpush1.msra.mxu0 %v3879
    %3921 = vmatprep.subr.mxu0 %v3884
    %3922 = vmatpush1.msra.mxu0 %v3883
    %3923 = vmatprep.subr.mxu0 %v3888
    %3924 = vmatpush1.msra.mxu0 %v3887
    %3925 = vmatprep.subr.mxu0 %v3892
    %3926 = vmatpush1.msra.mxu0 %v3891
    %3927 = vmatprep.subr.mxu0 0.0
    %3928 = vmatpush1.msra.mxu0 0.0
    %3929 = vmatprep.subr.mxu0 0.0
    %3930 = vmatpush1.msra.mxu0 0.0
    %3931 = vmatprep.subr.mxu0 0.0
    %3932 = vmatpush1.msra.mxu0 0.0
    %3933 = vmatprep.subr.mxu0 0.0
    %3934 = vmatpush1.msra.mxu0 0.0
    %3935 = vmatprep.subr.mxu0 0.0
    %3936 = vmatpush1.msra.mxu0 0.0
    %3937 = vmatprep.subr.mxu0 0.0
    %3938 = vmatpush1.msra.mxu0 0.0
    %3939 = vmatprep.subr.mxu0 0.0
    %3940 = vmatpush1.msra.mxu0 0.0
    %3941 = vmatprep.subr.mxu0 0.0
    %3942 = vmatpush1.msra.mxu0 0.0
    %3943 = vmatprep.subr.mxu0 0.0
    %3944 = vmatpush1.msra.mxu0 0.0
    %3945 = vmatprep.subr.mxu0 0.0
    %3946 = vmatpush1.msra.mxu0 0.0
    %3947 = vmatprep.subr.mxu0 0.0
    %3948 = vmatpush1.msra.mxu0 0.0
    %3949 = vmatprep.subr.mxu0 0.0
    %3950 = vmatpush1.msra.mxu0 0.0
    %3951 = vmatprep.subr.mxu0 0.0
    %3952 = vmatpush1.msra.mxu0 0.0
    %3953 = vmatprep.subr.mxu0 0.0
    %3954 = vmatpush1.msra.mxu0 0.0
    %3955 = vmatprep.subr.mxu0 0.0
    %3956 = vmatpush1.msra.mxu0 0.0
    %3957 = vmatprep.subr.mxu0 0.0
    %3958 = vmatpush1.msra.mxu0 0.0
    %3959 = vmatprep.mubr.f32.mxu0 0.0
    %3960 = vmatmul.mubr.f32.gmra.mrb[0].mxu0 %v2919
    %v3961 = vpop.f32.mrb[0].mxu0
    %v3962 = vadd.f32 %v3756, %v3961
    %v3963 = vpop.f32.mrb[0].mxu0
    %v3964 = vadd.f32 %v3758, %v3963
    %3965 = vdwg.mxu0
    %3966 = vmatprep.subr.mxu0 %v3834
    %3967 = vmatpush1.msra.mxu0 %v3833
    %3968 = vmatprep.subr.mxu0 %v3838
    %3969 = vmatpush1.msra.mxu0 %v3837
    %3970 = vmatprep.subr.mxu0 %v3842
    %3971 = vmatpush1.msra.mxu0 %v3841
    %3972 = vmatprep.subr.mxu0 %v3846
    %3973 = vmatpush1.msra.mxu0 %v3845
    %3974 = vmatprep.subr.mxu0 %v3850
    %3975 = vmatpush1.msra.mxu0 %v3849
    %3976 = vmatprep.subr.mxu0 %v3854
    %3977 = vmatpush1.msra.mxu0 %v3853
    %3978 = vmatprep.subr.mxu0 %v3858
    %3979 = vmatpush1.msra.mxu0 %v3857
    %3980 = vmatprep.subr.mxu0 %v3862
    %3981 = vmatpush1.msra.mxu0 %v3861
    %3982 = vmatprep.subr.mxu0 %v3866
    %3983 = vmatpush1.msra.mxu0 %v3865
    %3984 = vmatprep.subr.mxu0 %v3870
    %3985 = vmatpush1.msra.mxu0 %v3869
    %3986 = vmatprep.subr.mxu0 %v3874
    %3987 = vmatpush1.msra.mxu0 %v3873
    %3988 = vmatprep.subr.mxu0 %v3878
    %3989 = vmatpush1.msra.mxu0 %v3877
    %3990 = vmatprep.subr.mxu0 %v3882
    %3991 = vmatpush1.msra.mxu0 %v3881
    %3992 = vmatprep.subr.mxu0 %v3886
    %3993 = vmatpush1.msra.mxu0 %v3885
    %3994 = vmatprep.subr.mxu0 %v3890
    %3995 = vmatpush1.msra.mxu0 %v3889
    %3996 = vmatprep.subr.mxu0 %v3894
    %3997 = vmatpush1.msra.mxu0 %v3893
    %3998 = vmatprep.subr.mxu0 0.0
    %3999 = vmatpush1.msra.mxu0 0.0
    %4000 = vmatprep.subr.mxu0 0.0
    %4001 = vmatpush1.msra.mxu0 0.0
    %4002 = vmatprep.subr.mxu0 0.0
    %4003 = vmatpush1.msra.mxu0 0.0
    %4004 = vmatprep.subr.mxu0 0.0
    %4005 = vmatpush1.msra.mxu0 0.0
    %4006 = vmatprep.subr.mxu0 0.0
    %4007 = vmatpush1.msra.mxu0 0.0
    %4008 = vmatprep.subr.mxu0 0.0
    %4009 = vmatpush1.msra.mxu0 0.0
    %4010 = vmatprep.subr.mxu0 0.0
    %4011 = vmatpush1.msra.mxu0 0.0
    %4012 = vmatprep.subr.mxu0 0.0
    %4013 = vmatpush1.msra.mxu0 0.0
    %4014 = vmatprep.subr.mxu0 0.0
    %4015 = vmatpush1.msra.mxu0 0.0
    %4016 = vmatprep.subr.mxu0 0.0
    %4017 = vmatpush1.msra.mxu0 0.0
    %4018 = vmatprep.subr.mxu0 0.0
    %4019 = vmatpush1.msra.mxu0 0.0
    %4020 = vmatprep.subr.mxu0 0.0
    %4021 = vmatpush1.msra.mxu0 0.0
    %4022 = vmatprep.subr.mxu0 0.0
    %4023 = vmatpush1.msra.mxu0 0.0
    %4024 = vmatprep.subr.mxu0 0.0
    %4025 = vmatpush1.msra.mxu0 0.0
    %4026 = vmatprep.subr.mxu0 0.0
    %4027 = vmatpush1.msra.mxu0 0.0
    %4028 = vmatprep.subr.mxu0 0.0
    %4029 = vmatpush1.msra.mxu0 0.0
    %4030 = vmatprep.mubr.f32.mxu0 0.0
    %4031 = vmatmul.mubr.f32.gmra.mrb[0].mxu0 %v2919
    %v4032 = vpop.f32.mrb[0].mxu0
    %v4033 = vadd.f32 %v3827, %v4032
    %v4034 = vpop.f32.mrb[0].mxu0
    %v4035 = vadd.f32 %v3829, %v4034
    %4036 = vdwg.mxu0
    %v4037 = vld [vmem:[%s1217] sm:$0xf]
    %v4039 = vlaneseq
    %v4040 = vshrl.u32 %v4039, 7
    %v4041 = vsub.s32 0, %v4040
    %v4042 = vrot.slane %v4037, %v4041
    %v4043 = vlaneseq
    %v4044 = vshrl.u32 %v4043, 7
    %v4045 = vsub.s32 1, %v4044
    %v4046 = vrot.slane %v4037, %v4045
    %v4047 = vlaneseq
    %v4048 = vshrl.u32 %v4047, 7
    %v4049 = vsub.s32 2, %v4048
    %v4050 = vrot.slane %v4037, %v4049
    %v4051 = vlaneseq
    %v4052 = vshrl.u32 %v4051, 7
    %v4053 = vsub.s32 3, %v4052
    %v4054 = vrot.slane %v4037, %v4053
    %v4059 = vadd.f32 %v3962, %v4042
    %v4060 = vadd.f32 %v3964, %v4046
    %v4061 = vadd.f32 %v4033, %v4050
    %v4062 = vadd.f32 %v4035, %v4054
    %v4063 = vxor.u32 %v4059, 2147483648
    %v4064 = vxor.u32 %v4060, 2147483648
    %v4065 = vxor.u32 %v4061, 2147483648
    %v4066 = vmul.f32 %v4063, 1.442695
    %v4067 = vpow.pop %v4066
    %v4068 = vmul.f32 %v4064, 1.442695
    %v4069 = vpow.pop %v4068
    %v4070 = vmul.f32 %v4065, 1.442695
    %v4071 = vpow.pop %v4070
    %v4072 = vadd.f32 %v4067, 1.0
    %v4073 = vadd.f32 %v4069, 1.0
    %v4074 = vadd.f32 %v4071, 1.0
    %v4075 = vrcp.pop %v4072
    %v4076 = vmul.f32 1.0, %v4075
    %v4077 = vrcp.pop %v4073
    %v4078 = vmul.f32 1.0, %v4077
    %v4079 = vrcp.pop %v4074
    %v4080 = vmul.f32 1.0, %v4079
    %v4081 = vtanh.pop %v4062
    %v4082 = vmul.f32 %v4078, %v3379
    %v4083 = vmul.f32 %v4076, %v4081
    %v4084 = vadd.f32 %v4082, %v4083
    %v4085 = vtanh.pop %v4084
    %v4086 = vmul.f32 %v4080, %v4085
    %s4087 = scalar_lea.vmem [#allocation3], 32
    %4088 = vst [vmem:[%s4087] sm:$0xff] %v4086
    %v4089 = vld [vmem:[#allocation7] sm:$0xff]
    %v4090 = vld [vmem:[#allocation7 + $0x8] sm:$0xff]
    %v4091 = vld [vmem:[#allocation7 + $0x10] sm:$0xff]
    %v4092 = vld [vmem:[#allocation7 + $0x18] sm:$0xff]
    %v4093 = vld [vmem:[#allocation7 + $0x20] sm:$0xff]
    %v4094 = vld [vmem:[#allocation7 + $0x28] sm:$0xff]
    %v4095 = vld [vmem:[#allocation7 + $0x30] sm:$0xff]
    %v4096 = vld [vmem:[#allocation7 + $0x38] sm:$0xff]
    %v4097 = vld [vmem:[#allocation7 + $0x40] sm:$0xff]
    %v4098 = vld [vmem:[#allocation7 + $0x48] sm:$0xff]
    %v4099 = vld [vmem:[#allocation7 + $0x50] sm:$0xff]
    %v4100 = vld [vmem:[#allocation7 + $0x58] sm:$0xff]
    %v4101 = vld [vmem:[#allocation7 + $0x60] sm:$0xff]
    %v4102 = vld [vmem:[#allocation7 + $0x68] sm:$0xff]
    %v4103 = vld [vmem:[#allocation7 + $0x70] sm:$0xff]
    %v4104 = vld [vmem:[#allocation7 + $0x78] sm:$0xff]
    %v4105 = vld [vmem:[#allocation7 + $0x80] sm:$0xff]
    %v4106 = vld [vmem:[#allocation7 + $0x88] sm:$0xff]
    %v4107 = vld [vmem:[#allocation7 + $0x90] sm:$0xff]
    %v4108 = vld [vmem:[#allocation7 + $0x98] sm:$0xff]
    %v4109 = vld [vmem:[#allocation7 + $0xa0] sm:$0xff]
    %v4110 = vld [vmem:[#allocation7 + $0xa8] sm:$0xff]
    %v4111 = vld [vmem:[#allocation7 + $0xb0] sm:$0xff]
    %v4112 = vld [vmem:[#allocation7 + $0xb8] sm:$0xff]
    %v4113 = vld [vmem:[#allocation7 + $0xc0] sm:$0xff]
    %v4114 = vld [vmem:[#allocation7 + $0xc8] sm:$0xff]
    %v4115 = vld [vmem:[#allocation7 + $0xd0] sm:$0xff]
    %v4116 = vld [vmem:[#allocation7 + $0xd8] sm:$0xff]
    %v4117 = vld [vmem:[#allocation7 + $0xe0] sm:$0xff]
    %v4118 = vld [vmem:[#allocation7 + $0xe8] sm:$0xff]
    %v4119 = vld [vmem:[#allocation7 + $0xf0] sm:$0xff]
    %v4120 = vld [vmem:[#allocation7 + $0xf8] sm:$0xff]
    %v4121 = vld [vmem:[#allocation7 + $0x100] sm:$0xff]
    %v4122 = vld [vmem:[#allocation7 + $0x108] sm:$0xff]
    %v4123 = vld [vmem:[#allocation7 + $0x110] sm:$0xff]
    %v4124 = vld [vmem:[#allocation7 + $0x118] sm:$0xff]
    %v4125 = vld [vmem:[#allocation7 + $0x120] sm:$0xff]
    %v4126 = vld [vmem:[#allocation7 + $0x128] sm:$0xff]
    %v4127 = vld [vmem:[#allocation7 + $0x130] sm:$0xff]
    %v4128 = vld [vmem:[#allocation7 + $0x138] sm:$0xff]
    %v4129 = vld [vmem:[#allocation7 + $0x140] sm:$0xff]
    %v4130 = vld [vmem:[#allocation7 + $0x148] sm:$0xff]
    %v4131 = vld [vmem:[#allocation7 + $0x150] sm:$0xff]
    %v4132 = vld [vmem:[#allocation7 + $0x158] sm:$0xff]
    %v4133 = vld [vmem:[#allocation7 + $0x160] sm:$0xff]
    %v4134 = vld [vmem:[#allocation7 + $0x168] sm:$0xff]
    %v4135 = vld [vmem:[#allocation7 + $0x170] sm:$0xff]
    %v4136 = vld [vmem:[#allocation7 + $0x178] sm:$0xff]
    %v4137 = vld [vmem:[#allocation7 + $0x180] sm:$0xff]
    %v4138 = vld [vmem:[#allocation7 + $0x188] sm:$0xff]
    %v4139 = vld [vmem:[#allocation7 + $0x190] sm:$0xff]
    %v4140 = vld [vmem:[#allocation7 + $0x198] sm:$0xff]
    %v4141 = vld [vmem:[#allocation7 + $0x1a0] sm:$0xff]
    %v4142 = vld [vmem:[#allocation7 + $0x1a8] sm:$0xff]
    %v4143 = vld [vmem:[#allocation7 + $0x1b0] sm:$0xff]
    %v4144 = vld [vmem:[#allocation7 + $0x1b8] sm:$0xff]
    %v4145 = vld [vmem:[#allocation7 + $0x1c0] sm:$0xff]
    %v4146 = vld [vmem:[#allocation7 + $0x1c8] sm:$0xff]
    %v4147 = vld [vmem:[#allocation7 + $0x1d0] sm:$0xff]
    %v4148 = vld [vmem:[#allocation7 + $0x1d8] sm:$0xff]
    %v4149 = vld [vmem:[#allocation7 + $0x1e0] sm:$0xff]
    %v4150 = vld [vmem:[#allocation7 + $0x1e8] sm:$0xff]
    %v4151 = vld [vmem:[#allocation7 + $0x1f0] sm:$0xff]
    %v4152 = vld [vmem:[#allocation7 + $0x1f8] sm:$0xff]
    %4153 = vmatprep.subr.mxu0 %v4090
    %4154 = vmatpush1.msra.mxu0 %v4089
    %4155 = vmatprep.subr.mxu0 %v4094
    %4156 = vmatpush1.msra.mxu0 %v4093
    %4157 = vmatprep.subr.mxu0 %v4098
    %4158 = vmatpush1.msra.mxu0 %v4097
    %4159 = vmatprep.subr.mxu0 %v4102
    %4160 = vmatpush1.msra.mxu0 %v4101
    %4161 = vmatprep.subr.mxu0 %v4106
    %4162 = vmatpush1.msra.mxu0 %v4105
    %4163 = vmatprep.subr.mxu0 %v4110
    %4164 = vmatpush1.msra.mxu0 %v4109
    %4165 = vmatprep.subr.mxu0 %v4114
    %4166 = vmatpush1.msra.mxu0 %v4113
    %4167 = vmatprep.subr.mxu0 %v4118
    %4168 = vmatpush1.msra.mxu0 %v4117
    %4169 = vmatprep.subr.mxu0 %v4122
    %4170 = vmatpush1.msra.mxu0 %v4121
    %4171 = vmatprep.subr.mxu0 %v4126
    %4172 = vmatpush1.msra.mxu0 %v4125
    %4173 = vmatprep.subr.mxu0 %v4130
    %4174 = vmatpush1.msra.mxu0 %v4129
    %4175 = vmatprep.subr.mxu0 %v4134
    %4176 = vmatpush1.msra.mxu0 %v4133
    %4177 = vmatprep.subr.mxu0 %v4138
    %4178 = vmatpush1.msra.mxu0 %v4137
    %4179 = vmatprep.subr.mxu0 %v4142
    %4180 = vmatpush1.msra.mxu0 %v4141
    %4181 = vmatprep.subr.mxu0 %v4146
    %4182 = vmatpush1.msra.mxu0 %v4145
    %4183 = vmatprep.subr.mxu0 %v4150
    %4184 = vmatpush1.msra.mxu0 %v4149
    %4185 = vmatprep.subr.mxu0 0.0
    %4186 = vmatpush1.msra.mxu0 0.0
    %4187 = vmatprep.subr.mxu0 0.0
    %4188 = vmatpush1.msra.mxu0 0.0
    %4189 = vmatprep.subr.mxu0 0.0
    %4190 = vmatpush1.msra.mxu0 0.0
    %4191 = vmatprep.subr.mxu0 0.0
    %4192 = vmatpush1.msra.mxu0 0.0
    %4193 = vmatprep.subr.mxu0 0.0
    %4194 = vmatpush1.msra.mxu0 0.0
    %4195 = vmatprep.subr.mxu0 0.0
    %4196 = vmatpush1.msra.mxu0 0.0
    %4197 = vmatprep.subr.mxu0 0.0
    %4198 = vmatpush1.msra.mxu0 0.0
    %4199 = vmatprep.subr.mxu0 0.0
    %4200 = vmatpush1.msra.mxu0 0.0
    %4201 = vmatprep.subr.mxu0 0.0
    %4202 = vmatpush1.msra.mxu0 0.0
    %4203 = vmatprep.subr.mxu0 0.0
    %4204 = vmatpush1.msra.mxu0 0.0
    %4205 = vmatprep.subr.mxu0 0.0
    %4206 = vmatpush1.msra.mxu0 0.0
    %4207 = vmatprep.subr.mxu0 0.0
    %4208 = vmatpush1.msra.mxu0 0.0
    %4209 = vmatprep.subr.mxu0 0.0
    %4210 = vmatpush1.msra.mxu0 0.0
    %4211 = vmatprep.subr.mxu0 0.0
    %4212 = vmatpush1.msra.mxu0 0.0
    %4213 = vmatprep.subr.mxu0 0.0
    %4214 = vmatpush1.msra.mxu0 0.0
    %4215 = vmatprep.subr.mxu0 0.0
    %4216 = vmatpush1.msra.mxu0 0.0
    %4217 = vmatprep.mubr.f32.mxu0 0.0
    %4218 = vmatmul.mubr.f32.gmra.mrb[0].mxu0 %v3624
    %v4219 = vpop.f32.mrb[0].mxu0
    %v4220 = vadd.f32 0.0, %v4219
    %v4221 = vpop.f32.mrb[0].mxu0
    %v4222 = vadd.f32 0.0, %v4221
    %4223 = vdwg.mxu0
    %4224 = vmatprep.subr.mxu0 %v4092
    %4225 = vmatpush1.msra.mxu0 %v4091
    %4226 = vmatprep.subr.mxu0 %v4096
    %4227 = vmatpush1.msra.mxu0 %v4095
    %4228 = vmatprep.subr.mxu0 %v4100
    %4229 = vmatpush1.msra.mxu0 %v4099
    %4230 = vmatprep.subr.mxu0 %v4104
    %4231 = vmatpush1.msra.mxu0 %v4103
    %4232 = vmatprep.subr.mxu0 %v4108
    %4233 = vmatpush1.msra.mxu0 %v4107
    %4234 = vmatprep.subr.mxu0 %v4112
    %4235 = vmatpush1.msra.mxu0 %v4111
    %4236 = vmatprep.subr.mxu0 %v4116
    %4237 = vmatpush1.msra.mxu0 %v4115
    %4238 = vmatprep.subr.mxu0 %v4120
    %4239 = vmatpush1.msra.mxu0 %v4119
    %4240 = vmatprep.subr.mxu0 %v4124
    %4241 = vmatpush1.msra.mxu0 %v4123
    %4242 = vmatprep.subr.mxu0 %v4128
    %4243 = vmatpush1.msra.mxu0 %v4127
    %4244 = vmatprep.subr.mxu0 %v4132
    %4245 = vmatpush1.msra.mxu0 %v4131
    %4246 = vmatprep.subr.mxu0 %v4136
    %4247 = vmatpush1.msra.mxu0 %v4135
    %4248 = vmatprep.subr.mxu0 %v4140
    %4249 = vmatpush1.msra.mxu0 %v4139
    %4250 = vmatprep.subr.mxu0 %v4144
    %4251 = vmatpush1.msra.mxu0 %v4143
    %4252 = vmatprep.subr.mxu0 %v4148
    %4253 = vmatpush1.msra.mxu0 %v4147
    %4254 = vmatprep.subr.mxu0 %v4152
    %4255 = vmatpush1.msra.mxu0 %v4151
    %4256 = vmatprep.subr.mxu0 0.0
    %4257 = vmatpush1.msra.mxu0 0.0
    %4258 = vmatprep.subr.mxu0 0.0
    %4259 = vmatpush1.msra.mxu0 0.0
    %4260 = vmatprep.subr.mxu0 0.0
    %4261 = vmatpush1.msra.mxu0 0.0
    %4262 = vmatprep.subr.mxu0 0.0
    %4263 = vmatpush1.msra.mxu0 0.0
    %4264 = vmatprep.subr.mxu0 0.0
    %4265 = vmatpush1.msra.mxu0 0.0
    %4266 = vmatprep.subr.mxu0 0.0
    %4267 = vmatpush1.msra.mxu0 0.0
    %4268 = vmatprep.subr.mxu0 0.0
    %4269 = vmatpush1.msra.mxu0 0.0
    %4270 = vmatprep.subr.mxu0 0.0
    %4271 = vmatpush1.msra.mxu0 0.0
    %4272 = vmatprep.subr.mxu0 0.0
    %4273 = vmatpush1.msra.mxu0 0.0
    %4274 = vmatprep.subr.mxu0 0.0
    %4275 = vmatpush1.msra.mxu0 0.0
    %4276 = vmatprep.subr.mxu0 0.0
    %4277 = vmatpush1.msra.mxu0 0.0
    %4278 = vmatprep.subr.mxu0 0.0
    %4279 = vmatpush1.msra.mxu0 0.0
    %4280 = vmatprep.subr.mxu0 0.0
    %4281 = vmatpush1.msra.mxu0 0.0
    %4282 = vmatprep.subr.mxu0 0.0
    %4283 = vmatpush1.msra.mxu0 0.0
    %4284 = vmatprep.subr.mxu0 0.0
    %4285 = vmatpush1.msra.mxu0 0.0
    %4286 = vmatprep.subr.mxu0 0.0
    %4287 = vmatpush1.msra.mxu0 0.0
    %4288 = vmatprep.mubr.f32.mxu0 0.0
    %4289 = vmatmul.mubr.f32.gmra.mrb[0].mxu0 %v3624
    %v4290 = vpop.f32.mrb[0].mxu0
    %v4291 = vadd.f32 0.0, %v4290
    %v4292 = vpop.f32.mrb[0].mxu0
    %v4293 = vadd.f32 0.0, %v4292
    %4294 = vdwg.mxu0
    %s4295 = smul.u32 6, 4
    %s4296 = smul.addr %s4295, 8
    %s4297 = scalar_lea.vmem [#allocation2], %s4296
    %v4298 = vld [vmem:[%s4297] sm:$0xff]
    %v4299 = vld [vmem:[%s4297 + $0x8] sm:$0xff]
    %v4300 = vld [vmem:[%s4297 + $0x10] sm:$0xff]
    %v4301 = vld [vmem:[%s4297 + $0x18] sm:$0xff]
    %v4302 = vadd.f32 %v4298, %v4220
    %v4303 = vadd.f32 %v4299, %v4222
    %v4304 = vadd.f32 %v4300, %v4291
    %v4305 = vadd.f32 %v4301, %v4293
    %v4306 = vxor.u32 %v4302, 2147483648
    %v4307 = vxor.u32 %v4303, 2147483648
    %v4308 = vxor.u32 %v4304, 2147483648
    %v4309 = vmul.f32 %v4306, 1.442695
    %v4310 = vpow.pop %v4309
    %v4311 = vmul.f32 %v4307, 1.442695
    %v4312 = vpow.pop %v4311
    %v4313 = vmul.f32 %v4308, 1.442695
    %v4314 = vpow.pop %v4313
    %v4315 = vadd.f32 %v4310, 1.0
    %v4316 = vadd.f32 %v4312, 1.0
    %v4317 = vadd.f32 %v4314, 1.0
    %v4318 = vrcp.pop %v4315
    %v4319 = vmul.f32 1.0, %v4318
    %v4320 = vrcp.pop %v4316
    %v4321 = vmul.f32 1.0, %v4320
    %v4322 = vrcp.pop %v4317
    %v4323 = vmul.f32 1.0, %v4322
    %v4324 = vtanh.pop %v4305
    %v4325 = vmul.f32 %v4321, %v3622
    %v4326 = vmul.f32 %v4319, %v4324
    %v4327 = vadd.f32 %v4325, %v4326
    %v4328 = vtanh.pop %v4327
    %v4329 = vmul.f32 %v4323, %v4328
    %v4330 = vld [vmem:[%s804] sm:$0xff]
    %v4331 = vld [vmem:[%s804 + $0x8] sm:$0xff]
    %v4332 = vld [vmem:[%s804 + $0x10] sm:$0xff]
    %v4333 = vld [vmem:[%s804 + $0x18] sm:$0xff]
    %v4334 = vld [vmem:[%s804 + $0x20] sm:$0xff]
    %v4335 = vld [vmem:[%s804 + $0x28] sm:$0xff]
    %v4336 = vld [vmem:[%s804 + $0x30] sm:$0xff]
    %v4337 = vld [vmem:[%s804 + $0x38] sm:$0xff]
    %v4338 = vld [vmem:[%s804 + $0x40] sm:$0xff]
    %v4339 = vld [vmem:[%s804 + $0x48] sm:$0xff]
    %v4340 = vld [vmem:[%s804 + $0x50] sm:$0xff]
    %v4341 = vld [vmem:[%s804 + $0x58] sm:$0xff]
    %v4342 = vld [vmem:[%s804 + $0x60] sm:$0xff]
    %v4343 = vld [vmem:[%s804 + $0x68] sm:$0xff]
    %v4344 = vld [vmem:[%s804 + $0x70] sm:$0xff]
    %v4345 = vld [vmem:[%s804 + $0x78] sm:$0xff]
    %v4346 = vld [vmem:[%s804 + $0x80] sm:$0xff]
    %v4347 = vld [vmem:[%s804 + $0x88] sm:$0xff]
    %v4348 = vld [vmem:[%s804 + $0x90] sm:$0xff]
    %v4349 = vld [vmem:[%s804 + $0x98] sm:$0xff]
    %v4350 = vld [vmem:[%s804 + $0xa0] sm:$0xff]
    %v4351 = vld [vmem:[%s804 + $0xa8] sm:$0xff]
    %v4352 = vld [vmem:[%s804 + $0xb0] sm:$0xff]
    %v4353 = vld [vmem:[%s804 + $0xb8] sm:$0xff]
    %v4354 = vld [vmem:[%s804 + $0xc0] sm:$0xff]
    %v4355 = vld [vmem:[%s804 + $0xc8] sm:$0xff]
    %v4356 = vld [vmem:[%s804 + $0xd0] sm:$0xff]
    %v4357 = vld [vmem:[%s804 + $0xd8] sm:$0xff]
    %v4358 = vld [vmem:[%s804 + $0xe0] sm:$0xff]
    %v4359 = vld [vmem:[%s804 + $0xe8] sm:$0xff]
    %v4360 = vld [vmem:[%s804 + $0xf0] sm:$0xff]
    %v4361 = vld [vmem:[%s804 + $0xf8] sm:$0xff]
    %v4362 = vld [vmem:[%s804 + $0x100] sm:$0xff]
    %v4363 = vld [vmem:[%s804 + $0x108] sm:$0xff]
    %v4364 = vld [vmem:[%s804 + $0x110] sm:$0xff]
    %v4365 = vld [vmem:[%s804 + $0x118] sm:$0xff]
    %v4366 = vld [vmem:[%s804 + $0x120] sm:$0xff]
    %v4367 = vld [vmem:[%s804 + $0x128] sm:$0xff]
    %v4368 = vld [vmem:[%s804 + $0x130] sm:$0xff]
    %v4369 = vld [vmem:[%s804 + $0x138] sm:$0xff]
    %v4370 = vld [vmem:[%s804 + $0x140] sm:$0xff]
    %v4371 = vld [vmem:[%s804 + $0x148] sm:$0xff]
    %v4372 = vld [vmem:[%s804 + $0x150] sm:$0xff]
    %v4373 = vld [vmem:[%s804 + $0x158] sm:$0xff]
    %v4374 = vld [vmem:[%s804 + $0x160] sm:$0xff]
    %v4375 = vld [vmem:[%s804 + $0x168] sm:$0xff]
    %v4376 = vld [vmem:[%s804 + $0x170] sm:$0xff]
    %v4377 = vld [vmem:[%s804 + $0x178] sm:$0xff]
    %v4378 = vld [vmem:[%s804 + $0x180] sm:$0xff]
    %v4379 = vld [vmem:[%s804 + $0x188] sm:$0xff]
    %v4380 = vld [vmem:[%s804 + $0x190] sm:$0xff]
    %v4381 = vld [vmem:[%s804 + $0x198] sm:$0xff]
    %v4382 = vld [vmem:[%s804 + $0x1a0] sm:$0xff]
    %v4383 = vld [vmem:[%s804 + $0x1a8] sm:$0xff]
    %v4384 = vld [vmem:[%s804 + $0x1b0] sm:$0xff]
    %v4385 = vld [vmem:[%s804 + $0x1b8] sm:$0xff]
    %v4386 = vld [vmem:[%s804 + $0x1c0] sm:$0xff]
    %v4387 = vld [vmem:[%s804 + $0x1c8] sm:$0xff]
    %v4388 = vld [vmem:[%s804 + $0x1d0] sm:$0xff]
    %v4389 = vld [vmem:[%s804 + $0x1d8] sm:$0xff]
    %v4390 = vld [vmem:[%s804 + $0x1e0] sm:$0xff]
    %v4391 = vld [vmem:[%s804 + $0x1e8] sm:$0xff]
    %v4392 = vld [vmem:[%s804 + $0x1f0] sm:$0xff]
    %v4393 = vld [vmem:[%s804 + $0x1f8] sm:$0xff]
    %4394 = vmatprep.subr.mxu0 %v4331
    %4395 = vmatpush1.msra.mxu0 %v4330
    %4396 = vmatprep.subr.mxu0 %v4335
    %4397 = vmatpush1.msra.mxu0 %v4334
    %4398 = vmatprep.subr.mxu0 %v4339
    %4399 = vmatpush1.msra.mxu0 %v4338
    %4400 = vmatprep.subr.mxu0 %v4343
    %4401 = vmatpush1.msra.mxu0 %v4342
    %4402 = vmatprep.subr.mxu0 %v4347
    %4403 = vmatpush1.msra.mxu0 %v4346
    %4404 = vmatprep.subr.mxu0 %v4351
    %4405 = vmatpush1.msra.mxu0 %v4350
    %4406 = vmatprep.subr.mxu0 %v4355
    %4407 = vmatpush1.msra.mxu0 %v4354
    %4408 = vmatprep.subr.mxu0 %v4359
    %4409 = vmatpush1.msra.mxu0 %v4358
    %4410 = vmatprep.subr.mxu0 %v4363
    %4411 = vmatpush1.msra.mxu0 %v4362
    %4412 = vmatprep.subr.mxu0 %v4367
    %4413 = vmatpush1.msra.mxu0 %v4366
    %4414 = vmatprep.subr.mxu0 %v4371
    %4415 = vmatpush1.msra.mxu0 %v4370
    %4416 = vmatprep.subr.mxu0 %v4375
    %4417 = vmatpush1.msra.mxu0 %v4374
    %4418 = vmatprep.subr.mxu0 %v4379
    %4419 = vmatpush1.msra.mxu0 %v4378
    %4420 = vmatprep.subr.mxu0 %v4383
    %4421 = vmatpush1.msra.mxu0 %v4382
    %4422 = vmatprep.subr.mxu0 %v4387
    %4423 = vmatpush1.msra.mxu0 %v4386
    %4424 = vmatprep.subr.mxu0 %v4391
    %4425 = vmatpush1.msra.mxu0 %v4390
    %4426 = vmatprep.subr.mxu0 0.0
    %4427 = vmatpush1.msra.mxu0 0.0
    %4428 = vmatprep.subr.mxu0 0.0
    %4429 = vmatpush1.msra.mxu0 0.0
    %4430 = vmatprep.subr.mxu0 0.0
    %4431 = vmatpush1.msra.mxu0 0.0
    %4432 = vmatprep.subr.mxu0 0.0
    %4433 = vmatpush1.msra.mxu0 0.0
    %4434 = vmatprep.subr.mxu0 0.0
    %4435 = vmatpush1.msra.mxu0 0.0
    %4436 = vmatprep.subr.mxu0 0.0
    %4437 = vmatpush1.msra.mxu0 0.0
    %4438 = vmatprep.subr.mxu0 0.0
    %4439 = vmatpush1.msra.mxu0 0.0
    %4440 = vmatprep.subr.mxu0 0.0
    %4441 = vmatpush1.msra.mxu0 0.0
    %4442 = vmatprep.subr.mxu0 0.0
    %4443 = vmatpush1.msra.mxu0 0.0
    %4444 = vmatprep.subr.mxu0 0.0
    %4445 = vmatpush1.msra.mxu0 0.0
    %4446 = vmatprep.subr.mxu0 0.0
    %4447 = vmatpush1.msra.mxu0 0.0
    %4448 = vmatprep.subr.mxu0 0.0
    %4449 = vmatpush1.msra.mxu0 0.0
    %4450 = vmatprep.subr.mxu0 0.0
    %4451 = vmatpush1.msra.mxu0 0.0
    %4452 = vmatprep.subr.mxu0 0.0
    %4453 = vmatpush1.msra.mxu0 0.0
    %4454 = vmatprep.subr.mxu0 0.0
    %4455 = vmatpush1.msra.mxu0 0.0
    %4456 = vmatprep.subr.mxu0 0.0
    %4457 = vmatpush1.msra.mxu0 0.0
    %4458 = vmatprep.mubr.f32.mxu0 0.0
    %4459 = vmatmul.mubr.f32.gmra.mrb[0].mxu0 %v4086
    %v4460 = vpop.f32.mrb[0].mxu0
    %v4461 = vadd.f32 0.0, %v4460
    %v4462 = vpop.f32.mrb[0].mxu0
    %v4463 = vadd.f32 0.0, %v4462
    %4464 = vdwg.mxu0
    %4465 = vmatprep.subr.mxu0 %v4333
    %4466 = vmatpush1.msra.mxu0 %v4332
    %4467 = vmatprep.subr.mxu0 %v4337
    %4468 = vmatpush1.msra.mxu0 %v4336
    %4469 = vmatprep.subr.mxu0 %v4341
    %4470 = vmatpush1.msra.mxu0 %v4340
    %4471 = vmatprep.subr.mxu0 %v4345
    %4472 = vmatpush1.msra.mxu0 %v4344
    %4473 = vmatprep.subr.mxu0 %v4349
    %4474 = vmatpush1.msra.mxu0 %v4348
    %4475 = vmatprep.subr.mxu0 %v4353
    %4476 = vmatpush1.msra.mxu0 %v4352
    %4477 = vmatprep.subr.mxu0 %v4357
    %4478 = vmatpush1.msra.mxu0 %v4356
    %4479 = vmatprep.subr.mxu0 %v4361
    %4480 = vmatpush1.msra.mxu0 %v4360
    %4481 = vmatprep.subr.mxu0 %v4365
    %4482 = vmatpush1.msra.mxu0 %v4364
    %4483 = vmatprep.subr.mxu0 %v4369
    %4484 = vmatpush1.msra.mxu0 %v4368
    %4485 = vmatprep.subr.mxu0 %v4373
    %4486 = vmatpush1.msra.mxu0 %v4372
    %4487 = vmatprep.subr.mxu0 %v4377
    %4488 = vmatpush1.msra.mxu0 %v4376
    %4489 = vmatprep.subr.mxu0 %v4381
    %4490 = vmatpush1.msra.mxu0 %v4380
    %4491 = vmatprep.subr.mxu0 %v4385
    %4492 = vmatpush1.msra.mxu0 %v4384
    %4493 = vmatprep.subr.mxu0 %v4389
    %4494 = vmatpush1.msra.mxu0 %v4388
    %4495 = vmatprep.subr.mxu0 %v4393
    %4496 = vmatpush1.msra.mxu0 %v4392
    %4497 = vmatprep.subr.mxu0 0.0
    %4498 = vmatpush1.msra.mxu0 0.0
    %4499 = vmatprep.subr.mxu0 0.0
    %4500 = vmatpush1.msra.mxu0 0.0
    %4501 = vmatprep.subr.mxu0 0.0
    %4502 = vmatpush1.msra.mxu0 0.0
    %4503 = vmatprep.subr.mxu0 0.0
    %4504 = vmatpush1.msra.mxu0 0.0
    %4505 = vmatprep.subr.mxu0 0.0
    %4506 = vmatpush1.msra.mxu0 0.0
    %4507 = vmatprep.subr.mxu0 0.0
    %4508 = vmatpush1.msra.mxu0 0.0
    %4509 = vmatprep.subr.mxu0 0.0
    %4510 = vmatpush1.msra.mxu0 0.0
    %4511 = vmatprep.subr.mxu0 0.0
    %4512 = vmatpush1.msra.mxu0 0.0
    %4513 = vmatprep.subr.mxu0 0.0
    %4514 = vmatpush1.msra.mxu0 0.0
    %4515 = vmatprep.subr.mxu0 0.0
    %4516 = vmatpush1.msra.mxu0 0.0
    %4517 = vmatprep.subr.mxu0 0.0
    %4518 = vmatpush1.msra.mxu0 0.0
    %4519 = vmatprep.subr.mxu0 0.0
    %4520 = vmatpush1.msra.mxu0 0.0
    %4521 = vmatprep.subr.mxu0 0.0
    %4522 = vmatpush1.msra.mxu0 0.0
    %4523 = vmatprep.subr.mxu0 0.0
    %4524 = vmatpush1.msra.mxu0 0.0
    %4525 = vmatprep.subr.mxu0 0.0
    %4526 = vmatpush1.msra.mxu0 0.0
    %4527 = vmatprep.subr.mxu0 0.0
    %4528 = vmatpush1.msra.mxu0 0.0
    %4529 = vmatprep.mubr.f32.mxu0 0.0
    %4530 = vmatmul.mubr.f32.gmra.mrb[0].mxu0 %v4086
    %v4531 = vpop.f32.mrb[0].mxu0
    %v4532 = vadd.f32 0.0, %v4531
    %v4533 = vpop.f32.mrb[0].mxu0
    %v4534 = vadd.f32 0.0, %v4533
    %4535 = vdwg.mxu0
    %v4536 = vld [vmem:[#allocation4] sm:$0xff]
    %v4537 = vld [vmem:[#allocation4 + $0x8] sm:$0xff]
    %v4538 = vld [vmem:[#allocation4 + $0x10] sm:$0xff]
    %v4539 = vld [vmem:[#allocation4 + $0x18] sm:$0xff]
    %v4540 = vld [vmem:[#allocation4 + $0x20] sm:$0xff]
    %v4541 = vld [vmem:[#allocation4 + $0x28] sm:$0xff]
    %v4542 = vld [vmem:[#allocation4 + $0x30] sm:$0xff]
    %v4543 = vld [vmem:[#allocation4 + $0x38] sm:$0xff]
    %v4544 = vld [vmem:[#allocation4 + $0x40] sm:$0xff]
    %v4545 = vld [vmem:[#allocation4 + $0x48] sm:$0xff]
    %v4546 = vld [vmem:[#allocation4 + $0x50] sm:$0xff]
    %v4547 = vld [vmem:[#allocation4 + $0x58] sm:$0xff]
    %v4548 = vld [vmem:[#allocation4 + $0x60] sm:$0xff]
    %v4549 = vld [vmem:[#allocation4 + $0x68] sm:$0xff]
    %v4550 = vld [vmem:[#allocation4 + $0x70] sm:$0xff]
    %v4551 = vld [vmem:[#allocation4 + $0x78] sm:$0xff]
    %v4552 = vld [vmem:[#allocation4 + $0x80] sm:$0xff]
    %v4553 = vld [vmem:[#allocation4 + $0x88] sm:$0xff]
    %v4554 = vld [vmem:[#allocation4 + $0x90] sm:$0xff]
    %v4555 = vld [vmem:[#allocation4 + $0x98] sm:$0xff]
    %v4556 = vld [vmem:[#allocation4 + $0xa0] sm:$0xff]
    %v4557 = vld [vmem:[#allocation4 + $0xa8] sm:$0xff]
    %v4558 = vld [vmem:[#allocation4 + $0xb0] sm:$0xff]
    %v4559 = vld [vmem:[#allocation4 + $0xb8] sm:$0xff]
    %v4560 = vld [vmem:[#allocation4 + $0xc0] sm:$0xff]
    %v4561 = vld [vmem:[#allocation4 + $0xc8] sm:$0xff]
    %v4562 = vld [vmem:[#allocation4 + $0xd0] sm:$0xff]
    %v4563 = vld [vmem:[#allocation4 + $0xd8] sm:$0xff]
    %v4564 = vld [vmem:[#allocation4 + $0xe0] sm:$0xff]
    %v4565 = vld [vmem:[#allocation4 + $0xe8] sm:$0xff]
    %v4566 = vld [vmem:[#allocation4 + $0xf0] sm:$0xff]
    %v4567 = vld [vmem:[#allocation4 + $0xf8] sm:$0xff]
    %v4568 = vld [vmem:[#allocation4 + $0x100] sm:$0xff]
    %v4569 = vld [vmem:[#allocation4 + $0x108] sm:$0xff]
    %v4570 = vld [vmem:[#allocation4 + $0x110] sm:$0xff]
    %v4571 = vld [vmem:[#allocation4 + $0x118] sm:$0xff]
    %v4572 = vld [vmem:[#allocation4 + $0x120] sm:$0xff]
    %v4573 = vld [vmem:[#allocation4 + $0x128] sm:$0xff]
    %v4574 = vld [vmem:[#allocation4 + $0x130] sm:$0xff]
    %v4575 = vld [vmem:[#allocation4 + $0x138] sm:$0xff]
    %v4576 = vld [vmem:[#allocation4 + $0x140] sm:$0xff]
    %v4577 = vld [vmem:[#allocation4 + $0x148] sm:$0xff]
    %v4578 = vld [vmem:[#allocation4 + $0x150] sm:$0xff]
    %v4579 = vld [vmem:[#allocation4 + $0x158] sm:$0xff]
    %v4580 = vld [vmem:[#allocation4 + $0x160] sm:$0xff]
    %v4581 = vld [vmem:[#allocation4 + $0x168] sm:$0xff]
    %v4582 = vld [vmem:[#allocation4 + $0x170] sm:$0xff]
    %v4583 = vld [vmem:[#allocation4 + $0x178] sm:$0xff]
    %v4584 = vld [vmem:[#allocation4 + $0x180] sm:$0xff]
    %v4585 = vld [vmem:[#allocation4 + $0x188] sm:$0xff]
    %v4586 = vld [vmem:[#allocation4 + $0x190] sm:$0xff]
    %v4587 = vld [vmem:[#allocation4 + $0x198] sm:$0xff]
    %v4588 = vld [vmem:[#allocation4 + $0x1a0] sm:$0xff]
    %v4589 = vld [vmem:[#allocation4 + $0x1a8] sm:$0xff]
    %v4590 = vld [vmem:[#allocation4 + $0x1b0] sm:$0xff]
    %v4591 = vld [vmem:[#allocation4 + $0x1b8] sm:$0xff]
    %v4592 = vld [vmem:[#allocation4 + $0x1c0] sm:$0xff]
    %v4593 = vld [vmem:[#allocation4 + $0x1c8] sm:$0xff]
    %v4594 = vld [vmem:[#allocation4 + $0x1d0] sm:$0xff]
    %v4595 = vld [vmem:[#allocation4 + $0x1d8] sm:$0xff]
    %v4596 = vld [vmem:[#allocation4 + $0x1e0] sm:$0xff]
    %v4597 = vld [vmem:[#allocation4 + $0x1e8] sm:$0xff]
    %v4598 = vld [vmem:[#allocation4 + $0x1f0] sm:$0xff]
    %v4599 = vld [vmem:[#allocation4 + $0x1f8] sm:$0xff]
    %4600 = vmatprep.subr.mxu0 %v4537
    %4601 = vmatpush1.msra.mxu0 %v4536
    %4602 = vmatprep.subr.mxu0 %v4541
    %4603 = vmatpush1.msra.mxu0 %v4540
    %4604 = vmatprep.subr.mxu0 %v4545
    %4605 = vmatpush1.msra.mxu0 %v4544
    %4606 = vmatprep.subr.mxu0 %v4549
    %4607 = vmatpush1.msra.mxu0 %v4548
    %4608 = vmatprep.subr.mxu0 %v4553
    %4609 = vmatpush1.msra.mxu0 %v4552
    %4610 = vmatprep.subr.mxu0 %v4557
    %4611 = vmatpush1.msra.mxu0 %v4556
    %4612 = vmatprep.subr.mxu0 %v4561
    %4613 = vmatpush1.msra.mxu0 %v4560
    %4614 = vmatprep.subr.mxu0 %v4565
    %4615 = vmatpush1.msra.mxu0 %v4564
    %4616 = vmatprep.subr.mxu0 %v4569
    %4617 = vmatpush1.msra.mxu0 %v4568
    %4618 = vmatprep.subr.mxu0 %v4573
    %4619 = vmatpush1.msra.mxu0 %v4572
    %4620 = vmatprep.subr.mxu0 %v4577
    %4621 = vmatpush1.msra.mxu0 %v4576
    %4622 = vmatprep.subr.mxu0 %v4581
    %4623 = vmatpush1.msra.mxu0 %v4580
    %4624 = vmatprep.subr.mxu0 %v4585
    %4625 = vmatpush1.msra.mxu0 %v4584
    %4626 = vmatprep.subr.mxu0 %v4589
    %4627 = vmatpush1.msra.mxu0 %v4588
    %4628 = vmatprep.subr.mxu0 %v4593
    %4629 = vmatpush1.msra.mxu0 %v4592
    %4630 = vmatprep.subr.mxu0 %v4597
    %4631 = vmatpush1.msra.mxu0 %v4596
    %4632 = vmatprep.subr.mxu0 0.0
    %4633 = vmatpush1.msra.mxu0 0.0
    %4634 = vmatprep.subr.mxu0 0.0
    %4635 = vmatpush1.msra.mxu0 0.0
    %4636 = vmatprep.subr.mxu0 0.0
    %4637 = vmatpush1.msra.mxu0 0.0
    %4638 = vmatprep.subr.mxu0 0.0
    %4639 = vmatpush1.msra.mxu0 0.0
    %4640 = vmatprep.subr.mxu0 0.0
    %4641 = vmatpush1.msra.mxu0 0.0
    %4642 = vmatprep.subr.mxu0 0.0
    %4643 = vmatpush1.msra.mxu0 0.0
    %4644 = vmatprep.subr.mxu0 0.0
    %4645 = vmatpush1.msra.mxu0 0.0
    %4646 = vmatprep.subr.mxu0 0.0
    %4647 = vmatpush1.msra.mxu0 0.0
    %4648 = vmatprep.subr.mxu0 0.0
    %4649 = vmatpush1.msra.mxu0 0.0
    %4650 = vmatprep.subr.mxu0 0.0
    %4651 = vmatpush1.msra.mxu0 0.0
    %4652 = vmatprep.subr.mxu0 0.0
    %4653 = vmatpush1.msra.mxu0 0.0
    %4654 = vmatprep.subr.mxu0 0.0
    %4655 = vmatpush1.msra.mxu0 0.0
    %4656 = vmatprep.subr.mxu0 0.0
    %4657 = vmatpush1.msra.mxu0 0.0
    %4658 = vmatprep.subr.mxu0 0.0
    %4659 = vmatpush1.msra.mxu0 0.0
    %4660 = vmatprep.subr.mxu0 0.0
    %4661 = vmatpush1.msra.mxu0 0.0
    %4662 = vmatprep.subr.mxu0 0.0
    %4663 = vmatpush1.msra.mxu0 0.0
    %4664 = vmatprep.mubr.f32.mxu0 0.0
    %4665 = vmatmul.mubr.f32.gmra.mrb[0].mxu0 %v3624
    %v4666 = vpop.f32.mrb[0].mxu0
    %v4667 = vadd.f32 %v4461, %v4666
    %v4668 = vpop.f32.mrb[0].mxu0
    %v4669 = vadd.f32 %v4463, %v4668
    %4670 = vdwg.mxu0
    %4671 = vmatprep.subr.mxu0 %v4539
    %4672 = vmatpush1.msra.mxu0 %v4538
    %4673 = vmatprep.subr.mxu0 %v4543
    %4674 = vmatpush1.msra.mxu0 %v4542
    %4675 = vmatprep.subr.mxu0 %v4547
    %4676 = vmatpush1.msra.mxu0 %v4546
    %4677 = vmatprep.subr.mxu0 %v4551
    %4678 = vmatpush1.msra.mxu0 %v4550
    %4679 = vmatprep.subr.mxu0 %v4555
    %4680 = vmatpush1.msra.mxu0 %v4554
    %4681 = vmatprep.subr.mxu0 %v4559
    %4682 = vmatpush1.msra.mxu0 %v4558
    %4683 = vmatprep.subr.mxu0 %v4563
    %4684 = vmatpush1.msra.mxu0 %v4562
    %4685 = vmatprep.subr.mxu0 %v4567
    %4686 = vmatpush1.msra.mxu0 %v4566
    %4687 = vmatprep.subr.mxu0 %v4571
    %4688 = vmatpush1.msra.mxu0 %v4570
    %4689 = vmatprep.subr.mxu0 %v4575
    %4690 = vmatpush1.msra.mxu0 %v4574
    %4691 = vmatprep.subr.mxu0 %v4579
    %4692 = vmatpush1.msra.mxu0 %v4578
    %4693 = vmatprep.subr.mxu0 %v4583
    %4694 = vmatpush1.msra.mxu0 %v4582
    %4695 = vmatprep.subr.mxu0 %v4587
    %4696 = vmatpush1.msra.mxu0 %v4586
    %4697 = vmatprep.subr.mxu0 %v4591
    %4698 = vmatpush1.msra.mxu0 %v4590
    %4699 = vmatprep.subr.mxu0 %v4595
    %4700 = vmatpush1.msra.mxu0 %v4594
    %4701 = vmatprep.subr.mxu0 %v4599
    %4702 = vmatpush1.msra.mxu0 %v4598
    %4703 = vmatprep.subr.mxu0 0.0
    %4704 = vmatpush1.msra.mxu0 0.0
    %4705 = vmatprep.subr.mxu0 0.0
    %4706 = vmatpush1.msra.mxu0 0.0
    %4707 = vmatprep.subr.mxu0 0.0
    %4708 = vmatpush1.msra.mxu0 0.0
    %4709 = vmatprep.subr.mxu0 0.0
    %4710 = vmatpush1.msra.mxu0 0.0
    %4711 = vmatprep.subr.mxu0 0.0
    %4712 = vmatpush1.msra.mxu0 0.0
    %4713 = vmatprep.subr.mxu0 0.0
    %4714 = vmatpush1.msra.mxu0 0.0
    %4715 = vmatprep.subr.mxu0 0.0
    %4716 = vmatpush1.msra.mxu0 0.0
    %4717 = vmatprep.subr.mxu0 0.0
    %4718 = vmatpush1.msra.mxu0 0.0
    %4719 = vmatprep.subr.mxu0 0.0
    %4720 = vmatpush1.msra.mxu0 0.0
    %4721 = vmatprep.subr.mxu0 0.0
    %4722 = vmatpush1.msra.mxu0 0.0
    %4723 = vmatprep.subr.mxu0 0.0
    %4724 = vmatpush1.msra.mxu0 0.0
    %4725 = vmatprep.subr.mxu0 0.0
    %4726 = vmatpush1.msra.mxu0 0.0
    %4727 = vmatprep.subr.mxu0 0.0
    %4728 = vmatpush1.msra.mxu0 0.0
    %4729 = vmatprep.subr.mxu0 0.0
    %4730 = vmatpush1.msra.mxu0 0.0
    %4731 = vmatprep.subr.mxu0 0.0
    %4732 = vmatpush1.msra.mxu0 0.0
    %4733 = vmatprep.subr.mxu0 0.0
    %4734 = vmatpush1.msra.mxu0 0.0
    %4735 = vmatprep.mubr.f32.mxu0 0.0
    %4736 = vmatmul.mubr.f32.gmra.mrb[0].mxu0 %v3624
    %v4737 = vpop.f32.mrb[0].mxu0
    %v4738 = vadd.f32 %v4532, %v4737
    %v4739 = vpop.f32.mrb[0].mxu0
    %v4740 = vadd.f32 %v4534, %v4739
    %4741 = vdwg.mxu0
    %v4742 = vld [vmem:[%s1217] sm:$0xf]
    %v4744 = vlaneseq
    %v4745 = vshrl.u32 %v4744, 7
    %v4746 = vsub.s32 0, %v4745
    %v4747 = vrot.slane %v4742, %v4746
    %v4748 = vlaneseq
    %v4749 = vshrl.u32 %v4748, 7
    %v4750 = vsub.s32 1, %v4749
    %v4751 = vrot.slane %v4742, %v4750
    %v4752 = vlaneseq
    %v4753 = vshrl.u32 %v4752, 7
    %v4754 = vsub.s32 2, %v4753
    %v4755 = vrot.slane %v4742, %v4754
    %v4756 = vlaneseq
    %v4757 = vshrl.u32 %v4756, 7
    %v4758 = vsub.s32 3, %v4757
    %v4759 = vrot.slane %v4742, %v4758
    %v4764 = vadd.f32 %v4667, %v4747
    %v4765 = vadd.f32 %v4669, %v4751
    %v4766 = vadd.f32 %v4738, %v4755
    %v4767 = vadd.f32 %v4740, %v4759
    %v4768 = vxor.u32 %v4764, 2147483648
    %v4769 = vxor.u32 %v4765, 2147483648
    %v4770 = vxor.u32 %v4766, 2147483648
    %v4771 = vmul.f32 %v4768, 1.442695
    %v4772 = vpow.pop %v4771
    %v4773 = vmul.f32 %v4769, 1.442695
    %v4774 = vpow.pop %v4773
    %v4775 = vmul.f32 %v4770, 1.442695
    %v4776 = vpow.pop %v4775
    %v4777 = vadd.f32 %v4772, 1.0
    %v4778 = vadd.f32 %v4774, 1.0
    %v4779 = vadd.f32 %v4776, 1.0
    %v4780 = vrcp.pop %v4777
    %v4781 = vmul.f32 1.0, %v4780
    %v4782 = vrcp.pop %v4778
    %v4783 = vmul.f32 1.0, %v4782
    %v4784 = vrcp.pop %v4779
    %v4785 = vmul.f32 1.0, %v4784
    %v4786 = vtanh.pop %v4767
    %v4787 = vmul.f32 %v4783, %v4084
    %v4788 = vmul.f32 %v4781, %v4786
    %v4789 = vadd.f32 %v4787, %v4788
    %v4790 = vtanh.pop %v4789
    %v4791 = vmul.f32 %v4785, %v4790
    %s4792 = scalar_lea.vmem [#allocation3], 40
    %4793 = vst [vmem:[%s4792] sm:$0xff] %v4791
    %v4794 = vld [vmem:[#allocation7] sm:$0xff]
    %v4795 = vld [vmem:[#allocation7 + $0x8] sm:$0xff]
    %v4796 = vld [vmem:[#allocation7 + $0x10] sm:$0xff]
    %v4797 = vld [vmem:[#allocation7 + $0x18] sm:$0xff]
    %v4798 = vld [vmem:[#allocation7 + $0x20] sm:$0xff]
    %v4799 = vld [vmem:[#allocation7 + $0x28] sm:$0xff]
    %v4800 = vld [vmem:[#allocation7 + $0x30] sm:$0xff]
    %v4801 = vld [vmem:[#allocation7 + $0x38] sm:$0xff]
    %v4802 = vld [vmem:[#allocation7 + $0x40] sm:$0xff]
    %v4803 = vld [vmem:[#allocation7 + $0x48] sm:$0xff]
    %v4804 = vld [vmem:[#allocation7 + $0x50] sm:$0xff]
    %v4805 = vld [vmem:[#allocation7 + $0x58] sm:$0xff]
    %v4806 = vld [vmem:[#allocation7 + $0x60] sm:$0xff]
    %v4807 = vld [vmem:[#allocation7 + $0x68] sm:$0xff]
    %v4808 = vld [vmem:[#allocation7 + $0x70] sm:$0xff]
    %v4809 = vld [vmem:[#allocation7 + $0x78] sm:$0xff]
    %v4810 = vld [vmem:[#allocation7 + $0x80] sm:$0xff]
    %v4811 = vld [vmem:[#allocation7 + $0x88] sm:$0xff]
    %v4812 = vld [vmem:[#allocation7 + $0x90] sm:$0xff]
    %v4813 = vld [vmem:[#allocation7 + $0x98] sm:$0xff]
    %v4814 = vld [vmem:[#allocation7 + $0xa0] sm:$0xff]
    %v4815 = vld [vmem:[#allocation7 + $0xa8] sm:$0xff]
    %v4816 = vld [vmem:[#allocation7 + $0xb0] sm:$0xff]
    %v4817 = vld [vmem:[#allocation7 + $0xb8] sm:$0xff]
    %v4818 = vld [vmem:[#allocation7 + $0xc0] sm:$0xff]
    %v4819 = vld [vmem:[#allocation7 + $0xc8] sm:$0xff]
    %v4820 = vld [vmem:[#allocation7 + $0xd0] sm:$0xff]
    %v4821 = vld [vmem:[#allocation7 + $0xd8] sm:$0xff]
    %v4822 = vld [vmem:[#allocation7 + $0xe0] sm:$0xff]
    %v4823 = vld [vmem:[#allocation7 + $0xe8] sm:$0xff]
    %v4824 = vld [vmem:[#allocation7 + $0xf0] sm:$0xff]
    %v4825 = vld [vmem:[#allocation7 + $0xf8] sm:$0xff]
    %v4826 = vld [vmem:[#allocation7 + $0x100] sm:$0xff]
    %v4827 = vld [vmem:[#allocation7 + $0x108] sm:$0xff]
    %v4828 = vld [vmem:[#allocation7 + $0x110] sm:$0xff]
    %v4829 = vld [vmem:[#allocation7 + $0x118] sm:$0xff]
    %v4830 = vld [vmem:[#allocation7 + $0x120] sm:$0xff]
    %v4831 = vld [vmem:[#allocation7 + $0x128] sm:$0xff]
    %v4832 = vld [vmem:[#allocation7 + $0x130] sm:$0xff]
    %v4833 = vld [vmem:[#allocation7 + $0x138] sm:$0xff]
    %v4834 = vld [vmem:[#allocation7 + $0x140] sm:$0xff]
    %v4835 = vld [vmem:[#allocation7 + $0x148] sm:$0xff]
    %v4836 = vld [vmem:[#allocation7 + $0x150] sm:$0xff]
    %v4837 = vld [vmem:[#allocation7 + $0x158] sm:$0xff]
    %v4838 = vld [vmem:[#allocation7 + $0x160] sm:$0xff]
    %v4839 = vld [vmem:[#allocation7 + $0x168] sm:$0xff]
    %v4840 = vld [vmem:[#allocation7 + $0x170] sm:$0xff]
    %v4841 = vld [vmem:[#allocation7 + $0x178] sm:$0xff]
    %v4842 = vld [vmem:[#allocation7 + $0x180] sm:$0xff]
    %v4843 = vld [vmem:[#allocation7 + $0x188] sm:$0xff]
    %v4844 = vld [vmem:[#allocation7 + $0x190] sm:$0xff]
    %v4845 = vld [vmem:[#allocation7 + $0x198] sm:$0xff]
    %v4846 = vld [vmem:[#allocation7 + $0x1a0] sm:$0xff]
    %v4847 = vld [vmem:[#allocation7 + $0x1a8] sm:$0xff]
    %v4848 = vld [vmem:[#allocation7 + $0x1b0] sm:$0xff]
    %v4849 = vld [vmem:[#allocation7 + $0x1b8] sm:$0xff]
    %v4850 = vld [vmem:[#allocation7 + $0x1c0] sm:$0xff]
    %v4851 = vld [vmem:[#allocation7 + $0x1c8] sm:$0xff]
    %v4852 = vld [vmem:[#allocation7 + $0x1d0] sm:$0xff]
    %v4853 = vld [vmem:[#allocation7 + $0x1d8] sm:$0xff]
    %v4854 = vld [vmem:[#allocation7 + $0x1e0] sm:$0xff]
    %v4855 = vld [vmem:[#allocation7 + $0x1e8] sm:$0xff]
    %v4856 = vld [vmem:[#allocation7 + $0x1f0] sm:$0xff]
    %v4857 = vld [vmem:[#allocation7 + $0x1f8] sm:$0xff]
    %4858 = vmatprep.subr.mxu0 %v4795
    %4859 = vmatpush1.msra.mxu0 %v4794
    %4860 = vmatprep.subr.mxu0 %v4799
    %4861 = vmatpush1.msra.mxu0 %v4798
    %4862 = vmatprep.subr.mxu0 %v4803
    %4863 = vmatpush1.msra.mxu0 %v4802
    %4864 = vmatprep.subr.mxu0 %v4807
    %4865 = vmatpush1.msra.mxu0 %v4806
    %4866 = vmatprep.subr.mxu0 %v4811
    %4867 = vmatpush1.msra.mxu0 %v4810
    %4868 = vmatprep.subr.mxu0 %v4815
    %4869 = vmatpush1.msra.mxu0 %v4814
    %4870 = vmatprep.subr.mxu0 %v4819
    %4871 = vmatpush1.msra.mxu0 %v4818
    %4872 = vmatprep.subr.mxu0 %v4823
    %4873 = vmatpush1.msra.mxu0 %v4822
    %4874 = vmatprep.subr.mxu0 %v4827
    %4875 = vmatpush1.msra.mxu0 %v4826
    %4876 = vmatprep.subr.mxu0 %v4831
    %4877 = vmatpush1.msra.mxu0 %v4830
    %4878 = vmatprep.subr.mxu0 %v4835
    %4879 = vmatpush1.msra.mxu0 %v4834
    %4880 = vmatprep.subr.mxu0 %v4839
    %4881 = vmatpush1.msra.mxu0 %v4838
    %4882 = vmatprep.subr.mxu0 %v4843
    %4883 = vmatpush1.msra.mxu0 %v4842
    %4884 = vmatprep.subr.mxu0 %v4847
    %4885 = vmatpush1.msra.mxu0 %v4846
    %4886 = vmatprep.subr.mxu0 %v4851
    %4887 = vmatpush1.msra.mxu0 %v4850
    %4888 = vmatprep.subr.mxu0 %v4855
    %4889 = vmatpush1.msra.mxu0 %v4854
    %4890 = vmatprep.subr.mxu0 0.0
    %4891 = vmatpush1.msra.mxu0 0.0
    %4892 = vmatprep.subr.mxu0 0.0
    %4893 = vmatpush1.msra.mxu0 0.0
    %4894 = vmatprep.subr.mxu0 0.0
    %4895 = vmatpush1.msra.mxu0 0.0
    %4896 = vmatprep.subr.mxu0 0.0
    %4897 = vmatpush1.msra.mxu0 0.0
    %4898 = vmatprep.subr.mxu0 0.0
    %4899 = vmatpush1.msra.mxu0 0.0
    %4900 = vmatprep.subr.mxu0 0.0
    %4901 = vmatpush1.msra.mxu0 0.0
    %4902 = vmatprep.subr.mxu0 0.0
    %4903 = vmatpush1.msra.mxu0 0.0
    %4904 = vmatprep.subr.mxu0 0.0
    %4905 = vmatpush1.msra.mxu0 0.0
    %4906 = vmatprep.subr.mxu0 0.0
    %4907 = vmatpush1.msra.mxu0 0.0
    %4908 = vmatprep.subr.mxu0 0.0
    %4909 = vmatpush1.msra.mxu0 0.0
    %4910 = vmatprep.subr.mxu0 0.0
    %4911 = vmatpush1.msra.mxu0 0.0
    %4912 = vmatprep.subr.mxu0 0.0
    %4913 = vmatpush1.msra.mxu0 0.0
    %4914 = vmatprep.subr.mxu0 0.0
    %4915 = vmatpush1.msra.mxu0 0.0
    %4916 = vmatprep.subr.mxu0 0.0
    %4917 = vmatpush1.msra.mxu0 0.0
    %4918 = vmatprep.subr.mxu0 0.0
    %4919 = vmatpush1.msra.mxu0 0.0
    %4920 = vmatprep.subr.mxu0 0.0
    %4921 = vmatpush1.msra.mxu0 0.0
    %4922 = vmatprep.mubr.f32.mxu0 0.0
    %4923 = vmatmul.mubr.f32.gmra.mrb[0].mxu0 %v4329
    %v4924 = vpop.f32.mrb[0].mxu0
    %v4925 = vadd.f32 0.0, %v4924
    %v4926 = vpop.f32.mrb[0].mxu0
    %v4927 = vadd.f32 0.0, %v4926
    %4928 = vdwg.mxu0
    %4929 = vmatprep.subr.mxu0 %v4797
    %4930 = vmatpush1.msra.mxu0 %v4796
    %4931 = vmatprep.subr.mxu0 %v4801
    %4932 = vmatpush1.msra.mxu0 %v4800
    %4933 = vmatprep.subr.mxu0 %v4805
    %4934 = vmatpush1.msra.mxu0 %v4804
    %4935 = vmatprep.subr.mxu0 %v4809
    %4936 = vmatpush1.msra.mxu0 %v4808
    %4937 = vmatprep.subr.mxu0 %v4813
    %4938 = vmatpush1.msra.mxu0 %v4812
    %4939 = vmatprep.subr.mxu0 %v4817
    %4940 = vmatpush1.msra.mxu0 %v4816
    %4941 = vmatprep.subr.mxu0 %v4821
    %4942 = vmatpush1.msra.mxu0 %v4820
    %4943 = vmatprep.subr.mxu0 %v4825
    %4944 = vmatpush1.msra.mxu0 %v4824
    %4945 = vmatprep.subr.mxu0 %v4829
    %4946 = vmatpush1.msra.mxu0 %v4828
    %4947 = vmatprep.subr.mxu0 %v4833
    %4948 = vmatpush1.msra.mxu0 %v4832
    %4949 = vmatprep.subr.mxu0 %v4837
    %4950 = vmatpush1.msra.mxu0 %v4836
    %4951 = vmatprep.subr.mxu0 %v4841
    %4952 = vmatpush1.msra.mxu0 %v4840
    %4953 = vmatprep.subr.mxu0 %v4845
    %4954 = vmatpush1.msra.mxu0 %v4844
    %4955 = vmatprep.subr.mxu0 %v4849
    %4956 = vmatpush1.msra.mxu0 %v4848
    %4957 = vmatprep.subr.mxu0 %v4853
    %4958 = vmatpush1.msra.mxu0 %v4852
    %4959 = vmatprep.subr.mxu0 %v4857
    %4960 = vmatpush1.msra.mxu0 %v4856
    %4961 = vmatprep.subr.mxu0 0.0
    %4962 = vmatpush1.msra.mxu0 0.0
    %4963 = vmatprep.subr.mxu0 0.0
    %4964 = vmatpush1.msra.mxu0 0.0
    %4965 = vmatprep.subr.mxu0 0.0
    %4966 = vmatpush1.msra.mxu0 0.0
    %4967 = vmatprep.subr.mxu0 0.0
    %4968 = vmatpush1.msra.mxu0 0.0
    %4969 = vmatprep.subr.mxu0 0.0
    %4970 = vmatpush1.msra.mxu0 0.0
    %4971 = vmatprep.subr.mxu0 0.0
    %4972 = vmatpush1.msra.mxu0 0.0
    %4973 = vmatprep.subr.mxu0 0.0
    %4974 = vmatpush1.msra.mxu0 0.0
    %4975 = vmatprep.subr.mxu0 0.0
    %4976 = vmatpush1.msra.mxu0 0.0
    %4977 = vmatprep.subr.mxu0 0.0
    %4978 = vmatpush1.msra.mxu0 0.0
    %4979 = vmatprep.subr.mxu0 0.0
    %4980 = vmatpush1.msra.mxu0 0.0
    %4981 = vmatprep.subr.mxu0 0.0
    %4982 = vmatpush1.msra.mxu0 0.0
    %4983 = vmatprep.subr.mxu0 0.0
    %4984 = vmatpush1.msra.mxu0 0.0
    %4985 = vmatprep.subr.mxu0 0.0
    %4986 = vmatpush1.msra.mxu0 0.0
    %4987 = vmatprep.subr.mxu0 0.0
    %4988 = vmatpush1.msra.mxu0 0.0
    %4989 = vmatprep.subr.mxu0 0.0
    %4990 = vmatpush1.msra.mxu0 0.0
    %4991 = vmatprep.subr.mxu0 0.0
    %4992 = vmatpush1.msra.mxu0 0.0
    %4993 = vmatprep.mubr.f32.mxu0 0.0
    %4994 = vmatmul.mubr.f32.gmra.mrb[0].mxu0 %v4329
    %v4995 = vpop.f32.mrb[0].mxu0
    %v4996 = vadd.f32 0.0, %v4995
    %v4997 = vpop.f32.mrb[0].mxu0
    %v4998 = vadd.f32 0.0, %v4997
    %4999 = vdwg.mxu0
    %s5000 = smul.u32 7, 4
    %s5001 = smul.addr %s5000, 8
    %s5002 = scalar_lea.vmem [#allocation2], %s5001
    %v5003 = vld [vmem:[%s5002] sm:$0xff]
    %v5004 = vld [vmem:[%s5002 + $0x8] sm:$0xff]
    %v5005 = vld [vmem:[%s5002 + $0x10] sm:$0xff]
    %v5006 = vld [vmem:[%s5002 + $0x18] sm:$0xff]
    %v5007 = vadd.f32 %v5003, %v4925
    %v5008 = vadd.f32 %v5004, %v4927
    %v5009 = vadd.f32 %v5005, %v4996
    %v5010 = vadd.f32 %v5006, %v4998
    %v5011 = vxor.u32 %v5007, 2147483648
    %v5012 = vxor.u32 %v5008, 2147483648
    %v5013 = vxor.u32 %v5009, 2147483648
    %v5014 = vmul.f32 %v5011, 1.442695
    %v5015 = vpow.pop %v5014
    %v5016 = vmul.f32 %v5012, 1.442695
    %v5017 = vpow.pop %v5016
    %v5018 = vmul.f32 %v5013, 1.442695
    %v5019 = vpow.pop %v5018
    %v5020 = vadd.f32 %v5015, 1.0
    %v5021 = vadd.f32 %v5017, 1.0
    %v5022 = vadd.f32 %v5019, 1.0
    %v5023 = vrcp.pop %v5020
    %v5024 = vmul.f32 1.0, %v5023
    %v5025 = vrcp.pop %v5021
    %v5026 = vmul.f32 1.0, %v5025
    %v5027 = vrcp.pop %v5022
    %v5028 = vmul.f32 1.0, %v5027
    %v5029 = vtanh.pop %v5010
    %v5030 = vmul.f32 %v5026, %v4327
    %v5031 = vmul.f32 %v5024, %v5029
    %v5032 = vadd.f32 %v5030, %v5031
    %v5033 = vtanh.pop %v5032
    %v5034 = vmul.f32 %v5028, %v5033
    %v5035 = vld [vmem:[%s804] sm:$0xff]
    %v5036 = vld [vmem:[%s804 + $0x8] sm:$0xff]
    %v5037 = vld [vmem:[%s804 + $0x10] sm:$0xff]
    %v5038 = vld [vmem:[%s804 + $0x18] sm:$0xff]
    %v5039 = vld [vmem:[%s804 + $0x20] sm:$0xff]
    %v5040 = vld [vmem:[%s804 + $0x28] sm:$0xff]
    %v5041 = vld [vmem:[%s804 + $0x30] sm:$0xff]
    %v5042 = vld [vmem:[%s804 + $0x38] sm:$0xff]
    %v5043 = vld [vmem:[%s804 + $0x40] sm:$0xff]
    %v5044 = vld [vmem:[%s804 + $0x48] sm:$0xff]
    %v5045 = vld [vmem:[%s804 + $0x50] sm:$0xff]
    %v5046 = vld [vmem:[%s804 + $0x58] sm:$0xff]
    %v5047 = vld [vmem:[%s804 + $0x60] sm:$0xff]
    %v5048 = vld [vmem:[%s804 + $0x68] sm:$0xff]
    %v5049 = vld [vmem:[%s804 + $0x70] sm:$0xff]
    %v5050 = vld [vmem:[%s804 + $0x78] sm:$0xff]
    %v5051 = vld [vmem:[%s804 + $0x80] sm:$0xff]
    %v5052 = vld [vmem:[%s804 + $0x88] sm:$0xff]
    %v5053 = vld [vmem:[%s804 + $0x90] sm:$0xff]
    %v5054 = vld [vmem:[%s804 + $0x98] sm:$0xff]
    %v5055 = vld [vmem:[%s804 + $0xa0] sm:$0xff]
    %v5056 = vld [vmem:[%s804 + $0xa8] sm:$0xff]
    %v5057 = vld [vmem:[%s804 + $0xb0] sm:$0xff]
    %v5058 = vld [vmem:[%s804 + $0xb8] sm:$0xff]
    %v5059 = vld [vmem:[%s804 + $0xc0] sm:$0xff]
    %v5060 = vld [vmem:[%s804 + $0xc8] sm:$0xff]
    %v5061 = vld [vmem:[%s804 + $0xd0] sm:$0xff]
    %v5062 = vld [vmem:[%s804 + $0xd8] sm:$0xff]
    %v5063 = vld [vmem:[%s804 + $0xe0] sm:$0xff]
    %v5064 = vld [vmem:[%s804 + $0xe8] sm:$0xff]
    %v5065 = vld [vmem:[%s804 + $0xf0] sm:$0xff]
    %v5066 = vld [vmem:[%s804 + $0xf8] sm:$0xff]
    %v5067 = vld [vmem:[%s804 + $0x100] sm:$0xff]
    %v5068 = vld [vmem:[%s804 + $0x108] sm:$0xff]
    %v5069 = vld [vmem:[%s804 + $0x110] sm:$0xff]
    %v5070 = vld [vmem:[%s804 + $0x118] sm:$0xff]
    %v5071 = vld [vmem:[%s804 + $0x120] sm:$0xff]
    %v5072 = vld [vmem:[%s804 + $0x128] sm:$0xff]
    %v5073 = vld [vmem:[%s804 + $0x130] sm:$0xff]
    %v5074 = vld [vmem:[%s804 + $0x138] sm:$0xff]
    %v5075 = vld [vmem:[%s804 + $0x140] sm:$0xff]
    %v5076 = vld [vmem:[%s804 + $0x148] sm:$0xff]
    %v5077 = vld [vmem:[%s804 + $0x150] sm:$0xff]
    %v5078 = vld [vmem:[%s804 + $0x158] sm:$0xff]
    %v5079 = vld [vmem:[%s804 + $0x160] sm:$0xff]
    %v5080 = vld [vmem:[%s804 + $0x168] sm:$0xff]
    %v5081 = vld [vmem:[%s804 + $0x170] sm:$0xff]
    %v5082 = vld [vmem:[%s804 + $0x178] sm:$0xff]
    %v5083 = vld [vmem:[%s804 + $0x180] sm:$0xff]
    %v5084 = vld [vmem:[%s804 + $0x188] sm:$0xff]
    %v5085 = vld [vmem:[%s804 + $0x190] sm:$0xff]
    %v5086 = vld [vmem:[%s804 + $0x198] sm:$0xff]
    %v5087 = vld [vmem:[%s804 + $0x1a0] sm:$0xff]
    %v5088 = vld [vmem:[%s804 + $0x1a8] sm:$0xff]
    %v5089 = vld [vmem:[%s804 + $0x1b0] sm:$0xff]
    %v5090 = vld [vmem:[%s804 + $0x1b8] sm:$0xff]
    %v5091 = vld [vmem:[%s804 + $0x1c0] sm:$0xff]
    %v5092 = vld [vmem:[%s804 + $0x1c8] sm:$0xff]
    %v5093 = vld [vmem:[%s804 + $0x1d0] sm:$0xff]
    %v5094 = vld [vmem:[%s804 + $0x1d8] sm:$0xff]
    %v5095 = vld [vmem:[%s804 + $0x1e0] sm:$0xff]
    %v5096 = vld [vmem:[%s804 + $0x1e8] sm:$0xff]
    %v5097 = vld [vmem:[%s804 + $0x1f0] sm:$0xff]
    %v5098 = vld [vmem:[%s804 + $0x1f8] sm:$0xff]
    %5099 = vmatprep.subr.mxu0 %v5036
    %5100 = vmatpush1.msra.mxu0 %v5035
    %5101 = vmatprep.subr.mxu0 %v5040
    %5102 = vmatpush1.msra.mxu0 %v5039
    %5103 = vmatprep.subr.mxu0 %v5044
    %5104 = vmatpush1.msra.mxu0 %v5043
    %5105 = vmatprep.subr.mxu0 %v5048
    %5106 = vmatpush1.msra.mxu0 %v5047
    %5107 = vmatprep.subr.mxu0 %v5052
    %5108 = vmatpush1.msra.mxu0 %v5051
    %5109 = vmatprep.subr.mxu0 %v5056
    %5110 = vmatpush1.msra.mxu0 %v5055
    %5111 = vmatprep.subr.mxu0 %v5060
    %5112 = vmatpush1.msra.mxu0 %v5059
    %5113 = vmatprep.subr.mxu0 %v5064
    %5114 = vmatpush1.msra.mxu0 %v5063
    %5115 = vmatprep.subr.mxu0 %v5068
    %5116 = vmatpush1.msra.mxu0 %v5067
    %5117 = vmatprep.subr.mxu0 %v5072
    %5118 = vmatpush1.msra.mxu0 %v5071
    %5119 = vmatprep.subr.mxu0 %v5076
    %5120 = vmatpush1.msra.mxu0 %v5075
    %5121 = vmatprep.subr.mxu0 %v5080
    %5122 = vmatpush1.msra.mxu0 %v5079
    %5123 = vmatprep.subr.mxu0 %v5084
    %5124 = vmatpush1.msra.mxu0 %v5083
    %5125 = vmatprep.subr.mxu0 %v5088
    %5126 = vmatpush1.msra.mxu0 %v5087
    %5127 = vmatprep.subr.mxu0 %v5092
    %5128 = vmatpush1.msra.mxu0 %v5091
    %5129 = vmatprep.subr.mxu0 %v5096
    %5130 = vmatpush1.msra.mxu0 %v5095
    %5131 = vmatprep.subr.mxu0 0.0
    %5132 = vmatpush1.msra.mxu0 0.0
    %5133 = vmatprep.subr.mxu0 0.0
    %5134 = vmatpush1.msra.mxu0 0.0
    %5135 = vmatprep.subr.mxu0 0.0
    %5136 = vmatpush1.msra.mxu0 0.0
    %5137 = vmatprep.subr.mxu0 0.0
    %5138 = vmatpush1.msra.mxu0 0.0
    %5139 = vmatprep.subr.mxu0 0.0
    %5140 = vmatpush1.msra.mxu0 0.0
    %5141 = vmatprep.subr.mxu0 0.0
    %5142 = vmatpush1.msra.mxu0 0.0
    %5143 = vmatprep.subr.mxu0 0.0
    %5144 = vmatpush1.msra.mxu0 0.0
    %5145 = vmatprep.subr.mxu0 0.0
    %5146 = vmatpush1.msra.mxu0 0.0
    %5147 = vmatprep.subr.mxu0 0.0
    %5148 = vmatpush1.msra.mxu0 0.0
    %5149 = vmatprep.subr.mxu0 0.0
    %5150 = vmatpush1.msra.mxu0 0.0
    %5151 = vmatprep.subr.mxu0 0.0
    %5152 = vmatpush1.msra.mxu0 0.0
    %5153 = vmatprep.subr.mxu0 0.0
    %5154 = vmatpush1.msra.mxu0 0.0
    %5155 = vmatprep.subr.mxu0 0.0
    %5156 = vmatpush1.msra.mxu0 0.0
    %5157 = vmatprep.subr.mxu0 0.0
    %5158 = vmatpush1.msra.mxu0 0.0
    %5159 = vmatprep.subr.mxu0 0.0
    %5160 = vmatpush1.msra.mxu0 0.0
    %5161 = vmatprep.subr.mxu0 0.0
    %5162 = vmatpush1.msra.mxu0 0.0
    %5163 = vmatprep.mubr.f32.mxu0 0.0
    %5164 = vmatmul.mubr.f32.gmra.mrb[0].mxu0 %v4791
    %v5165 = vpop.f32.mrb[0].mxu0
    %v5166 = vadd.f32 0.0, %v5165
    %v5167 = vpop.f32.mrb[0].mxu0
    %v5168 = vadd.f32 0.0, %v5167
    %5169 = vdwg.mxu0
    %5170 = vmatprep.subr.mxu0 %v5038
    %5171 = vmatpush1.msra.mxu0 %v5037
    %5172 = vmatprep.subr.mxu0 %v5042
    %5173 = vmatpush1.msra.mxu0 %v5041
    %5174 = vmatprep.subr.mxu0 %v5046
    %5175 = vmatpush1.msra.mxu0 %v5045
    %5176 = vmatprep.subr.mxu0 %v5050
    %5177 = vmatpush1.msra.mxu0 %v5049
    %5178 = vmatprep.subr.mxu0 %v5054
    %5179 = vmatpush1.msra.mxu0 %v5053
    %5180 = vmatprep.subr.mxu0 %v5058
    %5181 = vmatpush1.msra.mxu0 %v5057
    %5182 = vmatprep.subr.mxu0 %v5062
    %5183 = vmatpush1.msra.mxu0 %v5061
    %5184 = vmatprep.subr.mxu0 %v5066
    %5185 = vmatpush1.msra.mxu0 %v5065
    %5186 = vmatprep.subr.mxu0 %v5070
    %5187 = vmatpush1.msra.mxu0 %v5069
    %5188 = vmatprep.subr.mxu0 %v5074
    %5189 = vmatpush1.msra.mxu0 %v5073
    %5190 = vmatprep.subr.mxu0 %v5078
    %5191 = vmatpush1.msra.mxu0 %v5077
    %5192 = vmatprep.subr.mxu0 %v5082
    %5193 = vmatpush1.msra.mxu0 %v5081
    %5194 = vmatprep.subr.mxu0 %v5086
    %5195 = vmatpush1.msra.mxu0 %v5085
    %5196 = vmatprep.subr.mxu0 %v5090
    %5197 = vmatpush1.msra.mxu0 %v5089
    %5198 = vmatprep.subr.mxu0 %v5094
    %5199 = vmatpush1.msra.mxu0 %v5093
    %5200 = vmatprep.subr.mxu0 %v5098
    %5201 = vmatpush1.msra.mxu0 %v5097
    %5202 = vmatprep.subr.mxu0 0.0
    %5203 = vmatpush1.msra.mxu0 0.0
    %5204 = vmatprep.subr.mxu0 0.0
    %5205 = vmatpush1.msra.mxu0 0.0
    %5206 = vmatprep.subr.mxu0 0.0
    %5207 = vmatpush1.msra.mxu0 0.0
    %5208 = vmatprep.subr.mxu0 0.0
    %5209 = vmatpush1.msra.mxu0 0.0
    %5210 = vmatprep.subr.mxu0 0.0
    %5211 = vmatpush1.msra.mxu0 0.0
    %5212 = vmatprep.subr.mxu0 0.0
    %5213 = vmatpush1.msra.mxu0 0.0
    %5214 = vmatprep.subr.mxu0 0.0
    %5215 = vmatpush1.msra.mxu0 0.0
    %5216 = vmatprep.subr.mxu0 0.0
    %5217 = vmatpush1.msra.mxu0 0.0
    %5218 = vmatprep.subr.mxu0 0.0
    %5219 = vmatpush1.msra.mxu0 0.0
    %5220 = vmatprep.subr.mxu0 0.0
    %5221 = vmatpush1.msra.mxu0 0.0
    %5222 = vmatprep.subr.mxu0 0.0
    %5223 = vmatpush1.msra.mxu0 0.0
    %5224 = vmatprep.subr.mxu0 0.0
    %5225 = vmatpush1.msra.mxu0 0.0
    %5226 = vmatprep.subr.mxu0 0.0
    %5227 = vmatpush1.msra.mxu0 0.0
    %5228 = vmatprep.subr.mxu0 0.0
    %5229 = vmatpush1.msra.mxu0 0.0
    %5230 = vmatprep.subr.mxu0 0.0
    %5231 = vmatpush1.msra.mxu0 0.0
    %5232 = vmatprep.subr.mxu0 0.0
    %5233 = vmatpush1.msra.mxu0 0.0
    %5234 = vmatprep.mubr.f32.mxu0 0.0
    %5235 = vmatmul.mubr.f32.gmra.mrb[0].mxu0 %v4791
    %v5236 = vpop.f32.mrb[0].mxu0
    %v5237 = vadd.f32 0.0, %v5236
    %v5238 = vpop.f32.mrb[0].mxu0
    %v5239 = vadd.f32 0.0, %v5238
    %5240 = vdwg.mxu0
    %v5241 = vld [vmem:[#allocation4] sm:$0xff]
    %v5242 = vld [vmem:[#allocation4 + $0x8] sm:$0xff]
    %v5243 = vld [vmem:[#allocation4 + $0x10] sm:$0xff]
    %v5244 = vld [vmem:[#allocation4 + $0x18] sm:$0xff]
    %v5245 = vld [vmem:[#allocation4 + $0x20] sm:$0xff]
    %v5246 = vld [vmem:[#allocation4 + $0x28] sm:$0xff]
    %v5247 = vld [vmem:[#allocation4 + $0x30] sm:$0xff]
    %v5248 = vld [vmem:[#allocation4 + $0x38] sm:$0xff]
    %v5249 = vld [vmem:[#allocation4 + $0x40] sm:$0xff]
    %v5250 = vld [vmem:[#allocation4 + $0x48] sm:$0xff]
    %v5251 = vld [vmem:[#allocation4 + $0x50] sm:$0xff]
    %v5252 = vld [vmem:[#allocation4 + $0x58] sm:$0xff]
    %v5253 = vld [vmem:[#allocation4 + $0x60] sm:$0xff]
    %v5254 = vld [vmem:[#allocation4 + $0x68] sm:$0xff]
    %v5255 = vld [vmem:[#allocation4 + $0x70] sm:$0xff]
    %v5256 = vld [vmem:[#allocation4 + $0x78] sm:$0xff]
    %v5257 = vld [vmem:[#allocation4 + $0x80] sm:$0xff]
    %v5258 = vld [vmem:[#allocation4 + $0x88] sm:$0xff]
    %v5259 = vld [vmem:[#allocation4 + $0x90] sm:$0xff]
    %v5260 = vld [vmem:[#allocation4 + $0x98] sm:$0xff]
    %v5261 = vld [vmem:[#allocation4 + $0xa0] sm:$0xff]
    %v5262 = vld [vmem:[#allocation4 + $0xa8] sm:$0xff]
    %v5263 = vld [vmem:[#allocation4 + $0xb0] sm:$0xff]
    %v5264 = vld [vmem:[#allocation4 + $0xb8] sm:$0xff]
    %v5265 = vld [vmem:[#allocation4 + $0xc0] sm:$0xff]
    %v5266 = vld [vmem:[#allocation4 + $0xc8] sm:$0xff]
    %v5267 = vld [vmem:[#allocation4 + $0xd0] sm:$0xff]
    %v5268 = vld [vmem:[#allocation4 + $0xd8] sm:$0xff]
    %v5269 = vld [vmem:[#allocation4 + $0xe0] sm:$0xff]
    %v5270 = vld [vmem:[#allocation4 + $0xe8] sm:$0xff]
    %v5271 = vld [vmem:[#allocation4 + $0xf0] sm:$0xff]
    %v5272 = vld [vmem:[#allocation4 + $0xf8] sm:$0xff]
    %v5273 = vld [vmem:[#allocation4 + $0x100] sm:$0xff]
    %v5274 = vld [vmem:[#allocation4 + $0x108] sm:$0xff]
    %v5275 = vld [vmem:[#allocation4 + $0x110] sm:$0xff]
    %v5276 = vld [vmem:[#allocation4 + $0x118] sm:$0xff]
    %v5277 = vld [vmem:[#allocation4 + $0x120] sm:$0xff]
    %v5278 = vld [vmem:[#allocation4 + $0x128] sm:$0xff]
    %v5279 = vld [vmem:[#allocation4 + $0x130] sm:$0xff]
    %v5280 = vld [vmem:[#allocation4 + $0x138] sm:$0xff]
    %v5281 = vld [vmem:[#allocation4 + $0x140] sm:$0xff]
    %v5282 = vld [vmem:[#allocation4 + $0x148] sm:$0xff]
    %v5283 = vld [vmem:[#allocation4 + $0x150] sm:$0xff]
    %v5284 = vld [vmem:[#allocation4 + $0x158] sm:$0xff]
    %v5285 = vld [vmem:[#allocation4 + $0x160] sm:$0xff]
    %v5286 = vld [vmem:[#allocation4 + $0x168] sm:$0xff]
    %v5287 = vld [vmem:[#allocation4 + $0x170] sm:$0xff]
    %v5288 = vld [vmem:[#allocation4 + $0x178] sm:$0xff]
    %v5289 = vld [vmem:[#allocation4 + $0x180] sm:$0xff]
    %v5290 = vld [vmem:[#allocation4 + $0x188] sm:$0xff]
    %v5291 = vld [vmem:[#allocation4 + $0x190] sm:$0xff]
    %v5292 = vld [vmem:[#allocation4 + $0x198] sm:$0xff]
    %v5293 = vld [vmem:[#allocation4 + $0x1a0] sm:$0xff]
    %v5294 = vld [vmem:[#allocation4 + $0x1a8] sm:$0xff]
    %v5295 = vld [vmem:[#allocation4 + $0x1b0] sm:$0xff]
    %v5296 = vld [vmem:[#allocation4 + $0x1b8] sm:$0xff]
    %v5297 = vld [vmem:[#allocation4 + $0x1c0] sm:$0xff]
    %v5298 = vld [vmem:[#allocation4 + $0x1c8] sm:$0xff]
    %v5299 = vld [vmem:[#allocation4 + $0x1d0] sm:$0xff]
    %v5300 = vld [vmem:[#allocation4 + $0x1d8] sm:$0xff]
    %v5301 = vld [vmem:[#allocation4 + $0x1e0] sm:$0xff]
    %v5302 = vld [vmem:[#allocation4 + $0x1e8] sm:$0xff]
    %v5303 = vld [vmem:[#allocation4 + $0x1f0] sm:$0xff]
    %v5304 = vld [vmem:[#allocation4 + $0x1f8] sm:$0xff]
    %5305 = vmatprep.subr.mxu0 %v5242
    %5306 = vmatpush1.msra.mxu0 %v5241
    %5307 = vmatprep.subr.mxu0 %v5246
    %5308 = vmatpush1.msra.mxu0 %v5245
    %5309 = vmatprep.subr.mxu0 %v5250
    %5310 = vmatpush1.msra.mxu0 %v5249
    %5311 = vmatprep.subr.mxu0 %v5254
    %5312 = vmatpush1.msra.mxu0 %v5253
    %5313 = vmatprep.subr.mxu0 %v5258
    %5314 = vmatpush1.msra.mxu0 %v5257
    %5315 = vmatprep.subr.mxu0 %v5262
    %5316 = vmatpush1.msra.mxu0 %v5261
    %5317 = vmatprep.subr.mxu0 %v5266
    %5318 = vmatpush1.msra.mxu0 %v5265
    %5319 = vmatprep.subr.mxu0 %v5270
    %5320 = vmatpush1.msra.mxu0 %v5269
    %5321 = vmatprep.subr.mxu0 %v5274
    %5322 = vmatpush1.msra.mxu0 %v5273
    %5323 = vmatprep.subr.mxu0 %v5278
    %5324 = vmatpush1.msra.mxu0 %v5277
    %5325 = vmatprep.subr.mxu0 %v5282
    %5326 = vmatpush1.msra.mxu0 %v5281
    %5327 = vmatprep.subr.mxu0 %v5286
    %5328 = vmatpush1.msra.mxu0 %v5285
    %5329 = vmatprep.subr.mxu0 %v5290
    %5330 = vmatpush1.msra.mxu0 %v5289
    %5331 = vmatprep.subr.mxu0 %v5294
    %5332 = vmatpush1.msra.mxu0 %v5293
    %5333 = vmatprep.subr.mxu0 %v5298
    %5334 = vmatpush1.msra.mxu0 %v5297
    %5335 = vmatprep.subr.mxu0 %v5302
    %5336 = vmatpush1.msra.mxu0 %v5301
    %5337 = vmatprep.subr.mxu0 0.0
    %5338 = vmatpush1.msra.mxu0 0.0
    %5339 = vmatprep.subr.mxu0 0.0
    %5340 = vmatpush1.msra.mxu0 0.0
    %5341 = vmatprep.subr.mxu0 0.0
    %5342 = vmatpush1.msra.mxu0 0.0
    %5343 = vmatprep.subr.mxu0 0.0
    %5344 = vmatpush1.msra.mxu0 0.0
    %5345 = vmatprep.subr.mxu0 0.0
    %5346 = vmatpush1.msra.mxu0 0.0
    %5347 = vmatprep.subr.mxu0 0.0
    %5348 = vmatpush1.msra.mxu0 0.0
    %5349 = vmatprep.subr.mxu0 0.0
    %5350 = vmatpush1.msra.mxu0 0.0
    %5351 = vmatprep.subr.mxu0 0.0
    %5352 = vmatpush1.msra.mxu0 0.0
    %5353 = vmatprep.subr.mxu0 0.0
    %5354 = vmatpush1.msra.mxu0 0.0
    %5355 = vmatprep.subr.mxu0 0.0
    %5356 = vmatpush1.msra.mxu0 0.0
    %5357 = vmatprep.subr.mxu0 0.0
    %5358 = vmatpush1.msra.mxu0 0.0
    %5359 = vmatprep.subr.mxu0 0.0
    %5360 = vmatpush1.msra.mxu0 0.0
    %5361 = vmatprep.subr.mxu0 0.0
    %5362 = vmatpush1.msra.mxu0 0.0
    %5363 = vmatprep.subr.mxu0 0.0
    %5364 = vmatpush1.msra.mxu0 0.0
    %5365 = vmatprep.subr.mxu0 0.0
    %5366 = vmatpush1.msra.mxu0 0.0
    %5367 = vmatprep.subr.mxu0 0.0
    %5368 = vmatpush1.msra.mxu0 0.0
    %5369 = vmatprep.mubr.f32.mxu0 0.0
    %5370 = vmatmul.mubr.f32.gmra.mrb[0].mxu0 %v4329
    %v5371 = vpop.f32.mrb[0].mxu0
    %v5372 = vadd.f32 %v5166, %v5371
    %v5373 = vpop.f32.mrb[0].mxu0
    %v5374 = vadd.f32 %v5168, %v5373
    %5375 = vdwg.mxu0
    %5376 = vmatprep.subr.mxu0 %v5244
    %5377 = vmatpush1.msra.mxu0 %v5243
    %5378 = vmatprep.subr.mxu0 %v5248
    %5379 = vmatpush1.msra.mxu0 %v5247
    %5380 = vmatprep.subr.mxu0 %v5252
    %5381 = vmatpush1.msra.mxu0 %v5251
    %5382 = vmatprep.subr.mxu0 %v5256
    %5383 = vmatpush1.msra.mxu0 %v5255
    %5384 = vmatprep.subr.mxu0 %v5260
    %5385 = vmatpush1.msra.mxu0 %v5259
    %5386 = vmatprep.subr.mxu0 %v5264
    %5387 = vmatpush1.msra.mxu0 %v5263
    %5388 = vmatprep.subr.mxu0 %v5268
    %5389 = vmatpush1.msra.mxu0 %v5267
    %5390 = vmatprep.subr.mxu0 %v5272
    %5391 = vmatpush1.msra.mxu0 %v5271
    %5392 = vmatprep.subr.mxu0 %v5276
    %5393 = vmatpush1.msra.mxu0 %v5275
    %5394 = vmatprep.subr.mxu0 %v5280
    %5395 = vmatpush1.msra.mxu0 %v5279
    %5396 = vmatprep.subr.mxu0 %v5284
    %5397 = vmatpush1.msra.mxu0 %v5283
    %5398 = vmatprep.subr.mxu0 %v5288
    %5399 = vmatpush1.msra.mxu0 %v5287
    %5400 = vmatprep.subr.mxu0 %v5292
    %5401 = vmatpush1.msra.mxu0 %v5291
    %5402 = vmatprep.subr.mxu0 %v5296
    %5403 = vmatpush1.msra.mxu0 %v5295
    %5404 = vmatprep.subr.mxu0 %v5300
    %5405 = vmatpush1.msra.mxu0 %v5299
    %5406 = vmatprep.subr.mxu0 %v5304
    %5407 = vmatpush1.msra.mxu0 %v5303
    %5408 = vmatprep.subr.mxu0 0.0
    %5409 = vmatpush1.msra.mxu0 0.0
    %5410 = vmatprep.subr.mxu0 0.0
    %5411 = vmatpush1.msra.mxu0 0.0
    %5412 = vmatprep.subr.mxu0 0.0
    %5413 = vmatpush1.msra.mxu0 0.0
    %5414 = vmatprep.subr.mxu0 0.0
    %5415 = vmatpush1.msra.mxu0 0.0
    %5416 = vmatprep.subr.mxu0 0.0
    %5417 = vmatpush1.msra.mxu0 0.0
    %5418 = vmatprep.subr.mxu0 0.0
    %5419 = vmatpush1.msra.mxu0 0.0
    %5420 = vmatprep.subr.mxu0 0.0
    %5421 = vmatpush1.msra.mxu0 0.0
    %5422 = vmatprep.subr.mxu0 0.0
    %5423 = vmatpush1.msra.mxu0 0.0
    %5424 = vmatprep.subr.mxu0 0.0
    %5425 = vmatpush1.msra.mxu0 0.0
    %5426 = vmatprep.subr.mxu0 0.0
    %5427 = vmatpush1.msra.mxu0 0.0
    %5428 = vmatprep.subr.mxu0 0.0
    %5429 = vmatpush1.msra.mxu0 0.0
    %5430 = vmatprep.subr.mxu0 0.0
    %5431 = vmatpush1.msra.mxu0 0.0
    %5432 = vmatprep.subr.mxu0 0.0
    %5433 = vmatpush1.msra.mxu0 0.0
    %5434 = vmatprep.subr.mxu0 0.0
    %5435 = vmatpush1.msra.mxu0 0.0
    %5436 = vmatprep.subr.mxu0 0.0
    %5437 = vmatpush1.msra.mxu0 0.0
    %5438 = vmatprep.subr.mxu0 0.0
    %5439 = vmatpush1.msra.mxu0 0.0
    %5440 = vmatprep.mubr.f32.mxu0 0.0
    %5441 = vmatmul.mubr.f32.gmra.mrb[0].mxu0 %v4329
    %v5442 = vpop.f32.mrb[0].mxu0
    %v5443 = vadd.f32 %v5237, %v5442
    %v5444 = vpop.f32.mrb[0].mxu0
    %v5445 = vadd.f32 %v5239, %v5444
    %5446 = vdwg.mxu0
    %v5447 = vld [vmem:[%s1217] sm:$0xf]
    %v5449 = vlaneseq
    %v5450 = vshrl.u32 %v5449, 7
    %v5451 = vsub.s32 0, %v5450
    %v5452 = vrot.slane %v5447, %v5451
    %v5453 = vlaneseq
    %v5454 = vshrl.u32 %v5453, 7
    %v5455 = vsub.s32 1, %v5454
    %v5456 = vrot.slane %v5447, %v5455
    %v5457 = vlaneseq
    %v5458 = vshrl.u32 %v5457, 7
    %v5459 = vsub.s32 2, %v5458
    %v5460 = vrot.slane %v5447, %v5459
    %v5461 = vlaneseq
    %v5462 = vshrl.u32 %v5461, 7
    %v5463 = vsub.s32 3, %v5462
    %v5464 = vrot.slane %v5447, %v5463
    %v5469 = vadd.f32 %v5372, %v5452
    %v5470 = vadd.f32 %v5374, %v5456
    %v5471 = vadd.f32 %v5443, %v5460
    %v5472 = vadd.f32 %v5445, %v5464
    %v5473 = vxor.u32 %v5469, 2147483648
    %v5474 = vxor.u32 %v5470, 2147483648
    %v5475 = vxor.u32 %v5471, 2147483648
    %v5476 = vmul.f32 %v5473, 1.442695
    %v5477 = vpow.pop %v5476
    %v5478 = vmul.f32 %v5474, 1.442695
    %v5479 = vpow.pop %v5478
    %v5480 = vmul.f32 %v5475, 1.442695
    %v5481 = vpow.pop %v5480
    %v5482 = vadd.f32 %v5477, 1.0
    %v5483 = vadd.f32 %v5479, 1.0
    %v5484 = vadd.f32 %v5481, 1.0
    %v5485 = vrcp.pop %v5482
    %v5486 = vmul.f32 1.0, %v5485
    %v5487 = vrcp.pop %v5483
    %v5488 = vmul.f32 1.0, %v5487
    %v5489 = vrcp.pop %v5484
    %v5490 = vmul.f32 1.0, %v5489
    %v5491 = vtanh.pop %v5472
    %v5492 = vmul.f32 %v5488, %v4789
    %v5493 = vmul.f32 %v5486, %v5491
    %v5494 = vadd.f32 %v5492, %v5493
    %v5495 = vtanh.pop %v5494
    %v5496 = vmul.f32 %v5490, %v5495
    %s5497 = scalar_lea.vmem [#allocation3], 48
    %5498 = vst [vmem:[%s5497] sm:$0xff] %v5496
    %v5499 = vld [vmem:[%s804] sm:$0xff]
    %v5500 = vld [vmem:[%s804 + $0x8] sm:$0xff]
    %v5501 = vld [vmem:[%s804 + $0x10] sm:$0xff]
    %v5502 = vld [vmem:[%s804 + $0x18] sm:$0xff]
    %v5503 = vld [vmem:[%s804 + $0x20] sm:$0xff]
    %v5504 = vld [vmem:[%s804 + $0x28] sm:$0xff]
    %v5505 = vld [vmem:[%s804 + $0x30] sm:$0xff]
    %v5506 = vld [vmem:[%s804 + $0x38] sm:$0xff]
    %v5507 = vld [vmem:[%s804 + $0x40] sm:$0xff]
    %v5508 = vld [vmem:[%s804 + $0x48] sm:$0xff]
    %v5509 = vld [vmem:[%s804 + $0x50] sm:$0xff]
    %v5510 = vld [vmem:[%s804 + $0x58] sm:$0xff]
    %v5511 = vld [vmem:[%s804 + $0x60] sm:$0xff]
    %v5512 = vld [vmem:[%s804 + $0x68] sm:$0xff]
    %v5513 = vld [vmem:[%s804 + $0x70] sm:$0xff]
    %v5514 = vld [vmem:[%s804 + $0x78] sm:$0xff]
    %v5515 = vld [vmem:[%s804 + $0x80] sm:$0xff]
    %v5516 = vld [vmem:[%s804 + $0x88] sm:$0xff]
    %v5517 = vld [vmem:[%s804 + $0x90] sm:$0xff]
    %v5518 = vld [vmem:[%s804 + $0x98] sm:$0xff]
    %v5519 = vld [vmem:[%s804 + $0xa0] sm:$0xff]
    %v5520 = vld [vmem:[%s804 + $0xa8] sm:$0xff]
    %v5521 = vld [vmem:[%s804 + $0xb0] sm:$0xff]
    %v5522 = vld [vmem:[%s804 + $0xb8] sm:$0xff]
    %v5523 = vld [vmem:[%s804 + $0xc0] sm:$0xff]
    %v5524 = vld [vmem:[%s804 + $0xc8] sm:$0xff]
    %v5525 = vld [vmem:[%s804 + $0xd0] sm:$0xff]
    %v5526 = vld [vmem:[%s804 + $0xd8] sm:$0xff]
    %v5527 = vld [vmem:[%s804 + $0xe0] sm:$0xff]
    %v5528 = vld [vmem:[%s804 + $0xe8] sm:$0xff]
    %v5529 = vld [vmem:[%s804 + $0xf0] sm:$0xff]
    %v5530 = vld [vmem:[%s804 + $0xf8] sm:$0xff]
    %v5531 = vld [vmem:[%s804 + $0x100] sm:$0xff]
    %v5532 = vld [vmem:[%s804 + $0x108] sm:$0xff]
    %v5533 = vld [vmem:[%s804 + $0x110] sm:$0xff]
    %v5534 = vld [vmem:[%s804 + $0x118] sm:$0xff]
    %v5535 = vld [vmem:[%s804 + $0x120] sm:$0xff]
    %v5536 = vld [vmem:[%s804 + $0x128] sm:$0xff]
    %v5537 = vld [vmem:[%s804 + $0x130] sm:$0xff]
    %v5538 = vld [vmem:[%s804 + $0x138] sm:$0xff]
    %v5539 = vld [vmem:[%s804 + $0x140] sm:$0xff]
    %v5540 = vld [vmem:[%s804 + $0x148] sm:$0xff]
    %v5541 = vld [vmem:[%s804 + $0x150] sm:$0xff]
    %v5542 = vld [vmem:[%s804 + $0x158] sm:$0xff]
    %v5543 = vld [vmem:[%s804 + $0x160] sm:$0xff]
    %v5544 = vld [vmem:[%s804 + $0x168] sm:$0xff]
    %v5545 = vld [vmem:[%s804 + $0x170] sm:$0xff]
    %v5546 = vld [vmem:[%s804 + $0x178] sm:$0xff]
    %v5547 = vld [vmem:[%s804 + $0x180] sm:$0xff]
    %v5548 = vld [vmem:[%s804 + $0x188] sm:$0xff]
    %v5549 = vld [vmem:[%s804 + $0x190] sm:$0xff]
    %v5550 = vld [vmem:[%s804 + $0x198] sm:$0xff]
    %v5551 = vld [vmem:[%s804 + $0x1a0] sm:$0xff]
    %v5552 = vld [vmem:[%s804 + $0x1a8] sm:$0xff]
    %v5553 = vld [vmem:[%s804 + $0x1b0] sm:$0xff]
    %v5554 = vld [vmem:[%s804 + $0x1b8] sm:$0xff]
    %v5555 = vld [vmem:[%s804 + $0x1c0] sm:$0xff]
    %v5556 = vld [vmem:[%s804 + $0x1c8] sm:$0xff]
    %v5557 = vld [vmem:[%s804 + $0x1d0] sm:$0xff]
    %v5558 = vld [vmem:[%s804 + $0x1d8] sm:$0xff]
    %v5559 = vld [vmem:[%s804 + $0x1e0] sm:$0xff]
    %v5560 = vld [vmem:[%s804 + $0x1e8] sm:$0xff]
    %v5561 = vld [vmem:[%s804 + $0x1f0] sm:$0xff]
    %v5562 = vld [vmem:[%s804 + $0x1f8] sm:$0xff]
    %5563 = vmatprep.subr.mxu0 %v5500
    %5564 = vmatpush1.msra.mxu0 %v5499
    %5565 = vmatprep.subr.mxu0 %v5504
    %5566 = vmatpush1.msra.mxu0 %v5503
    %5567 = vmatprep.subr.mxu0 %v5508
    %5568 = vmatpush1.msra.mxu0 %v5507
    %5569 = vmatprep.subr.mxu0 %v5512
    %5570 = vmatpush1.msra.mxu0 %v5511
    %5571 = vmatprep.subr.mxu0 %v5516
    %5572 = vmatpush1.msra.mxu0 %v5515
    %5573 = vmatprep.subr.mxu0 %v5520
    %5574 = vmatpush1.msra.mxu0 %v5519
    %5575 = vmatprep.subr.mxu0 %v5524
    %5576 = vmatpush1.msra.mxu0 %v5523
    %5577 = vmatprep.subr.mxu0 %v5528
    %5578 = vmatpush1.msra.mxu0 %v5527
    %5579 = vmatprep.subr.mxu0 %v5532
    %5580 = vmatpush1.msra.mxu0 %v5531
    %5581 = vmatprep.subr.mxu0 %v5536
    %5582 = vmatpush1.msra.mxu0 %v5535
    %5583 = vmatprep.subr.mxu0 %v5540
    %5584 = vmatpush1.msra.mxu0 %v5539
    %5585 = vmatprep.subr.mxu0 %v5544
    %5586 = vmatpush1.msra.mxu0 %v5543
    %5587 = vmatprep.subr.mxu0 %v5548
    %5588 = vmatpush1.msra.mxu0 %v5547
    %5589 = vmatprep.subr.mxu0 %v5552
    %5590 = vmatpush1.msra.mxu0 %v5551
    %5591 = vmatprep.subr.mxu0 %v5556
    %5592 = vmatpush1.msra.mxu0 %v5555
    %5593 = vmatprep.subr.mxu0 %v5560
    %5594 = vmatpush1.msra.mxu0 %v5559
    %5595 = vmatprep.subr.mxu0 0.0
    %5596 = vmatpush1.msra.mxu0 0.0
    %5597 = vmatprep.subr.mxu0 0.0
    %5598 = vmatpush1.msra.mxu0 0.0
    %5599 = vmatprep.subr.mxu0 0.0
    %5600 = vmatpush1.msra.mxu0 0.0
    %5601 = vmatprep.subr.mxu0 0.0
    %5602 = vmatpush1.msra.mxu0 0.0
    %5603 = vmatprep.subr.mxu0 0.0
    %5604 = vmatpush1.msra.mxu0 0.0
    %5605 = vmatprep.subr.mxu0 0.0
    %5606 = vmatpush1.msra.mxu0 0.0
    %5607 = vmatprep.subr.mxu0 0.0
    %5608 = vmatpush1.msra.mxu0 0.0
    %5609 = vmatprep.subr.mxu0 0.0
    %5610 = vmatpush1.msra.mxu0 0.0
    %5611 = vmatprep.subr.mxu0 0.0
    %5612 = vmatpush1.msra.mxu0 0.0
    %5613 = vmatprep.subr.mxu0 0.0
    %5614 = vmatpush1.msra.mxu0 0.0
    %5615 = vmatprep.subr.mxu0 0.0
    %5616 = vmatpush1.msra.mxu0 0.0
    %5617 = vmatprep.subr.mxu0 0.0
    %5618 = vmatpush1.msra.mxu0 0.0
    %5619 = vmatprep.subr.mxu0 0.0
    %5620 = vmatpush1.msra.mxu0 0.0
    %5621 = vmatprep.subr.mxu0 0.0
    %5622 = vmatpush1.msra.mxu0 0.0
    %5623 = vmatprep.subr.mxu0 0.0
    %5624 = vmatpush1.msra.mxu0 0.0
    %5625 = vmatprep.subr.mxu0 0.0
    %5626 = vmatpush1.msra.mxu0 0.0
    %5627 = vmatprep.mubr.f32.mxu0 0.0
    %5628 = vmatmul.mubr.f32.gmra.mrb[0].mxu0 %v5496
    %v5629 = vpop.f32.mrb[0].mxu0
    %v5630 = vadd.f32 0.0, %v5629
    %v5631 = vpop.f32.mrb[0].mxu0
    %v5632 = vadd.f32 0.0, %v5631
    %5633 = vdwg.mxu0
    %5634 = vmatprep.subr.mxu0 %v5502
    %5635 = vmatpush1.msra.mxu0 %v5501
    %5636 = vmatprep.subr.mxu0 %v5506
    %5637 = vmatpush1.msra.mxu0 %v5505
    %5638 = vmatprep.subr.mxu0 %v5510
    %5639 = vmatpush1.msra.mxu0 %v5509
    %5640 = vmatprep.subr.mxu0 %v5514
    %5641 = vmatpush1.msra.mxu0 %v5513
    %5642 = vmatprep.subr.mxu0 %v5518
    %5643 = vmatpush1.msra.mxu0 %v5517
    %5644 = vmatprep.subr.mxu0 %v5522
    %5645 = vmatpush1.msra.mxu0 %v5521
    %5646 = vmatprep.subr.mxu0 %v5526
    %5647 = vmatpush1.msra.mxu0 %v5525
    %5648 = vmatprep.subr.mxu0 %v5530
    %5649 = vmatpush1.msra.mxu0 %v5529
    %5650 = vmatprep.subr.mxu0 %v5534
    %5651 = vmatpush1.msra.mxu0 %v5533
    %5652 = vmatprep.subr.mxu0 %v5538
    %5653 = vmatpush1.msra.mxu0 %v5537
    %5654 = vmatprep.subr.mxu0 %v5542
    %5655 = vmatpush1.msra.mxu0 %v5541
    %5656 = vmatprep.subr.mxu0 %v5546
    %5657 = vmatpush1.msra.mxu0 %v5545
    %5658 = vmatprep.subr.mxu0 %v5550
    %5659 = vmatpush1.msra.mxu0 %v5549
    %5660 = vmatprep.subr.mxu0 %v5554
    %5661 = vmatpush1.msra.mxu0 %v5553
    %5662 = vmatprep.subr.mxu0 %v5558
    %5663 = vmatpush1.msra.mxu0 %v5557
    %5664 = vmatprep.subr.mxu0 %v5562
    %5665 = vmatpush1.msra.mxu0 %v5561
    %5666 = vmatprep.subr.mxu0 0.0
    %5667 = vmatpush1.msra.mxu0 0.0
    %5668 = vmatprep.subr.mxu0 0.0
    %5669 = vmatpush1.msra.mxu0 0.0
    %5670 = vmatprep.subr.mxu0 0.0
    %5671 = vmatpush1.msra.mxu0 0.0
    %5672 = vmatprep.subr.mxu0 0.0
    %5673 = vmatpush1.msra.mxu0 0.0
    %5674 = vmatprep.subr.mxu0 0.0
    %5675 = vmatpush1.msra.mxu0 0.0
    %5676 = vmatprep.subr.mxu0 0.0
    %5677 = vmatpush1.msra.mxu0 0.0
    %5678 = vmatprep.subr.mxu0 0.0
    %5679 = vmatpush1.msra.mxu0 0.0
    %5680 = vmatprep.subr.mxu0 0.0
    %5681 = vmatpush1.msra.mxu0 0.0
    %5682 = vmatprep.subr.mxu0 0.0
    %5683 = vmatpush1.msra.mxu0 0.0
    %5684 = vmatprep.subr.mxu0 0.0
    %5685 = vmatpush1.msra.mxu0 0.0
    %5686 = vmatprep.subr.mxu0 0.0
    %5687 = vmatpush1.msra.mxu0 0.0
    %5688 = vmatprep.subr.mxu0 0.0
    %5689 = vmatpush1.msra.mxu0 0.0
    %5690 = vmatprep.subr.mxu0 0.0
    %5691 = vmatpush1.msra.mxu0 0.0
    %5692 = vmatprep.subr.mxu0 0.0
    %5693 = vmatpush1.msra.mxu0 0.0
    %5694 = vmatprep.subr.mxu0 0.0
    %5695 = vmatpush1.msra.mxu0 0.0
    %5696 = vmatprep.subr.mxu0 0.0
    %5697 = vmatpush1.msra.mxu0 0.0
    %5698 = vmatprep.mubr.f32.mxu0 0.0
    %5699 = vmatmul.mubr.f32.gmra.mrb[0].mxu0 %v5496
    %v5700 = vpop.f32.mrb[0].mxu0
    %v5701 = vadd.f32 0.0, %v5700
    %v5702 = vpop.f32.mrb[0].mxu0
    %v5703 = vadd.f32 0.0, %v5702
    %5704 = vdwg.mxu0
    %v5705 = vld [vmem:[#allocation4] sm:$0xff]
    %v5706 = vld [vmem:[#allocation4 + $0x8] sm:$0xff]
    %v5707 = vld [vmem:[#allocation4 + $0x10] sm:$0xff]
    %v5708 = vld [vmem:[#allocation4 + $0x18] sm:$0xff]
    %v5709 = vld [vmem:[#allocation4 + $0x20] sm:$0xff]
    %v5710 = vld [vmem:[#allocation4 + $0x28] sm:$0xff]
    %v5711 = vld [vmem:[#allocation4 + $0x30] sm:$0xff]
    %v5712 = vld [vmem:[#allocation4 + $0x38] sm:$0xff]
    %v5713 = vld [vmem:[#allocation4 + $0x40] sm:$0xff]
    %v5714 = vld [vmem:[#allocation4 + $0x48] sm:$0xff]
    %v5715 = vld [vmem:[#allocation4 + $0x50] sm:$0xff]
    %v5716 = vld [vmem:[#allocation4 + $0x58] sm:$0xff]
    %v5717 = vld [vmem:[#allocation4 + $0x60] sm:$0xff]
    %v5718 = vld [vmem:[#allocation4 + $0x68] sm:$0xff]
    %v5719 = vld [vmem:[#allocation4 + $0x70] sm:$0xff]
    %v5720 = vld [vmem:[#allocation4 + $0x78] sm:$0xff]
    %v5721 = vld [vmem:[#allocation4 + $0x80] sm:$0xff]
    %v5722 = vld [vmem:[#allocation4 + $0x88] sm:$0xff]
    %v5723 = vld [vmem:[#allocation4 + $0x90] sm:$0xff]
    %v5724 = vld [vmem:[#allocation4 + $0x98] sm:$0xff]
    %v5725 = vld [vmem:[#allocation4 + $0xa0] sm:$0xff]
    %v5726 = vld [vmem:[#allocation4 + $0xa8] sm:$0xff]
    %v5727 = vld [vmem:[#allocation4 + $0xb0] sm:$0xff]
    %v5728 = vld [vmem:[#allocation4 + $0xb8] sm:$0xff]
    %v5729 = vld [vmem:[#allocation4 + $0xc0] sm:$0xff]
    %v5730 = vld [vmem:[#allocation4 + $0xc8] sm:$0xff]
    %v5731 = vld [vmem:[#allocation4 + $0xd0] sm:$0xff]
    %v5732 = vld [vmem:[#allocation4 + $0xd8] sm:$0xff]
    %v5733 = vld [vmem:[#allocation4 + $0xe0] sm:$0xff]
    %v5734 = vld [vmem:[#allocation4 + $0xe8] sm:$0xff]
    %v5735 = vld [vmem:[#allocation4 + $0xf0] sm:$0xff]
    %v5736 = vld [vmem:[#allocation4 + $0xf8] sm:$0xff]
    %v5737 = vld [vmem:[#allocation4 + $0x100] sm:$0xff]
    %v5738 = vld [vmem:[#allocation4 + $0x108] sm:$0xff]
    %v5739 = vld [vmem:[#allocation4 + $0x110] sm:$0xff]
    %v5740 = vld [vmem:[#allocation4 + $0x118] sm:$0xff]
    %v5741 = vld [vmem:[#allocation4 + $0x120] sm:$0xff]
    %v5742 = vld [vmem:[#allocation4 + $0x128] sm:$0xff]
    %v5743 = vld [vmem:[#allocation4 + $0x130] sm:$0xff]
    %v5744 = vld [vmem:[#allocation4 + $0x138] sm:$0xff]
    %v5745 = vld [vmem:[#allocation4 + $0x140] sm:$0xff]
    %v5746 = vld [vmem:[#allocation4 + $0x148] sm:$0xff]
    %v5747 = vld [vmem:[#allocation4 + $0x150] sm:$0xff]
    %v5748 = vld [vmem:[#allocation4 + $0x158] sm:$0xff]
    %v5749 = vld [vmem:[#allocation4 + $0x160] sm:$0xff]
    %v5750 = vld [vmem:[#allocation4 + $0x168] sm:$0xff]
    %v5751 = vld [vmem:[#allocation4 + $0x170] sm:$0xff]
    %v5752 = vld [vmem:[#allocation4 + $0x178] sm:$0xff]
    %v5753 = vld [vmem:[#allocation4 + $0x180] sm:$0xff]
    %v5754 = vld [vmem:[#allocation4 + $0x188] sm:$0xff]
    %v5755 = vld [vmem:[#allocation4 + $0x190] sm:$0xff]
    %v5756 = vld [vmem:[#allocation4 + $0x198] sm:$0xff]
    %v5757 = vld [vmem:[#allocation4 + $0x1a0] sm:$0xff]
    %v5758 = vld [vmem:[#allocation4 + $0x1a8] sm:$0xff]
    %v5759 = vld [vmem:[#allocation4 + $0x1b0] sm:$0xff]
    %v5760 = vld [vmem:[#allocation4 + $0x1b8] sm:$0xff]
    %v5761 = vld [vmem:[#allocation4 + $0x1c0] sm:$0xff]
    %v5762 = vld [vmem:[#allocation4 + $0x1c8] sm:$0xff]
    %v5763 = vld [vmem:[#allocation4 + $0x1d0] sm:$0xff]
    %v5764 = vld [vmem:[#allocation4 + $0x1d8] sm:$0xff]
    %v5765 = vld [vmem:[#allocation4 + $0x1e0] sm:$0xff]
    %v5766 = vld [vmem:[#allocation4 + $0x1e8] sm:$0xff]
    %v5767 = vld [vmem:[#allocation4 + $0x1f0] sm:$0xff]
    %v5768 = vld [vmem:[#allocation4 + $0x1f8] sm:$0xff]
    %5769 = vmatprep.subr.mxu0 %v5706
    %5770 = vmatpush1.msra.mxu0 %v5705
    %5771 = vmatprep.subr.mxu0 %v5710
    %5772 = vmatpush1.msra.mxu0 %v5709
    %5773 = vmatprep.subr.mxu0 %v5714
    %5774 = vmatpush1.msra.mxu0 %v5713
    %5775 = vmatprep.subr.mxu0 %v5718
    %5776 = vmatpush1.msra.mxu0 %v5717
    %5777 = vmatprep.subr.mxu0 %v5722
    %5778 = vmatpush1.msra.mxu0 %v5721
    %5779 = vmatprep.subr.mxu0 %v5726
    %5780 = vmatpush1.msra.mxu0 %v5725
    %5781 = vmatprep.subr.mxu0 %v5730
    %5782 = vmatpush1.msra.mxu0 %v5729
    %5783 = vmatprep.subr.mxu0 %v5734
    %5784 = vmatpush1.msra.mxu0 %v5733
    %5785 = vmatprep.subr.mxu0 %v5738
    %5786 = vmatpush1.msra.mxu0 %v5737
    %5787 = vmatprep.subr.mxu0 %v5742
    %5788 = vmatpush1.msra.mxu0 %v5741
    %5789 = vmatprep.subr.mxu0 %v5746
    %5790 = vmatpush1.msra.mxu0 %v5745
    %5791 = vmatprep.subr.mxu0 %v5750
    %5792 = vmatpush1.msra.mxu0 %v5749
    %5793 = vmatprep.subr.mxu0 %v5754
    %5794 = vmatpush1.msra.mxu0 %v5753
    %5795 = vmatprep.subr.mxu0 %v5758
    %5796 = vmatpush1.msra.mxu0 %v5757
    %5797 = vmatprep.subr.mxu0 %v5762
    %5798 = vmatpush1.msra.mxu0 %v5761
    %5799 = vmatprep.subr.mxu0 %v5766
    %5800 = vmatpush1.msra.mxu0 %v5765
    %5801 = vmatprep.subr.mxu0 0.0
    %5802 = vmatpush1.msra.mxu0 0.0
    %5803 = vmatprep.subr.mxu0 0.0
    %5804 = vmatpush1.msra.mxu0 0.0
    %5805 = vmatprep.subr.mxu0 0.0
    %5806 = vmatpush1.msra.mxu0 0.0
    %5807 = vmatprep.subr.mxu0 0.0
    %5808 = vmatpush1.msra.mxu0 0.0
    %5809 = vmatprep.subr.mxu0 0.0
    %5810 = vmatpush1.msra.mxu0 0.0
    %5811 = vmatprep.subr.mxu0 0.0
    %5812 = vmatpush1.msra.mxu0 0.0
    %5813 = vmatprep.subr.mxu0 0.0
    %5814 = vmatpush1.msra.mxu0 0.0
    %5815 = vmatprep.subr.mxu0 0.0
    %5816 = vmatpush1.msra.mxu0 0.0
    %5817 = vmatprep.subr.mxu0 0.0
    %5818 = vmatpush1.msra.mxu0 0.0
    %5819 = vmatprep.subr.mxu0 0.0
    %5820 = vmatpush1.msra.mxu0 0.0
    %5821 = vmatprep.subr.mxu0 0.0
    %5822 = vmatpush1.msra.mxu0 0.0
    %5823 = vmatprep.subr.mxu0 0.0
    %5824 = vmatpush1.msra.mxu0 0.0
    %5825 = vmatprep.subr.mxu0 0.0
    %5826 = vmatpush1.msra.mxu0 0.0
    %5827 = vmatprep.subr.mxu0 0.0
    %5828 = vmatpush1.msra.mxu0 0.0
    %5829 = vmatprep.subr.mxu0 0.0
    %5830 = vmatpush1.msra.mxu0 0.0
    %5831 = vmatprep.subr.mxu0 0.0
    %5832 = vmatpush1.msra.mxu0 0.0
    %5833 = vmatprep.mubr.f32.mxu0 0.0
    %5834 = vmatmul.mubr.f32.gmra.mrb[0].mxu0 %v5034
    %v5835 = vpop.f32.mrb[0].mxu0
    %v5836 = vadd.f32 %v5630, %v5835
    %v5837 = vpop.f32.mrb[0].mxu0
    %v5838 = vadd.f32 %v5632, %v5837
    %5839 = vdwg.mxu0
    %5840 = vmatprep.subr.mxu0 %v5708
    %5841 = vmatpush1.msra.mxu0 %v5707
    %5842 = vmatprep.subr.mxu0 %v5712
    %5843 = vmatpush1.msra.mxu0 %v5711
    %5844 = vmatprep.subr.mxu0 %v5716
    %5845 = vmatpush1.msra.mxu0 %v5715
    %5846 = vmatprep.subr.mxu0 %v5720
    %5847 = vmatpush1.msra.mxu0 %v5719
    %5848 = vmatprep.subr.mxu0 %v5724
    %5849 = vmatpush1.msra.mxu0 %v5723
    %5850 = vmatprep.subr.mxu0 %v5728
    %5851 = vmatpush1.msra.mxu0 %v5727
    %5852 = vmatprep.subr.mxu0 %v5732
    %5853 = vmatpush1.msra.mxu0 %v5731
    %5854 = vmatprep.subr.mxu0 %v5736
    %5855 = vmatpush1.msra.mxu0 %v5735
    %5856 = vmatprep.subr.mxu0 %v5740
    %5857 = vmatpush1.msra.mxu0 %v5739
    %5858 = vmatprep.subr.mxu0 %v5744
    %5859 = vmatpush1.msra.mxu0 %v5743
    %5860 = vmatprep.subr.mxu0 %v5748
    %5861 = vmatpush1.msra.mxu0 %v5747
    %5862 = vmatprep.subr.mxu0 %v5752
    %5863 = vmatpush1.msra.mxu0 %v5751
    %5864 = vmatprep.subr.mxu0 %v5756
    %5865 = vmatpush1.msra.mxu0 %v5755
    %5866 = vmatprep.subr.mxu0 %v5760
    %5867 = vmatpush1.msra.mxu0 %v5759
    %5868 = vmatprep.subr.mxu0 %v5764
    %5869 = vmatpush1.msra.mxu0 %v5763
    %5870 = vmatprep.subr.mxu0 %v5768
    %5871 = vmatpush1.msra.mxu0 %v5767
    %5872 = vmatprep.subr.mxu0 0.0
    %5873 = vmatpush1.msra.mxu0 0.0
    %5874 = vmatprep.subr.mxu0 0.0
    %5875 = vmatpush1.msra.mxu0 0.0
    %5876 = vmatprep.subr.mxu0 0.0
    %5877 = vmatpush1.msra.mxu0 0.0
    %5878 = vmatprep.subr.mxu0 0.0
    %5879 = vmatpush1.msra.mxu0 0.0
    %5880 = vmatprep.subr.mxu0 0.0
    %5881 = vmatpush1.msra.mxu0 0.0
    %5882 = vmatprep.subr.mxu0 0.0
    %5883 = vmatpush1.msra.mxu0 0.0
    %5884 = vmatprep.subr.mxu0 0.0
    %5885 = vmatpush1.msra.mxu0 0.0
    %5886 = vmatprep.subr.mxu0 0.0
    %5887 = vmatpush1.msra.mxu0 0.0
    %5888 = vmatprep.subr.mxu0 0.0
    %5889 = vmatpush1.msra.mxu0 0.0
    %5890 = vmatprep.subr.mxu0 0.0
    %5891 = vmatpush1.msra.mxu0 0.0
    %5892 = vmatprep.subr.mxu0 0.0
    %5893 = vmatpush1.msra.mxu0 0.0
    %5894 = vmatprep.subr.mxu0 0.0
    %5895 = vmatpush1.msra.mxu0 0.0
    %5896 = vmatprep.subr.mxu0 0.0
    %5897 = vmatpush1.msra.mxu0 0.0
    %5898 = vmatprep.subr.mxu0 0.0
    %5899 = vmatpush1.msra.mxu0 0.0
    %5900 = vmatprep.subr.mxu0 0.0
    %5901 = vmatpush1.msra.mxu0 0.0
    %5902 = vmatprep.subr.mxu0 0.0
    %5903 = vmatpush1.msra.mxu0 0.0
    %5904 = vmatprep.mubr.f32.mxu0 0.0
    %5905 = vmatmul.mubr.f32.gmra.mrb[0].mxu0 %v5034
    %v5906 = vpop.f32.mrb[0].mxu0
    %v5907 = vadd.f32 %v5701, %v5906
    %v5908 = vpop.f32.mrb[0].mxu0
    %v5909 = vadd.f32 %v5703, %v5908
    %5910 = vdwg.mxu0
    %v5911 = vld [vmem:[%s1217] sm:$0xf]
    %v5913 = vlaneseq
    %v5914 = vshrl.u32 %v5913, 7
    %v5915 = vsub.s32 0, %v5914
    %v5916 = vrot.slane %v5911, %v5915
    %v5917 = vlaneseq
    %v5918 = vshrl.u32 %v5917, 7
    %v5919 = vsub.s32 1, %v5918
    %v5920 = vrot.slane %v5911, %v5919
    %v5921 = vlaneseq
    %v5922 = vshrl.u32 %v5921, 7
    %v5923 = vsub.s32 2, %v5922
    %v5924 = vrot.slane %v5911, %v5923
    %v5925 = vlaneseq
    %v5926 = vshrl.u32 %v5925, 7
    %v5927 = vsub.s32 3, %v5926
    %v5928 = vrot.slane %v5911, %v5927
    %v5933 = vadd.f32 %v5836, %v5916
    %v5934 = vadd.f32 %v5838, %v5920
    %v5935 = vadd.f32 %v5907, %v5924
    %v5936 = vadd.f32 %v5909, %v5928
    %v5937 = vxor.u32 %v5933, 2147483648
    %v5938 = vxor.u32 %v5934, 2147483648
    %v5939 = vxor.u32 %v5935, 2147483648
    %v5940 = vmul.f32 %v5937, 1.442695
    %v5941 = vpow.pop %v5940
    %v5942 = vmul.f32 %v5938, 1.442695
    %v5943 = vpow.pop %v5942
    %v5944 = vmul.f32 %v5939, 1.442695
    %v5945 = vpow.pop %v5944
    %v5946 = vadd.f32 %v5941, 1.0
    %v5947 = vadd.f32 %v5943, 1.0
    %v5948 = vadd.f32 %v5945, 1.0
    %v5949 = vrcp.pop %v5946
    %v5950 = vmul.f32 1.0, %v5949
    %v5951 = vrcp.pop %v5947
    %v5952 = vmul.f32 1.0, %v5951
    %v5953 = vrcp.pop %v5948
    %v5954 = vmul.f32 1.0, %v5953
    %v5955 = vtanh.pop %v5936
    %v5956 = vmul.f32 %v5952, %v5494
    %v5957 = vmul.f32 %v5950, %v5955
    %v5958 = vadd.f32 %v5956, %v5957
    %v5959 = vtanh.pop %v5958
    %v5960 = vmul.f32 %v5954, %v5959
    %5961 = vst [vmem:[#allocation3 + $0x38] sm:$0xff] %v5960
    %v5962 = vld [vmem:[#allocation3] sm:$0xff]
    %v5963 = vld [vmem:[#allocation3 + $0x8] sm:$0xff]
    %v5964 = vld [vmem:[#allocation3 + $0x10] sm:$0xff]
    %v5965 = vld [vmem:[#allocation3 + $0x18] sm:$0xff]
    %v5966 = vld [vmem:[#allocation3 + $0x20] sm:$0xff]
    %v5967 = vld [vmem:[#allocation3 + $0x28] sm:$0xff]
    %v5968 = vld [vmem:[#allocation3 + $0x30] sm:$0xff]
    %v5969 = vld [vmem:[#allocation3 + $0x38] sm:$0xff]
    %v5970 = vld [vmem:[#allocation9] sm:$0xff]
    %v5971 = vld [vmem:[#allocation9 + $0x8] sm:$0xff]
    %v5972 = vld [vmem:[#allocation9 + $0x10] sm:$0xff]
    %v5973 = vld [vmem:[#allocation9 + $0x18] sm:$0xff]
    %v5974 = vld [vmem:[#allocation9 + $0x20] sm:$0xff]
    %v5975 = vld [vmem:[#allocation9 + $0x28] sm:$0xff]
    %v5976 = vld [vmem:[#allocation9 + $0x30] sm:$0xff]
    %v5977 = vld [vmem:[#allocation9 + $0x38] sm:$0xff]
    %v5978 = vld [vmem:[#allocation9 + $0x40] sm:$0xff]
    %v5979 = vld [vmem:[#allocation9 + $0x48] sm:$0xff]
    %v5980 = vld [vmem:[#allocation9 + $0x50] sm:$0xff]
    %v5981 = vld [vmem:[#allocation9 + $0x58] sm:$0xff]
    %v5982 = vld [vmem:[#allocation9 + $0x60] sm:$0xff]
    %v5983 = vld [vmem:[#allocation9 + $0x68] sm:$0xff]
    %v5984 = vld [vmem:[#allocation9 + $0x70] sm:$0xff]
    %v5985 = vld [vmem:[#allocation9 + $0x78] sm:$0xff]
    %v5986 = vld [vmem:[%s6] sm:$0x1]
    %v5988 = vlaneseq
    %v5989 = vshrl.u32 %v5988, 7
    %v5990 = vsub.s32 0, %v5989
    %v5991 = vrot.slane %v5986, %v5990
    %5993 = vmatprep.subr.mxu0 0.0
    %5994 = vmatpush1.msra.mxu0 %v5970
    %5995 = vmatprep.subr.mxu0 0.0
    %5996 = vmatpush1.msra.mxu0 %v5971
    %5997 = vmatprep.subr.mxu0 0.0
    %5998 = vmatpush1.msra.mxu0 %v5972
    %5999 = vmatprep.subr.mxu0 0.0
    %6000 = vmatpush1.msra.mxu0 %v5973
    %6001 = vmatprep.subr.mxu0 0.0
    %6002 = vmatpush1.msra.mxu0 %v5974
    %6003 = vmatprep.subr.mxu0 0.0
    %6004 = vmatpush1.msra.mxu0 %v5975
    %6005 = vmatprep.subr.mxu0 0.0
    %6006 = vmatpush1.msra.mxu0 %v5976
    %6007 = vmatprep.subr.mxu0 0.0
    %6008 = vmatpush1.msra.mxu0 %v5977
    %6009 = vmatprep.subr.mxu0 0.0
    %6010 = vmatpush1.msra.mxu0 %v5978
    %6011 = vmatprep.subr.mxu0 0.0
    %6012 = vmatpush1.msra.mxu0 %v5979
    %6013 = vmatprep.subr.mxu0 0.0
    %6014 = vmatpush1.msra.mxu0 %v5980
    %6015 = vmatprep.subr.mxu0 0.0
    %6016 = vmatpush1.msra.mxu0 %v5981
    %6017 = vmatprep.subr.mxu0 0.0
    %6018 = vmatpush1.msra.mxu0 %v5982
    %6019 = vmatprep.subr.mxu0 0.0
    %6020 = vmatpush1.msra.mxu0 %v5983
    %6021 = vmatprep.subr.mxu0 0.0
    %6022 = vmatpush1.msra.mxu0 %v5984
    %6023 = vmatprep.subr.mxu0 0.0
    %6024 = vmatpush1.msra.mxu0 %v5985
    %6025 = vmatprep.subr.mxu0 0.0
    %6026 = vmatpush1.msra.mxu0 0.0
    %6027 = vmatprep.subr.mxu0 0.0
    %6028 = vmatpush1.msra.mxu0 0.0
    %6029 = vmatprep.subr.mxu0 0.0
    %6030 = vmatpush1.msra.mxu0 0.0
    %6031 = vmatprep.subr.mxu0 0.0
    %6032 = vmatpush1.msra.mxu0 0.0
    %6033 = vmatprep.subr.mxu0 0.0
    %6034 = vmatpush1.msra.mxu0 0.0
    %6035 = vmatprep.subr.mxu0 0.0
    %6036 = vmatpush1.msra.mxu0 0.0
    %6037 = vmatprep.subr.mxu0 0.0
    %6038 = vmatpush1.msra.mxu0 0.0
    %6039 = vmatprep.subr.mxu0 0.0
    %6040 = vmatpush1.msra.mxu0 0.0
    %6041 = vmatprep.subr.mxu0 0.0
    %6042 = vmatpush1.msra.mxu0 0.0
    %6043 = vmatprep.subr.mxu0 0.0
    %6044 = vmatpush1.msra.mxu0 0.0
    %6045 = vmatprep.subr.mxu0 0.0
    %6046 = vmatpush1.msra.mxu0 0.0
    %6047 = vmatprep.subr.mxu0 0.0
    %6048 = vmatpush1.msra.mxu0 0.0
    %6049 = vmatprep.subr.mxu0 0.0
    %6050 = vmatpush1.msra.mxu0 0.0
    %6051 = vmatprep.subr.mxu0 0.0
    %6052 = vmatpush1.msra.mxu0 0.0
    %6053 = vmatprep.subr.mxu0 0.0
    %6054 = vmatpush1.msra.mxu0 0.0
    %6055 = vmatprep.subr.mxu0 0.0
    %6056 = vmatpush1.msra.mxu0 0.0
    %6057 = vmatprep.mubr.f32.mxu0 0.0
    %6058 = vmatmul.mubr.f32.gmra.mrb[0].mxu0 %v5962
    %v6059 = vpop.f32.mrb[0].mxu0
    %v6060 = vadd.f32 %v5991, %v6059
    %v6061 = vpop.f32.mrb[0].mxu0
    %6062 = vmatprep.mubr.f32.mxu0 0.0
    %6063 = vmatmul.mubr.f32.gmra.mrb[0].mxu0 %v5963
    %v6064 = vpop.f32.mrb[0].mxu0
    %v6065 = vadd.f32 %v5991, %v6064
    %v6066 = vpop.f32.mrb[0].mxu0
    %6067 = vmatprep.mubr.f32.mxu0 0.0
    %6068 = vmatmul.mubr.f32.gmra.mrb[0].mxu0 %v5964
    %v6069 = vpop.f32.mrb[0].mxu0
    %v6070 = vadd.f32 %v5991, %v6069
    %v6071 = vpop.f32.mrb[0].mxu0
    %6072 = vmatprep.mubr.f32.mxu0 0.0
    %6073 = vmatmul.mubr.f32.gmra.mrb[0].mxu0 %v5965
    %v6074 = vpop.f32.mrb[0].mxu0
    %v6075 = vadd.f32 %v5991, %v6074
    %v6076 = vpop.f32.mrb[0].mxu0
    %6077 = vmatprep.mubr.f32.mxu0 0.0
    %6078 = vmatmul.mubr.f32.gmra.mrb[0].mxu0 %v5966
    %v6079 = vpop.f32.mrb[0].mxu0
    %v6080 = vadd.f32 %v5991, %v6079
    %v6081 = vpop.f32.mrb[0].mxu0
    %6082 = vmatprep.mubr.f32.mxu0 0.0
    %6083 = vmatmul.mubr.f32.gmra.mrb[0].mxu0 %v5967
    %v6084 = vpop.f32.mrb[0].mxu0
    %v6085 = vadd.f32 %v5991, %v6084
    %v6086 = vpop.f32.mrb[0].mxu0
    %6087 = vmatprep.mubr.f32.mxu0 0.0
    %6088 = vmatmul.mubr.f32.gmra.mrb[0].mxu0 %v5968
    %v6089 = vpop.f32.mrb[0].mxu0
    %v6090 = vadd.f32 %v5991, %v6089
    %v6091 = vpop.f32.mrb[0].mxu0
    %6092 = vmatprep.mubr.f32.mxu0 0.0
    %6093 = vmatmul.mubr.f32.gmra.mrb[0].mxu0 %v5969
    %v6094 = vpop.f32.mrb[0].mxu0
    %v6095 = vadd.f32 %v5991, %v6094
    %v6096 = vpop.f32.mrb[0].mxu0
    %6097 = vdwg.mxu0
    %v6098 = vmax.f32 %v6060, 0.0
    %v6099 = vmax.f32 %v6065, 0.0
    %v6100 = vmax.f32 %v6070, 0.0
    %v6101 = vmax.f32 %v6075, 0.0
    %v6102 = vmax.f32 %v6080, 0.0
    %v6103 = vmax.f32 %v6085, 0.0
    %v6104 = vmax.f32 %v6090, 0.0
    %v6105 = vmax.f32 %v6095, 0.0
    %6106 = vst [vmem:[#allocation10] sm:$0xff] %v6098
    %6107 = vst [vmem:[#allocation10 + $0x8] sm:$0xff] %v6099
    %6108 = vst [vmem:[#allocation10 + $0x10] sm:$0xff] %v6100
    %6109 = vst [vmem:[#allocation10 + $0x18] sm:$0xff] %v6101
    %6110 = vst [vmem:[#allocation10 + $0x20] sm:$0xff] %v6102
    %6111 = vst [vmem:[#allocation10 + $0x28] sm:$0xff] %v6103
    %6112 = vst [vmem:[#allocation10 + $0x30] sm:$0xff] %v6104
    %6113 = vst [vmem:[#allocation10 + $0x38] sm:$0xff] %v6105
    // Predicated region
    $region42: #{tpu_custom_call.1} parent=1 // pred_check
      _
    $region43: #{tpu_custom_call.1} parent=1 // pred_check_branch
      %6115 = sbr.rel (0) target = $region45
    $region44: #{tpu_custom_call.1} parent=1 // pred_region
      %s6117 = ssub.s32 1024, 1024
      %6118 = vsyncadd [#allocation6], %s6117
      %s6119 = sshll.u32 [#allocation10], 4
      %s6120 = int_to_ptr.vmem [resolvable:$true] %s6119
      %6125 = dma.vmem_to_hbm [thread:$0]  %s6120, 1024, %s7, [#allocation6], 128, 128, 8
    $region45: #{tpu_custom_call.1} parent=1 // pred_fallthru
      _
    // Predicated region
    $region46: #{tpu_custom_call.1} parent=1 // pred_check
      _
    $region47: #{tpu_custom_call.1} parent=1 // pred_check_branch
      %6127 = sbr.rel (0) target = $region49
    $region48: #{tpu_custom_call.1} parent=1 // pred_region
      %6128 = dma.done [#allocation6], 1024
    $region49: #{tpu_custom_call.1} parent=1 // pred_fallthru
      _
    %6129 = vsyncpa [#allocation5], 1
    %6130 = vsyncpa [#allocation8], 1
    %6131 = vsyncpa [#allocation6], 1

</llo_original>
